<compile_context>
chip_gen: v6e
topology: v6e:2x2x1
jax: 0.10.0
libtpu: 0.0.40
codegen_flags: <defaults>
</compile_context>

<pallas_src>
import jax
import jax.numpy as jnp
from jax.experimental import pallas as pl
from jax.experimental.pallas import tpu as pltpu

D = 178            # sequence length
L = D
LR = 192           # L rounded up to a multiple of 16 sublanes (14 zero tail rows)
K_CLASSES = 5      # number of classes
CPAD = 128         # lane-dense padded class dimension
NFM = 64           # n_feature_maps
BN_EPS = 1e-5


# ---------------------------------------------------------------------------
# Fused kernel: one program = Bt batch samples, everything in VMEM
# ---------------------------------------------------------------------------
def _resnet_kernel(x_ref,
                   wA1, b11, bs1, w12, b12, w13, b13,
                   wA2, w21r, b21, bs2, w22c, b22, w23c, b23,
                   wA3, w31c, b31, bs3, w32c, b32, w33c, b33,
                   wfc, bfc,
                   o_ref):
    M = x_ref.shape[0]            # Bt * LR   (flat rows, multiple of 8)
    Bt = M // LR
    C1 = NFM                      # 64
    C2 = 2 * NFM                  # 128

    # Row-validity masks, hoisted & pre-broadcast once (broadcasts aren't CSE'd).
    # Tail rows are re-zeroed after every layer so the circular rolls below give
    # exact 'same' zero padding, including across sample boundaries.
    rowv = jax.lax.broadcasted_iota(jnp.int32, (Bt, LR, 1), 1)
    m1 = (rowv < L).astype(jnp.float32)                        # (Bt, LR, 1)
    mask64 = jnp.broadcast_to(m1, (Bt, LR, C1)).reshape(M, C1)
    mask128 = jnp.broadcast_to(m1, (Bt, LR, C2)).reshape(M, C2)

    def tap(h, d):
        # h[(i + d) mod M]; valid rows never read another sample's data because
        # LR - L = 14 >= 2 * max|d| and every layer keeps the tail rows at zero.
        return h if d == 0 else pltpu.roll(h, (-d) % M, axis=0)

    def conv_taps(h, w_ref, b_ref, mask):
        # Per-tap MXU accumulation (used when Cin == 64: lane concat not aligned).
        ksize = w_ref.shape[0]
        p = (ksize - 1) // 2
        acc = jnp.zeros((M, w_ref.shape[2]), jnp.float32)
        for k in range(ksize):                                  # static unroll
            xk = tap(h, k - p).astype(jnp.bfloat16)
            acc = acc + jnp.dot(xk, w_ref[k], preferred_element_type=jnp.float32)
        return jnp.maximum(acc + b_ref[...], 0.0) * mask

    def conv_im2col(h, wc_ref, b_ref, ksize, mask):
        # Cin == 128: single deep-K matmul over lane-concatenated taps.
        p = (ksize - 1) // 2
        cols = [tap(h, k - p).astype(jnp.bfloat16) for k in range(ksize)]
        xcat = jnp.concatenate(cols, axis=-1)                   # (M, ksize*128)
        y = jnp.dot(xcat, wc_ref[...], preferred_element_type=jnp.float32)
        return jnp.maximum(y + b_ref[...], 0.0) * mask

    # ---- block 1 (conv1_1 & shortcut1 fused into one (M,8)@(8,128) matmul) ----
    x7 = x_ref[...]                                             # (M, 8) bf16
    t = jnp.dot(x7, wA1[...], preferred_element_type=jnp.float32)   # (M, 128)
    h = jnp.maximum(t[:, :C1] + b11[...], 0.0) * mask64
    s = (t[:, C1:] + bs1[...]) * mask64
    h = conv_taps(h, w12, b12, mask64)
    h = conv_taps(h, w13, b13, mask64)
    out1 = jnp.maximum(h + s, 0.0)                              # (M, 64), tail zero

    # ---- block 2 (conv2_1 center tap & shortcut2 fused to N=256) ----
    o1b = out1.astype(jnp.bfloat16)
    t = jnp.dot(o1b, wA2[...], preferred_element_type=jnp.float32)  # (M, 256)
    acc = t[:, :C2]
    for j, k in enumerate((0, 1, 2, 4, 5, 6)):                  # non-center taps
        xk = tap(out1, k - 3).astype(jnp.bfloat16)
        acc = acc + jnp.dot(xk, w21r[j], preferred_element_type=jnp.float32)
    h = jnp.maximum(acc + b21[...], 0.0) * mask128
    s = (t[:, C2:] + bs2[...]) * mask128
    h = conv_im2col(h, w22c, b22, 5, mask128)
    h = conv_im2col(h, w23c, b23, 3, mask128)
    out2 = jnp.maximum(h + s, 0.0)                              # (M, 128)

    # ---- block 3 (conv3_1 center tap & shortcut3 fused; other taps im2col) ----
    o2b = out2.astype(jnp.bfloat16)
    t = jnp.dot(o2b, wA3[...], preferred_element_type=jnp.float32)  # (M, 256)
    cols = [tap(out2, k - 3).astype(jnp.bfloat16) for k in (0, 1, 2, 4, 5, 6)]
    xcat = jnp.concatenate(cols, axis=-1)                       # (M, 768)
    acc = t[:, :C2] + jnp.dot(xcat, w31c[...], preferred_element_type=jnp.float32)
    h = jnp.maximum(acc + b31[...], 0.0) * mask128
    s = (t[:, C2:] + bs3[...]) * mask128
    h = conv_im2col(h, w32c, b32, 5, mask128)
    h = conv_im2col(h, w33c, b33, 3, mask128)
    out3 = jnp.maximum(h + s, 0.0)                              # (M, 128)

    # ---- head: GAP over the 178 valid rows + fc + softmax (padded classes) ----
    gap = jnp.sum(out3.reshape(Bt, LR, C2), axis=1) * (1.0 / L)      # (Bt, 128)
    logits = jnp.dot(gap, wfc[...], preferred_element_type=jnp.float32) + bfc[...]
    mx = jnp.max(logits, axis=-1, keepdims=True)
    e = jnp.exp(logits - mx)           # padded classes have bias -1e30 -> exp == 0
    probs = e / jnp.sum(e, axis=-1, keepdims=True)
    o_ref[0] = probs                                            # (Bt, 128) lane-dense


# ---------------------------------------------------------------------------
# Host-side wrappers
# ---------------------------------------------------------------------------
def _build_input_taps(x, b_pad):
    """x: (B, L) -> (b_pad*LR, 8) bf16: lane k holds x shifted by (k-3); zero pad."""
    b = x.shape[0]
    if b_pad > b:
        x = jnp.concatenate([x, jnp.zeros((b_pad - b, L), x.dtype)], axis=0)
    xp = jnp.pad(x, ((0, 0), (3, 3)))                           # (b_pad, L + 6)
    cols = [xp[:, k:k + L] for k in range(7)]                   # each (b_pad, L)
    x7 = jnp.stack(cols, axis=-1)                               # (b_pad, L, 7)
    x7 = jnp.pad(x7, ((0, 0), (0, LR - L), (0, 1)))             # (b_pad, LR, 8)
    return x7.reshape(b_pad * LR, 8).astype(jnp.bfloat16)


def resnet_forward(x, params, block_batch=None):
    # x: (B, D) (or anything reshapeable to it) == PyTorch x.reshape(-1, 1, D)
    x = jnp.asarray(x, jnp.float32).reshape(-1, D)
    B = x.shape[0]
    if block_batch is None:
        # >= 2 grid steps when B >= 2 (keeps both v7x TensorCores busy), Bt <= 8.
        Bt = max(1, min(8, B // 2)) if B >= 2 else 1
    else:
        Bt = block_batch
    G = -(-B // Bt)
    B_pad = G * Bt
    x7 = _build_input_taps(x, B_pad)                            # (B_pad*LR, 8) bf16

    # Input is pipelined per grid step; weights/biases live whole-array in VMEM.
    in_specs = [pl.BlockSpec((Bt * LR, 8), lambda i: (i, 0))]
    in_specs += [pl.BlockSpec(memory_space=pltpu.MemorySpace.VMEM)] * len(params)

    out = pl.pallas_call(
        _resnet_kernel,
        out_shape=jax.ShapeDtypeStruct((G, Bt, CPAD), jnp.float32),
        grid=(G,),
        in_specs=in_specs,
        out_specs=pl.BlockSpec((1, Bt, CPAD), lambda i: (i, 0, 0)),
        compiler_params=pltpu.CompilerParams(
            dimension_semantics=("parallel",),
            vmem_limit_bytes=32 * 1024 * 1024,
        ),
    )(x7, *params)
    return out.reshape(G * Bt, CPAD)[:B, :K_CLASSES]


# ---------------------------------------------------------------------------
# Deterministic parameter construction (conv + inference-mode BN folded)
# ---------------------------------------------------------------------------
def init_conv_bn(key, cin, cout, ksize):
    kw, kb, kg, kbeta, km, kv = jax.random.split(key, 6)
    w = 0.1 * jax.random.normal(kw, (ksize, cin, cout), jnp.float32)
    b_conv = 0.1 * jax.random.normal(kb, (cout,), jnp.float32)
    gamma = 1.0 + 0.1 * jax.random.normal(kg, (cout,), jnp.float32)
    beta = 0.1 * jax.random.normal(kbeta, (cout,), jnp.float32)
    run_mean = 0.1 * jax.random.normal(km, (cout,), jnp.float32)
    run_var = 1.0 + 0.1 * jnp.abs(jax.random.normal(kv, (cout,), jnp.float32))
    scale = gamma / jnp.sqrt(run_var + BN_EPS)
    w_folded = w * scale[None, None, :]                          # BN scale folded
    bias = (beta - run_mean * scale + scale * b_conv).reshape(1, cout)
    return w_folded, bias


def _expand_taps_to_8(w):
    """(K, 1, Cout) conv-on-raw-input weight -> (8, Cout) matrix over input taps."""
    ksize, _, cout = w.shape
    p = (ksize - 1) // 2
    mat = jnp.zeros((8, cout), jnp.float32)
    return mat.at[3 - p:3 - p + ksize, :].set(w[:, 0, :])


def init_params(key):
    keys = jax.random.split(key, 14)
    w11, b11 = init_conv_bn(keys[0], 1, NFM, 7)
    w12, b12 = init_conv_bn(keys[1], NFM, NFM, 5)
    w13, b13 = init_conv_bn(keys[2], NFM, NFM, 3)
    ws1, bs1 = init_conv_bn(keys[3], 1, NFM, 1)
    w21, b21 = init_conv_bn(keys[4], NFM, 2 * NFM, 7)
    w22, b22 = init_conv_bn(keys[5], 2 * NFM, 2 * NFM, 5)
    w23, b23 = init_conv_bn(keys[6], 2 * NFM, 2 * NFM, 3)
    ws2, bs2 = init_conv_bn(keys[7], NFM, 2 * NFM, 1)
    w31, b31 = init_conv_bn(keys[8], 2 * NFM, 2 * NFM, 7)
    w32, b32 = init_conv_bn(keys[9], 2 * NFM, 2 * NFM, 5)
    w33, b33 = init_conv_bn(keys[10], 2 * NFM, 2 * NFM, 3)
    ws3, bs3 = init_conv_bn(keys[11], 2 * NFM, 2 * NFM, 1)
    fc_w = 0.1 * jax.random.normal(keys[12], (2 * NFM, K_CLASSES), jnp.float32)
    fc_b = 0.1 * jax.random.normal(keys[13], (K_CLASSES,), jnp.float32)

    bf = lambda a: a.astype(jnp.bfloat16)
    side = jnp.array([0, 1, 2, 4, 5, 6])                 # non-center tap indices

    # Shortcut weights fused (along Cout) with the center tap of each block's
    # first conv; Cin=128 conv weights host-reshaped to K-major im2col matrices.
    wA1 = jnp.concatenate([_expand_taps_to_8(w11), _expand_taps_to_8(ws1)], axis=1)
    wA2 = jnp.concatenate([w21[3], ws2[0]], axis=1)      # (64, 256)
    wA3 = jnp.concatenate([w31[3], ws3[0]], axis=1)      # (128, 256)

    params = [
        bf(wA1), b11, bs1,
        bf(w12), b12, bf(w13), b13,
        bf(wA2), bf(w21[side]), b21, bs2,
        bf(w22.reshape(5 * 2 * NFM, 2 * NFM)), b22,
        bf(w23.reshape(3 * 2 * NFM, 2 * NFM)), b23,
        bf(wA3), bf(w31[side].reshape(6 * 2 * NFM, 2 * NFM)), b31, bs3,
        bf(w32.reshape(5 * 2 * NFM, 2 * NFM)), b32,
        bf(w33.reshape(3 * 2 * NFM, 2 * NFM)), b33,
        jnp.zeros((2 * NFM, CPAD), jnp.float32).at[:, :K_CLASSES].set(fc_w),
        jnp.full((1, CPAD), -1e30, jnp.float32).at[0, :K_CLASSES].set(fc_b),
    ]
    return params


if __name__ == "__main__":
    key = jax.random.PRNGKey(0)
    k_params, k_x = jax.random.split(key)
    params = init_params(k_params)
    x = jax.random.normal(k_x, (2, D), jnp.float32)      # batch=2 samples of length D

    fwd = jax.jit(resnet_forward)
    probs = fwd(x, params)
    jax.block_until_ready(probs)

    assert probs.shape == (2, K_CLASSES)
    assert bool(jnp.all(jnp.isfinite(probs)))
    assert bool(jnp.allclose(jnp.sum(probs, axis=1), 1.0, atol=1e-4))
    print("KERNEL_OK")
</pallas_src>

<mosaic_0001>
module attributes {stable_mosaic.version = 11 : i64} {
  func.func @_resnet_kernel(%arg0: i32, %arg1: memref<192x8xbf16, #tpu.memory_space<vmem>>, %arg2: memref<8x128xbf16, #tpu.memory_space<vmem>>, %arg3: memref<1x64xf32, #tpu.memory_space<vmem>>, %arg4: memref<1x64xf32, #tpu.memory_space<vmem>>, %arg5: memref<5x64x64xbf16, #tpu.memory_space<vmem>>, %arg6: memref<1x64xf32, #tpu.memory_space<vmem>>, %arg7: memref<3x64x64xbf16, #tpu.memory_space<vmem>>, %arg8: memref<1x64xf32, #tpu.memory_space<vmem>>, %arg9: memref<64x256xbf16, #tpu.memory_space<vmem>>, %arg10: memref<6x64x128xbf16, #tpu.memory_space<vmem>>, %arg11: memref<1x128xf32, #tpu.memory_space<vmem>>, %arg12: memref<1x128xf32, #tpu.memory_space<vmem>>, %arg13: memref<640x128xbf16, #tpu.memory_space<vmem>>, %arg14: memref<1x128xf32, #tpu.memory_space<vmem>>, %arg15: memref<384x128xbf16, #tpu.memory_space<vmem>>, %arg16: memref<1x128xf32, #tpu.memory_space<vmem>>, %arg17: memref<128x256xbf16, #tpu.memory_space<vmem>>, %arg18: memref<768x128xbf16, #tpu.memory_space<vmem>>, %arg19: memref<1x128xf32, #tpu.memory_space<vmem>>, %arg20: memref<1x128xf32, #tpu.memory_space<vmem>>, %arg21: memref<640x128xbf16, #tpu.memory_space<vmem>>, %arg22: memref<1x128xf32, #tpu.memory_space<vmem>>, %arg23: memref<384x128xbf16, #tpu.memory_space<vmem>>, %arg24: memref<1x128xf32, #tpu.memory_space<vmem>>, %arg25: memref<128x128xf32, #tpu.memory_space<vmem>>, %arg26: memref<1x128xf32, #tpu.memory_space<vmem>>, %arg27: memref<1x1x128xf32, #tpu.memory_space<vmem>>) attributes {dimension_semantics = [#tpu.dimension_semantics<parallel>], iteration_bounds = array<i64: 2>, scalar_prefetch = 0 : i64, scratch_operands = 0 : i64, tpu.core_type = #tpu.core_type<tc>, window_params = [{transform_indices = @transform_0, window_bounds = array<i64: 192, 8>}, {pipeline_mode = #tpu.pipeline_mode<synchronous>, transform_indices = @transform_1, window_bounds = array<i64: 8, 128>}, {pipeline_mode = #tpu.pipeline_mode<synchronous>, transform_indices = @transform_2, window_bounds = array<i64: 1, 64>}, {pipeline_mode = #tpu.pipeline_mode<synchronous>, transform_indices = @transform_3, window_bounds = array<i64: 1, 64>}, {pipeline_mode = #tpu.pipeline_mode<synchronous>, transform_indices = @transform_4, window_bounds = array<i64: 5, 64, 64>}, {pipeline_mode = #tpu.pipeline_mode<synchronous>, transform_indices = @transform_5, window_bounds = array<i64: 1, 64>}, {pipeline_mode = #tpu.pipeline_mode<synchronous>, transform_indices = @transform_6, window_bounds = array<i64: 3, 64, 64>}, {pipeline_mode = #tpu.pipeline_mode<synchronous>, transform_indices = @transform_7, window_bounds = array<i64: 1, 64>}, {pipeline_mode = #tpu.pipeline_mode<synchronous>, transform_indices = @transform_8, window_bounds = array<i64: 64, 256>}, {pipeline_mode = #tpu.pipeline_mode<synchronous>, transform_indices = @transform_9, window_bounds = array<i64: 6, 64, 128>}, {pipeline_mode = #tpu.pipeline_mode<synchronous>, transform_indices = @transform_10, window_bounds = array<i64: 1, 128>}, {pipeline_mode = #tpu.pipeline_mode<synchronous>, transform_indices = @transform_11, window_bounds = array<i64: 1, 128>}, {pipeline_mode = #tpu.pipeline_mode<synchronous>, transform_indices = @transform_12, window_bounds = array<i64: 640, 128>}, {pipeline_mode = #tpu.pipeline_mode<synchronous>, transform_indices = @transform_13, window_bounds = array<i64: 1, 128>}, {pipeline_mode = #tpu.pipeline_mode<synchronous>, transform_indices = @transform_14, window_bounds = array<i64: 384, 128>}, {pipeline_mode = #tpu.pipeline_mode<synchronous>, transform_indices = @transform_15, window_bounds = array<i64: 1, 128>}, {pipeline_mode = #tpu.pipeline_mode<synchronous>, transform_indices = @transform_16, window_bounds = array<i64: 128, 256>}, {pipeline_mode = #tpu.pipeline_mode<synchronous>, transform_indices = @transform_17, window_bounds = array<i64: 768, 128>}, {pipeline_mode = #tpu.pipeline_mode<synchronous>, transform_indices = @transform_18, window_bounds = array<i64: 1, 128>}, {pipeline_mode = #tpu.pipeline_mode<synchronous>, transform_indices = @transform_19, window_bounds = array<i64: 1, 128>}, {pipeline_mode = #tpu.pipeline_mode<synchronous>, transform_indices = @transform_20, window_bounds = array<i64: 640, 128>}, {pipeline_mode = #tpu.pipeline_mode<synchronous>, transform_indices = @transform_21, window_bounds = array<i64: 1, 128>}, {pipeline_mode = #tpu.pipeline_mode<synchronous>, transform_indices = @transform_22, window_bounds = array<i64: 384, 128>}, {pipeline_mode = #tpu.pipeline_mode<synchronous>, transform_indices = @transform_23, window_bounds = array<i64: 1, 128>}, {pipeline_mode = #tpu.pipeline_mode<synchronous>, transform_indices = @transform_24, window_bounds = array<i64: 128, 128>}, {pipeline_mode = #tpu.pipeline_mode<synchronous>, transform_indices = @transform_25, window_bounds = array<i64: 1, 128>}, {transform_indices = @transform_26, window_bounds = array<i64: 1, 1, 128>}]} {
    %0 = tpu.iota {dimensions = array<i32: 1>} : vector<1x192x1xi32>
    %c178_i32 = arith.constant 178 : i32
    %1 = vector.broadcast %c178_i32 : i32 to vector<1x192x1xi32>
    %2 = arith.cmpi slt, %0, %1 : vector<1x192x1xi32>
    %3 = arith.extui %2 : vector<1x192x1xi1> to vector<1x192x1xi32>
    %4 = arith.sitofp %3 : vector<1x192x1xi32> to vector<1x192x1xf32>
    %5 = vector.shape_cast %4 : vector<1x192x1xf32> to vector<1x192x1xf32>
    %6 = vector.broadcast %5 : vector<1x192x1xf32> to vector<1x192x64xf32>
    %7 = vector.shape_cast %6 : vector<1x192x64xf32> to vector<192x64xf32>
    %8 = vector.shape_cast %4 : vector<1x192x1xf32> to vector<1x192x1xf32>
    %9 = vector.broadcast %8 : vector<1x192x1xf32> to vector<1x192x128xf32>
    %10 = vector.shape_cast %9 : vector<1x192x128xf32> to vector<192x128xf32>
    %c0 = arith.constant 0 : index
    %c0_0 = arith.constant 0 : index
    %11 = vector.load %arg1[%c0, %c0_0] : memref<192x8xbf16, #tpu.memory_space<vmem>>, vector<192x8xbf16>
    %c0_1 = arith.constant 0 : index
    %c0_2 = arith.constant 0 : index
    %12 = vector.load %arg2[%c0_1, %c0_2] : memref<8x128xbf16, #tpu.memory_space<vmem>>, vector<8x128xbf16>
    %cst = arith.constant dense<0.000000e+00> : vector<192x128xf32>
    %13 = tpu.matmul %11, %12, %cst {dimension_numbers = #tpu.dot_dimension_numbers<[1], [0], [0], [1], [0, 0, 1, 1], [], []>} : vector<192x8xbf16>, vector<8x128xbf16>, vector<192x128xf32> -> vector<192x128xf32>
    %14 = vector.extract_strided_slice %13 {offsets = [0, 0], sizes = [192, 64], strides = [1, 1]} : vector<192x128xf32> to vector<192x64xf32>
    %c0_3 = arith.constant 0 : index
    %c0_4 = arith.constant 0 : index
    %15 = vector.load %arg3[%c0_3, %c0_4] : memref<1x64xf32, #tpu.memory_space<vmem>>, vector<1x64xf32>
    %16 = vector.broadcast %15 : vector<1x64xf32> to vector<192x64xf32>
    %17 = arith.addf %14, %16 : vector<192x64xf32>
    %cst_5 = arith.constant 0.000000e+00 : f32
    %18 = vector.broadcast %cst_5 : f32 to vector<192x64xf32>
    %19 = arith.maximumf %17, %18 : vector<192x64xf32>
    %20 = arith.mulf %19, %7 : vector<192x64xf32>
    %21 = vector.extract_strided_slice %13 {offsets = [0, 64], sizes = [192, 64], strides = [1, 1]} : vector<192x128xf32> to vector<192x64xf32>
    %c0_6 = arith.constant 0 : index
    %c0_7 = arith.constant 0 : index
    %22 = vector.load %arg4[%c0_6, %c0_7] : memref<1x64xf32, #tpu.memory_space<vmem>>, vector<1x64xf32>
    %23 = vector.broadcast %22 : vector<1x64xf32> to vector<192x64xf32>
    %24 = arith.addf %21, %23 : vector<192x64xf32>
    %25 = arith.mulf %24, %7 : vector<192x64xf32>
    %cst_8 = arith.constant 0.000000e+00 : f32
    %26 = vector.broadcast %cst_8 : f32 to vector<192x64xf32>
    %c2_i32 = arith.constant 2 : i32
    %27 = tpu.dynamic_rotate %20 by %c2_i32 dim 0 : vector<192x64xf32>, i32 -> vector<192x64xf32>
    %28 = arith.truncf %27 : vector<192x64xf32> to vector<192x64xbf16>
    %c0_9 = arith.constant 0 : index
    %c0_10 = arith.constant 0 : index
    %c0_11 = arith.constant 0 : index
    %29 = vector.load %arg5[%c0_9, %c0_10, %c0_11] : memref<5x64x64xbf16, #tpu.memory_space<vmem>>, vector<1x64x64xbf16>
    %30 = vector.shape_cast %29 : vector<1x64x64xbf16> to vector<64x64xbf16>
    %cst_12 = arith.constant dense<0.000000e+00> : vector<192x64xf32>
    %31 = tpu.matmul %28, %30, %cst_12 {dimension_numbers = #tpu.dot_dimension_numbers<[1], [0], [0], [1], [0, 0, 1, 1], [], []>} : vector<192x64xbf16>, vector<64x64xbf16>, vector<192x64xf32> -> vector<192x64xf32>
    %32 = arith.addf %26, %31 : vector<192x64xf32>
    %c1_i32 = arith.constant 1 : i32
    %33 = tpu.dynamic_rotate %20 by %c1_i32 dim 0 : vector<192x64xf32>, i32 -> vector<192x64xf32>
    %34 = arith.truncf %33 : vector<192x64xf32> to vector<192x64xbf16>
    %c1 = arith.constant 1 : index
    %c0_13 = arith.constant 0 : index
    %c0_14 = arith.constant 0 : index
    %35 = vector.load %arg5[%c1, %c0_13, %c0_14] : memref<5x64x64xbf16, #tpu.memory_space<vmem>>, vector<1x64x64xbf16>
    %36 = vector.shape_cast %35 : vector<1x64x64xbf16> to vector<64x64xbf16>
    %cst_15 = arith.constant dense<0.000000e+00> : vector<192x64xf32>
    %37 = tpu.matmul %34, %36, %cst_15 {dimension_numbers = #tpu.dot_dimension_numbers<[1], [0], [0], [1], [0, 0, 1, 1], [], []>} : vector<192x64xbf16>, vector<64x64xbf16>, vector<192x64xf32> -> vector<192x64xf32>
    %38 = arith.addf %32, %37 : vector<192x64xf32>
    %39 = arith.truncf %20 : vector<192x64xf32> to vector<192x64xbf16>
    %c2 = arith.constant 2 : index
    %c0_16 = arith.constant 0 : index
    %c0_17 = arith.constant 0 : index
    %40 = vector.load %arg5[%c2, %c0_16, %c0_17] : memref<5x64x64xbf16, #tpu.memory_space<vmem>>, vector<1x64x64xbf16>
    %41 = vector.shape_cast %40 : vector<1x64x64xbf16> to vector<64x64xbf16>
    %cst_18 = arith.constant dense<0.000000e+00> : vector<192x64xf32>
    %42 = tpu.matmul %39, %41, %cst_18 {dimension_numbers = #tpu.dot_dimension_numbers<[1], [0], [0], [1], [0, 0, 1, 1], [], []>} : vector<192x64xbf16>, vector<64x64xbf16>, vector<192x64xf32> -> vector<192x64xf32>
    %43 = arith.addf %38, %42 : vector<192x64xf32>
    %c191_i32 = arith.constant 191 : i32
    %44 = tpu.dynamic_rotate %20 by %c191_i32 dim 0 : vector<192x64xf32>, i32 -> vector<192x64xf32>
    %45 = arith.truncf %44 : vector<192x64xf32> to vector<192x64xbf16>
    %c3 = arith.constant 3 : index
    %c0_19 = arith.constant 0 : index
    %c0_20 = arith.constant 0 : index
    %46 = vector.load %arg5[%c3, %c0_19, %c0_20] : memref<5x64x64xbf16, #tpu.memory_space<vmem>>, vector<1x64x64xbf16>
    %47 = vector.shape_cast %46 : vector<1x64x64xbf16> to vector<64x64xbf16>
    %cst_21 = arith.constant dense<0.000000e+00> : vector<192x64xf32>
    %48 = tpu.matmul %45, %47, %cst_21 {dimension_numbers = #tpu.dot_dimension_numbers<[1], [0], [0], [1], [0, 0, 1, 1], [], []>} : vector<192x64xbf16>, vector<64x64xbf16>, vector<192x64xf32> -> vector<192x64xf32>
    %49 = arith.addf %43, %48 : vector<192x64xf32>
    %c190_i32 = arith.constant 190 : i32
    %50 = tpu.dynamic_rotate %20 by %c190_i32 dim 0 : vector<192x64xf32>, i32 -> vector<192x64xf32>
    %51 = arith.truncf %50 : vector<192x64xf32> to vector<192x64xbf16>
    %c4 = arith.constant 4 : index
    %c0_22 = arith.constant 0 : index
    %c0_23 = arith.constant 0 : index
    %52 = vector.load %arg5[%c4, %c0_22, %c0_23] : memref<5x64x64xbf16, #tpu.memory_space<vmem>>, vector<1x64x64xbf16>
    %53 = vector.shape_cast %52 : vector<1x64x64xbf16> to vector<64x64xbf16>
    %cst_24 = arith.constant dense<0.000000e+00> : vector<192x64xf32>
    %54 = tpu.matmul %51, %53, %cst_24 {dimension_numbers = #tpu.dot_dimension_numbers<[1], [0], [0], [1], [0, 0, 1, 1], [], []>} : vector<192x64xbf16>, vector<64x64xbf16>, vector<192x64xf32> -> vector<192x64xf32>
    %55 = arith.addf %49, %54 : vector<192x64xf32>
    %c0_25 = arith.constant 0 : index
    %c0_26 = arith.constant 0 : index
    %56 = vector.load %arg6[%c0_25, %c0_26] : memref<1x64xf32, #tpu.memory_space<vmem>>, vector<1x64xf32>
    %57 = vector.broadcast %56 : vector<1x64xf32> to vector<192x64xf32>
    %58 = arith.addf %55, %57 : vector<192x64xf32>
    %cst_27 = arith.constant 0.000000e+00 : f32
    %59 = vector.broadcast %cst_27 : f32 to vector<192x64xf32>
    %60 = arith.maximumf %58, %59 : vector<192x64xf32>
    %61 = arith.mulf %60, %7 : vector<192x64xf32>
    %cst_28 = arith.constant 0.000000e+00 : f32
    %62 = vector.broadcast %cst_28 : f32 to vector<192x64xf32>
    %c1_i32_29 = arith.constant 1 : i32
    %63 = tpu.dynamic_rotate %61 by %c1_i32_29 dim 0 : vector<192x64xf32>, i32 -> vector<192x64xf32>
    %64 = arith.truncf %63 : vector<192x64xf32> to vector<192x64xbf16>
    %c0_30 = arith.constant 0 : index
    %c0_31 = arith.constant 0 : index
    %c0_32 = arith.constant 0 : index
    %65 = vector.load %arg7[%c0_30, %c0_31, %c0_32] : memref<3x64x64xbf16, #tpu.memory_space<vmem>>, vector<1x64x64xbf16>
    %66 = vector.shape_cast %65 : vector<1x64x64xbf16> to vector<64x64xbf16>
    %cst_33 = arith.constant dense<0.000000e+00> : vector<192x64xf32>
    %67 = tpu.matmul %64, %66, %cst_33 {dimension_numbers = #tpu.dot_dimension_numbers<[1], [0], [0], [1], [0, 0, 1, 1], [], []>} : vector<192x64xbf16>, vector<64x64xbf16>, vector<192x64xf32> -> vector<192x64xf32>
    %68 = arith.addf %62, %67 : vector<192x64xf32>
    %69 = arith.truncf %61 : vector<192x64xf32> to vector<192x64xbf16>
    %c1_34 = arith.constant 1 : index
    %c0_35 = arith.constant 0 : index
    %c0_36 = arith.constant 0 : index
    %70 = vector.load %arg7[%c1_34, %c0_35, %c0_36] : memref<3x64x64xbf16, #tpu.memory_space<vmem>>, vector<1x64x64xbf16>
    %71 = vector.shape_cast %70 : vector<1x64x64xbf16> to vector<64x64xbf16>
    %cst_37 = arith.constant dense<0.000000e+00> : vector<192x64xf32>
    %72 = tpu.matmul %69, %71, %cst_37 {dimension_numbers = #tpu.dot_dimension_numbers<[1], [0], [0], [1], [0, 0, 1, 1], [], []>} : vector<192x64xbf16>, vector<64x64xbf16>, vector<192x64xf32> -> vector<192x64xf32>
    %73 = arith.addf %68, %72 : vector<192x64xf32>
    %c191_i32_38 = arith.constant 191 : i32
    %74 = tpu.dynamic_rotate %61 by %c191_i32_38 dim 0 : vector<192x64xf32>, i32 -> vector<192x64xf32>
    %75 = arith.truncf %74 : vector<192x64xf32> to vector<192x64xbf16>
    %c2_39 = arith.constant 2 : index
    %c0_40 = arith.constant 0 : index
    %c0_41 = arith.constant 0 : index
    %76 = vector.load %arg7[%c2_39, %c0_40, %c0_41] : memref<3x64x64xbf16, #tpu.memory_space<vmem>>, vector<1x64x64xbf16>
    %77 = vector.shape_cast %76 : vector<1x64x64xbf16> to vector<64x64xbf16>
    %cst_42 = arith.constant dense<0.000000e+00> : vector<192x64xf32>
    %78 = tpu.matmul %75, %77, %cst_42 {dimension_numbers = #tpu.dot_dimension_numbers<[1], [0], [0], [1], [0, 0, 1, 1], [], []>} : vector<192x64xbf16>, vector<64x64xbf16>, vector<192x64xf32> -> vector<192x64xf32>
    %79 = arith.addf %73, %78 : vector<192x64xf32>
    %c0_43 = arith.constant 0 : index
    %c0_44 = arith.constant 0 : index
    %80 = vector.load %arg8[%c0_43, %c0_44] : memref<1x64xf32, #tpu.memory_space<vmem>>, vector<1x64xf32>
    %81 = vector.broadcast %80 : vector<1x64xf32> to vector<192x64xf32>
    %82 = arith.addf %79, %81 : vector<192x64xf32>
    %cst_45 = arith.constant 0.000000e+00 : f32
    %83 = vector.broadcast %cst_45 : f32 to vector<192x64xf32>
    %84 = arith.maximumf %82, %83 : vector<192x64xf32>
    %85 = arith.mulf %84, %7 : vector<192x64xf32>
    %86 = arith.addf %85, %25 : vector<192x64xf32>
    %cst_46 = arith.constant 0.000000e+00 : f32
    %87 = vector.broadcast %cst_46 : f32 to vector<192x64xf32>
    %88 = arith.maximumf %86, %87 : vector<192x64xf32>
    %89 = arith.truncf %88 : vector<192x64xf32> to vector<192x64xbf16>
    %c0_47 = arith.constant 0 : index
    %c0_48 = arith.constant 0 : index
    %90 = vector.load %arg9[%c0_47, %c0_48] : memref<64x256xbf16, #tpu.memory_space<vmem>>, vector<64x256xbf16>
    %cst_49 = arith.constant dense<0.000000e+00> : vector<192x256xf32>
    %91 = tpu.matmul %89, %90, %cst_49 {dimension_numbers = #tpu.dot_dimension_numbers<[1], [0], [0], [1], [0, 0, 1, 1], [], []>} : vector<192x64xbf16>, vector<64x256xbf16>, vector<192x256xf32> -> vector<192x256xf32>
    %92 = vector.extract_strided_slice %91 {offsets = [0, 0], sizes = [192, 128], strides = [1, 1]} : vector<192x256xf32> to vector<192x128xf32>
    %c3_i32 = arith.constant 3 : i32
    %93 = tpu.dynamic_rotate %88 by %c3_i32 dim 0 : vector<192x64xf32>, i32 -> vector<192x64xf32>
    %94 = arith.truncf %93 : vector<192x64xf32> to vector<192x64xbf16>
    %c0_50 = arith.constant 0 : index
    %c0_51 = arith.constant 0 : index
    %c0_52 = arith.constant 0 : index
    %95 = vector.load %arg10[%c0_50, %c0_51, %c0_52] : memref<6x64x128xbf16, #tpu.memory_space<vmem>>, vector<1x64x128xbf16>
    %96 = vector.shape_cast %95 : vector<1x64x128xbf16> to vector<64x128xbf16>
    %cst_53 = arith.constant dense<0.000000e+00> : vector<192x128xf32>
    %97 = tpu.matmul %94, %96, %cst_53 {dimension_numbers = #tpu.dot_dimension_numbers<[1], [0], [0], [1], [0, 0, 1, 1], [], []>} : vector<192x64xbf16>, vector<64x128xbf16>, vector<192x128xf32> -> vector<192x128xf32>
    %98 = arith.addf %92, %97 : vector<192x128xf32>
    %c2_i32_54 = arith.constant 2 : i32
    %99 = tpu.dynamic_rotate %88 by %c2_i32_54 dim 0 : vector<192x64xf32>, i32 -> vector<192x64xf32>
    %100 = arith.truncf %99 : vector<192x64xf32> to vector<192x64xbf16>
    %c1_55 = arith.constant 1 : index
    %c0_56 = arith.constant 0 : index
    %c0_57 = arith.constant 0 : index
    %101 = vector.load %arg10[%c1_55, %c0_56, %c0_57] : memref<6x64x128xbf16, #tpu.memory_space<vmem>>, vector<1x64x128xbf16>
    %102 = vector.shape_cast %101 : vector<1x64x128xbf16> to vector<64x128xbf16>
    %cst_58 = arith.constant dense<0.000000e+00> : vector<192x128xf32>
    %103 = tpu.matmul %100, %102, %cst_58 {dimension_numbers = #tpu.dot_dimension_numbers<[1], [0], [0], [1], [0, 0, 1, 1], [], []>} : vector<192x64xbf16>, vector<64x128xbf16>, vector<192x128xf32> -> vector<192x128xf32>
    %104 = arith.addf %98, %103 : vector<192x128xf32>
    %c1_i32_59 = arith.constant 1 : i32
    %105 = tpu.dynamic_rotate %88 by %c1_i32_59 dim 0 : vector<192x64xf32>, i32 -> vector<192x64xf32>
    %106 = arith.truncf %105 : vector<192x64xf32> to vector<192x64xbf16>
    %c2_60 = arith.constant 2 : index
    %c0_61 = arith.constant 0 : index
    %c0_62 = arith.constant 0 : index
    %107 = vector.load %arg10[%c2_60, %c0_61, %c0_62] : memref<6x64x128xbf16, #tpu.memory_space<vmem>>, vector<1x64x128xbf16>
    %108 = vector.shape_cast %107 : vector<1x64x128xbf16> to vector<64x128xbf16>
    %cst_63 = arith.constant dense<0.000000e+00> : vector<192x128xf32>
    %109 = tpu.matmul %106, %108, %cst_63 {dimension_numbers = #tpu.dot_dimension_numbers<[1], [0], [0], [1], [0, 0, 1, 1], [], []>} : vector<192x64xbf16>, vector<64x128xbf16>, vector<192x128xf32> -> vector<192x128xf32>
    %110 = arith.addf %104, %109 : vector<192x128xf32>
    %c191_i32_64 = arith.constant 191 : i32
    %111 = tpu.dynamic_rotate %88 by %c191_i32_64 dim 0 : vector<192x64xf32>, i32 -> vector<192x64xf32>
    %112 = arith.truncf %111 : vector<192x64xf32> to vector<192x64xbf16>
    %c3_65 = arith.constant 3 : index
    %c0_66 = arith.constant 0 : index
    %c0_67 = arith.constant 0 : index
    %113 = vector.load %arg10[%c3_65, %c0_66, %c0_67] : memref<6x64x128xbf16, #tpu.memory_space<vmem>>, vector<1x64x128xbf16>
    %114 = vector.shape_cast %113 : vector<1x64x128xbf16> to vector<64x128xbf16>
    %cst_68 = arith.constant dense<0.000000e+00> : vector<192x128xf32>
    %115 = tpu.matmul %112, %114, %cst_68 {dimension_numbers = #tpu.dot_dimension_numbers<[1], [0], [0], [1], [0, 0, 1, 1], [], []>} : vector<192x64xbf16>, vector<64x128xbf16>, vector<192x128xf32> -> vector<192x128xf32>
    %116 = arith.addf %110, %115 : vector<192x128xf32>
    %c190_i32_69 = arith.constant 190 : i32
    %117 = tpu.dynamic_rotate %88 by %c190_i32_69 dim 0 : vector<192x64xf32>, i32 -> vector<192x64xf32>
    %118 = arith.truncf %117 : vector<192x64xf32> to vector<192x64xbf16>
    %c4_70 = arith.constant 4 : index
    %c0_71 = arith.constant 0 : index
    %c0_72 = arith.constant 0 : index
    %119 = vector.load %arg10[%c4_70, %c0_71, %c0_72] : memref<6x64x128xbf16, #tpu.memory_space<vmem>>, vector<1x64x128xbf16>
    %120 = vector.shape_cast %119 : vector<1x64x128xbf16> to vector<64x128xbf16>
    %cst_73 = arith.constant dense<0.000000e+00> : vector<192x128xf32>
    %121 = tpu.matmul %118, %120, %cst_73 {dimension_numbers = #tpu.dot_dimension_numbers<[1], [0], [0], [1], [0, 0, 1, 1], [], []>} : vector<192x64xbf16>, vector<64x128xbf16>, vector<192x128xf32> -> vector<192x128xf32>
    %122 = arith.addf %116, %121 : vector<192x128xf32>
    %c189_i32 = arith.constant 189 : i32
    %123 = tpu.dynamic_rotate %88 by %c189_i32 dim 0 : vector<192x64xf32>, i32 -> vector<192x64xf32>
    %124 = arith.truncf %123 : vector<192x64xf32> to vector<192x64xbf16>
    %c5 = arith.constant 5 : index
    %c0_74 = arith.constant 0 : index
    %c0_75 = arith.constant 0 : index
    %125 = vector.load %arg10[%c5, %c0_74, %c0_75] : memref<6x64x128xbf16, #tpu.memory_space<vmem>>, vector<1x64x128xbf16>
    %126 = vector.shape_cast %125 : vector<1x64x128xbf16> to vector<64x128xbf16>
    %cst_76 = arith.constant dense<0.000000e+00> : vector<192x128xf32>
    %127 = tpu.matmul %124, %126, %cst_76 {dimension_numbers = #tpu.dot_dimension_numbers<[1], [0], [0], [1], [0, 0, 1, 1], [], []>} : vector<192x64xbf16>, vector<64x128xbf16>, vector<192x128xf32> -> vector<192x128xf32>
    %128 = arith.addf %122, %127 : vector<192x128xf32>
    %c0_77 = arith.constant 0 : index
    %c0_78 = arith.constant 0 : index
    %129 = vector.load %arg11[%c0_77, %c0_78] : memref<1x128xf32, #tpu.memory_space<vmem>>, vector<1x128xf32>
    %130 = vector.broadcast %129 : vector<1x128xf32> to vector<192x128xf32>
    %131 = arith.addf %128, %130 : vector<192x128xf32>
    %cst_79 = arith.constant 0.000000e+00 : f32
    %132 = vector.broadcast %cst_79 : f32 to vector<192x128xf32>
    %133 = arith.maximumf %131, %132 : vector<192x128xf32>
    %134 = arith.mulf %133, %10 : vector<192x128xf32>
    %135 = vector.extract_strided_slice %91 {offsets = [0, 128], sizes = [192, 128], strides = [1, 1]} : vector<192x256xf32> to vector<192x128xf32>
    %c0_80 = arith.constant 0 : index
    %c0_81 = arith.constant 0 : index
    %136 = vector.load %arg12[%c0_80, %c0_81] : memref<1x128xf32, #tpu.memory_space<vmem>>, vector<1x128xf32>
    %137 = vector.broadcast %136 : vector<1x128xf32> to vector<192x128xf32>
    %138 = arith.addf %135, %137 : vector<192x128xf32>
    %139 = arith.mulf %138, %10 : vector<192x128xf32>
    %c2_i32_82 = arith.constant 2 : i32
    %140 = tpu.dynamic_rotate %134 by %c2_i32_82 dim 0 : vector<192x128xf32>, i32 -> vector<192x128xf32>
    %141 = arith.truncf %140 : vector<192x128xf32> to vector<192x128xbf16>
    %c1_i32_83 = arith.constant 1 : i32
    %142 = tpu.dynamic_rotate %134 by %c1_i32_83 dim 0 : vector<192x128xf32>, i32 -> vector<192x128xf32>
    %143 = arith.truncf %142 : vector<192x128xf32> to vector<192x128xbf16>
    %144 = arith.truncf %134 : vector<192x128xf32> to vector<192x128xbf16>
    %c191_i32_84 = arith.constant 191 : i32
    %145 = tpu.dynamic_rotate %134 by %c191_i32_84 dim 0 : vector<192x128xf32>, i32 -> vector<192x128xf32>
    %146 = arith.truncf %145 : vector<192x128xf32> to vector<192x128xbf16>
    %c190_i32_85 = arith.constant 190 : i32
    %147 = tpu.dynamic_rotate %134 by %c190_i32_85 dim 0 : vector<192x128xf32>, i32 -> vector<192x128xf32>
    %148 = arith.truncf %147 : vector<192x128xf32> to vector<192x128xbf16>
    %149 = tpu.concatenate %141, %143, %144, %146, %148 in 1 : vector<192x128xbf16>, vector<192x128xbf16>, vector<192x128xbf16>, vector<192x128xbf16>, vector<192x128xbf16> -> vector<192x640xbf16>
    %c0_86 = arith.constant 0 : index
    %c0_87 = arith.constant 0 : index
    %150 = vector.load %arg13[%c0_86, %c0_87] : memref<640x128xbf16, #tpu.memory_space<vmem>>, vector<640x128xbf16>
    %cst_88 = arith.constant dense<0.000000e+00> : vector<192x128xf32>
    %151 = tpu.matmul %149, %150, %cst_88 {dimension_numbers = #tpu.dot_dimension_numbers<[1], [0], [0], [1], [0, 0, 1, 1], [], []>} : vector<192x640xbf16>, vector<640x128xbf16>, vector<192x128xf32> -> vector<192x128xf32>
    %c0_89 = arith.constant 0 : index
    %c0_90 = arith.constant 0 : index
    %152 = vector.load %arg14[%c0_89, %c0_90] : memref<1x128xf32, #tpu.memory_space<vmem>>, vector<1x128xf32>
    %153 = vector.broadcast %152 : vector<1x128xf32> to vector<192x128xf32>
    %154 = arith.addf %151, %153 : vector<192x128xf32>
    %cst_91 = arith.constant 0.000000e+00 : f32
    %155 = vector.broadcast %cst_91 : f32 to vector<192x128xf32>
    %156 = arith.maximumf %154, %155 : vector<192x128xf32>
    %157 = arith.mulf %156, %10 : vector<192x128xf32>
    %c1_i32_92 = arith.constant 1 : i32
    %158 = tpu.dynamic_rotate %157 by %c1_i32_92 dim 0 : vector<192x128xf32>, i32 -> vector<192x128xf32>
    %159 = arith.truncf %158 : vector<192x128xf32> to vector<192x128xbf16>
    %160 = arith.truncf %157 : vector<192x128xf32> to vector<192x128xbf16>
    %c191_i32_93 = arith.constant 191 : i32
    %161 = tpu.dynamic_rotate %157 by %c191_i32_93 dim 0 : vector<192x128xf32>, i32 -> vector<192x128xf32>
    %162 = arith.truncf %161 : vector<192x128xf32> to vector<192x128xbf16>
    %163 = tpu.concatenate %159, %160, %162 in 1 : vector<192x128xbf16>, vector<192x128xbf16>, vector<192x128xbf16> -> vector<192x384xbf16>
    %c0_94 = arith.constant 0 : index
    %c0_95 = arith.constant 0 : index
    %164 = vector.load %arg15[%c0_94, %c0_95] : memref<384x128xbf16, #tpu.memory_space<vmem>>, vector<384x128xbf16>
    %cst_96 = arith.constant dense<0.000000e+00> : vector<192x128xf32>
    %165 = tpu.matmul %163, %164, %cst_96 {dimension_numbers = #tpu.dot_dimension_numbers<[1], [0], [0], [1], [0, 0, 1, 1], [], []>} : vector<192x384xbf16>, vector<384x128xbf16>, vector<192x128xf32> -> vector<192x128xf32>
    %c0_97 = arith.constant 0 : index
    %c0_98 = arith.constant 0 : index
    %166 = vector.load %arg16[%c0_97, %c0_98] : memref<1x128xf32, #tpu.memory_space<vmem>>, vector<1x128xf32>
    %167 = vector.broadcast %166 : vector<1x128xf32> to vector<192x128xf32>
    %168 = arith.addf %165, %167 : vector<192x128xf32>
    %cst_99 = arith.constant 0.000000e+00 : f32
    %169 = vector.broadcast %cst_99 : f32 to vector<192x128xf32>
    %170 = arith.maximumf %168, %169 : vector<192x128xf32>
    %171 = arith.mulf %170, %10 : vector<192x128xf32>
    %172 = arith.addf %171, %139 : vector<192x128xf32>
    %cst_100 = arith.constant 0.000000e+00 : f32
    %173 = vector.broadcast %cst_100 : f32 to vector<192x128xf32>
    %174 = arith.maximumf %172, %173 : vector<192x128xf32>
    %175 = arith.truncf %174 : vector<192x128xf32> to vector<192x128xbf16>
    %c0_101 = arith.constant 0 : index
    %c0_102 = arith.constant 0 : index
    %176 = vector.load %arg17[%c0_101, %c0_102] : memref<128x256xbf16, #tpu.memory_space<vmem>>, vector<128x256xbf16>
    %cst_103 = arith.constant dense<0.000000e+00> : vector<192x256xf32>
    %177 = tpu.matmul %175, %176, %cst_103 {dimension_numbers = #tpu.dot_dimension_numbers<[1], [0], [0], [1], [0, 0, 1, 1], [], []>} : vector<192x128xbf16>, vector<128x256xbf16>, vector<192x256xf32> -> vector<192x256xf32>
    %c3_i32_104 = arith.constant 3 : i32
    %178 = tpu.dynamic_rotate %174 by %c3_i32_104 dim 0 : vector<192x128xf32>, i32 -> vector<192x128xf32>
    %179 = arith.truncf %178 : vector<192x128xf32> to vector<192x128xbf16>
    %c2_i32_105 = arith.constant 2 : i32
    %180 = tpu.dynamic_rotate %174 by %c2_i32_105 dim 0 : vector<192x128xf32>, i32 -> vector<192x128xf32>
    %181 = arith.truncf %180 : vector<192x128xf32> to vector<192x128xbf16>
    %c1_i32_106 = arith.constant 1 : i32
    %182 = tpu.dynamic_rotate %174 by %c1_i32_106 dim 0 : vector<192x128xf32>, i32 -> vector<192x128xf32>
    %183 = arith.truncf %182 : vector<192x128xf32> to vector<192x128xbf16>
    %c191_i32_107 = arith.constant 191 : i32
    %184 = tpu.dynamic_rotate %174 by %c191_i32_107 dim 0 : vector<192x128xf32>, i32 -> vector<192x128xf32>
    %185 = arith.truncf %184 : vector<192x128xf32> to vector<192x128xbf16>
    %c190_i32_108 = arith.constant 190 : i32
    %186 = tpu.dynamic_rotate %174 by %c190_i32_108 dim 0 : vector<192x128xf32>, i32 -> vector<192x128xf32>
    %187 = arith.truncf %186 : vector<192x128xf32> to vector<192x128xbf16>
    %c189_i32_109 = arith.constant 189 : i32
    %188 = tpu.dynamic_rotate %174 by %c189_i32_109 dim 0 : vector<192x128xf32>, i32 -> vector<192x128xf32>
    %189 = arith.truncf %188 : vector<192x128xf32> to vector<192x128xbf16>
    %190 = tpu.concatenate %179, %181, %183, %185, %187, %189 in 1 : vector<192x128xbf16>, vector<192x128xbf16>, vector<192x128xbf16>, vector<192x128xbf16>, vector<192x128xbf16>, vector<192x128xbf16> -> vector<192x768xbf16>
    %191 = vector.extract_strided_slice %177 {offsets = [0, 0], sizes = [192, 128], strides = [1, 1]} : vector<192x256xf32> to vector<192x128xf32>
    %c0_110 = arith.constant 0 : index
    %c0_111 = arith.constant 0 : index
    %192 = vector.load %arg18[%c0_110, %c0_111] : memref<768x128xbf16, #tpu.memory_space<vmem>>, vector<768x128xbf16>
    %cst_112 = arith.constant dense<0.000000e+00> : vector<192x128xf32>
    %193 = tpu.matmul %190, %192, %cst_112 {dimension_numbers = #tpu.dot_dimension_numbers<[1], [0], [0], [1], [0, 0, 1, 1], [], []>} : vector<192x768xbf16>, vector<768x128xbf16>, vector<192x128xf32> -> vector<192x128xf32>
    %194 = arith.addf %191, %193 : vector<192x128xf32>
    %c0_113 = arith.constant 0 : index
    %c0_114 = arith.constant 0 : index
    %195 = vector.load %arg19[%c0_113, %c0_114] : memref<1x128xf32, #tpu.memory_space<vmem>>, vector<1x128xf32>
    %196 = vector.broadcast %195 : vector<1x128xf32> to vector<192x128xf32>
    %197 = arith.addf %194, %196 : vector<192x128xf32>
    %cst_115 = arith.constant 0.000000e+00 : f32
    %198 = vector.broadcast %cst_115 : f32 to vector<192x128xf32>
    %199 = arith.maximumf %197, %198 : vector<192x128xf32>
    %200 = arith.mulf %199, %10 : vector<192x128xf32>
    %201 = vector.extract_strided_slice %177 {offsets = [0, 128], sizes = [192, 128], strides = [1, 1]} : vector<192x256xf32> to vector<192x128xf32>
    %c0_116 = arith.constant 0 : index
    %c0_117 = arith.constant 0 : index
    %202 = vector.load %arg20[%c0_116, %c0_117] : memref<1x128xf32, #tpu.memory_space<vmem>>, vector<1x128xf32>
    %203 = vector.broadcast %202 : vector<1x128xf32> to vector<192x128xf32>
    %204 = arith.addf %201, %203 : vector<192x128xf32>
    %205 = arith.mulf %204, %10 : vector<192x128xf32>
    %c2_i32_118 = arith.constant 2 : i32
    %206 = tpu.dynamic_rotate %200 by %c2_i32_118 dim 0 : vector<192x128xf32>, i32 -> vector<192x128xf32>
    %207 = arith.truncf %206 : vector<192x128xf32> to vector<192x128xbf16>
    %c1_i32_119 = arith.constant 1 : i32
    %208 = tpu.dynamic_rotate %200 by %c1_i32_119 dim 0 : vector<192x128xf32>, i32 -> vector<192x128xf32>
    %209 = arith.truncf %208 : vector<192x128xf32> to vector<192x128xbf16>
    %210 = arith.truncf %200 : vector<192x128xf32> to vector<192x128xbf16>
    %c191_i32_120 = arith.constant 191 : i32
    %211 = tpu.dynamic_rotate %200 by %c191_i32_120 dim 0 : vector<192x128xf32>, i32 -> vector<192x128xf32>
    %212 = arith.truncf %211 : vector<192x128xf32> to vector<192x128xbf16>
    %c190_i32_121 = arith.constant 190 : i32
    %213 = tpu.dynamic_rotate %200 by %c190_i32_121 dim 0 : vector<192x128xf32>, i32 -> vector<192x128xf32>
    %214 = arith.truncf %213 : vector<192x128xf32> to vector<192x128xbf16>
    %215 = tpu.concatenate %207, %209, %210, %212, %214 in 1 : vector<192x128xbf16>, vector<192x128xbf16>, vector<192x128xbf16>, vector<192x128xbf16>, vector<192x128xbf16> -> vector<192x640xbf16>
    %c0_122 = arith.constant 0 : index
    %c0_123 = arith.constant 0 : index
    %216 = vector.load %arg21[%c0_122, %c0_123] : memref<640x128xbf16, #tpu.memory_space<vmem>>, vector<640x128xbf16>
    %cst_124 = arith.constant dense<0.000000e+00> : vector<192x128xf32>
    %217 = tpu.matmul %215, %216, %cst_124 {dimension_numbers = #tpu.dot_dimension_numbers<[1], [0], [0], [1], [0, 0, 1, 1], [], []>} : vector<192x640xbf16>, vector<640x128xbf16>, vector<192x128xf32> -> vector<192x128xf32>
    %c0_125 = arith.constant 0 : index
    %c0_126 = arith.constant 0 : index
    %218 = vector.load %arg22[%c0_125, %c0_126] : memref<1x128xf32, #tpu.memory_space<vmem>>, vector<1x128xf32>
    %219 = vector.broadcast %218 : vector<1x128xf32> to vector<192x128xf32>
    %220 = arith.addf %217, %219 : vector<192x128xf32>
    %cst_127 = arith.constant 0.000000e+00 : f32
    %221 = vector.broadcast %cst_127 : f32 to vector<192x128xf32>
    %222 = arith.maximumf %220, %221 : vector<192x128xf32>
    %223 = arith.mulf %222, %10 : vector<192x128xf32>
    %c1_i32_128 = arith.constant 1 : i32
    %224 = tpu.dynamic_rotate %223 by %c1_i32_128 dim 0 : vector<192x128xf32>, i32 -> vector<192x128xf32>
    %225 = arith.truncf %224 : vector<192x128xf32> to vector<192x128xbf16>
    %226 = arith.truncf %223 : vector<192x128xf32> to vector<192x128xbf16>
    %c191_i32_129 = arith.constant 191 : i32
    %227 = tpu.dynamic_rotate %223 by %c191_i32_129 dim 0 : vector<192x128xf32>, i32 -> vector<192x128xf32>
    %228 = arith.truncf %227 : vector<192x128xf32> to vector<192x128xbf16>
    %229 = tpu.concatenate %225, %226, %228 in 1 : vector<192x128xbf16>, vector<192x128xbf16>, vector<192x128xbf16> -> vector<192x384xbf16>
    %c0_130 = arith.constant 0 : index
    %c0_131 = arith.constant 0 : index
    %230 = vector.load %arg23[%c0_130, %c0_131] : memref<384x128xbf16, #tpu.memory_space<vmem>>, vector<384x128xbf16>
    %cst_132 = arith.constant dense<0.000000e+00> : vector<192x128xf32>
    %231 = tpu.matmul %229, %230, %cst_132 {dimension_numbers = #tpu.dot_dimension_numbers<[1], [0], [0], [1], [0, 0, 1, 1], [], []>} : vector<192x384xbf16>, vector<384x128xbf16>, vector<192x128xf32> -> vector<192x128xf32>
    %c0_133 = arith.constant 0 : index
    %c0_134 = arith.constant 0 : index
    %232 = vector.load %arg24[%c0_133, %c0_134] : memref<1x128xf32, #tpu.memory_space<vmem>>, vector<1x128xf32>
    %233 = vector.broadcast %232 : vector<1x128xf32> to vector<192x128xf32>
    %234 = arith.addf %231, %233 : vector<192x128xf32>
    %cst_135 = arith.constant 0.000000e+00 : f32
    %235 = vector.broadcast %cst_135 : f32 to vector<192x128xf32>
    %236 = arith.maximumf %234, %235 : vector<192x128xf32>
    %237 = arith.mulf %236, %10 : vector<192x128xf32>
    %238 = arith.addf %237, %205 : vector<192x128xf32>
    %cst_136 = arith.constant 0.000000e+00 : f32
    %239 = vector.broadcast %cst_136 : f32 to vector<192x128xf32>
    %240 = arith.maximumf %238, %239 : vector<192x128xf32>
    %241 = vector.shape_cast %240 : vector<192x128xf32> to vector<1x192x128xf32>
    %cst_137 = arith.constant dense<0.000000e+00> : vector<1x128xf32>
    %242 = vector.multi_reduction <add>, %241, %cst_137 [1] : vector<1x192x128xf32> to vector<1x128xf32>
    %cst_138 = arith.constant 0.00561797759 : f32
    %243 = vector.broadcast %cst_138 : f32 to vector<1x128xf32>
    %244 = arith.mulf %242, %243 : vector<1x128xf32>
    %c0_139 = arith.constant 0 : index
    %c0_140 = arith.constant 0 : index
    %245 = vector.load %arg25[%c0_139, %c0_140] : memref<128x128xf32, #tpu.memory_space<vmem>>, vector<128x128xf32>
    %cst_141 = arith.constant dense<0.000000e+00> : vector<1x128xf32>
    %246 = tpu.matmul %244, %245, %cst_141 {dimension_numbers = #tpu.dot_dimension_numbers<[1], [0], [0], [1], [0, 0, 1, 1], [], []>} : vector<1x128xf32>, vector<128x128xf32>, vector<1x128xf32> -> vector<1x128xf32>
    %c0_142 = arith.constant 0 : index
    %c0_143 = arith.constant 0 : index
    %247 = vector.load %arg26[%c0_142, %c0_143] : memref<1x128xf32, #tpu.memory_space<vmem>>, vector<1x128xf32>
    %248 = arith.addf %246, %247 : vector<1x128xf32>
    %cst_144 = arith.constant dense<0xFF800000> : vector<1xf32>
    %249 = vector.multi_reduction <maximumf>, %248, %cst_144 [1] : vector<1x128xf32> to vector<1xf32>
    %250 = vector.shape_cast %249 : vector<1xf32> to vector<1x1xf32>
    %251 = vector.broadcast %250 : vector<1x1xf32> to vector<1x128xf32>
    %252 = arith.subf %248, %251 : vector<1x128xf32>
    %253 = math.exp %252 : vector<1x128xf32>
    %cst_145 = arith.constant dense<0.000000e+00> : vector<1xf32>
    %254 = vector.multi_reduction <add>, %253, %cst_145 [1] : vector<1x128xf32> to vector<1xf32>
    %255 = vector.shape_cast %254 : vector<1xf32> to vector<1x1xf32>
    %256 = vector.broadcast %255 : vector<1x1xf32> to vector<1x128xf32>
    %257 = arith.divf %253, %256 : vector<1x128xf32>
    %c0_146 = arith.constant 0 : index
    %c0_147 = arith.constant 0 : index
    %c0_148 = arith.constant 0 : index
    %258 = vector.load %arg27[%c0_146, %c0_147, %c0_148] : memref<1x1x128xf32, #tpu.memory_space<vmem>>, vector<1x1x128xf32>
    %259 = vector.shape_cast %258 : vector<1x1x128xf32> to vector<1x128xf32>
    %260 = vector.shape_cast %257 : vector<1x128xf32> to vector<1x1x128xf32>
    tpu.vector_store %arg27[%c0_146, %c0_147, %c0_148], %260 {strides = array<i32>} : memref<1x1x128xf32, #tpu.memory_space<vmem>>, vector<1x1x128xf32>,
    return
  }
  func.func @transform_0(%arg0: i32) -> (i32, i32) {
    %c0_i32 = arith.constant 0 : i32
    %c0_i32_0 = arith.constant 0 : i32
    return %arg0, %c0_i32 : i32, i32
  }
  func.func @transform_1(%arg0: i32) -> (i32, i32) {
    %c0_i32 = arith.constant 0 : i32
    %c0_i32_0 = arith.constant 0 : i32
    %c0_i32_1 = arith.constant 0 : i32
    return %c0_i32, %c0_i32_0 : i32, i32
  }
  func.func @transform_2(%arg0: i32) -> (i32, i32) {
    %c0_i32 = arith.constant 0 : i32
    %c0_i32_0 = arith.constant 0 : i32
    %c0_i32_1 = arith.constant 0 : i32
    return %c0_i32, %c0_i32_0 : i32, i32
  }
  func.func @transform_3(%arg0: i32) -> (i32, i32) {
    %c0_i32 = arith.constant 0 : i32
    %c0_i32_0 = arith.constant 0 : i32
    %c0_i32_1 = arith.constant 0 : i32
    return %c0_i32, %c0_i32_0 : i32, i32
  }
  func.func @transform_4(%arg0: i32) -> (i32, i32, i32) {
    %c0_i32 = arith.constant 0 : i32
    %c0_i32_0 = arith.constant 0 : i32
    %c0_i32_1 = arith.constant 0 : i32
    %c0_i32_2 = arith.constant 0 : i32
    return %c0_i32, %c0_i32_0, %c0_i32_1 : i32, i32, i32
  }
  func.func @transform_5(%arg0: i32) -> (i32, i32) {
    %c0_i32 = arith.constant 0 : i32
    %c0_i32_0 = arith.constant 0 : i32
    %c0_i32_1 = arith.constant 0 : i32
    return %c0_i32, %c0_i32_0 : i32, i32
  }
  func.func @transform_6(%arg0: i32) -> (i32, i32, i32) {
    %c0_i32 = arith.constant 0 : i32
    %c0_i32_0 = arith.constant 0 : i32
    %c0_i32_1 = arith.constant 0 : i32
    %c0_i32_2 = arith.constant 0 : i32
    return %c0_i32, %c0_i32_0, %c0_i32_1 : i32, i32, i32
  }
  func.func @transform_7(%arg0: i32) -> (i32, i32) {
    %c0_i32 = arith.constant 0 : i32
    %c0_i32_0 = arith.constant 0 : i32
    %c0_i32_1 = arith.constant 0 : i32
    return %c0_i32, %c0_i32_0 : i32, i32
  }
  func.func @transform_8(%arg0: i32) -> (i32, i32) {
    %c0_i32 = arith.constant 0 : i32
    %c0_i32_0 = arith.constant 0 : i32
    %c0_i32_1 = arith.constant 0 : i32
    return %c0_i32, %c0_i32_0 : i32, i32
  }
  func.func @transform_9(%arg0: i32) -> (i32, i32, i32) {
    %c0_i32 = arith.constant 0 : i32
    %c0_i32_0 = arith.constant 0 : i32
    %c0_i32_1 = arith.constant 0 : i32
    %c0_i32_2 = arith.constant 0 : i32
    return %c0_i32, %c0_i32_0, %c0_i32_1 : i32, i32, i32
  }
  func.func @transform_10(%arg0: i32) -> (i32, i32) {
    %c0_i32 = arith.constant 0 : i32
    %c0_i32_0 = arith.constant 0 : i32
    %c0_i32_1 = arith.constant 0 : i32
    return %c0_i32, %c0_i32_0 : i32, i32
  }
  func.func @transform_11(%arg0: i32) -> (i32, i32) {
    %c0_i32 = arith.constant 0 : i32
    %c0_i32_0 = arith.constant 0 : i32
    %c0_i32_1 = arith.constant 0 : i32
    return %c0_i32, %c0_i32_0 : i32, i32
  }
  func.func @transform_12(%arg0: i32) -> (i32, i32) {
    %c0_i32 = arith.constant 0 : i32
    %c0_i32_0 = arith.constant 0 : i32
    %c0_i32_1 = arith.constant 0 : i32
    return %c0_i32, %c0_i32_0 : i32, i32
  }
  func.func @transform_13(%arg0: i32) -> (i32, i32) {
    %c0_i32 = arith.constant 0 : i32
    %c0_i32_0 = arith.constant 0 : i32
    %c0_i32_1 = arith.constant 0 : i32
    return %c0_i32, %c0_i32_0 : i32, i32
  }
  func.func @transform_14(%arg0: i32) -> (i32, i32) {
    %c0_i32 = arith.constant 0 : i32
    %c0_i32_0 = arith.constant 0 : i32
    %c0_i32_1 = arith.constant 0 : i32
    return %c0_i32, %c0_i32_0 : i32, i32
  }
  func.func @transform_15(%arg0: i32) -> (i32, i32) {
    %c0_i32 = arith.constant 0 : i32
    %c0_i32_0 = arith.constant 0 : i32
    %c0_i32_1 = arith.constant 0 : i32
    return %c0_i32, %c0_i32_0 : i32, i32
  }
  func.func @transform_16(%arg0: i32) -> (i32, i32) {
    %c0_i32 = arith.constant 0 : i32
    %c0_i32_0 = arith.constant 0 : i32
    %c0_i32_1 = arith.constant 0 : i32
    return %c0_i32, %c0_i32_0 : i32, i32
  }
  func.func @transform_17(%arg0: i32) -> (i32, i32) {
    %c0_i32 = arith.constant 0 : i32
    %c0_i32_0 = arith.constant 0 : i32
    %c0_i32_1 = arith.constant 0 : i32
    return %c0_i32, %c0_i32_0 : i32, i32
  }
  func.func @transform_18(%arg0: i32) -> (i32, i32) {
    %c0_i32 = arith.constant 0 : i32
    %c0_i32_0 = arith.constant 0 : i32
    %c0_i32_1 = arith.constant 0 : i32
    return %c0_i32, %c0_i32_0 : i32, i32
  }
  func.func @transform_19(%arg0: i32) -> (i32, i32) {
    %c0_i32 = arith.constant 0 : i32
    %c0_i32_0 = arith.constant 0 : i32
    %c0_i32_1 = arith.constant 0 : i32
    return %c0_i32, %c0_i32_0 : i32, i32
  }
  func.func @transform_20(%arg0: i32) -> (i32, i32) {
    %c0_i32 = arith.constant 0 : i32
    %c0_i32_0 = arith.constant 0 : i32
    %c0_i32_1 = arith.constant 0 : i32
    return %c0_i32, %c0_i32_0 : i32, i32
  }
  func.func @transform_21(%arg0: i32) -> (i32, i32) {
    %c0_i32 = arith.constant 0 : i32
    %c0_i32_0 = arith.constant 0 : i32
    %c0_i32_1 = arith.constant 0 : i32
    return %c0_i32, %c0_i32_0 : i32, i32
  }
  func.func @transform_22(%arg0: i32) -> (i32, i32) {
    %c0_i32 = arith.constant 0 : i32
    %c0_i32_0 = arith.constant 0 : i32
    %c0_i32_1 = arith.constant 0 : i32
    return %c0_i32, %c0_i32_0 : i32, i32
  }
  func.func @transform_23(%arg0: i32) -> (i32, i32) {
    %c0_i32 = arith.constant 0 : i32
    %c0_i32_0 = arith.constant 0 : i32
    %c0_i32_1 = arith.constant 0 : i32
    return %c0_i32, %c0_i32_0 : i32, i32
  }
  func.func @transform_24(%arg0: i32) -> (i32, i32) {
    %c0_i32 = arith.constant 0 : i32
    %c0_i32_0 = arith.constant 0 : i32
    %c0_i32_1 = arith.constant 0 : i32
    return %c0_i32, %c0_i32_0 : i32, i32
  }
  func.func @transform_25(%arg0: i32) -> (i32, i32) {
    %c0_i32 = arith.constant 0 : i32
    %c0_i32_0 = arith.constant 0 : i32
    %c0_i32_1 = arith.constant 0 : i32
    return %c0_i32, %c0_i32_0 : i32, i32
  }
  func.func @transform_26(%arg0: i32) -> (i32, i32, i32) {
    %c0_i32 = arith.constant 0 : i32
    %c0_i32_0 = arith.constant 0 : i32
    %c0_i32_1 = arith.constant 0 : i32
    return %arg0, %c0_i32, %c0_i32_0 : i32, i32, i32
  }
}

</mosaic_0001>

<llo_original>
// kernel: resnet_forward.1
$region0: #{resnet_forward.1}
  #allocation0 [shape = 'u32[]', space=smem, size = 0x4, offset = 0x4, fixed_abs, tag = 'smem constant byte address 0x4 - core index']
  #allocation1 [shape = 'u32[144,128]{1,0:T(1,128)}', space=vmem, size = 0x12000, scoped, tag = 'internal scratch']
  %s0 = inlined_call_operand.vmem [shape: bf16[384,8], index: 0, kind: input, shape index: {}]
  %s1 = inlined_call_operand.hbm [shape: bf16[8,128], index: 1, kind: input, shape index: {}]
  %s2 = inlined_call_operand.vmem [shape: f32[1,64], index: 2, kind: input, shape index: {}]
  %s3 = inlined_call_operand.hbm [shape: f32[1,64], index: 3, kind: input, shape index: {}]
  %s4 = inlined_call_operand.hbm [shape: bf16[5,64,64], index: 4, kind: input, shape index: {}]
  %s5 = inlined_call_operand.hbm [shape: f32[1,64], index: 5, kind: input, shape index: {}]
  %s6 = inlined_call_operand.hbm [shape: bf16[3,64,64], index: 6, kind: input, shape index: {}]
  %s7 = inlined_call_operand.hbm [shape: f32[1,64], index: 7, kind: input, shape index: {}]
  %s8 = inlined_call_operand.vmem [shape: bf16[64,256], index: 8, kind: input, shape index: {}]
  %s9 = inlined_call_operand.vmem [shape: bf16[6,64,128], index: 9, kind: input, shape index: {}]
  %s10 = inlined_call_operand.hbm [shape: f32[1,128], index: 10, kind: input, shape index: {}]
  %s11 = inlined_call_operand.hbm [shape: f32[1,128], index: 11, kind: input, shape index: {}]
  %s12 = inlined_call_operand.hbm [shape: bf16[640,128], index: 12, kind: input, shape index: {}]
  %s13 = inlined_call_operand.hbm [shape: f32[1,128], index: 13, kind: input, shape index: {}]
  %s14 = inlined_call_operand.hbm [shape: bf16[384,128], index: 14, kind: input, shape index: {}]
  %s15 = inlined_call_operand.hbm [shape: f32[1,128], index: 15, kind: input, shape index: {}]
  %s16 = inlined_call_operand.hbm [shape: bf16[128,256], index: 16, kind: input, shape index: {}]
  %s17 = inlined_call_operand.vmem [shape: bf16[768,128], index: 17, kind: input, shape index: {}]
  %s18 = inlined_call_operand.hbm [shape: f32[1,128], index: 18, kind: input, shape index: {}]
  %s19 = inlined_call_operand.hbm [shape: f32[1,128], index: 19, kind: input, shape index: {}]
  %s20 = inlined_call_operand.hbm [shape: bf16[640,128], index: 20, kind: input, shape index: {}]
  %s21 = inlined_call_operand.vmem [shape: f32[1,128], index: 21, kind: input, shape index: {}]
  %s22 = inlined_call_operand.hbm [shape: bf16[384,128], index: 22, kind: input, shape index: {}]
  %s23 = inlined_call_operand.vmem [shape: f32[1,128], index: 23, kind: input, shape index: {}]
  %s24 = inlined_call_operand.hbm [shape: f32[128,128], index: 24, kind: input, shape index: {}]
  %s25 = inlined_call_operand.vmem [shape: f32[1,128], index: 25, kind: input, shape index: {}]
  %s26 = inlined_call_operand.hbm [shape: f32[2,1,128], index: 26, kind: output, shape index: {}]
  %s27 = sld [smem:[#allocation0]]
  $region209: #{resnet_forward.1} parent=0
    _
  %s29 = ssub.s32 1, %s27
  %s30 = scalar_select 0, %s29, %s27
  $region1: #{resnet_forward.1} parent=0
    #allocation2 [shape = 'u8[2048]{0}', space=vmem, size = 0x800, scoped, tag = 'input window, operand 1, single buffered']
    #allocation3 [shape = 's32[2]{0}', space=sflag, size = 0x8, scoped, tag = 'scoped memory for resnet_forward.1']
    #allocation4 [shape = 's32[2]{0}', space=sflag, size = 0x8, scoped, tag = 'scoped memory for resnet_forward.1']
    #allocation5 [shape = 'u8[512]{0}', space=vmem, size = 0x400, scoped, tag = 'input window, operand 3, single buffered']
    #allocation6 [shape = 's32[1]{0}', space=sflag, size = 0x4, scoped, tag = 'scoped memory for resnet_forward.1']
    #allocation7 [shape = 'u8[81920]{0}', space=vmem, size = 0x14000, scoped, tag = 'input window, operand 4, single buffered']
    #allocation8 [shape = 'u8[512]{0}', space=vmem, size = 0x400, scoped, tag = 'input window, operand 5, single buffered']
    #allocation9 [shape = 's32[1]{0}', space=sflag, size = 0x4, scoped, tag = 'scoped memory for resnet_forward.1']
    #allocation10 [shape = 'u8[49152]{0}', space=vmem, size = 0xc000, scoped, tag = 'input window, operand 6, single buffered']
    #allocation11 [shape = 'u8[512]{0}', space=vmem, size = 0x400, scoped, tag = 'input window, operand 7, single buffered']
    #allocation12 [shape = 's32[1]{0}', space=sflag, size = 0x4, scoped, tag = 'scoped memory for resnet_forward.1']
    #allocation13 [shape = 'u8[512]{0}', space=vmem, size = 0x400, scoped, tag = 'input window, operand 10, single buffered']
    #allocation14 [shape = 'u8[512]{0}', space=vmem, size = 0x400, scoped, tag = 'input window, operand 11, single buffered']
    #allocation15 [shape = 's32[1]{0}', space=sflag, size = 0x4, scoped, tag = 'scoped memory for resnet_forward.1']
    #allocation16 [shape = 'u8[163840]{0}', space=vmem, size = 0x28000, scoped, tag = 'input window, operand 12, single buffered']
    #allocation17 [shape = 'u8[512]{0}', space=vmem, size = 0x400, scoped, tag = 'input window, operand 13, single buffered']
    #allocation18 [shape = 's32[1]{0}', space=sflag, size = 0x4, scoped, tag = 'scoped memory for resnet_forward.1']
    #allocation19 [shape = 'u8[98304]{0}', space=vmem, size = 0x18000, scoped, tag = 'input window, operand 14, single buffered']
    #allocation20 [shape = 'u8[512]{0}', space=vmem, size = 0x400, scoped, tag = 'input window, operand 15, single buffered']
    #allocation21 [shape = 's32[1]{0}', space=sflag, size = 0x4, scoped, tag = 'scoped memory for resnet_forward.1']
    #allocation22 [shape = 'u8[65536]{0}', space=vmem, size = 0x10000, scoped, tag = 'input window, operand 16, single buffered']
    #allocation23 [shape = 'u8[512]{0}', space=vmem, size = 0x400, scoped, tag = 'input window, operand 18, single buffered']
    #allocation24 [shape = 's32[1]{0}', space=sflag, size = 0x4, scoped, tag = 'scoped memory for resnet_forward.1']
    #allocation25 [shape = 'u8[512]{0}', space=vmem, size = 0x400, scoped, tag = 'input window, operand 19, single buffered']
    #allocation26 [shape = 'u8[163840]{0}', space=vmem, size = 0x28000, scoped, tag = 'input window, operand 20, single buffered']
    #allocation27 [shape = 's32[1]{0}', space=sflag, size = 0x4, scoped, tag = 'scoped memory for resnet_forward.1']
    #allocation28 [shape = 'u8[98304]{0}', space=vmem, size = 0x18000, scoped, tag = 'input window, operand 22, single buffered']
    #allocation29 [shape = 'u8[65536]{0}', space=vmem, size = 0x10000, scoped, tag = 'input window, operand 24, single buffered']
    #allocation30 [shape = 's32[1]{0}', space=sflag, size = 0x4, scoped, tag = 'scoped memory for resnet_forward.1']
    #allocation31 [shape = 'u8[1024]{0}', space=vmem, size = 0x400, scoped, tag = 'output window, operand 0']
    %31 = vsyncpa [#allocation3], 0
    %32 = vsyncpa [#allocation6], 0
    %33 = vsyncpa [#allocation9], 0
    %34 = vsyncpa [#allocation12], 0
    %35 = vsyncpa [#allocation15], 0
    %36 = vsyncpa [#allocation18], 0
    %37 = vsyncpa [#allocation21], 0
    %38 = vsyncpa [#allocation24], 0
    %39 = vsyncpa [#allocation27], 0
    %40 = vsyncpa [#allocation30], 0
    %41 = vsyncpa [#allocation4], 0
    %s42 = scalar_lea.sflag [#allocation4], 1
    %43 = vsyncpa %s42, 0
    loop: start=0, step=1, limit=4
    $region2: #{resnet_forward.1} parent=1 // loop_pre_header
      _
    $region3: #{resnet_forward.1} parent=1 // loop_header
      %s45 = sphi 0, %s49
      %p46 = scmp.ge.s32.totalorder %s45, 4
      %s55 = sphi 0, %s57
      %s58 = sphi 0, %s55
      %s59 = sphi 0, %s58
      %s75 = sphi 0, %s59
      %s79 = sphi 0, %s79
      %s81 = sphi 0, %s79
      %s82 = sphi 0, %s81
      %s96 = sphi 0, %s82
      %s100 = sphi 0, %s100
      %s102 = sphi 0, %s100
      %s103 = sphi 0, %s102
      %s117 = sphi 0, %s103
      %s121 = sphi 0, %s121
      %s123 = sphi 0, %s121
      %s124 = sphi 0, %s123
      %s138 = sphi 0, %s124
      %s142 = sphi 0, %s142
      %s144 = sphi 0, %s142
      %s145 = sphi 0, %s144
      %s159 = sphi 0, %s145
      %s163 = sphi 0, %s163
      %s165 = sphi 0, %s163
      %s166 = sphi 0, %s165
      %s180 = sphi 0, %s166
      %s184 = sphi 0, %s184
      %s186 = sphi 0, %s184
      %s187 = sphi 0, %s186
      %s201 = sphi 0, %s187
      %s205 = sphi 0, %s205
      %s207 = sphi 0, %s205
      %s208 = sphi 0, %s207
      %s222 = sphi 0, %s208
      %s226 = sphi 0, %s226
      %s228 = sphi 0, %s226
      %s229 = sphi 0, %s228
      %s243 = sphi 0, %s229
      %s247 = sphi 0, %s247
      %s249 = sphi 0, %s247
      %s250 = sphi 0, %s249
      %s264 = sphi 0, %s250
      %s268 = sphi 0, %s268
      %s270 = sphi 0, %s268
      %s271 = sphi 0, %s270
      %s285 = sphi 0, %s271
      %s289 = sphi 0, %s289
      %s291 = sphi 0, %s289
      %s292 = sphi 0, %s291
      %s306 = sphi 0, %s292
      %s310 = sphi 0, %s310
      %s312 = sphi 0, %s310
      %s313 = sphi 0, %s312
      %s327 = sphi 0, %s313
      %s331 = sphi 0, %s331
      %s333 = sphi 0, %s331
      %s334 = sphi 0, %s333
      %s348 = sphi 0, %s334
      %s352 = sphi 0, %s352
      %s354 = sphi 0, %s352
      %s355 = sphi 0, %s354
      %s369 = sphi 0, %s355
      %s373 = sphi 0, %s373
      %s375 = sphi 0, %s373
      %s376 = sphi 0, %s375
      %s390 = sphi 0, %s376
      %s394 = sphi 0, %s394
      %s396 = sphi 0, %s394
      %s397 = sphi 0, %s396
      %s411 = sphi 0, %s397
      %s415 = sphi 0, %s415
      %s417 = sphi 0, %s415
      %s418 = sphi 0, %s417
      %s432 = sphi 0, %s418
      %s436 = sphi 0, %s436
      %s438 = sphi 0, %s436
      %s439 = sphi 0, %s438
      %s453 = sphi 0, %s439
      %s457 = sphi 0, %s457
      %s459 = sphi 0, %s457
      %s460 = sphi 0, %s459
      %s474 = sphi 0, %s460
      %s478 = sphi 0, %s478
      %s480 = sphi 0, %s478
      %s481 = sphi 0, %s480
      %s495 = sphi 0, %s481
      %s499 = sphi 0, %s499
      %s501 = sphi 0, %s499
      %s502 = sphi 0, %s501
      %s516 = sphi 0, %s502
      %s520 = sphi 0, %s520
      %s522 = sphi 0, %s520
      %s523 = sphi 0, %s522
      %s537 = sphi 0, %s523
      %s541 = sphi 0, %s541
      %s543 = sphi 0, %s541
      %s544 = sphi 0, %s543
      %s558 = sphi 0, %s544
      %s562 = sphi 0, %s562
      %s564 = sphi 0, %s562
      %s565 = sphi 0, %s564
      %s579 = sphi 0, %s565
      %s583 = sphi 0, %s583
      %s585 = sphi 0, %s583
      %s586 = sphi 0, %s585
      %s600 = sphi 0, %s586
      %s606 = sphi 0, %s608
      %s609 = sphi 0, %s606
      %s610 = sphi 0, %s609
      %s626 = sphi 0, %s610
    $region4: #{resnet_forward.1} parent=1 // loop_header_branch
      %48 = sbr.rel (%p46) target = $region8
    $region5: #{resnet_forward.1} parent=1 // loop_body
      %s50 = ssub.s32 %s45, 1
      %s51 = ssub.s32 %s45, 2
      %s52 = sadd.s32 %s45, 1
      %s53 = ssub.s32 %s45, %s52
      %p54 = scmp.eq.s32.totalorder %s53, 0
      %s56 = sadd.s32 %s55, 1
      %s57 = scalar_select %p54, %s55, %s56
      %p60 = pneg %p54
      %p61 = scmp.eq.s32.totalorder %s45, 1
      %p62 = por %p60, %p61
      %p63 = scmp.ne.s32.totalorder %s55, %s58
      %p64 = scmp.eq.s32.totalorder %s45, 0
      %p65 = por %p63, %p64
      %p66 = scmp.ne.s32.totalorder %s55, %s58
      %p67 = scmp.eq.s32.totalorder %s50, 1
      %p68 = por %p66, %p67
      %p69 = scmp.ne.s32.totalorder %s58, %s59
      %p70 = scmp.eq.s32.totalorder %s50, 0
      %p71 = por %p69, %p70
      %p72 = scmp.ne.s32.totalorder %s58, %s59
      %p73 = scmp.eq.s32.totalorder %s51, 1
      %p74 = por %p72, %p73
      %p76 = scmp.ne.s32.totalorder %s59, %s75
      %p77 = scmp.eq.s32.totalorder %s51, 0
      %p78 = por %p76, %p77
      %s80 = sadd.s32 %s79, 1
      %p83 = scmp.eq.s32.totalorder %s45, 1
      %p84 = scmp.ne.s32.totalorder %s79, %s81
      %p85 = scmp.eq.s32.totalorder %s45, 0
      %p86 = por %p84, %p85
      %p87 = scmp.ne.s32.totalorder %s79, %s81
      %p88 = scmp.eq.s32.totalorder %s50, 1
      %p89 = por %p87, %p88
      %p90 = scmp.ne.s32.totalorder %s81, %s82
      %p91 = scmp.eq.s32.totalorder %s50, 0
      %p92 = por %p90, %p91
      %p93 = scmp.ne.s32.totalorder %s81, %s82
      %p94 = scmp.eq.s32.totalorder %s51, 1
      %p95 = por %p93, %p94
      %p97 = scmp.ne.s32.totalorder %s82, %s96
      %p98 = scmp.eq.s32.totalorder %s51, 0
      %p99 = por %p97, %p98
      %s101 = sadd.s32 %s100, 1
      %p104 = scmp.eq.s32.totalorder %s45, 1
      %p105 = scmp.ne.s32.totalorder %s100, %s102
      %p106 = scmp.eq.s32.totalorder %s45, 0
      %p107 = por %p105, %p106
      %p108 = scmp.ne.s32.totalorder %s100, %s102
      %p109 = scmp.eq.s32.totalorder %s50, 1
      %p110 = por %p108, %p109
      %p111 = scmp.ne.s32.totalorder %s102, %s103
      %p112 = scmp.eq.s32.totalorder %s50, 0
      %p113 = por %p111, %p112
      %p114 = scmp.ne.s32.totalorder %s102, %s103
      %p115 = scmp.eq.s32.totalorder %s51, 1
      %p116 = por %p114, %p115
      %p118 = scmp.ne.s32.totalorder %s103, %s117
      %p119 = scmp.eq.s32.totalorder %s51, 0
      %p120 = por %p118, %p119
      %s122 = sadd.s32 %s121, 1
      %p125 = scmp.eq.s32.totalorder %s45, 1
      %p126 = scmp.ne.s32.totalorder %s121, %s123
      %p127 = scmp.eq.s32.totalorder %s45, 0
      %p128 = por %p126, %p127
      %p129 = scmp.ne.s32.totalorder %s121, %s123
      %p130 = scmp.eq.s32.totalorder %s50, 1
      %p131 = por %p129, %p130
      %p132 = scmp.ne.s32.totalorder %s123, %s124
      %p133 = scmp.eq.s32.totalorder %s50, 0
      %p134 = por %p132, %p133
      %p135 = scmp.ne.s32.totalorder %s123, %s124
      %p136 = scmp.eq.s32.totalorder %s51, 1
      %p137 = por %p135, %p136
      %p139 = scmp.ne.s32.totalorder %s124, %s138
      %p140 = scmp.eq.s32.totalorder %s51, 0
      %p141 = por %p139, %p140
      %s143 = sadd.s32 %s142, 1
      %p146 = scmp.eq.s32.totalorder %s45, 1
      %p147 = scmp.ne.s32.totalorder %s142, %s144
      %p148 = scmp.eq.s32.totalorder %s45, 0
      %p149 = por %p147, %p148
      %p150 = scmp.ne.s32.totalorder %s142, %s144
      %p151 = scmp.eq.s32.totalorder %s50, 1
      %p152 = por %p150, %p151
      %p153 = scmp.ne.s32.totalorder %s144, %s145
      %p154 = scmp.eq.s32.totalorder %s50, 0
      %p155 = por %p153, %p154
      %p156 = scmp.ne.s32.totalorder %s144, %s145
      %p157 = scmp.eq.s32.totalorder %s51, 1
      %p158 = por %p156, %p157
      %p160 = scmp.ne.s32.totalorder %s145, %s159
      %p161 = scmp.eq.s32.totalorder %s51, 0
      %p162 = por %p160, %p161
      %s164 = sadd.s32 %s163, 1
      %p167 = scmp.eq.s32.totalorder %s45, 1
      %p168 = scmp.ne.s32.totalorder %s163, %s165
      %p169 = scmp.eq.s32.totalorder %s45, 0
      %p170 = por %p168, %p169
      %p171 = scmp.ne.s32.totalorder %s163, %s165
      %p172 = scmp.eq.s32.totalorder %s50, 1
      %p173 = por %p171, %p172
      %p174 = scmp.ne.s32.totalorder %s165, %s166
      %p175 = scmp.eq.s32.totalorder %s50, 0
      %p176 = por %p174, %p175
      %p177 = scmp.ne.s32.totalorder %s165, %s166
      %p178 = scmp.eq.s32.totalorder %s51, 1
      %p179 = por %p177, %p178
      %p181 = scmp.ne.s32.totalorder %s166, %s180
      %p182 = scmp.eq.s32.totalorder %s51, 0
      %p183 = por %p181, %p182
      %s185 = sadd.s32 %s184, 1
      %p188 = scmp.eq.s32.totalorder %s45, 1
      %p189 = scmp.ne.s32.totalorder %s184, %s186
      %p190 = scmp.eq.s32.totalorder %s45, 0
      %p191 = por %p189, %p190
      %p192 = scmp.ne.s32.totalorder %s184, %s186
      %p193 = scmp.eq.s32.totalorder %s50, 1
      %p194 = por %p192, %p193
      %p195 = scmp.ne.s32.totalorder %s186, %s187
      %p196 = scmp.eq.s32.totalorder %s50, 0
      %p197 = por %p195, %p196
      %p198 = scmp.ne.s32.totalorder %s186, %s187
      %p199 = scmp.eq.s32.totalorder %s51, 1
      %p200 = por %p198, %p199
      %p202 = scmp.ne.s32.totalorder %s187, %s201
      %p203 = scmp.eq.s32.totalorder %s51, 0
      %p204 = por %p202, %p203
      %s206 = sadd.s32 %s205, 1
      %p209 = scmp.eq.s32.totalorder %s45, 1
      %p210 = scmp.ne.s32.totalorder %s205, %s207
      %p211 = scmp.eq.s32.totalorder %s45, 0
      %p212 = por %p210, %p211
      %p213 = scmp.ne.s32.totalorder %s205, %s207
      %p214 = scmp.eq.s32.totalorder %s50, 1
      %p215 = por %p213, %p214
      %p216 = scmp.ne.s32.totalorder %s207, %s208
      %p217 = scmp.eq.s32.totalorder %s50, 0
      %p218 = por %p216, %p217
      %p219 = scmp.ne.s32.totalorder %s207, %s208
      %p220 = scmp.eq.s32.totalorder %s51, 1
      %p221 = por %p219, %p220
      %p223 = scmp.ne.s32.totalorder %s208, %s222
      %p224 = scmp.eq.s32.totalorder %s51, 0
      %p225 = por %p223, %p224
      %s227 = sadd.s32 %s226, 1
      %p230 = scmp.eq.s32.totalorder %s45, 1
      %p231 = scmp.ne.s32.totalorder %s226, %s228
      %p232 = scmp.eq.s32.totalorder %s45, 0
      %p233 = por %p231, %p232
      %p234 = scmp.ne.s32.totalorder %s226, %s228
      %p235 = scmp.eq.s32.totalorder %s50, 1
      %p236 = por %p234, %p235
      %p237 = scmp.ne.s32.totalorder %s228, %s229
      %p238 = scmp.eq.s32.totalorder %s50, 0
      %p239 = por %p237, %p238
      %p240 = scmp.ne.s32.totalorder %s228, %s229
      %p241 = scmp.eq.s32.totalorder %s51, 1
      %p242 = por %p240, %p241
      %p244 = scmp.ne.s32.totalorder %s229, %s243
      %p245 = scmp.eq.s32.totalorder %s51, 0
      %p246 = por %p244, %p245
      %s248 = sadd.s32 %s247, 1
      %p251 = scmp.eq.s32.totalorder %s45, 1
      %p252 = scmp.ne.s32.totalorder %s247, %s249
      %p253 = scmp.eq.s32.totalorder %s45, 0
      %p254 = por %p252, %p253
      %p255 = scmp.ne.s32.totalorder %s247, %s249
      %p256 = scmp.eq.s32.totalorder %s50, 1
      %p257 = por %p255, %p256
      %p258 = scmp.ne.s32.totalorder %s249, %s250
      %p259 = scmp.eq.s32.totalorder %s50, 0
      %p260 = por %p258, %p259
      %p261 = scmp.ne.s32.totalorder %s249, %s250
      %p262 = scmp.eq.s32.totalorder %s51, 1
      %p263 = por %p261, %p262
      %p265 = scmp.ne.s32.totalorder %s250, %s264
      %p266 = scmp.eq.s32.totalorder %s51, 0
      %p267 = por %p265, %p266
      %s269 = sadd.s32 %s268, 1
      %p272 = scmp.eq.s32.totalorder %s45, 1
      %p273 = scmp.ne.s32.totalorder %s268, %s270
      %p274 = scmp.eq.s32.totalorder %s45, 0
      %p275 = por %p273, %p274
      %p276 = scmp.ne.s32.totalorder %s268, %s270
      %p277 = scmp.eq.s32.totalorder %s50, 1
      %p278 = por %p276, %p277
      %p279 = scmp.ne.s32.totalorder %s270, %s271
      %p280 = scmp.eq.s32.totalorder %s50, 0
      %p281 = por %p279, %p280
      %p282 = scmp.ne.s32.totalorder %s270, %s271
      %p283 = scmp.eq.s32.totalorder %s51, 1
      %p284 = por %p282, %p283
      %p286 = scmp.ne.s32.totalorder %s271, %s285
      %p287 = scmp.eq.s32.totalorder %s51, 0
      %p288 = por %p286, %p287
      %s290 = sadd.s32 %s289, 1
      %p293 = scmp.eq.s32.totalorder %s45, 1
      %p294 = scmp.ne.s32.totalorder %s289, %s291
      %p295 = scmp.eq.s32.totalorder %s45, 0
      %p296 = por %p294, %p295
      %p297 = scmp.ne.s32.totalorder %s289, %s291
      %p298 = scmp.eq.s32.totalorder %s50, 1
      %p299 = por %p297, %p298
      %p300 = scmp.ne.s32.totalorder %s291, %s292
      %p301 = scmp.eq.s32.totalorder %s50, 0
      %p302 = por %p300, %p301
      %p303 = scmp.ne.s32.totalorder %s291, %s292
      %p304 = scmp.eq.s32.totalorder %s51, 1
      %p305 = por %p303, %p304
      %p307 = scmp.ne.s32.totalorder %s292, %s306
      %p308 = scmp.eq.s32.totalorder %s51, 0
      %p309 = por %p307, %p308
      %s311 = sadd.s32 %s310, 1
      %p314 = scmp.eq.s32.totalorder %s45, 1
      %p315 = scmp.ne.s32.totalorder %s310, %s312
      %p316 = scmp.eq.s32.totalorder %s45, 0
      %p317 = por %p315, %p316
      %p318 = scmp.ne.s32.totalorder %s310, %s312
      %p319 = scmp.eq.s32.totalorder %s50, 1
      %p320 = por %p318, %p319
      %p321 = scmp.ne.s32.totalorder %s312, %s313
      %p322 = scmp.eq.s32.totalorder %s50, 0
      %p323 = por %p321, %p322
      %p324 = scmp.ne.s32.totalorder %s312, %s313
      %p325 = scmp.eq.s32.totalorder %s51, 1
      %p326 = por %p324, %p325
      %p328 = scmp.ne.s32.totalorder %s313, %s327
      %p329 = scmp.eq.s32.totalorder %s51, 0
      %p330 = por %p328, %p329
      %s332 = sadd.s32 %s331, 1
      %p335 = scmp.eq.s32.totalorder %s45, 1
      %p336 = scmp.ne.s32.totalorder %s331, %s333
      %p337 = scmp.eq.s32.totalorder %s45, 0
      %p338 = por %p336, %p337
      %p339 = scmp.ne.s32.totalorder %s331, %s333
      %p340 = scmp.eq.s32.totalorder %s50, 1
      %p341 = por %p339, %p340
      %p342 = scmp.ne.s32.totalorder %s333, %s334
      %p343 = scmp.eq.s32.totalorder %s50, 0
      %p344 = por %p342, %p343
      %p345 = scmp.ne.s32.totalorder %s333, %s334
      %p346 = scmp.eq.s32.totalorder %s51, 1
      %p347 = por %p345, %p346
      %p349 = scmp.ne.s32.totalorder %s334, %s348
      %p350 = scmp.eq.s32.totalorder %s51, 0
      %p351 = por %p349, %p350
      %s353 = sadd.s32 %s352, 1
      %p356 = scmp.eq.s32.totalorder %s45, 1
      %p357 = scmp.ne.s32.totalorder %s352, %s354
      %p358 = scmp.eq.s32.totalorder %s45, 0
      %p359 = por %p357, %p358
      %p360 = scmp.ne.s32.totalorder %s352, %s354
      %p361 = scmp.eq.s32.totalorder %s50, 1
      %p362 = por %p360, %p361
      %p363 = scmp.ne.s32.totalorder %s354, %s355
      %p364 = scmp.eq.s32.totalorder %s50, 0
      %p365 = por %p363, %p364
      %p366 = scmp.ne.s32.totalorder %s354, %s355
      %p367 = scmp.eq.s32.totalorder %s51, 1
      %p368 = por %p366, %p367
      %p370 = scmp.ne.s32.totalorder %s355, %s369
      %p371 = scmp.eq.s32.totalorder %s51, 0
      %p372 = por %p370, %p371
      %s374 = sadd.s32 %s373, 1
      %p377 = scmp.eq.s32.totalorder %s45, 1
      %p378 = scmp.ne.s32.totalorder %s373, %s375
      %p379 = scmp.eq.s32.totalorder %s45, 0
      %p380 = por %p378, %p379
      %p381 = scmp.ne.s32.totalorder %s373, %s375
      %p382 = scmp.eq.s32.totalorder %s50, 1
      %p383 = por %p381, %p382
      %p384 = scmp.ne.s32.totalorder %s375, %s376
      %p385 = scmp.eq.s32.totalorder %s50, 0
      %p386 = por %p384, %p385
      %p387 = scmp.ne.s32.totalorder %s375, %s376
      %p388 = scmp.eq.s32.totalorder %s51, 1
      %p389 = por %p387, %p388
      %p391 = scmp.ne.s32.totalorder %s376, %s390
      %p392 = scmp.eq.s32.totalorder %s51, 0
      %p393 = por %p391, %p392
      %s395 = sadd.s32 %s394, 1
      %p398 = scmp.eq.s32.totalorder %s45, 1
      %p399 = scmp.ne.s32.totalorder %s394, %s396
      %p400 = scmp.eq.s32.totalorder %s45, 0
      %p401 = por %p399, %p400
      %p402 = scmp.ne.s32.totalorder %s394, %s396
      %p403 = scmp.eq.s32.totalorder %s50, 1
      %p404 = por %p402, %p403
      %p405 = scmp.ne.s32.totalorder %s396, %s397
      %p406 = scmp.eq.s32.totalorder %s50, 0
      %p407 = por %p405, %p406
      %p408 = scmp.ne.s32.totalorder %s396, %s397
      %p409 = scmp.eq.s32.totalorder %s51, 1
      %p410 = por %p408, %p409
      %p412 = scmp.ne.s32.totalorder %s397, %s411
      %p413 = scmp.eq.s32.totalorder %s51, 0
      %p414 = por %p412, %p413
      %s416 = sadd.s32 %s415, 1
      %p419 = scmp.eq.s32.totalorder %s45, 1
      %p420 = scmp.ne.s32.totalorder %s415, %s417
      %p421 = scmp.eq.s32.totalorder %s45, 0
      %p422 = por %p420, %p421
      %p423 = scmp.ne.s32.totalorder %s415, %s417
      %p424 = scmp.eq.s32.totalorder %s50, 1
      %p425 = por %p423, %p424
      %p426 = scmp.ne.s32.totalorder %s417, %s418
      %p427 = scmp.eq.s32.totalorder %s50, 0
      %p428 = por %p426, %p427
      %p429 = scmp.ne.s32.totalorder %s417, %s418
      %p430 = scmp.eq.s32.totalorder %s51, 1
      %p431 = por %p429, %p430
      %p433 = scmp.ne.s32.totalorder %s418, %s432
      %p434 = scmp.eq.s32.totalorder %s51, 0
      %p435 = por %p433, %p434
      %s437 = sadd.s32 %s436, 1
      %p440 = scmp.eq.s32.totalorder %s45, 1
      %p441 = scmp.ne.s32.totalorder %s436, %s438
      %p442 = scmp.eq.s32.totalorder %s45, 0
      %p443 = por %p441, %p442
      %p444 = scmp.ne.s32.totalorder %s436, %s438
      %p445 = scmp.eq.s32.totalorder %s50, 1
      %p446 = por %p444, %p445
      %p447 = scmp.ne.s32.totalorder %s438, %s439
      %p448 = scmp.eq.s32.totalorder %s50, 0
      %p449 = por %p447, %p448
      %p450 = scmp.ne.s32.totalorder %s438, %s439
      %p451 = scmp.eq.s32.totalorder %s51, 1
      %p452 = por %p450, %p451
      %p454 = scmp.ne.s32.totalorder %s439, %s453
      %p455 = scmp.eq.s32.totalorder %s51, 0
      %p456 = por %p454, %p455
      %s458 = sadd.s32 %s457, 1
      %p461 = scmp.eq.s32.totalorder %s45, 1
      %p462 = scmp.ne.s32.totalorder %s457, %s459
      %p463 = scmp.eq.s32.totalorder %s45, 0
      %p464 = por %p462, %p463
      %p465 = scmp.ne.s32.totalorder %s457, %s459
      %p466 = scmp.eq.s32.totalorder %s50, 1
      %p467 = por %p465, %p466
      %p468 = scmp.ne.s32.totalorder %s459, %s460
      %p469 = scmp.eq.s32.totalorder %s50, 0
      %p470 = por %p468, %p469
      %p471 = scmp.ne.s32.totalorder %s459, %s460
      %p472 = scmp.eq.s32.totalorder %s51, 1
      %p473 = por %p471, %p472
      %p475 = scmp.ne.s32.totalorder %s460, %s474
      %p476 = scmp.eq.s32.totalorder %s51, 0
      %p477 = por %p475, %p476
      %s479 = sadd.s32 %s478, 1
      %p482 = scmp.eq.s32.totalorder %s45, 1
      %p483 = scmp.ne.s32.totalorder %s478, %s480
      %p484 = scmp.eq.s32.totalorder %s45, 0
      %p485 = por %p483, %p484
      %p486 = scmp.ne.s32.totalorder %s478, %s480
      %p487 = scmp.eq.s32.totalorder %s50, 1
      %p488 = por %p486, %p487
      %p489 = scmp.ne.s32.totalorder %s480, %s481
      %p490 = scmp.eq.s32.totalorder %s50, 0
      %p491 = por %p489, %p490
      %p492 = scmp.ne.s32.totalorder %s480, %s481
      %p493 = scmp.eq.s32.totalorder %s51, 1
      %p494 = por %p492, %p493
      %p496 = scmp.ne.s32.totalorder %s481, %s495
      %p497 = scmp.eq.s32.totalorder %s51, 0
      %p498 = por %p496, %p497
      %s500 = sadd.s32 %s499, 1
      %p503 = scmp.eq.s32.totalorder %s45, 1
      %p504 = scmp.ne.s32.totalorder %s499, %s501
      %p505 = scmp.eq.s32.totalorder %s45, 0
      %p506 = por %p504, %p505
      %p507 = scmp.ne.s32.totalorder %s499, %s501
      %p508 = scmp.eq.s32.totalorder %s50, 1
      %p509 = por %p507, %p508
      %p510 = scmp.ne.s32.totalorder %s501, %s502
      %p511 = scmp.eq.s32.totalorder %s50, 0
      %p512 = por %p510, %p511
      %p513 = scmp.ne.s32.totalorder %s501, %s502
      %p514 = scmp.eq.s32.totalorder %s51, 1
      %p515 = por %p513, %p514
      %p517 = scmp.ne.s32.totalorder %s502, %s516
      %p518 = scmp.eq.s32.totalorder %s51, 0
      %p519 = por %p517, %p518
      %s521 = sadd.s32 %s520, 1
      %p524 = scmp.eq.s32.totalorder %s45, 1
      %p525 = scmp.ne.s32.totalorder %s520, %s522
      %p526 = scmp.eq.s32.totalorder %s45, 0
      %p527 = por %p525, %p526
      %p528 = scmp.ne.s32.totalorder %s520, %s522
      %p529 = scmp.eq.s32.totalorder %s50, 1
      %p530 = por %p528, %p529
      %p531 = scmp.ne.s32.totalorder %s522, %s523
      %p532 = scmp.eq.s32.totalorder %s50, 0
      %p533 = por %p531, %p532
      %p534 = scmp.ne.s32.totalorder %s522, %s523
      %p535 = scmp.eq.s32.totalorder %s51, 1
      %p536 = por %p534, %p535
      %p538 = scmp.ne.s32.totalorder %s523, %s537
      %p539 = scmp.eq.s32.totalorder %s51, 0
      %p540 = por %p538, %p539
      %s542 = sadd.s32 %s541, 1
      %p545 = scmp.eq.s32.totalorder %s45, 1
      %p546 = scmp.ne.s32.totalorder %s541, %s543
      %p547 = scmp.eq.s32.totalorder %s45, 0
      %p548 = por %p546, %p547
      %p549 = scmp.ne.s32.totalorder %s541, %s543
      %p550 = scmp.eq.s32.totalorder %s50, 1
      %p551 = por %p549, %p550
      %p552 = scmp.ne.s32.totalorder %s543, %s544
      %p553 = scmp.eq.s32.totalorder %s50, 0
      %p554 = por %p552, %p553
      %p555 = scmp.ne.s32.totalorder %s543, %s544
      %p556 = scmp.eq.s32.totalorder %s51, 1
      %p557 = por %p555, %p556
      %p559 = scmp.ne.s32.totalorder %s544, %s558
      %p560 = scmp.eq.s32.totalorder %s51, 0
      %p561 = por %p559, %p560
      %s563 = sadd.s32 %s562, 1
      %p566 = scmp.eq.s32.totalorder %s45, 1
      %p567 = scmp.ne.s32.totalorder %s562, %s564
      %p568 = scmp.eq.s32.totalorder %s45, 0
      %p569 = por %p567, %p568
      %p570 = scmp.ne.s32.totalorder %s562, %s564
      %p571 = scmp.eq.s32.totalorder %s50, 1
      %p572 = por %p570, %p571
      %p573 = scmp.ne.s32.totalorder %s564, %s565
      %p574 = scmp.eq.s32.totalorder %s50, 0
      %p575 = por %p573, %p574
      %p576 = scmp.ne.s32.totalorder %s564, %s565
      %p577 = scmp.eq.s32.totalorder %s51, 1
      %p578 = por %p576, %p577
      %p580 = scmp.ne.s32.totalorder %s565, %s579
      %p581 = scmp.eq.s32.totalorder %s51, 0
      %p582 = por %p580, %p581
      %s584 = sadd.s32 %s583, 1
      %p587 = scmp.eq.s32.totalorder %s45, 1
      %p588 = scmp.ne.s32.totalorder %s583, %s585
      %p589 = scmp.eq.s32.totalorder %s45, 0
      %p590 = por %p588, %p589
      %p591 = scmp.ne.s32.totalorder %s583, %s585
      %p592 = scmp.eq.s32.totalorder %s50, 1
      %p593 = por %p591, %p592
      %p594 = scmp.ne.s32.totalorder %s585, %s586
      %p595 = scmp.eq.s32.totalorder %s50, 0
      %p596 = por %p594, %p595
      %p597 = scmp.ne.s32.totalorder %s585, %s586
      %p598 = scmp.eq.s32.totalorder %s51, 1
      %p599 = por %p597, %p598
      %p601 = scmp.ne.s32.totalorder %s586, %s600
      %p602 = scmp.eq.s32.totalorder %s51, 0
      %p603 = por %p601, %p602
      %s604 = ssub.s32 %s45, %s52
      %p605 = scmp.eq.s32.totalorder %s604, 0
      %s607 = sadd.s32 %s606, 1
      %s608 = scalar_select %p605, %s606, %s607
      %p611 = pneg %p605
      %p612 = scmp.eq.s32.totalorder %s45, 1
      %p613 = por %p611, %p612
      %p614 = scmp.ne.s32.totalorder %s606, %s609
      %p615 = scmp.eq.s32.totalorder %s45, 0
      %p616 = por %p614, %p615
      %p617 = scmp.ne.s32.totalorder %s606, %s609
      %p618 = scmp.eq.s32.totalorder %s50, 1
      %p619 = por %p617, %p618
      %p620 = scmp.ne.s32.totalorder %s609, %s610
      %p621 = scmp.eq.s32.totalorder %s50, 0
      %p622 = por %p620, %p621
      %p623 = scmp.ne.s32.totalorder %s609, %s610
      %p624 = scmp.eq.s32.totalorder %s51, 1
      %p625 = por %p623, %p624
      %p627 = scmp.ne.s32.totalorder %s610, %s626
      %p628 = scmp.eq.s32.totalorder %s51, 0
      %p629 = por %p627, %p628
      %p630 = scmp.le.s32.totalorder 1, %s45
      %p631 = scmp.lt.s32.totalorder %s45, 3
      %p632 = pnand %p630, %p631
      %p633 = pneg %p632
      // Predicated region
      $region9: #{resnet_forward.1} parent=5 // pred_check
        _
      $region10: #{resnet_forward.1} parent=5 // pred_check_branch
        %635 = sbr.rel (%p632) target = $region12
      $region11: #{resnet_forward.1} parent=5 // pred_region
        %s636 = ssub.s32 %s45, 1
        // Predicated region
        $region13: #{resnet_forward.1} parent=11 // pred_check
          %p637 = pneg %p92
        $region14: #{resnet_forward.1} parent=11 // pred_check_branch
          %639 = sbr.rel (%p637) target = $region16
        $region15: #{resnet_forward.1} parent=11 // pred_region
          %s641 = ssub.s32 64, 64
          %642 = vsyncadd [#allocation3], %s641
          %s644 = sshll.u32 [#allocation2], 4
          %s645 = int_to_ptr.vmem [resolvable:$true] %s644
          %647 = dma.hbm_to_vmem [thread:$0]  %s1, 64, %s645, [#allocation3]
        $region16: #{resnet_forward.1} parent=11 // pred_fallthru
          _
        // Predicated region
        $region17: #{resnet_forward.1} parent=11 // pred_check
          %p648 = pneg %p113
        $region18: #{resnet_forward.1} parent=11 // pred_check_branch
          %650 = sbr.rel (%p648) target = $region20
        $region19: #{resnet_forward.1} parent=11 // pred_region
          _
        $region20: #{resnet_forward.1} parent=11 // pred_fallthru
          _
        // Predicated region
        $region21: #{resnet_forward.1} parent=11 // pred_check
          %p651 = pneg %p134
        $region22: #{resnet_forward.1} parent=11 // pred_check_branch
          %653 = sbr.rel (%p651) target = $region24
        $region23: #{resnet_forward.1} parent=11 // pred_region
          %s655 = ssub.s32 16, 16
          %656 = vsyncadd [#allocation6], %s655
          %s658 = sshll.u32 [#allocation5], 4
          %s659 = int_to_ptr.vmem [resolvable:$true] %s658
          %661 = dma.hbm_to_vmem [thread:$0]  %s3, 16, %s659, [#allocation6]
        $region24: #{resnet_forward.1} parent=11 // pred_fallthru
          _
        // Predicated region
        $region25: #{resnet_forward.1} parent=11 // pred_check
          %p662 = pneg %p155
        $region26: #{resnet_forward.1} parent=11 // pred_check_branch
          %664 = sbr.rel (%p662) target = $region28
        $region27: #{resnet_forward.1} parent=11 // pred_region
          %s666 = ssub.s32 2560, 2560
          %667 = vsyncadd [#allocation6], %s666
          %s668 = sshll.u32 [#allocation7], 4
          %s669 = int_to_ptr.vmem [resolvable:$true] %s668
          %674 = dma.hbm_to_vmem [thread:$0]  %s4, 2560, %s669, [#allocation6], 64, 64, 4
        $region28: #{resnet_forward.1} parent=11 // pred_fallthru
          _
        // Predicated region
        $region29: #{resnet_forward.1} parent=11 // pred_check
          %p675 = pneg %p176
        $region30: #{resnet_forward.1} parent=11 // pred_check_branch
          %677 = sbr.rel (%p675) target = $region32
        $region31: #{resnet_forward.1} parent=11 // pred_region
          %s679 = ssub.s32 16, 16
          %680 = vsyncadd [#allocation9], %s679
          %s682 = sshll.u32 [#allocation8], 4
          %s683 = int_to_ptr.vmem [resolvable:$true] %s682
          %685 = dma.hbm_to_vmem [thread:$0]  %s5, 16, %s683, [#allocation9]
        $region32: #{resnet_forward.1} parent=11 // pred_fallthru
          _
        // Predicated region
        $region33: #{resnet_forward.1} parent=11 // pred_check
          %p686 = pneg %p197
        $region34: #{resnet_forward.1} parent=11 // pred_check_branch
          %688 = sbr.rel (%p686) target = $region36
        $region35: #{resnet_forward.1} parent=11 // pred_region
          %s690 = ssub.s32 1536, 1536
          %691 = vsyncadd [#allocation9], %s690
          %s692 = sshll.u32 [#allocation10], 4
          %s693 = int_to_ptr.vmem [resolvable:$true] %s692
          %698 = dma.hbm_to_vmem [thread:$0]  %s6, 1536, %s693, [#allocation9], 64, 64, 4
        $region36: #{resnet_forward.1} parent=11 // pred_fallthru
          _
        // Predicated region
        $region37: #{resnet_forward.1} parent=11 // pred_check
          %p699 = pneg %p218
        $region38: #{resnet_forward.1} parent=11 // pred_check_branch
          %701 = sbr.rel (%p699) target = $region40
        $region39: #{resnet_forward.1} parent=11 // pred_region
          %s703 = ssub.s32 16, 16
          %704 = vsyncadd [#allocation12], %s703
          %s706 = sshll.u32 [#allocation11], 4
          %s707 = int_to_ptr.vmem [resolvable:$true] %s706
          %709 = dma.hbm_to_vmem [thread:$0]  %s7, 16, %s707, [#allocation12]
        $region40: #{resnet_forward.1} parent=11 // pred_fallthru
          _
        // Predicated region
        $region41: #{resnet_forward.1} parent=11 // pred_check
          %p710 = pneg %p239
        $region42: #{resnet_forward.1} parent=11 // pred_check_branch
          %712 = sbr.rel (%p710) target = $region44
        $region43: #{resnet_forward.1} parent=11 // pred_region
          _
        $region44: #{resnet_forward.1} parent=11 // pred_fallthru
          _
        // Predicated region
        $region45: #{resnet_forward.1} parent=11 // pred_check
          %p713 = pneg %p260
        $region46: #{resnet_forward.1} parent=11 // pred_check_branch
          %715 = sbr.rel (%p713) target = $region48
        $region47: #{resnet_forward.1} parent=11 // pred_region
          _
        $region48: #{resnet_forward.1} parent=11 // pred_fallthru
          _
        // Predicated region
        $region49: #{resnet_forward.1} parent=11 // pred_check
          %p716 = pneg %p281
        $region50: #{resnet_forward.1} parent=11 // pred_check_branch
          %718 = sbr.rel (%p716) target = $region52
        $region51: #{resnet_forward.1} parent=11 // pred_region
          %s720 = ssub.s32 16, 16
          %721 = vsyncadd [#allocation12], %s720
          %s723 = sshll.u32 [#allocation13], 4
          %s724 = int_to_ptr.vmem [resolvable:$true] %s723
          %726 = dma.hbm_to_vmem [thread:$0]  %s10, 16, %s724, [#allocation12]
        $region52: #{resnet_forward.1} parent=11 // pred_fallthru
          _
        // Predicated region
        $region53: #{resnet_forward.1} parent=11 // pred_check
          %p727 = pneg %p302
        $region54: #{resnet_forward.1} parent=11 // pred_check_branch
          %729 = sbr.rel (%p727) target = $region56
        $region55: #{resnet_forward.1} parent=11 // pred_region
          %s731 = ssub.s32 16, 16
          %732 = vsyncadd [#allocation15], %s731
          %s734 = sshll.u32 [#allocation14], 4
          %s735 = int_to_ptr.vmem [resolvable:$true] %s734
          %737 = dma.hbm_to_vmem [thread:$0]  %s11, 16, %s735, [#allocation15]
        $region56: #{resnet_forward.1} parent=11 // pred_fallthru
          _
        // Predicated region
        $region57: #{resnet_forward.1} parent=11 // pred_check
          %p738 = pneg %p323
        $region58: #{resnet_forward.1} parent=11 // pred_check_branch
          %740 = sbr.rel (%p738) target = $region60
        $region59: #{resnet_forward.1} parent=11 // pred_region
          %s742 = ssub.s32 5120, 5120
          %743 = vsyncadd [#allocation15], %s742
          %s744 = sshll.u32 [#allocation16], 4
          %s745 = int_to_ptr.vmem [resolvable:$true] %s744
          %750 = dma.hbm_to_vmem [thread:$0]  %s12, 5120, %s745, [#allocation15], 64, 64, 4
        $region60: #{resnet_forward.1} parent=11 // pred_fallthru
          _
        // Predicated region
        $region61: #{resnet_forward.1} parent=11 // pred_check
          %p751 = pneg %p344
        $region62: #{resnet_forward.1} parent=11 // pred_check_branch
          %753 = sbr.rel (%p751) target = $region64
        $region63: #{resnet_forward.1} parent=11 // pred_region
          %s755 = ssub.s32 16, 16
          %756 = vsyncadd [#allocation18], %s755
          %s758 = sshll.u32 [#allocation17], 4
          %s759 = int_to_ptr.vmem [resolvable:$true] %s758
          %761 = dma.hbm_to_vmem [thread:$0]  %s13, 16, %s759, [#allocation18]
        $region64: #{resnet_forward.1} parent=11 // pred_fallthru
          _
        // Predicated region
        $region65: #{resnet_forward.1} parent=11 // pred_check
          %p762 = pneg %p365
        $region66: #{resnet_forward.1} parent=11 // pred_check_branch
          %764 = sbr.rel (%p762) target = $region68
        $region67: #{resnet_forward.1} parent=11 // pred_region
          %s766 = ssub.s32 3072, 3072
          %767 = vsyncadd [#allocation18], %s766
          %s768 = sshll.u32 [#allocation19], 4
          %s769 = int_to_ptr.vmem [resolvable:$true] %s768
          %774 = dma.hbm_to_vmem [thread:$0]  %s14, 3072, %s769, [#allocation18], 64, 64, 4
        $region68: #{resnet_forward.1} parent=11 // pred_fallthru
          _
        // Predicated region
        $region69: #{resnet_forward.1} parent=11 // pred_check
          %p775 = pneg %p386
        $region70: #{resnet_forward.1} parent=11 // pred_check_branch
          %777 = sbr.rel (%p775) target = $region72
        $region71: #{resnet_forward.1} parent=11 // pred_region
          %s779 = ssub.s32 16, 16
          %780 = vsyncadd [#allocation21], %s779
          %s782 = sshll.u32 [#allocation20], 4
          %s783 = int_to_ptr.vmem [resolvable:$true] %s782
          %785 = dma.hbm_to_vmem [thread:$0]  %s15, 16, %s783, [#allocation21]
        $region72: #{resnet_forward.1} parent=11 // pred_fallthru
          _
        // Predicated region
        $region73: #{resnet_forward.1} parent=11 // pred_check
          %p786 = pneg %p407
        $region74: #{resnet_forward.1} parent=11 // pred_check_branch
          %788 = sbr.rel (%p786) target = $region76
        $region75: #{resnet_forward.1} parent=11 // pred_region
          %s790 = ssub.s32 2048, 2048
          %791 = vsyncadd [#allocation21], %s790
          %s792 = sshll.u32 [#allocation22], 4
          %s793 = int_to_ptr.vmem [resolvable:$true] %s792
          %798 = dma.hbm_to_vmem [thread:$0]  %s16, 2048, %s793, [#allocation21], 128, 128, 8
        $region76: #{resnet_forward.1} parent=11 // pred_fallthru
          _
        // Predicated region
        $region77: #{resnet_forward.1} parent=11 // pred_check
          %p799 = pneg %p428
        $region78: #{resnet_forward.1} parent=11 // pred_check_branch
          %801 = sbr.rel (%p799) target = $region80
        $region79: #{resnet_forward.1} parent=11 // pred_region
          _
        $region80: #{resnet_forward.1} parent=11 // pred_fallthru
          _
        // Predicated region
        $region81: #{resnet_forward.1} parent=11 // pred_check
          %p802 = pneg %p449
        $region82: #{resnet_forward.1} parent=11 // pred_check_branch
          %804 = sbr.rel (%p802) target = $region84
        $region83: #{resnet_forward.1} parent=11 // pred_region
          %s806 = ssub.s32 16, 16
          %807 = vsyncadd [#allocation24], %s806
          %s809 = sshll.u32 [#allocation23], 4
          %s810 = int_to_ptr.vmem [resolvable:$true] %s809
          %812 = dma.hbm_to_vmem [thread:$0]  %s18, 16, %s810, [#allocation24]
        $region84: #{resnet_forward.1} parent=11 // pred_fallthru
          _
        // Predicated region
        $region85: #{resnet_forward.1} parent=11 // pred_check
          %p813 = pneg %p470
        $region86: #{resnet_forward.1} parent=11 // pred_check_branch
          %815 = sbr.rel (%p813) target = $region88
        $region87: #{resnet_forward.1} parent=11 // pred_region
          %s817 = ssub.s32 16, 16
          %818 = vsyncadd [#allocation24], %s817
          %s820 = sshll.u32 [#allocation25], 4
          %s821 = int_to_ptr.vmem [resolvable:$true] %s820
          %823 = dma.hbm_to_vmem [thread:$0]  %s19, 16, %s821, [#allocation24]
        $region88: #{resnet_forward.1} parent=11 // pred_fallthru
          _
        // Predicated region
        $region89: #{resnet_forward.1} parent=11 // pred_check
          %p824 = pneg %p491
        $region90: #{resnet_forward.1} parent=11 // pred_check_branch
          %826 = sbr.rel (%p824) target = $region92
        $region91: #{resnet_forward.1} parent=11 // pred_region
          %s828 = ssub.s32 5120, 5120
          %829 = vsyncadd [#allocation27], %s828
          %s830 = sshll.u32 [#allocation26], 4
          %s831 = int_to_ptr.vmem [resolvable:$true] %s830
          %836 = dma.hbm_to_vmem [thread:$0]  %s20, 5120, %s831, [#allocation27], 64, 64, 4
        $region92: #{resnet_forward.1} parent=11 // pred_fallthru
          _
        // Predicated region
        $region93: #{resnet_forward.1} parent=11 // pred_check
          %p837 = pneg %p512
        $region94: #{resnet_forward.1} parent=11 // pred_check_branch
          %839 = sbr.rel (%p837) target = $region96
        $region95: #{resnet_forward.1} parent=11 // pred_region
          _
        $region96: #{resnet_forward.1} parent=11 // pred_fallthru
          _
        // Predicated region
        $region97: #{resnet_forward.1} parent=11 // pred_check
          %p840 = pneg %p533
        $region98: #{resnet_forward.1} parent=11 // pred_check_branch
          %842 = sbr.rel (%p840) target = $region100
        $region99: #{resnet_forward.1} parent=11 // pred_region
          %s844 = ssub.s32 3072, 3072
          %845 = vsyncadd [#allocation27], %s844
          %s846 = sshll.u32 [#allocation28], 4
          %s847 = int_to_ptr.vmem [resolvable:$true] %s846
          %852 = dma.hbm_to_vmem [thread:$0]  %s22, 3072, %s847, [#allocation27], 64, 64, 4
        $region100: #{resnet_forward.1} parent=11 // pred_fallthru
          _
        // Predicated region
        $region101: #{resnet_forward.1} parent=11 // pred_check
          %p853 = pneg %p554
        $region102: #{resnet_forward.1} parent=11 // pred_check_branch
          %855 = sbr.rel (%p853) target = $region104
        $region103: #{resnet_forward.1} parent=11 // pred_region
          _
        $region104: #{resnet_forward.1} parent=11 // pred_fallthru
          _
        // Predicated region
        $region105: #{resnet_forward.1} parent=11 // pred_check
          %p856 = pneg %p575
        $region106: #{resnet_forward.1} parent=11 // pred_check_branch
          %858 = sbr.rel (%p856) target = $region108
        $region107: #{resnet_forward.1} parent=11 // pred_region
          %s860 = ssub.s32 2048, 2048
          %861 = vsyncadd [#allocation30], %s860
          %s862 = sshll.u32 [#allocation29], 4
          %s863 = int_to_ptr.vmem [resolvable:$true] %s862
          %868 = dma.hbm_to_vmem [thread:$0]  %s24, 2048, %s863, [#allocation30], 128, 128, 8
        $region108: #{resnet_forward.1} parent=11 // pred_fallthru
          _
        // Predicated region
        $region109: #{resnet_forward.1} parent=11 // pred_check
          %p869 = pneg %p596
        $region110: #{resnet_forward.1} parent=11 // pred_check_branch
          %871 = sbr.rel (%p869) target = $region112
        $region111: #{resnet_forward.1} parent=11 // pred_region
          _
        $region112: #{resnet_forward.1} parent=11 // pred_fallthru
          _
      $region12: #{resnet_forward.1} parent=5 // pred_fallthru
        _
      %p872 = scmp.lt.s32.totalorder %s45, 2
      // Predicated region
      $region113: #{resnet_forward.1} parent=5 // pred_check
        %p873 = pneg %p872
      $region114: #{resnet_forward.1} parent=5 // pred_check_branch
        %875 = sbr.rel (%p873) target = $region116
      $region115: #{resnet_forward.1} parent=5 // pred_region
        // Predicated region
        $region117: #{resnet_forward.1} parent=115 // pred_check
          %p876 = pneg %p65
        $region118: #{resnet_forward.1} parent=115 // pred_check_branch
          %878 = sbr.rel (%p876) target = $region120
        $region119: #{resnet_forward.1} parent=115 // pred_region
          %s879 = smul.u32 24, %s45
          %p880 = scmp.lt.s32.totalorder %s879, 47
          %s881 = scalar_select %p880, %s879, 47
          %s882 = smul.addr %s881, 4
          %s883 = scalar_lea.vmem %s0, %s882
          %s884 = smul.u32 24, %s45
        $region120: #{resnet_forward.1} parent=115 // pred_fallthru
          _
      $region116: #{resnet_forward.1} parent=5 // pred_fallthru
        _
      %p885 = scmp.le.s32.totalorder 1, %s45
      %p886 = scmp.lt.s32.totalorder %s45, 3
      %p887 = pnand %p885, %p886
      %p888 = pneg %p887
      // Predicated region
      $region121: #{resnet_forward.1} parent=5 // pred_check
        _
      $region122: #{resnet_forward.1} parent=5 // pred_check_branch
        %890 = sbr.rel (%p887) target = $region124
      $region123: #{resnet_forward.1} parent=5 // pred_region
        %s891 = ssub.s32 %s45, 1
        // Predicated region
        $region125: #{resnet_forward.1} parent=123 // pred_check
          %p892 = pneg %p92
        $region126: #{resnet_forward.1} parent=123 // pred_check_branch
          %894 = sbr.rel (%p892) target = $region128
        $region127: #{resnet_forward.1} parent=123 // pred_region
          %895 = dma.done [#allocation3], 64
        $region128: #{resnet_forward.1} parent=123 // pred_fallthru
          _
        // Predicated region
        $region129: #{resnet_forward.1} parent=123 // pred_check
          %p896 = pneg %p134
        $region130: #{resnet_forward.1} parent=123 // pred_check_branch
          %898 = sbr.rel (%p896) target = $region132
        $region131: #{resnet_forward.1} parent=123 // pred_region
          %899 = dma.done [#allocation6], 16
        $region132: #{resnet_forward.1} parent=123 // pred_fallthru
          _
        // Predicated region
        $region133: #{resnet_forward.1} parent=123 // pred_check
          %p900 = pneg %p155
        $region134: #{resnet_forward.1} parent=123 // pred_check_branch
          %902 = sbr.rel (%p900) target = $region136
        $region135: #{resnet_forward.1} parent=123 // pred_region
          %903 = dma.done [#allocation6], 2560
        $region136: #{resnet_forward.1} parent=123 // pred_fallthru
          _
        // Predicated region
        $region137: #{resnet_forward.1} parent=123 // pred_check
          %p904 = pneg %p176
        $region138: #{resnet_forward.1} parent=123 // pred_check_branch
          %906 = sbr.rel (%p904) target = $region140
        $region139: #{resnet_forward.1} parent=123 // pred_region
          %907 = dma.done [#allocation9], 16
        $region140: #{resnet_forward.1} parent=123 // pred_fallthru
          _
        // Predicated region
        $region141: #{resnet_forward.1} parent=123 // pred_check
          %p908 = pneg %p197
        $region142: #{resnet_forward.1} parent=123 // pred_check_branch
          %910 = sbr.rel (%p908) target = $region144
        $region143: #{resnet_forward.1} parent=123 // pred_region
          %911 = dma.done [#allocation9], 1536
        $region144: #{resnet_forward.1} parent=123 // pred_fallthru
          _
        // Predicated region
        $region145: #{resnet_forward.1} parent=123 // pred_check
          %p912 = pneg %p218
        $region146: #{resnet_forward.1} parent=123 // pred_check_branch
          %914 = sbr.rel (%p912) target = $region148
        $region147: #{resnet_forward.1} parent=123 // pred_region
          %915 = dma.done [#allocation12], 16
        $region148: #{resnet_forward.1} parent=123 // pred_fallthru
          _
        // Predicated region
        $region149: #{resnet_forward.1} parent=123 // pred_check
          %p916 = pneg %p281
        $region150: #{resnet_forward.1} parent=123 // pred_check_branch
          %918 = sbr.rel (%p916) target = $region152
        $region151: #{resnet_forward.1} parent=123 // pred_region
          %919 = dma.done [#allocation12], 16
        $region152: #{resnet_forward.1} parent=123 // pred_fallthru
          _
        // Predicated region
        $region153: #{resnet_forward.1} parent=123 // pred_check
          %p920 = pneg %p302
        $region154: #{resnet_forward.1} parent=123 // pred_check_branch
          %922 = sbr.rel (%p920) target = $region156
        $region155: #{resnet_forward.1} parent=123 // pred_region
          %923 = dma.done [#allocation15], 16
        $region156: #{resnet_forward.1} parent=123 // pred_fallthru
          _
        // Predicated region
        $region157: #{resnet_forward.1} parent=123 // pred_check
          %p924 = pneg %p323
        $region158: #{resnet_forward.1} parent=123 // pred_check_branch
          %926 = sbr.rel (%p924) target = $region160
        $region159: #{resnet_forward.1} parent=123 // pred_region
          %927 = dma.done [#allocation15], 5120
        $region160: #{resnet_forward.1} parent=123 // pred_fallthru
          _
        // Predicated region
        $region161: #{resnet_forward.1} parent=123 // pred_check
          %p928 = pneg %p344
        $region162: #{resnet_forward.1} parent=123 // pred_check_branch
          %930 = sbr.rel (%p928) target = $region164
        $region163: #{resnet_forward.1} parent=123 // pred_region
          %931 = dma.done [#allocation18], 16
        $region164: #{resnet_forward.1} parent=123 // pred_fallthru
          _
        // Predicated region
        $region165: #{resnet_forward.1} parent=123 // pred_check
          %p932 = pneg %p365
        $region166: #{resnet_forward.1} parent=123 // pred_check_branch
          %934 = sbr.rel (%p932) target = $region168
        $region167: #{resnet_forward.1} parent=123 // pred_region
          %935 = dma.done [#allocation18], 3072
        $region168: #{resnet_forward.1} parent=123 // pred_fallthru
          _
        // Predicated region
        $region169: #{resnet_forward.1} parent=123 // pred_check
          %p936 = pneg %p386
        $region170: #{resnet_forward.1} parent=123 // pred_check_branch
          %938 = sbr.rel (%p936) target = $region172
        $region171: #{resnet_forward.1} parent=123 // pred_region
          %939 = dma.done [#allocation21], 16
        $region172: #{resnet_forward.1} parent=123 // pred_fallthru
          _
        // Predicated region
        $region173: #{resnet_forward.1} parent=123 // pred_check
          %p940 = pneg %p407
        $region174: #{resnet_forward.1} parent=123 // pred_check_branch
          %942 = sbr.rel (%p940) target = $region176
        $region175: #{resnet_forward.1} parent=123 // pred_region
          %943 = dma.done [#allocation21], 2048
        $region176: #{resnet_forward.1} parent=123 // pred_fallthru
          _
        // Predicated region
        $region177: #{resnet_forward.1} parent=123 // pred_check
          %p944 = pneg %p449
        $region178: #{resnet_forward.1} parent=123 // pred_check_branch
          %946 = sbr.rel (%p944) target = $region180
        $region179: #{resnet_forward.1} parent=123 // pred_region
          %947 = dma.done [#allocation24], 16
        $region180: #{resnet_forward.1} parent=123 // pred_fallthru
          _
        // Predicated region
        $region181: #{resnet_forward.1} parent=123 // pred_check
          %p948 = pneg %p470
        $region182: #{resnet_forward.1} parent=123 // pred_check_branch
          %950 = sbr.rel (%p948) target = $region184
        $region183: #{resnet_forward.1} parent=123 // pred_region
          %951 = dma.done [#allocation24], 16
        $region184: #{resnet_forward.1} parent=123 // pred_fallthru
          _
        // Predicated region
        $region185: #{resnet_forward.1} parent=123 // pred_check
          %p952 = pneg %p491
        $region186: #{resnet_forward.1} parent=123 // pred_check_branch
          %954 = sbr.rel (%p952) target = $region188
        $region187: #{resnet_forward.1} parent=123 // pred_region
          %955 = dma.done [#allocation27], 5120
        $region188: #{resnet_forward.1} parent=123 // pred_fallthru
          _
        // Predicated region
        $region189: #{resnet_forward.1} parent=123 // pred_check
          %p956 = pneg %p533
        $region190: #{resnet_forward.1} parent=123 // pred_check_branch
          %958 = sbr.rel (%p956) target = $region192
        $region191: #{resnet_forward.1} parent=123 // pred_region
          %959 = dma.done [#allocation27], 3072
        $region192: #{resnet_forward.1} parent=123 // pred_fallthru
          _
        // Predicated region
        $region193: #{resnet_forward.1} parent=123 // pred_check
          %p960 = pneg %p575
        $region194: #{resnet_forward.1} parent=123 // pred_check_branch
          %962 = sbr.rel (%p960) target = $region196
        $region195: #{resnet_forward.1} parent=123 // pred_region
          %963 = dma.done [#allocation30], 2048
        $region196: #{resnet_forward.1} parent=123 // pred_fallthru
          _
        %s964 = smul.u32 24, %s50
        %p965 = scmp.lt.s32.totalorder %s964, 47
        %s966 = scalar_select %p965, %s964, 47
        %s967 = smul.addr %s966, 4
        %s968 = scalar_lea.vmem %s0, %s967
        %p969 = pneg %p71
        %p970 = pneg %p68
        %p971 = pneg %p92
        %p972 = pneg %p89
        %p973 = pneg %p113
        %p974 = pneg %p110
        %p975 = pneg %p134
        %p976 = pneg %p131
        %p977 = pneg %p155
        %p978 = pneg %p152
        %p979 = pneg %p176
        %p980 = pneg %p173
        %p981 = pneg %p197
        %p982 = pneg %p194
        %p983 = pneg %p218
        %p984 = pneg %p215
        %p985 = pneg %p239
        %p986 = pneg %p236
        %p987 = pneg %p260
        %p988 = pneg %p257
        %p989 = pneg %p281
        %p990 = pneg %p278
        %p991 = pneg %p302
        %p992 = pneg %p299
        %p993 = pneg %p323
        %p994 = pneg %p320
        %p995 = pneg %p344
        %p996 = pneg %p341
        %p997 = pneg %p365
        %p998 = pneg %p362
        %p999 = pneg %p386
        %p1000 = pneg %p383
        %p1001 = pneg %p407
        %p1002 = pneg %p404
        %p1003 = pneg %p428
        %p1004 = pneg %p425
        %p1005 = pneg %p449
        %p1006 = pneg %p446
        %p1007 = pneg %p470
        %p1008 = pneg %p467
        %p1009 = pneg %p491
        %p1010 = pneg %p488
        %p1011 = pneg %p512
        %p1012 = pneg %p509
        %p1013 = pneg %p533
        %p1014 = pneg %p530
        %p1015 = pneg %p554
        %p1016 = pneg %p551
        %p1017 = pneg %p575
        %p1018 = pneg %p572
        %p1019 = pneg %p596
        %p1020 = pneg %p593
        %p1021 = pneg %p622
        %p1022 = pneg %p619
        %s1023 = sand.u32 %s609, 1
        %s1024 = scalar_lea.sflag [#allocation4], %s1023
        %s1025 = sand.u32 %s609, 1
        %s1026 = scalar_lea.vmem [#allocation31], %s1025
        %s1027 = smul.u32 24, %s50
        %p1028 = scmp.lt.s32.totalorder %s1027, 47
        %s1029 = scalar_select %p1028, %s1027, 47
        %s1030 = smul.addr %s1029, 4
        %s1031 = scalar_lea.vmem %s0, %s1030
        %s1032 = smul.u32 24, %s50
        %v1034 = vlaneseq
        %v1035 = vshrl.u32 %v1034, 7
        %v1036 = vadd.s32 %v1035, 8
        %v1037 = vadd.s32 %v1035, 16
        %v1038 = vadd.s32 %v1035, 24
        %v1039 = vadd.s32 %v1035, 32
        %v1040 = vadd.s32 %v1035, 40
        %v1041 = vadd.s32 %v1035, 48
        %v1042 = vadd.s32 %v1035, 56
        %v1043 = vadd.s32 %v1035, 64
        %v1044 = vadd.s32 %v1035, 72
        %v1045 = vadd.s32 %v1035, 80
        %v1046 = vadd.s32 %v1035, 88
        %v1047 = vadd.s32 %v1035, 96
        %v1048 = vadd.s32 %v1035, 104
        %v1049 = vadd.s32 %v1035, 112
        %v1050 = vadd.s32 %v1035, 120
        %v1051 = vadd.s32 %v1035, 128
        %v1052 = vadd.s32 %v1035, 136
        %v1053 = vadd.s32 %v1035, 144
        %v1054 = vadd.s32 %v1035, 152
        %v1055 = vadd.s32 %v1035, 160
        %v1056 = vadd.s32 %v1035, 168
        %v1057 = vadd.s32 %v1035, 176
        %v1058 = vadd.s32 %v1035, 184
        %vm1059 = vcmp.lt.s32.totalorder %v1035, 178
        %vm1060 = vcmp.lt.s32.totalorder %v1036, 178
        %vm1061 = vcmp.lt.s32.totalorder %v1037, 178
        %vm1062 = vcmp.lt.s32.totalorder %v1038, 178
        %vm1063 = vcmp.lt.s32.totalorder %v1039, 178
        %vm1064 = vcmp.lt.s32.totalorder %v1040, 178
        %vm1065 = vcmp.lt.s32.totalorder %v1041, 178
        %vm1066 = vcmp.lt.s32.totalorder %v1042, 178
        %vm1067 = vcmp.lt.s32.totalorder %v1043, 178
        %vm1068 = vcmp.lt.s32.totalorder %v1044, 178
        %vm1069 = vcmp.lt.s32.totalorder %v1045, 178
        %vm1070 = vcmp.lt.s32.totalorder %v1046, 178
        %vm1071 = vcmp.lt.s32.totalorder %v1047, 178
        %vm1072 = vcmp.lt.s32.totalorder %v1048, 178
        %vm1073 = vcmp.lt.s32.totalorder %v1049, 178
        %vm1074 = vcmp.lt.s32.totalorder %v1050, 178
        %vm1075 = vcmp.lt.s32.totalorder %v1051, 178
        %vm1076 = vcmp.lt.s32.totalorder %v1052, 178
        %vm1077 = vcmp.lt.s32.totalorder %v1053, 178
        %vm1078 = vcmp.lt.s32.totalorder %v1054, 178
        %vm1079 = vcmp.lt.s32.totalorder %v1055, 178
        %vm1080 = vcmp.lt.s32.totalorder %v1056, 178
        %vm1081 = vcmp.lt.s32.totalorder %v1057, 178
        %vm1082 = vcmp.lt.s32.totalorder %v1058, 178
        %v1083 = vsel %vm1059, 1, 0
        %v1084 = vsel %vm1060, 1, 0
        %v1085 = vsel %vm1061, 1, 0
        %v1086 = vsel %vm1062, 1, 0
        %v1087 = vsel %vm1063, 1, 0
        %v1088 = vsel %vm1064, 1, 0
        %v1089 = vsel %vm1065, 1, 0
        %v1090 = vsel %vm1066, 1, 0
        %v1091 = vsel %vm1067, 1, 0
        %v1092 = vsel %vm1068, 1, 0
        %v1093 = vsel %vm1069, 1, 0
        %v1094 = vsel %vm1070, 1, 0
        %v1095 = vsel %vm1071, 1, 0
        %v1096 = vsel %vm1072, 1, 0
        %v1097 = vsel %vm1073, 1, 0
        %v1098 = vsel %vm1074, 1, 0
        %v1099 = vsel %vm1075, 1, 0
        %v1100 = vsel %vm1076, 1, 0
        %v1101 = vsel %vm1077, 1, 0
        %v1102 = vsel %vm1078, 1, 0
        %v1103 = vsel %vm1079, 1, 0
        %v1104 = vsel %vm1080, 1, 0
        %v1105 = vsel %vm1081, 1, 0
        %v1106 = vsel %vm1082, 1, 0
        %v1107 = vcvt.s32.f32 %v1083
        %v1108 = vcvt.s32.f32 %v1084
        %v1109 = vcvt.s32.f32 %v1085
        %v1110 = vcvt.s32.f32 %v1086
        %v1111 = vcvt.s32.f32 %v1087
        %v1112 = vcvt.s32.f32 %v1088
        %v1113 = vcvt.s32.f32 %v1089
        %v1114 = vcvt.s32.f32 %v1090
        %v1115 = vcvt.s32.f32 %v1091
        %v1116 = vcvt.s32.f32 %v1092
        %v1117 = vcvt.s32.f32 %v1093
        %v1118 = vcvt.s32.f32 %v1094
        %v1119 = vcvt.s32.f32 %v1095
        %v1120 = vcvt.s32.f32 %v1096
        %v1121 = vcvt.s32.f32 %v1097
        %v1122 = vcvt.s32.f32 %v1098
        %v1123 = vcvt.s32.f32 %v1099
        %v1124 = vcvt.s32.f32 %v1100
        %v1125 = vcvt.s32.f32 %v1101
        %v1126 = vcvt.s32.f32 %v1102
        %v1127 = vcvt.s32.f32 %v1103
        %v1128 = vcvt.s32.f32 %v1104
        %v1129 = vcvt.s32.f32 %v1105
        %v1130 = vcvt.s32.f32 %v1106
        %v1131 = vld [vmem:[%s1031] sm:$0xf]
        %v1132 = vld [vmem:[%s1031 + $0x4] sm:$0xf]
        %v1133 = vld [vmem:[%s1031 + $0x8] sm:$0xf]
        %v1134 = vld [vmem:[%s1031 + $0xc] sm:$0xf]
        %v1135 = vld [vmem:[%s1031 + $0x10] sm:$0xf]
        %v1136 = vld [vmem:[%s1031 + $0x14] sm:$0xf]
        %v1137 = vld [vmem:[%s1031 + $0x18] sm:$0xf]
        %v1138 = vld [vmem:[%s1031 + $0x1c] sm:$0xf]
        %v1139 = vld [vmem:[%s1031 + $0x20] sm:$0xf]
        %v1140 = vld [vmem:[%s1031 + $0x24] sm:$0xf]
        %v1141 = vld [vmem:[%s1031 + $0x28] sm:$0xf]
        %v1142 = vld [vmem:[%s1031 + $0x2c] sm:$0xf]
        %v1143 = vld [vmem:[%s1031 + $0x30] sm:$0xf]
        %v1144 = vld [vmem:[%s1031 + $0x34] sm:$0xf]
        %v1145 = vld [vmem:[%s1031 + $0x38] sm:$0xf]
        %v1146 = vld [vmem:[%s1031 + $0x3c] sm:$0xf]
        %v1147 = vld [vmem:[%s1031 + $0x40] sm:$0xf]
        %v1148 = vld [vmem:[%s1031 + $0x44] sm:$0xf]
        %v1149 = vld [vmem:[%s1031 + $0x48] sm:$0xf]
        %v1150 = vld [vmem:[%s1031 + $0x4c] sm:$0xf]
        %v1151 = vld [vmem:[%s1031 + $0x50] sm:$0xf]
        %v1152 = vld [vmem:[%s1031 + $0x54] sm:$0xf]
        %v1153 = vld [vmem:[%s1031 + $0x58] sm:$0xf]
        %v1154 = vld [vmem:[%s1031 + $0x5c] sm:$0xf]
        %v1155 = vld [vmem:[#allocation2] sm:$0xf]
        %v1180 = vunpack.c.l.b16 %v1131
        %v1181 = vunpack.c.l.b16 %v1132
        %v1182 = vunpack.c.l.b16 %v1133
        %v1183 = vunpack.c.l.b16 %v1134
        %v1184 = vunpack.c.l.b16 %v1135
        %v1185 = vunpack.c.l.b16 %v1136
        %v1186 = vunpack.c.l.b16 %v1137
        %v1187 = vunpack.c.l.b16 %v1138
        %v1188 = vunpack.c.l.b16 %v1139
        %v1189 = vunpack.c.l.b16 %v1140
        %v1190 = vunpack.c.l.b16 %v1141
        %v1191 = vunpack.c.l.b16 %v1142
        %v1192 = vunpack.c.l.b16 %v1143
        %v1193 = vunpack.c.l.b16 %v1144
        %v1194 = vunpack.c.l.b16 %v1145
        %v1195 = vunpack.c.l.b16 %v1146
        %v1196 = vunpack.c.l.b16 %v1147
        %v1197 = vunpack.c.l.b16 %v1148
        %v1198 = vunpack.c.l.b16 %v1149
        %v1199 = vunpack.c.l.b16 %v1150
        %v1200 = vunpack.c.l.b16 %v1151
        %v1201 = vunpack.c.l.b16 %v1152
        %v1202 = vunpack.c.l.b16 %v1153
        %v1203 = vunpack.c.l.b16 %v1154
        %v1204 = vpack.c.b16 %v1181, %v1180
        %v1205 = vpack.c.b16 %v1183, %v1182
        %v1206 = vpack.c.b16 %v1185, %v1184
        %v1207 = vpack.c.b16 %v1187, %v1186
        %v1208 = vpack.c.b16 %v1189, %v1188
        %v1209 = vpack.c.b16 %v1191, %v1190
        %v1210 = vpack.c.b16 %v1193, %v1192
        %v1211 = vpack.c.b16 %v1195, %v1194
        %v1212 = vpack.c.b16 %v1197, %v1196
        %v1213 = vpack.c.b16 %v1199, %v1198
        %v1214 = vpack.c.b16 %v1201, %v1200
        %v1215 = vpack.c.b16 %v1203, %v1202
        %vm1216 = vcmask 64512
        %v1218 = vsel %vm1216, %v1204, 0
        %v1221 = vsel %vm1216, %v1205, 0
        %v1224 = vsel %vm1216, %v1206, 0
        %v1227 = vsel %vm1216, %v1207, 0
        %v1230 = vsel %vm1216, %v1208, 0
        %v1233 = vsel %vm1216, %v1209, 0
        %v1236 = vsel %vm1216, %v1210, 0
        %v1239 = vsel %vm1216, %v1211, 0
        %v1242 = vsel %vm1216, %v1212, 0
        %v1245 = vsel %vm1216, %v1213, 0
        %v1248 = vsel %vm1216, %v1214, 0
        %v1251 = vsel %vm1216, %v1215, 0
        %vm1253 = vcmask 1043456
        %v1255 = vsel %vm1253, %v1155, 0
        %1257 = vmatprep.subr.bf16.mxu0 0
        %1258 = vmatpush1.bf16.msra.mxu0 0
        %1259 = vmatprep.subr.bf16.mxu0 0
        %1260 = vmatpush1.bf16.msra.mxu0 0
        %1261 = vmatprep.subr.bf16.mxu0 0
        %1262 = vmatpush1.bf16.msra.mxu0 0
        %1263 = vmatprep.subr.bf16.mxu0 0
        %1264 = vmatpush1.bf16.msra.mxu0 0
        %1265 = vmatprep.subr.bf16.mxu0 0
        %1266 = vmatpush1.bf16.msra.mxu0 0
        %1267 = vmatprep.subr.bf16.mxu0 0
        %1268 = vmatpush1.bf16.msra.mxu0 0
        %1269 = vmatprep.subr.bf16.mxu0 0
        %1270 = vmatpush1.bf16.msra.mxu0 0
        %1271 = vmatprep.subr.bf16.mxu0 0
        %1272 = vmatpush1.bf16.msra.mxu0 %v1255
        %1273 = vmatprep.subr.bf16.mxu0 0
        %1274 = vmatpush2.bf16.msra.mxu0 0
        %1275 = vmatprep.subr.bf16.mxu0 0
        %1276 = vmatpush2.bf16.msra.mxu0 0
        %1277 = vmatprep.subr.bf16.mxu0 0
        %1278 = vmatpush2.bf16.msra.mxu0 0
        %1279 = vmatprep.subr.bf16.mxu0 0
        %1280 = vmatpush2.bf16.msra.mxu0 0
        %1281 = vmatprep.subr.bf16.mxu0 0
        %1282 = vmatpush2.bf16.msra.mxu0 0
        %1283 = vmatprep.subr.bf16.mxu0 0
        %1284 = vmatpush2.bf16.msra.mxu0 0
        %1285 = vmatprep.subr.bf16.mxu0 0
        %1286 = vmatpush2.bf16.msra.mxu0 0
        %1287 = vmatprep.subr.bf16.mxu0 0
        %1288 = vmatpush2.bf16.msra.mxu0 0
        %1289 = vmatprep.mubr.bf16.mxu0 0
        %1290 = vmatmul.mubr.bf16.gmra.mxu0 %v1218
        %v1291 = vpop.f32.mrf.mxu0
        %v1292 = vadd.f32 0.0, %v1291
        %v1293 = vpop.f32.mrf.mxu0
        %v1294 = vpop.f32.mrf.mxu0
        %v1295 = vadd.f32 0.0, %v1294
        %v1296 = vpop.f32.mrf.mxu0
        %1297 = vmatprep.mubr.bf16.mxu0 0
        %1298 = vmatmul.mubr.bf16.gmra.mxu0 %v1221
        %v1299 = vpop.f32.mrf.mxu0
        %v1300 = vadd.f32 0.0, %v1299
        %v1301 = vpop.f32.mrf.mxu0
        %v1302 = vpop.f32.mrf.mxu0
        %v1303 = vadd.f32 0.0, %v1302
        %v1304 = vpop.f32.mrf.mxu0
        %1305 = vmatprep.mubr.bf16.mxu0 0
        %1306 = vmatmul.mubr.bf16.gmra.mxu0 %v1224
        %v1307 = vpop.f32.mrf.mxu0
        %v1308 = vadd.f32 0.0, %v1307
        %v1309 = vpop.f32.mrf.mxu0
        %v1310 = vpop.f32.mrf.mxu0
        %v1311 = vadd.f32 0.0, %v1310
        %v1312 = vpop.f32.mrf.mxu0
        %1313 = vmatprep.mubr.bf16.mxu0 0
        %1314 = vmatmul.mubr.bf16.gmra.mxu0 %v1227
        %v1315 = vpop.f32.mrf.mxu0
        %v1316 = vadd.f32 0.0, %v1315
        %v1317 = vpop.f32.mrf.mxu0
        %v1318 = vpop.f32.mrf.mxu0
        %v1319 = vadd.f32 0.0, %v1318
        %v1320 = vpop.f32.mrf.mxu0
        %1321 = vmatprep.mubr.bf16.mxu0 0
        %1322 = vmatmul.mubr.bf16.gmra.mxu0 %v1230
        %v1323 = vpop.f32.mrf.mxu0
        %v1324 = vadd.f32 0.0, %v1323
        %v1325 = vpop.f32.mrf.mxu0
        %v1326 = vpop.f32.mrf.mxu0
        %v1327 = vadd.f32 0.0, %v1326
        %v1328 = vpop.f32.mrf.mxu0
        %1329 = vmatprep.mubr.bf16.mxu0 0
        %1330 = vmatmul.mubr.bf16.gmra.mxu0 %v1233
        %v1331 = vpop.f32.mrf.mxu0
        %v1332 = vadd.f32 0.0, %v1331
        %v1333 = vpop.f32.mrf.mxu0
        %v1334 = vpop.f32.mrf.mxu0
        %v1335 = vadd.f32 0.0, %v1334
        %v1336 = vpop.f32.mrf.mxu0
        %1337 = vmatprep.mubr.bf16.mxu0 0
        %1338 = vmatmul.mubr.bf16.gmra.mxu0 %v1236
        %v1339 = vpop.f32.mrf.mxu0
        %v1340 = vadd.f32 0.0, %v1339
        %v1341 = vpop.f32.mrf.mxu0
        %v1342 = vpop.f32.mrf.mxu0
        %v1343 = vadd.f32 0.0, %v1342
        %v1344 = vpop.f32.mrf.mxu0
        %1345 = vmatprep.mubr.bf16.mxu0 0
        %1346 = vmatmul.mubr.bf16.gmra.mxu0 %v1239
        %v1347 = vpop.f32.mrf.mxu0
        %v1348 = vadd.f32 0.0, %v1347
        %v1349 = vpop.f32.mrf.mxu0
        %v1350 = vpop.f32.mrf.mxu0
        %v1351 = vadd.f32 0.0, %v1350
        %v1352 = vpop.f32.mrf.mxu0
        %1353 = vmatprep.mubr.bf16.mxu0 0
        %1354 = vmatmul.mubr.bf16.gmra.mxu0 %v1242
        %v1355 = vpop.f32.mrf.mxu0
        %v1356 = vadd.f32 0.0, %v1355
        %v1357 = vpop.f32.mrf.mxu0
        %v1358 = vpop.f32.mrf.mxu0
        %v1359 = vadd.f32 0.0, %v1358
        %v1360 = vpop.f32.mrf.mxu0
        %1361 = vmatprep.mubr.bf16.mxu0 0
        %1362 = vmatmul.mubr.bf16.gmra.mxu0 %v1245
        %v1363 = vpop.f32.mrf.mxu0
        %v1364 = vadd.f32 0.0, %v1363
        %v1365 = vpop.f32.mrf.mxu0
        %v1366 = vpop.f32.mrf.mxu0
        %v1367 = vadd.f32 0.0, %v1366
        %v1368 = vpop.f32.mrf.mxu0
        %1369 = vmatprep.mubr.bf16.mxu0 0
        %1370 = vmatmul.mubr.bf16.gmra.mxu0 %v1248
        %v1371 = vpop.f32.mrf.mxu0
        %v1372 = vadd.f32 0.0, %v1371
        %v1373 = vpop.f32.mrf.mxu0
        %v1374 = vpop.f32.mrf.mxu0
        %v1375 = vadd.f32 0.0, %v1374
        %v1376 = vpop.f32.mrf.mxu0
        %1377 = vmatprep.mubr.bf16.mxu0 0
        %1378 = vmatmul.mubr.bf16.gmra.mxu0 %v1251
        %v1379 = vpop.f32.mrf.mxu0
        %v1380 = vadd.f32 0.0, %v1379
        %v1381 = vpop.f32.mrf.mxu0
        %v1382 = vpop.f32.mrf.mxu0
        %v1383 = vadd.f32 0.0, %v1382
        %v1384 = vpop.f32.mrf.mxu0
        %1385 = vdwg.mxu0
        %v1386 = vld [vmem:[%s2] sm:$0x1]
        %v1388 = vlaneseq
        %v1389 = vshrl.u32 %v1388, 7
        %v1390 = vsub.s32 0, %v1389
        %v1391 = vrot.slane %v1386, %v1390
        %v1393 = vadd.f32 %v1292, %v1391
        %v1394 = vadd.f32 %v1295, %v1391
        %v1395 = vadd.f32 %v1300, %v1391
        %v1396 = vadd.f32 %v1303, %v1391
        %v1397 = vadd.f32 %v1308, %v1391
        %v1398 = vadd.f32 %v1311, %v1391
        %v1399 = vadd.f32 %v1316, %v1391
        %v1400 = vadd.f32 %v1319, %v1391
        %v1401 = vadd.f32 %v1324, %v1391
        %v1402 = vadd.f32 %v1327, %v1391
        %v1403 = vadd.f32 %v1332, %v1391
        %v1404 = vadd.f32 %v1335, %v1391
        %v1405 = vadd.f32 %v1340, %v1391
        %v1406 = vadd.f32 %v1343, %v1391
        %v1407 = vadd.f32 %v1348, %v1391
        %v1408 = vadd.f32 %v1351, %v1391
        %v1409 = vadd.f32 %v1356, %v1391
        %v1410 = vadd.f32 %v1359, %v1391
        %v1411 = vadd.f32 %v1364, %v1391
        %v1412 = vadd.f32 %v1367, %v1391
        %v1413 = vadd.f32 %v1372, %v1391
        %v1414 = vadd.f32 %v1375, %v1391
        %v1415 = vadd.f32 %v1380, %v1391
        %v1416 = vadd.f32 %v1383, %v1391
        %v1417 = vmax.f32 %v1393, 0.0
        %v1418 = vmax.f32 %v1394, 0.0
        %v1419 = vmax.f32 %v1395, 0.0
        %v1420 = vmax.f32 %v1396, 0.0
        %v1421 = vmax.f32 %v1397, 0.0
        %v1422 = vmax.f32 %v1398, 0.0
        %v1423 = vmax.f32 %v1399, 0.0
        %v1424 = vmax.f32 %v1400, 0.0
        %v1425 = vmax.f32 %v1401, 0.0
        %v1426 = vmax.f32 %v1402, 0.0
        %v1427 = vmax.f32 %v1403, 0.0
        %v1428 = vmax.f32 %v1404, 0.0
        %v1429 = vmax.f32 %v1405, 0.0
        %v1430 = vmax.f32 %v1406, 0.0
        %v1431 = vmax.f32 %v1407, 0.0
        %v1432 = vmax.f32 %v1408, 0.0
        %v1433 = vmax.f32 %v1409, 0.0
        %v1434 = vmax.f32 %v1410, 0.0
        %v1435 = vmax.f32 %v1411, 0.0
        %v1436 = vmax.f32 %v1412, 0.0
        %v1437 = vmax.f32 %v1413, 0.0
        %v1438 = vmax.f32 %v1414, 0.0
        %v1439 = vmax.f32 %v1415, 0.0
        %v1440 = vmax.f32 %v1416, 0.0
        %v1441 = vmul.f32 %v1417, %v1107
        %v1442 = vmul.f32 %v1418, %v1108
        %v1443 = vmul.f32 %v1419, %v1109
        %v1444 = vmul.f32 %v1420, %v1110
        %v1445 = vmul.f32 %v1421, %v1111
        %v1446 = vmul.f32 %v1422, %v1112
        %v1447 = vmul.f32 %v1423, %v1113
        %v1448 = vmul.f32 %v1424, %v1114
        %v1449 = vmul.f32 %v1425, %v1115
        %v1450 = vmul.f32 %v1426, %v1116
        %v1451 = vmul.f32 %v1427, %v1117
        %v1452 = vmul.f32 %v1428, %v1118
        %v1453 = vmul.f32 %v1429, %v1119
        %v1454 = vmul.f32 %v1430, %v1120
        %v1455 = vmul.f32 %v1431, %v1121
        %v1456 = vmul.f32 %v1432, %v1122
        %v1457 = vmul.f32 %v1433, %v1123
        %v1458 = vmul.f32 %v1434, %v1124
        %v1459 = vmul.f32 %v1435, %v1125
        %v1460 = vmul.f32 %v1436, %v1126
        %v1461 = vmul.f32 %v1437, %v1127
        %v1462 = vmul.f32 %v1438, %v1128
        %v1463 = vmul.f32 %v1439, %v1129
        %v1464 = vmul.f32 %v1440, %v1130
        %v1465 = vld [vmem:[#allocation5] sm:$0x1]
        %v1467 = vlaneseq
        %v1468 = vshrl.u32 %v1467, 7
        %v1469 = vsub.s32 0, %v1468
        %v1470 = vrot.slane %v1465, %v1469
        %1471 = vrot.lane.b32.xlu0 %v1470, 64
        %v1472 = vpop.permute.xlu0 %1471
        %v1474 = vadd.f32 %v1292, %v1472
        %v1475 = vadd.f32 %v1295, %v1472
        %v1476 = vadd.f32 %v1300, %v1472
        %v1477 = vadd.f32 %v1303, %v1472
        %v1478 = vadd.f32 %v1308, %v1472
        %v1479 = vadd.f32 %v1311, %v1472
        %v1480 = vadd.f32 %v1316, %v1472
        %v1481 = vadd.f32 %v1319, %v1472
        %v1482 = vadd.f32 %v1324, %v1472
        %v1483 = vadd.f32 %v1327, %v1472
        %v1484 = vadd.f32 %v1332, %v1472
        %v1485 = vadd.f32 %v1335, %v1472
        %v1486 = vadd.f32 %v1340, %v1472
        %v1487 = vadd.f32 %v1343, %v1472
        %v1488 = vadd.f32 %v1348, %v1472
        %v1489 = vadd.f32 %v1351, %v1472
        %v1490 = vadd.f32 %v1356, %v1472
        %v1491 = vadd.f32 %v1359, %v1472
        %v1492 = vadd.f32 %v1364, %v1472
        %v1493 = vadd.f32 %v1367, %v1472
        %v1494 = vadd.f32 %v1372, %v1472
        %v1495 = vadd.f32 %v1375, %v1472
        %v1496 = vadd.f32 %v1380, %v1472
        %v1497 = vadd.f32 %v1383, %v1472
        %v1498 = vmul.f32 %v1474, %v1107
        %v1499 = vmul.f32 %v1475, %v1108
        %v1500 = vmul.f32 %v1476, %v1109
        %v1501 = vmul.f32 %v1477, %v1110
        %v1502 = vmul.f32 %v1478, %v1111
        %v1503 = vmul.f32 %v1479, %v1112
        %v1504 = vmul.f32 %v1480, %v1113
        %v1505 = vmul.f32 %v1481, %v1114
        %v1506 = vmul.f32 %v1482, %v1115
        %v1507 = vmul.f32 %v1483, %v1116
        %v1508 = vmul.f32 %v1484, %v1117
        %v1509 = vmul.f32 %v1485, %v1118
        %v1510 = vmul.f32 %v1486, %v1119
        %v1511 = vmul.f32 %v1487, %v1120
        %v1512 = vmul.f32 %v1488, %v1121
        %v1513 = vmul.f32 %v1489, %v1122
        %v1514 = vmul.f32 %v1490, %v1123
        %v1515 = vmul.f32 %v1491, %v1124
        %v1516 = vmul.f32 %v1492, %v1125
        %v1517 = vmul.f32 %v1493, %v1126
        %v1518 = vmul.f32 %v1494, %v1127
        %v1519 = vmul.f32 %v1495, %v1128
        %v1520 = vmul.f32 %v1496, %v1129
        %v1521 = vmul.f32 %v1497, %v1130
        %v1522 = vrot.slane %v1441, 6
        %v1523 = vrot.slane %v1442, 6
        %v1524 = vrot.slane %v1443, 6
        %v1525 = vrot.slane %v1444, 6
        %v1526 = vrot.slane %v1445, 6
        %v1527 = vrot.slane %v1446, 6
        %v1528 = vrot.slane %v1447, 6
        %v1529 = vrot.slane %v1448, 6
        %v1530 = vrot.slane %v1449, 6
        %v1531 = vrot.slane %v1450, 6
        %v1532 = vrot.slane %v1451, 6
        %v1533 = vrot.slane %v1452, 6
        %v1534 = vrot.slane %v1453, 6
        %v1535 = vrot.slane %v1454, 6
        %v1536 = vrot.slane %v1455, 6
        %v1537 = vrot.slane %v1456, 6
        %v1538 = vrot.slane %v1457, 6
        %v1539 = vrot.slane %v1458, 6
        %v1540 = vrot.slane %v1459, 6
        %v1541 = vrot.slane %v1460, 6
        %v1542 = vrot.slane %v1461, 6
        %v1543 = vrot.slane %v1462, 6
        %v1544 = vrot.slane %v1463, 6
        %v1545 = vrot.slane %v1464, 6
        %vm1546 = vcmp.lt.s32.totalorder %v1035, 2
        %v1547 = vsel %vm1546, %v1544, %v1545
        %v1548 = vsel %vm1546, %v1543, %v1544
        %v1549 = vsel %vm1546, %v1542, %v1543
        %v1550 = vsel %vm1546, %v1541, %v1542
        %v1551 = vsel %vm1546, %v1540, %v1541
        %v1552 = vsel %vm1546, %v1539, %v1540
        %v1553 = vsel %vm1546, %v1538, %v1539
        %v1554 = vsel %vm1546, %v1537, %v1538
        %v1555 = vsel %vm1546, %v1536, %v1537
        %v1556 = vsel %vm1546, %v1535, %v1536
        %v1557 = vsel %vm1546, %v1534, %v1535
        %v1558 = vsel %vm1546, %v1533, %v1534
        %v1559 = vsel %vm1546, %v1532, %v1533
        %v1560 = vsel %vm1546, %v1531, %v1532
        %v1561 = vsel %vm1546, %v1530, %v1531
        %v1562 = vsel %vm1546, %v1529, %v1530
        %v1563 = vsel %vm1546, %v1528, %v1529
        %v1564 = vsel %vm1546, %v1527, %v1528
        %v1565 = vsel %vm1546, %v1526, %v1527
        %v1566 = vsel %vm1546, %v1525, %v1526
        %v1567 = vsel %vm1546, %v1524, %v1525
        %v1568 = vsel %vm1546, %v1523, %v1524
        %v1569 = vsel %vm1546, %v1522, %v1523
        %v1570 = vsel %vm1546, %v1545, %v1522
        %v1571 = vpack.c.bf16 %v1569, %v1570
        %v1572 = vpack.c.bf16 %v1567, %v1568
        %v1573 = vpack.c.bf16 %v1565, %v1566
        %v1574 = vpack.c.bf16 %v1563, %v1564
        %v1575 = vpack.c.bf16 %v1561, %v1562
        %v1576 = vpack.c.bf16 %v1559, %v1560
        %v1577 = vpack.c.bf16 %v1557, %v1558
        %v1578 = vpack.c.bf16 %v1555, %v1556
        %v1579 = vpack.c.bf16 %v1553, %v1554
        %v1580 = vpack.c.bf16 %v1551, %v1552
        %v1581 = vpack.c.bf16 %v1549, %v1550
        %v1582 = vpack.c.bf16 %v1547, %v1548
        %v1583 = vld [vmem:[#allocation7] sm:$0xf]
        %v1584 = vld [vmem:[#allocation7 + $0x4] sm:$0xf]
        %v1585 = vld [vmem:[#allocation7 + $0x8] sm:$0xf]
        %v1586 = vld [vmem:[#allocation7 + $0xc] sm:$0xf]
        %v1587 = vld [vmem:[#allocation7 + $0x10] sm:$0xf]
        %v1588 = vld [vmem:[#allocation7 + $0x14] sm:$0xf]
        %v1589 = vld [vmem:[#allocation7 + $0x18] sm:$0xf]
        %v1590 = vld [vmem:[#allocation7 + $0x1c] sm:$0xf]
        %v1591 = vrot.slane %v1441, 7
        %v1592 = vrot.slane %v1442, 7
        %v1593 = vrot.slane %v1443, 7
        %v1594 = vrot.slane %v1444, 7
        %v1595 = vrot.slane %v1445, 7
        %v1596 = vrot.slane %v1446, 7
        %v1597 = vrot.slane %v1447, 7
        %v1598 = vrot.slane %v1448, 7
        %v1599 = vrot.slane %v1449, 7
        %v1600 = vrot.slane %v1450, 7
        %v1601 = vrot.slane %v1451, 7
        %v1602 = vrot.slane %v1452, 7
        %v1603 = vrot.slane %v1453, 7
        %v1604 = vrot.slane %v1454, 7
        %v1605 = vrot.slane %v1455, 7
        %v1606 = vrot.slane %v1456, 7
        %v1607 = vrot.slane %v1457, 7
        %v1608 = vrot.slane %v1458, 7
        %v1609 = vrot.slane %v1459, 7
        %v1610 = vrot.slane %v1460, 7
        %v1611 = vrot.slane %v1461, 7
        %v1612 = vrot.slane %v1462, 7
        %v1613 = vrot.slane %v1463, 7
        %v1614 = vrot.slane %v1464, 7
        %vm1615 = vcmp.lt.s32.totalorder %v1035, 1
        %v1616 = vsel %vm1615, %v1613, %v1614
        %v1617 = vsel %vm1615, %v1612, %v1613
        %v1618 = vsel %vm1615, %v1611, %v1612
        %v1619 = vsel %vm1615, %v1610, %v1611
        %v1620 = vsel %vm1615, %v1609, %v1610
        %v1621 = vsel %vm1615, %v1608, %v1609
        %v1622 = vsel %vm1615, %v1607, %v1608
        %v1623 = vsel %vm1615, %v1606, %v1607
        %v1624 = vsel %vm1615, %v1605, %v1606
        %v1625 = vsel %vm1615, %v1604, %v1605
        %v1626 = vsel %vm1615, %v1603, %v1604
        %v1627 = vsel %vm1615, %v1602, %v1603
        %v1628 = vsel %vm1615, %v1601, %v1602
        %v1629 = vsel %vm1615, %v1600, %v1601
        %v1630 = vsel %vm1615, %v1599, %v1600
        %v1631 = vsel %vm1615, %v1598, %v1599
        %v1632 = vsel %vm1615, %v1597, %v1598
        %v1633 = vsel %vm1615, %v1596, %v1597
        %v1634 = vsel %vm1615, %v1595, %v1596
        %v1635 = vsel %vm1615, %v1594, %v1595
        %v1636 = vsel %vm1615, %v1593, %v1594
        %v1637 = vsel %vm1615, %v1592, %v1593
        %v1638 = vsel %vm1615, %v1591, %v1592
        %v1639 = vsel %vm1615, %v1614, %v1591
        %v1640 = vpack.c.bf16 %v1638, %v1639
        %v1641 = vpack.c.bf16 %v1636, %v1637
        %v1642 = vpack.c.bf16 %v1634, %v1635
        %v1643 = vpack.c.bf16 %v1632, %v1633
        %v1644 = vpack.c.bf16 %v1630, %v1631
        %v1645 = vpack.c.bf16 %v1628, %v1629
        %v1646 = vpack.c.bf16 %v1626, %v1627
        %v1647 = vpack.c.bf16 %v1624, %v1625
        %v1648 = vpack.c.bf16 %v1622, %v1623
        %v1649 = vpack.c.bf16 %v1620, %v1621
        %v1650 = vpack.c.bf16 %v1618, %v1619
        %v1651 = vpack.c.bf16 %v1616, %v1617
        %s1652 = scalar_lea.vmem [#allocation7], 32
        %v1653 = vld [vmem:[%s1652] sm:$0xf]
        %v1654 = vld [vmem:[%s1652 + $0x4] sm:$0xf]
        %v1655 = vld [vmem:[%s1652 + $0x8] sm:$0xf]
        %v1656 = vld [vmem:[%s1652 + $0xc] sm:$0xf]
        %v1657 = vld [vmem:[%s1652 + $0x10] sm:$0xf]
        %v1658 = vld [vmem:[%s1652 + $0x14] sm:$0xf]
        %v1659 = vld [vmem:[%s1652 + $0x18] sm:$0xf]
        %v1660 = vld [vmem:[%s1652 + $0x1c] sm:$0xf]
        %v1669 = vunpack.c.l.b16 %v1653
        %v1670 = vunpack.c.l.b16 %v1654
        %v1671 = vunpack.c.l.b16 %v1655
        %v1672 = vunpack.c.l.b16 %v1656
        %v1673 = vunpack.c.l.b16 %v1657
        %v1674 = vunpack.c.l.b16 %v1658
        %v1675 = vunpack.c.l.b16 %v1659
        %v1676 = vunpack.c.l.b16 %v1660
        %v1677 = vpack.c.b16 %v1670, %v1669
        %v1678 = vpack.c.b16 %v1672, %v1671
        %v1679 = vpack.c.b16 %v1674, %v1673
        %v1680 = vpack.c.b16 %v1676, %v1675
        %vm1685 = vcmask 523264
        %v1687 = vsel %vm1685, %v1640, 0
        %v1690 = vsel %vm1685, %v1641, 0
        %v1693 = vsel %vm1685, %v1642, 0
        %v1696 = vsel %vm1685, %v1643, 0
        %v1699 = vsel %vm1685, %v1644, 0
        %v1702 = vsel %vm1685, %v1645, 0
        %v1705 = vsel %vm1685, %v1646, 0
        %v1708 = vsel %vm1685, %v1647, 0
        %v1711 = vsel %vm1685, %v1648, 0
        %v1714 = vsel %vm1685, %v1649, 0
        %v1717 = vsel %vm1685, %v1650, 0
        %v1720 = vsel %vm1685, %v1651, 0
        %1722 = vmatprep.subr.bf16.mxu0 0
        %1723 = vmatpush1.bf16.msra.mxu0 0
        %1724 = vmatprep.subr.bf16.mxu0 0
        %1725 = vmatpush1.bf16.msra.mxu0 0
        %1726 = vmatprep.subr.bf16.mxu0 0
        %1727 = vmatpush1.bf16.msra.mxu0 0
        %1728 = vmatprep.subr.bf16.mxu0 0
        %1729 = vmatpush1.bf16.msra.mxu0 0
        %1730 = vmatprep.subr.bf16.mxu0 0
        %1731 = vmatpush1.bf16.msra.mxu0 %v1680
        %1732 = vmatprep.subr.bf16.mxu0 0
        %1733 = vmatpush1.bf16.msra.mxu0 %v1679
        %1734 = vmatprep.subr.bf16.mxu0 0
        %1735 = vmatpush1.bf16.msra.mxu0 %v1678
        %1736 = vmatprep.subr.bf16.mxu0 0
        %1737 = vmatpush1.bf16.msra.mxu0 %v1677
        %1738 = vmatprep.subr.bf16.mxu0 0
        %1739 = vmatpush2.bf16.msra.mxu0 0
        %1740 = vmatprep.subr.bf16.mxu0 0
        %1741 = vmatpush2.bf16.msra.mxu0 0
        %1742 = vmatprep.subr.bf16.mxu0 0
        %1743 = vmatpush2.bf16.msra.mxu0 0
        %1744 = vmatprep.subr.bf16.mxu0 0
        %1745 = vmatpush2.bf16.msra.mxu0 0
        %1746 = vmatprep.subr.bf16.mxu0 0
        %1747 = vmatpush2.bf16.msra.mxu0 0
        %1748 = vmatprep.subr.bf16.mxu0 0
        %1749 = vmatpush2.bf16.msra.mxu0 0
        %1750 = vmatprep.subr.bf16.mxu0 0
        %1751 = vmatpush2.bf16.msra.mxu0 0
        %1752 = vmatprep.subr.bf16.mxu0 0
        %1753 = vmatpush2.bf16.msra.mxu0 0
        %1754 = vmatprep.mubr.bf16.mxu0 0
        %1755 = vmatmul.mubr.bf16.gmra.mxu0 %v1687
        %v1756 = vpop.f32.mrf.mxu0
        %v1757 = vadd.f32 0.0, %v1756
        %v1758 = vpop.f32.mrf.mxu0
        %v1759 = vpop.f32.mrf.mxu0
        %v1760 = vadd.f32 0.0, %v1759
        %v1761 = vpop.f32.mrf.mxu0
        %1762 = vmatprep.mubr.bf16.mxu0 0
        %1763 = vmatmul.mubr.bf16.gmra.mxu0 %v1690
        %v1764 = vpop.f32.mrf.mxu0
        %v1765 = vadd.f32 0.0, %v1764
        %v1766 = vpop.f32.mrf.mxu0
        %v1767 = vpop.f32.mrf.mxu0
        %v1768 = vadd.f32 0.0, %v1767
        %v1769 = vpop.f32.mrf.mxu0
        %1770 = vmatprep.mubr.bf16.mxu0 0
        %1771 = vmatmul.mubr.bf16.gmra.mxu0 %v1693
        %v1772 = vpop.f32.mrf.mxu0
        %v1773 = vadd.f32 0.0, %v1772
        %v1774 = vpop.f32.mrf.mxu0
        %v1775 = vpop.f32.mrf.mxu0
        %v1776 = vadd.f32 0.0, %v1775
        %v1777 = vpop.f32.mrf.mxu0
        %1778 = vmatprep.mubr.bf16.mxu0 0
        %1779 = vmatmul.mubr.bf16.gmra.mxu0 %v1696
        %v1780 = vpop.f32.mrf.mxu0
        %v1781 = vadd.f32 0.0, %v1780
        %v1782 = vpop.f32.mrf.mxu0
        %v1783 = vpop.f32.mrf.mxu0
        %v1784 = vadd.f32 0.0, %v1783
        %v1785 = vpop.f32.mrf.mxu0
        %1786 = vmatprep.mubr.bf16.mxu0 0
        %1787 = vmatmul.mubr.bf16.gmra.mxu0 %v1699
        %v1788 = vpop.f32.mrf.mxu0
        %v1789 = vadd.f32 0.0, %v1788
        %v1790 = vpop.f32.mrf.mxu0
        %v1791 = vpop.f32.mrf.mxu0
        %v1792 = vadd.f32 0.0, %v1791
        %v1793 = vpop.f32.mrf.mxu0
        %1794 = vmatprep.mubr.bf16.mxu0 0
        %1795 = vmatmul.mubr.bf16.gmra.mxu0 %v1702
        %v1796 = vpop.f32.mrf.mxu0
        %v1797 = vadd.f32 0.0, %v1796
        %v1798 = vpop.f32.mrf.mxu0
        %v1799 = vpop.f32.mrf.mxu0
        %v1800 = vadd.f32 0.0, %v1799
        %v1801 = vpop.f32.mrf.mxu0
        %1802 = vmatprep.mubr.bf16.mxu0 0
        %1803 = vmatmul.mubr.bf16.gmra.mxu0 %v1705
        %v1804 = vpop.f32.mrf.mxu0
        %v1805 = vadd.f32 0.0, %v1804
        %v1806 = vpop.f32.mrf.mxu0
        %v1807 = vpop.f32.mrf.mxu0
        %v1808 = vadd.f32 0.0, %v1807
        %v1809 = vpop.f32.mrf.mxu0
        %1810 = vmatprep.mubr.bf16.mxu0 0
        %1811 = vmatmul.mubr.bf16.gmra.mxu0 %v1708
        %v1812 = vpop.f32.mrf.mxu0
        %v1813 = vadd.f32 0.0, %v1812
        %v1814 = vpop.f32.mrf.mxu0
        %v1815 = vpop.f32.mrf.mxu0
        %v1816 = vadd.f32 0.0, %v1815
        %v1817 = vpop.f32.mrf.mxu0
        %1818 = vmatprep.mubr.bf16.mxu0 0
        %1819 = vmatmul.mubr.bf16.gmra.mxu0 %v1711
        %v1820 = vpop.f32.mrf.mxu0
        %v1821 = vadd.f32 0.0, %v1820
        %v1822 = vpop.f32.mrf.mxu0
        %v1823 = vpop.f32.mrf.mxu0
        %v1824 = vadd.f32 0.0, %v1823
        %v1825 = vpop.f32.mrf.mxu0
        %1826 = vmatprep.mubr.bf16.mxu0 0
        %1827 = vmatmul.mubr.bf16.gmra.mxu0 %v1714
        %v1828 = vpop.f32.mrf.mxu0
        %v1829 = vadd.f32 0.0, %v1828
        %v1830 = vpop.f32.mrf.mxu0
        %v1831 = vpop.f32.mrf.mxu0
        %v1832 = vadd.f32 0.0, %v1831
        %v1833 = vpop.f32.mrf.mxu0
        %1834 = vmatprep.mubr.bf16.mxu0 0
        %1835 = vmatmul.mubr.bf16.gmra.mxu0 %v1717
        %v1836 = vpop.f32.mrf.mxu0
        %v1837 = vadd.f32 0.0, %v1836
        %v1838 = vpop.f32.mrf.mxu0
        %v1839 = vpop.f32.mrf.mxu0
        %v1840 = vadd.f32 0.0, %v1839
        %v1841 = vpop.f32.mrf.mxu0
        %1842 = vmatprep.mubr.bf16.mxu0 0
        %1843 = vmatmul.mubr.bf16.gmra.mxu0 %v1720
        %v1844 = vpop.f32.mrf.mxu0
        %v1845 = vadd.f32 0.0, %v1844
        %v1846 = vpop.f32.mrf.mxu0
        %v1847 = vpop.f32.mrf.mxu0
        %v1848 = vadd.f32 0.0, %v1847
        %v1849 = vpop.f32.mrf.mxu0
        %1850 = vdwg.mxu0
        %v1859 = vunpack.c.l.b16 %v1583
        %v1860 = vunpack.c.l.b16 %v1584
        %v1861 = vunpack.c.l.b16 %v1585
        %v1862 = vunpack.c.l.b16 %v1586
        %v1863 = vunpack.c.l.b16 %v1587
        %v1864 = vunpack.c.l.b16 %v1588
        %v1865 = vunpack.c.l.b16 %v1589
        %v1866 = vunpack.c.l.b16 %v1590
        %v1867 = vpack.c.b16 %v1860, %v1859
        %v1868 = vpack.c.b16 %v1862, %v1861
        %v1869 = vpack.c.b16 %v1864, %v1863
        %v1870 = vpack.c.b16 %v1866, %v1865
        %v1876 = vsel %vm1685, %v1571, 0
        %v1879 = vsel %vm1685, %v1572, 0
        %v1882 = vsel %vm1685, %v1573, 0
        %v1885 = vsel %vm1685, %v1574, 0
        %v1888 = vsel %vm1685, %v1575, 0
        %v1891 = vsel %vm1685, %v1576, 0
        %v1894 = vsel %vm1685, %v1577, 0
        %v1897 = vsel %vm1685, %v1578, 0
        %v1900 = vsel %vm1685, %v1579, 0
        %v1903 = vsel %vm1685, %v1580, 0
        %v1906 = vsel %vm1685, %v1581, 0
        %v1909 = vsel %vm1685, %v1582, 0
        %1911 = vmatprep.subr.bf16.mxu0 0
        %1912 = vmatpush1.bf16.msra.mxu0 0
        %1913 = vmatprep.subr.bf16.mxu0 0
        %1914 = vmatpush1.bf16.msra.mxu0 0
        %1915 = vmatprep.subr.bf16.mxu0 0
        %1916 = vmatpush1.bf16.msra.mxu0 0
        %1917 = vmatprep.subr.bf16.mxu0 0
        %1918 = vmatpush1.bf16.msra.mxu0 0
        %1919 = vmatprep.subr.bf16.mxu0 0
        %1920 = vmatpush1.bf16.msra.mxu0 %v1870
        %1921 = vmatprep.subr.bf16.mxu0 0
        %1922 = vmatpush1.bf16.msra.mxu0 %v1869
        %1923 = vmatprep.subr.bf16.mxu0 0
        %1924 = vmatpush1.bf16.msra.mxu0 %v1868
        %1925 = vmatprep.subr.bf16.mxu0 0
        %1926 = vmatpush1.bf16.msra.mxu0 %v1867
        %1927 = vmatprep.subr.bf16.mxu0 0
        %1928 = vmatpush2.bf16.msra.mxu0 0
        %1929 = vmatprep.subr.bf16.mxu0 0
        %1930 = vmatpush2.bf16.msra.mxu0 0
        %1931 = vmatprep.subr.bf16.mxu0 0
        %1932 = vmatpush2.bf16.msra.mxu0 0
        %1933 = vmatprep.subr.bf16.mxu0 0
        %1934 = vmatpush2.bf16.msra.mxu0 0
        %1935 = vmatprep.subr.bf16.mxu0 0
        %1936 = vmatpush2.bf16.msra.mxu0 0
        %1937 = vmatprep.subr.bf16.mxu0 0
        %1938 = vmatpush2.bf16.msra.mxu0 0
        %1939 = vmatprep.subr.bf16.mxu0 0
        %1940 = vmatpush2.bf16.msra.mxu0 0
        %1941 = vmatprep.subr.bf16.mxu0 0
        %1942 = vmatpush2.bf16.msra.mxu0 0
        %1943 = vmatprep.mubr.bf16.mxu0 0
        %1944 = vmatmul.mubr.bf16.gmra.mxu0 %v1876
        %v1945 = vpop.f32.mrf.mxu0
        %v1946 = vadd.f32 %v1757, %v1945
        %v1947 = vpop.f32.mrf.mxu0
        %v1948 = vpop.f32.mrf.mxu0
        %v1949 = vadd.f32 %v1760, %v1948
        %v1950 = vpop.f32.mrf.mxu0
        %1951 = vmatprep.mubr.bf16.mxu0 0
        %1952 = vmatmul.mubr.bf16.gmra.mxu0 %v1879
        %v1953 = vpop.f32.mrf.mxu0
        %v1954 = vadd.f32 %v1765, %v1953
        %v1955 = vpop.f32.mrf.mxu0
        %v1956 = vpop.f32.mrf.mxu0
        %v1957 = vadd.f32 %v1768, %v1956
        %v1958 = vpop.f32.mrf.mxu0
        %1959 = vmatprep.mubr.bf16.mxu0 0
        %1960 = vmatmul.mubr.bf16.gmra.mxu0 %v1882
        %v1961 = vpop.f32.mrf.mxu0
        %v1962 = vadd.f32 %v1773, %v1961
        %v1963 = vpop.f32.mrf.mxu0
        %v1964 = vpop.f32.mrf.mxu0
        %v1965 = vadd.f32 %v1776, %v1964
        %v1966 = vpop.f32.mrf.mxu0
        %1967 = vmatprep.mubr.bf16.mxu0 0
        %1968 = vmatmul.mubr.bf16.gmra.mxu0 %v1885
        %v1969 = vpop.f32.mrf.mxu0
        %v1970 = vadd.f32 %v1781, %v1969
        %v1971 = vpop.f32.mrf.mxu0
        %v1972 = vpop.f32.mrf.mxu0
        %v1973 = vadd.f32 %v1784, %v1972
        %v1974 = vpop.f32.mrf.mxu0
        %1975 = vmatprep.mubr.bf16.mxu0 0
        %1976 = vmatmul.mubr.bf16.gmra.mxu0 %v1888
        %v1977 = vpop.f32.mrf.mxu0
        %v1978 = vadd.f32 %v1789, %v1977
        %v1979 = vpop.f32.mrf.mxu0
        %v1980 = vpop.f32.mrf.mxu0
        %v1981 = vadd.f32 %v1792, %v1980
        %v1982 = vpop.f32.mrf.mxu0
        %1983 = vmatprep.mubr.bf16.mxu0 0
        %1984 = vmatmul.mubr.bf16.gmra.mxu0 %v1891
        %v1985 = vpop.f32.mrf.mxu0
        %v1986 = vadd.f32 %v1797, %v1985
        %v1987 = vpop.f32.mrf.mxu0
        %v1988 = vpop.f32.mrf.mxu0
        %v1989 = vadd.f32 %v1800, %v1988
        %v1990 = vpop.f32.mrf.mxu0
        %1991 = vmatprep.mubr.bf16.mxu0 0
        %1992 = vmatmul.mubr.bf16.gmra.mxu0 %v1894
        %v1993 = vpop.f32.mrf.mxu0
        %v1994 = vadd.f32 %v1805, %v1993
        %v1995 = vpop.f32.mrf.mxu0
        %v1996 = vpop.f32.mrf.mxu0
        %v1997 = vadd.f32 %v1808, %v1996
        %v1998 = vpop.f32.mrf.mxu0
        %1999 = vmatprep.mubr.bf16.mxu0 0
        %2000 = vmatmul.mubr.bf16.gmra.mxu0 %v1897
        %v2001 = vpop.f32.mrf.mxu0
        %v2002 = vadd.f32 %v1813, %v2001
        %v2003 = vpop.f32.mrf.mxu0
        %v2004 = vpop.f32.mrf.mxu0
        %v2005 = vadd.f32 %v1816, %v2004
        %v2006 = vpop.f32.mrf.mxu0
        %2007 = vmatprep.mubr.bf16.mxu0 0
        %2008 = vmatmul.mubr.bf16.gmra.mxu0 %v1900
        %v2009 = vpop.f32.mrf.mxu0
        %v2010 = vadd.f32 %v1821, %v2009
        %v2011 = vpop.f32.mrf.mxu0
        %v2012 = vpop.f32.mrf.mxu0
        %v2013 = vadd.f32 %v1824, %v2012
        %v2014 = vpop.f32.mrf.mxu0
        %2015 = vmatprep.mubr.bf16.mxu0 0
        %2016 = vmatmul.mubr.bf16.gmra.mxu0 %v1903
        %v2017 = vpop.f32.mrf.mxu0
        %v2018 = vadd.f32 %v1829, %v2017
        %v2019 = vpop.f32.mrf.mxu0
        %v2020 = vpop.f32.mrf.mxu0
        %v2021 = vadd.f32 %v1832, %v2020
        %v2022 = vpop.f32.mrf.mxu0
        %2023 = vmatprep.mubr.bf16.mxu0 0
        %2024 = vmatmul.mubr.bf16.gmra.mxu0 %v1906
        %v2025 = vpop.f32.mrf.mxu0
        %v2026 = vadd.f32 %v1837, %v2025
        %v2027 = vpop.f32.mrf.mxu0
        %v2028 = vpop.f32.mrf.mxu0
        %v2029 = vadd.f32 %v1840, %v2028
        %v2030 = vpop.f32.mrf.mxu0
        %2031 = vmatprep.mubr.bf16.mxu0 0
        %2032 = vmatmul.mubr.bf16.gmra.mxu0 %v1909
        %v2033 = vpop.f32.mrf.mxu0
        %v2034 = vadd.f32 %v1845, %v2033
        %v2035 = vpop.f32.mrf.mxu0
        %v2036 = vpop.f32.mrf.mxu0
        %v2037 = vadd.f32 %v1848, %v2036
        %v2038 = vpop.f32.mrf.mxu0
        %2039 = vdwg.mxu0
        %v2040 = vpack.c.bf16 %v1442, %v1441
        %v2041 = vpack.c.bf16 %v1444, %v1443
        %v2042 = vpack.c.bf16 %v1446, %v1445
        %v2043 = vpack.c.bf16 %v1448, %v1447
        %v2044 = vpack.c.bf16 %v1450, %v1449
        %v2045 = vpack.c.bf16 %v1452, %v1451
        %v2046 = vpack.c.bf16 %v1454, %v1453
        %v2047 = vpack.c.bf16 %v1456, %v1455
        %v2048 = vpack.c.bf16 %v1458, %v1457
        %v2049 = vpack.c.bf16 %v1460, %v1459
        %v2050 = vpack.c.bf16 %v1462, %v1461
        %v2051 = vpack.c.bf16 %v1464, %v1463
        %s2052 = scalar_lea.vmem [#allocation7], 64
        %v2053 = vld [vmem:[%s2052] sm:$0xf]
        %v2054 = vld [vmem:[%s2052 + $0x4] sm:$0xf]
        %v2055 = vld [vmem:[%s2052 + $0x8] sm:$0xf]
        %v2056 = vld [vmem:[%s2052 + $0xc] sm:$0xf]
        %v2057 = vld [vmem:[%s2052 + $0x10] sm:$0xf]
        %v2058 = vld [vmem:[%s2052 + $0x14] sm:$0xf]
        %v2059 = vld [vmem:[%s2052 + $0x18] sm:$0xf]
        %v2060 = vld [vmem:[%s2052 + $0x1c] sm:$0xf]
        %v2069 = vunpack.c.l.b16 %v2053
        %v2070 = vunpack.c.l.b16 %v2054
        %v2071 = vunpack.c.l.b16 %v2055
        %v2072 = vunpack.c.l.b16 %v2056
        %v2073 = vunpack.c.l.b16 %v2057
        %v2074 = vunpack.c.l.b16 %v2058
        %v2075 = vunpack.c.l.b16 %v2059
        %v2076 = vunpack.c.l.b16 %v2060
        %v2077 = vpack.c.b16 %v2070, %v2069
        %v2078 = vpack.c.b16 %v2072, %v2071
        %v2079 = vpack.c.b16 %v2074, %v2073
        %v2080 = vpack.c.b16 %v2076, %v2075
        %v2086 = vsel %vm1685, %v2040, 0
        %v2089 = vsel %vm1685, %v2041, 0
        %v2092 = vsel %vm1685, %v2042, 0
        %v2095 = vsel %vm1685, %v2043, 0
        %v2098 = vsel %vm1685, %v2044, 0
        %v2101 = vsel %vm1685, %v2045, 0
        %v2104 = vsel %vm1685, %v2046, 0
        %v2107 = vsel %vm1685, %v2047, 0
        %v2110 = vsel %vm1685, %v2048, 0
        %v2113 = vsel %vm1685, %v2049, 0
        %v2116 = vsel %vm1685, %v2050, 0
        %v2119 = vsel %vm1685, %v2051, 0
        %2121 = vmatprep.subr.bf16.mxu0 0
        %2122 = vmatpush1.bf16.msra.mxu0 0
        %2123 = vmatprep.subr.bf16.mxu0 0
        %2124 = vmatpush1.bf16.msra.mxu0 0
        %2125 = vmatprep.subr.bf16.mxu0 0
        %2126 = vmatpush1.bf16.msra.mxu0 0
        %2127 = vmatprep.subr.bf16.mxu0 0
        %2128 = vmatpush1.bf16.msra.mxu0 0
        %2129 = vmatprep.subr.bf16.mxu0 0
        %2130 = vmatpush1.bf16.msra.mxu0 %v2080
        %2131 = vmatprep.subr.bf16.mxu0 0
        %2132 = vmatpush1.bf16.msra.mxu0 %v2079
        %2133 = vmatprep.subr.bf16.mxu0 0
        %2134 = vmatpush1.bf16.msra.mxu0 %v2078
        %2135 = vmatprep.subr.bf16.mxu0 0
        %2136 = vmatpush1.bf16.msra.mxu0 %v2077
        %2137 = vmatprep.subr.bf16.mxu0 0
        %2138 = vmatpush2.bf16.msra.mxu0 0
        %2139 = vmatprep.subr.bf16.mxu0 0
        %2140 = vmatpush2.bf16.msra.mxu0 0
        %2141 = vmatprep.subr.bf16.mxu0 0
        %2142 = vmatpush2.bf16.msra.mxu0 0
        %2143 = vmatprep.subr.bf16.mxu0 0
        %2144 = vmatpush2.bf16.msra.mxu0 0
        %2145 = vmatprep.subr.bf16.mxu0 0
        %2146 = vmatpush2.bf16.msra.mxu0 0
        %2147 = vmatprep.subr.bf16.mxu0 0
        %2148 = vmatpush2.bf16.msra.mxu0 0
        %2149 = vmatprep.subr.bf16.mxu0 0
        %2150 = vmatpush2.bf16.msra.mxu0 0
        %2151 = vmatprep.subr.bf16.mxu0 0
        %2152 = vmatpush2.bf16.msra.mxu0 0
        %2153 = vmatprep.mubr.bf16.mxu0 0
        %2154 = vmatmul.mubr.bf16.gmra.mxu0 %v2086
        %v2155 = vpop.f32.mrf.mxu0
        %v2156 = vadd.f32 0.0, %v2155
        %v2157 = vpop.f32.mrf.mxu0
        %v2158 = vpop.f32.mrf.mxu0
        %v2159 = vadd.f32 0.0, %v2158
        %v2160 = vpop.f32.mrf.mxu0
        %2161 = vmatprep.mubr.bf16.mxu0 0
        %2162 = vmatmul.mubr.bf16.gmra.mxu0 %v2089
        %v2163 = vpop.f32.mrf.mxu0
        %v2164 = vadd.f32 0.0, %v2163
        %v2165 = vpop.f32.mrf.mxu0
        %v2166 = vpop.f32.mrf.mxu0
        %v2167 = vadd.f32 0.0, %v2166
        %v2168 = vpop.f32.mrf.mxu0
        %2169 = vmatprep.mubr.bf16.mxu0 0
        %2170 = vmatmul.mubr.bf16.gmra.mxu0 %v2092
        %v2171 = vpop.f32.mrf.mxu0
        %v2172 = vadd.f32 0.0, %v2171
        %v2173 = vpop.f32.mrf.mxu0
        %v2174 = vpop.f32.mrf.mxu0
        %v2175 = vadd.f32 0.0, %v2174
        %v2176 = vpop.f32.mrf.mxu0
        %2177 = vmatprep.mubr.bf16.mxu0 0
        %2178 = vmatmul.mubr.bf16.gmra.mxu0 %v2095
        %v2179 = vpop.f32.mrf.mxu0
        %v2180 = vadd.f32 0.0, %v2179
        %v2181 = vpop.f32.mrf.mxu0
        %v2182 = vpop.f32.mrf.mxu0
        %v2183 = vadd.f32 0.0, %v2182
        %v2184 = vpop.f32.mrf.mxu0
        %2185 = vmatprep.mubr.bf16.mxu0 0
        %2186 = vmatmul.mubr.bf16.gmra.mxu0 %v2098
        %v2187 = vpop.f32.mrf.mxu0
        %v2188 = vadd.f32 0.0, %v2187
        %v2189 = vpop.f32.mrf.mxu0
        %v2190 = vpop.f32.mrf.mxu0
        %v2191 = vadd.f32 0.0, %v2190
        %v2192 = vpop.f32.mrf.mxu0
        %2193 = vmatprep.mubr.bf16.mxu0 0
        %2194 = vmatmul.mubr.bf16.gmra.mxu0 %v2101
        %v2195 = vpop.f32.mrf.mxu0
        %v2196 = vadd.f32 0.0, %v2195
        %v2197 = vpop.f32.mrf.mxu0
        %v2198 = vpop.f32.mrf.mxu0
        %v2199 = vadd.f32 0.0, %v2198
        %v2200 = vpop.f32.mrf.mxu0
        %2201 = vmatprep.mubr.bf16.mxu0 0
        %2202 = vmatmul.mubr.bf16.gmra.mxu0 %v2104
        %v2203 = vpop.f32.mrf.mxu0
        %v2204 = vadd.f32 0.0, %v2203
        %v2205 = vpop.f32.mrf.mxu0
        %v2206 = vpop.f32.mrf.mxu0
        %v2207 = vadd.f32 0.0, %v2206
        %v2208 = vpop.f32.mrf.mxu0
        %2209 = vmatprep.mubr.bf16.mxu0 0
        %2210 = vmatmul.mubr.bf16.gmra.mxu0 %v2107
        %v2211 = vpop.f32.mrf.mxu0
        %v2212 = vadd.f32 0.0, %v2211
        %v2213 = vpop.f32.mrf.mxu0
        %v2214 = vpop.f32.mrf.mxu0
        %v2215 = vadd.f32 0.0, %v2214
        %v2216 = vpop.f32.mrf.mxu0
        %2217 = vmatprep.mubr.bf16.mxu0 0
        %2218 = vmatmul.mubr.bf16.gmra.mxu0 %v2110
        %v2219 = vpop.f32.mrf.mxu0
        %v2220 = vadd.f32 0.0, %v2219
        %v2221 = vpop.f32.mrf.mxu0
        %v2222 = vpop.f32.mrf.mxu0
        %v2223 = vadd.f32 0.0, %v2222
        %v2224 = vpop.f32.mrf.mxu0
        %2225 = vmatprep.mubr.bf16.mxu0 0
        %2226 = vmatmul.mubr.bf16.gmra.mxu0 %v2113
        %v2227 = vpop.f32.mrf.mxu0
        %v2228 = vadd.f32 0.0, %v2227
        %v2229 = vpop.f32.mrf.mxu0
        %v2230 = vpop.f32.mrf.mxu0
        %v2231 = vadd.f32 0.0, %v2230
        %v2232 = vpop.f32.mrf.mxu0
        %2233 = vmatprep.mubr.bf16.mxu0 0
        %2234 = vmatmul.mubr.bf16.gmra.mxu0 %v2116
        %v2235 = vpop.f32.mrf.mxu0
        %v2236 = vadd.f32 0.0, %v2235
        %v2237 = vpop.f32.mrf.mxu0
        %v2238 = vpop.f32.mrf.mxu0
        %v2239 = vadd.f32 0.0, %v2238
        %v2240 = vpop.f32.mrf.mxu0
        %2241 = vmatprep.mubr.bf16.mxu0 0
        %2242 = vmatmul.mubr.bf16.gmra.mxu0 %v2119
        %v2243 = vpop.f32.mrf.mxu0
        %v2244 = vadd.f32 0.0, %v2243
        %v2245 = vpop.f32.mrf.mxu0
        %v2246 = vpop.f32.mrf.mxu0
        %v2247 = vadd.f32 0.0, %v2246
        %v2248 = vpop.f32.mrf.mxu0
        %2249 = vdwg.mxu0
        %v2250 = vadd.f32 %v1946, %v2156
        %v2251 = vadd.f32 %v1949, %v2159
        %v2252 = vadd.f32 %v1954, %v2164
        %v2253 = vadd.f32 %v1957, %v2167
        %v2254 = vadd.f32 %v1962, %v2172
        %v2255 = vadd.f32 %v1965, %v2175
        %v2256 = vadd.f32 %v1970, %v2180
        %v2257 = vadd.f32 %v1973, %v2183
        %v2258 = vadd.f32 %v1978, %v2188
        %v2259 = vadd.f32 %v1981, %v2191
        %v2260 = vadd.f32 %v1986, %v2196
        %v2261 = vadd.f32 %v1989, %v2199
        %v2262 = vadd.f32 %v1994, %v2204
        %v2263 = vadd.f32 %v1997, %v2207
        %v2264 = vadd.f32 %v2002, %v2212
        %v2265 = vadd.f32 %v2005, %v2215
        %v2266 = vadd.f32 %v2010, %v2220
        %v2267 = vadd.f32 %v2013, %v2223
        %v2268 = vadd.f32 %v2018, %v2228
        %v2269 = vadd.f32 %v2021, %v2231
        %v2270 = vadd.f32 %v2026, %v2236
        %v2271 = vadd.f32 %v2029, %v2239
        %v2272 = vadd.f32 %v2034, %v2244
        %v2273 = vadd.f32 %v2037, %v2247
        %v2274 = vrot.slane %v1441, 1
        %v2275 = vrot.slane %v1442, 1
        %v2276 = vrot.slane %v1443, 1
        %v2277 = vrot.slane %v1444, 1
        %v2278 = vrot.slane %v1445, 1
        %v2279 = vrot.slane %v1446, 1
        %v2280 = vrot.slane %v1447, 1
        %v2281 = vrot.slane %v1448, 1
        %v2282 = vrot.slane %v1449, 1
        %v2283 = vrot.slane %v1450, 1
        %v2284 = vrot.slane %v1451, 1
        %v2285 = vrot.slane %v1452, 1
        %v2286 = vrot.slane %v1453, 1
        %v2287 = vrot.slane %v1454, 1
        %v2288 = vrot.slane %v1455, 1
        %v2289 = vrot.slane %v1456, 1
        %v2290 = vrot.slane %v1457, 1
        %v2291 = vrot.slane %v1458, 1
        %v2292 = vrot.slane %v1459, 1
        %v2293 = vrot.slane %v1460, 1
        %v2294 = vrot.slane %v1461, 1
        %v2295 = vrot.slane %v1462, 1
        %v2296 = vrot.slane %v1463, 1
        %v2297 = vrot.slane %v1464, 1
        %vm2298 = vcmp.lt.s32.totalorder %v1035, 7
        %v2299 = vsel %vm2298, %v2296, %v2297
        %v2300 = vsel %vm2298, %v2295, %v2296
        %v2301 = vsel %vm2298, %v2294, %v2295
        %v2302 = vsel %vm2298, %v2293, %v2294
        %v2303 = vsel %vm2298, %v2292, %v2293
        %v2304 = vsel %vm2298, %v2291, %v2292
        %v2305 = vsel %vm2298, %v2290, %v2291
        %v2306 = vsel %vm2298, %v2289, %v2290
        %v2307 = vsel %vm2298, %v2288, %v2289
        %v2308 = vsel %vm2298, %v2287, %v2288
        %v2309 = vsel %vm2298, %v2286, %v2287
        %v2310 = vsel %vm2298, %v2285, %v2286
        %v2311 = vsel %vm2298, %v2284, %v2285
        %v2312 = vsel %vm2298, %v2283, %v2284
        %v2313 = vsel %vm2298, %v2282, %v2283
        %v2314 = vsel %vm2298, %v2281, %v2282
        %v2315 = vsel %vm2298, %v2280, %v2281
        %v2316 = vsel %vm2298, %v2279, %v2280
        %v2317 = vsel %vm2298, %v2278, %v2279
        %v2318 = vsel %vm2298, %v2277, %v2278
        %v2319 = vsel %vm2298, %v2276, %v2277
        %v2320 = vsel %vm2298, %v2275, %v2276
        %v2321 = vsel %vm2298, %v2274, %v2275
        %v2322 = vsel %vm2298, %v2297, %v2274
        %v2323 = vpack.c.bf16 %v2320, %v2321
        %v2324 = vpack.c.bf16 %v2318, %v2319
        %v2325 = vpack.c.bf16 %v2316, %v2317
        %v2326 = vpack.c.bf16 %v2314, %v2315
        %v2327 = vpack.c.bf16 %v2312, %v2313
        %v2328 = vpack.c.bf16 %v2310, %v2311
        %v2329 = vpack.c.bf16 %v2308, %v2309
        %v2330 = vpack.c.bf16 %v2306, %v2307
        %v2331 = vpack.c.bf16 %v2304, %v2305
        %v2332 = vpack.c.bf16 %v2302, %v2303
        %v2333 = vpack.c.bf16 %v2300, %v2301
        %v2334 = vpack.c.bf16 %v2322, %v2299
        %s2335 = scalar_lea.vmem [#allocation7], 96
        %v2336 = vld [vmem:[%s2335] sm:$0xf]
        %v2337 = vld [vmem:[%s2335 + $0x4] sm:$0xf]
        %v2338 = vld [vmem:[%s2335 + $0x8] sm:$0xf]
        %v2339 = vld [vmem:[%s2335 + $0xc] sm:$0xf]
        %v2340 = vld [vmem:[%s2335 + $0x10] sm:$0xf]
        %v2341 = vld [vmem:[%s2335 + $0x14] sm:$0xf]
        %v2342 = vld [vmem:[%s2335 + $0x18] sm:$0xf]
        %v2343 = vld [vmem:[%s2335 + $0x1c] sm:$0xf]
        %v2352 = vunpack.c.l.b16 %v2336
        %v2353 = vunpack.c.l.b16 %v2337
        %v2354 = vunpack.c.l.b16 %v2338
        %v2355 = vunpack.c.l.b16 %v2339
        %v2356 = vunpack.c.l.b16 %v2340
        %v2357 = vunpack.c.l.b16 %v2341
        %v2358 = vunpack.c.l.b16 %v2342
        %v2359 = vunpack.c.l.b16 %v2343
        %v2360 = vpack.c.b16 %v2353, %v2352
        %v2361 = vpack.c.b16 %v2355, %v2354
        %v2362 = vpack.c.b16 %v2357, %v2356
        %v2363 = vpack.c.b16 %v2359, %v2358
        %v2369 = vsel %vm1685, %v2323, 0
        %v2372 = vsel %vm1685, %v2324, 0
        %v2375 = vsel %vm1685, %v2325, 0
        %v2378 = vsel %vm1685, %v2326, 0
        %v2381 = vsel %vm1685, %v2327, 0
        %v2384 = vsel %vm1685, %v2328, 0
        %v2387 = vsel %vm1685, %v2329, 0
        %v2390 = vsel %vm1685, %v2330, 0
        %v2393 = vsel %vm1685, %v2331, 0
        %v2396 = vsel %vm1685, %v2332, 0
        %v2399 = vsel %vm1685, %v2333, 0
        %v2402 = vsel %vm1685, %v2334, 0
        %2404 = vmatprep.subr.bf16.mxu0 0
        %2405 = vmatpush1.bf16.msra.mxu0 0
        %2406 = vmatprep.subr.bf16.mxu0 0
        %2407 = vmatpush1.bf16.msra.mxu0 0
        %2408 = vmatprep.subr.bf16.mxu0 0
        %2409 = vmatpush1.bf16.msra.mxu0 0
        %2410 = vmatprep.subr.bf16.mxu0 0
        %2411 = vmatpush1.bf16.msra.mxu0 0
        %2412 = vmatprep.subr.bf16.mxu0 0
        %2413 = vmatpush1.bf16.msra.mxu0 %v2363
        %2414 = vmatprep.subr.bf16.mxu0 0
        %2415 = vmatpush1.bf16.msra.mxu0 %v2362
        %2416 = vmatprep.subr.bf16.mxu0 0
        %2417 = vmatpush1.bf16.msra.mxu0 %v2361
        %2418 = vmatprep.subr.bf16.mxu0 0
        %2419 = vmatpush1.bf16.msra.mxu0 %v2360
        %2420 = vmatprep.subr.bf16.mxu0 0
        %2421 = vmatpush2.bf16.msra.mxu0 0
        %2422 = vmatprep.subr.bf16.mxu0 0
        %2423 = vmatpush2.bf16.msra.mxu0 0
        %2424 = vmatprep.subr.bf16.mxu0 0
        %2425 = vmatpush2.bf16.msra.mxu0 0
        %2426 = vmatprep.subr.bf16.mxu0 0
        %2427 = vmatpush2.bf16.msra.mxu0 0
        %2428 = vmatprep.subr.bf16.mxu0 0
        %2429 = vmatpush2.bf16.msra.mxu0 0
        %2430 = vmatprep.subr.bf16.mxu0 0
        %2431 = vmatpush2.bf16.msra.mxu0 0
        %2432 = vmatprep.subr.bf16.mxu0 0
        %2433 = vmatpush2.bf16.msra.mxu0 0
        %2434 = vmatprep.subr.bf16.mxu0 0
        %2435 = vmatpush2.bf16.msra.mxu0 0
        %2436 = vmatprep.mubr.bf16.mxu0 0
        %2437 = vmatmul.mubr.bf16.gmra.mxu0 %v2369
        %v2438 = vpop.f32.mrf.mxu0
        %v2439 = vadd.f32 0.0, %v2438
        %v2440 = vpop.f32.mrf.mxu0
        %v2441 = vpop.f32.mrf.mxu0
        %v2442 = vadd.f32 0.0, %v2441
        %v2443 = vpop.f32.mrf.mxu0
        %2444 = vmatprep.mubr.bf16.mxu0 0
        %2445 = vmatmul.mubr.bf16.gmra.mxu0 %v2372
        %v2446 = vpop.f32.mrf.mxu0
        %v2447 = vadd.f32 0.0, %v2446
        %v2448 = vpop.f32.mrf.mxu0
        %v2449 = vpop.f32.mrf.mxu0
        %v2450 = vadd.f32 0.0, %v2449
        %v2451 = vpop.f32.mrf.mxu0
        %2452 = vmatprep.mubr.bf16.mxu0 0
        %2453 = vmatmul.mubr.bf16.gmra.mxu0 %v2375
        %v2454 = vpop.f32.mrf.mxu0
        %v2455 = vadd.f32 0.0, %v2454
        %v2456 = vpop.f32.mrf.mxu0
        %v2457 = vpop.f32.mrf.mxu0
        %v2458 = vadd.f32 0.0, %v2457
        %v2459 = vpop.f32.mrf.mxu0
        %2460 = vmatprep.mubr.bf16.mxu0 0
        %2461 = vmatmul.mubr.bf16.gmra.mxu0 %v2378
        %v2462 = vpop.f32.mrf.mxu0
        %v2463 = vadd.f32 0.0, %v2462
        %v2464 = vpop.f32.mrf.mxu0
        %v2465 = vpop.f32.mrf.mxu0
        %v2466 = vadd.f32 0.0, %v2465
        %v2467 = vpop.f32.mrf.mxu0
        %2468 = vmatprep.mubr.bf16.mxu0 0
        %2469 = vmatmul.mubr.bf16.gmra.mxu0 %v2381
        %v2470 = vpop.f32.mrf.mxu0
        %v2471 = vadd.f32 0.0, %v2470
        %v2472 = vpop.f32.mrf.mxu0
        %v2473 = vpop.f32.mrf.mxu0
        %v2474 = vadd.f32 0.0, %v2473
        %v2475 = vpop.f32.mrf.mxu0
        %2476 = vmatprep.mubr.bf16.mxu0 0
        %2477 = vmatmul.mubr.bf16.gmra.mxu0 %v2384
        %v2478 = vpop.f32.mrf.mxu0
        %v2479 = vadd.f32 0.0, %v2478
        %v2480 = vpop.f32.mrf.mxu0
        %v2481 = vpop.f32.mrf.mxu0
        %v2482 = vadd.f32 0.0, %v2481
        %v2483 = vpop.f32.mrf.mxu0
        %2484 = vmatprep.mubr.bf16.mxu0 0
        %2485 = vmatmul.mubr.bf16.gmra.mxu0 %v2387
        %v2486 = vpop.f32.mrf.mxu0
        %v2487 = vadd.f32 0.0, %v2486
        %v2488 = vpop.f32.mrf.mxu0
        %v2489 = vpop.f32.mrf.mxu0
        %v2490 = vadd.f32 0.0, %v2489
        %v2491 = vpop.f32.mrf.mxu0
        %2492 = vmatprep.mubr.bf16.mxu0 0
        %2493 = vmatmul.mubr.bf16.gmra.mxu0 %v2390
        %v2494 = vpop.f32.mrf.mxu0
        %v2495 = vadd.f32 0.0, %v2494
        %v2496 = vpop.f32.mrf.mxu0
        %v2497 = vpop.f32.mrf.mxu0
        %v2498 = vadd.f32 0.0, %v2497
        %v2499 = vpop.f32.mrf.mxu0
        %2500 = vmatprep.mubr.bf16.mxu0 0
        %2501 = vmatmul.mubr.bf16.gmra.mxu0 %v2393
        %v2502 = vpop.f32.mrf.mxu0
        %v2503 = vadd.f32 0.0, %v2502
        %v2504 = vpop.f32.mrf.mxu0
        %v2505 = vpop.f32.mrf.mxu0
        %v2506 = vadd.f32 0.0, %v2505
        %v2507 = vpop.f32.mrf.mxu0
        %2508 = vmatprep.mubr.bf16.mxu0 0
        %2509 = vmatmul.mubr.bf16.gmra.mxu0 %v2396
        %v2510 = vpop.f32.mrf.mxu0
        %v2511 = vadd.f32 0.0, %v2510
        %v2512 = vpop.f32.mrf.mxu0
        %v2513 = vpop.f32.mrf.mxu0
        %v2514 = vadd.f32 0.0, %v2513
        %v2515 = vpop.f32.mrf.mxu0
        %2516 = vmatprep.mubr.bf16.mxu0 0
        %2517 = vmatmul.mubr.bf16.gmra.mxu0 %v2399
        %v2518 = vpop.f32.mrf.mxu0
        %v2519 = vadd.f32 0.0, %v2518
        %v2520 = vpop.f32.mrf.mxu0
        %v2521 = vpop.f32.mrf.mxu0
        %v2522 = vadd.f32 0.0, %v2521
        %v2523 = vpop.f32.mrf.mxu0
        %2524 = vmatprep.mubr.bf16.mxu0 0
        %2525 = vmatmul.mubr.bf16.gmra.mxu0 %v2402
        %v2526 = vpop.f32.mrf.mxu0
        %v2527 = vadd.f32 0.0, %v2526
        %v2528 = vpop.f32.mrf.mxu0
        %v2529 = vpop.f32.mrf.mxu0
        %v2530 = vadd.f32 0.0, %v2529
        %v2531 = vpop.f32.mrf.mxu0
        %2532 = vdwg.mxu0
        %v2533 = vadd.f32 %v2250, %v2439
        %v2534 = vadd.f32 %v2251, %v2442
        %v2535 = vadd.f32 %v2252, %v2447
        %v2536 = vadd.f32 %v2253, %v2450
        %v2537 = vadd.f32 %v2254, %v2455
        %v2538 = vadd.f32 %v2255, %v2458
        %v2539 = vadd.f32 %v2256, %v2463
        %v2540 = vadd.f32 %v2257, %v2466
        %v2541 = vadd.f32 %v2258, %v2471
        %v2542 = vadd.f32 %v2259, %v2474
        %v2543 = vadd.f32 %v2260, %v2479
        %v2544 = vadd.f32 %v2261, %v2482
        %v2545 = vadd.f32 %v2262, %v2487
        %v2546 = vadd.f32 %v2263, %v2490
        %v2547 = vadd.f32 %v2264, %v2495
        %v2548 = vadd.f32 %v2265, %v2498
        %v2549 = vadd.f32 %v2266, %v2503
        %v2550 = vadd.f32 %v2267, %v2506
        %v2551 = vadd.f32 %v2268, %v2511
        %v2552 = vadd.f32 %v2269, %v2514
        %v2553 = vadd.f32 %v2270, %v2519
        %v2554 = vadd.f32 %v2271, %v2522
        %v2555 = vadd.f32 %v2272, %v2527
        %v2556 = vadd.f32 %v2273, %v2530
        %v2557 = vrot.slane %v1441, 2
        %v2558 = vrot.slane %v1442, 2
        %v2559 = vrot.slane %v1443, 2
        %v2560 = vrot.slane %v1444, 2
        %v2561 = vrot.slane %v1445, 2
        %v2562 = vrot.slane %v1446, 2
        %v2563 = vrot.slane %v1447, 2
        %v2564 = vrot.slane %v1448, 2
        %v2565 = vrot.slane %v1449, 2
        %v2566 = vrot.slane %v1450, 2
        %v2567 = vrot.slane %v1451, 2
        %v2568 = vrot.slane %v1452, 2
        %v2569 = vrot.slane %v1453, 2
        %v2570 = vrot.slane %v1454, 2
        %v2571 = vrot.slane %v1455, 2
        %v2572 = vrot.slane %v1456, 2
        %v2573 = vrot.slane %v1457, 2
        %v2574 = vrot.slane %v1458, 2
        %v2575 = vrot.slane %v1459, 2
        %v2576 = vrot.slane %v1460, 2
        %v2577 = vrot.slane %v1461, 2
        %v2578 = vrot.slane %v1462, 2
        %v2579 = vrot.slane %v1463, 2
        %v2580 = vrot.slane %v1464, 2
        %vm2581 = vcmp.lt.s32.totalorder %v1035, 6
        %v2582 = vsel %vm2581, %v2579, %v2580
        %v2583 = vsel %vm2581, %v2578, %v2579
        %v2584 = vsel %vm2581, %v2577, %v2578
        %v2585 = vsel %vm2581, %v2576, %v2577
        %v2586 = vsel %vm2581, %v2575, %v2576
        %v2587 = vsel %vm2581, %v2574, %v2575
        %v2588 = vsel %vm2581, %v2573, %v2574
        %v2589 = vsel %vm2581, %v2572, %v2573
        %v2590 = vsel %vm2581, %v2571, %v2572
        %v2591 = vsel %vm2581, %v2570, %v2571
        %v2592 = vsel %vm2581, %v2569, %v2570
        %v2593 = vsel %vm2581, %v2568, %v2569
        %v2594 = vsel %vm2581, %v2567, %v2568
        %v2595 = vsel %vm2581, %v2566, %v2567
        %v2596 = vsel %vm2581, %v2565, %v2566
        %v2597 = vsel %vm2581, %v2564, %v2565
        %v2598 = vsel %vm2581, %v2563, %v2564
        %v2599 = vsel %vm2581, %v2562, %v2563
        %v2600 = vsel %vm2581, %v2561, %v2562
        %v2601 = vsel %vm2581, %v2560, %v2561
        %v2602 = vsel %vm2581, %v2559, %v2560
        %v2603 = vsel %vm2581, %v2558, %v2559
        %v2604 = vsel %vm2581, %v2557, %v2558
        %v2605 = vsel %vm2581, %v2580, %v2557
        %v2606 = vpack.c.bf16 %v2603, %v2604
        %v2607 = vpack.c.bf16 %v2601, %v2602
        %v2608 = vpack.c.bf16 %v2599, %v2600
        %v2609 = vpack.c.bf16 %v2597, %v2598
        %v2610 = vpack.c.bf16 %v2595, %v2596
        %v2611 = vpack.c.bf16 %v2593, %v2594
        %v2612 = vpack.c.bf16 %v2591, %v2592
        %v2613 = vpack.c.bf16 %v2589, %v2590
        %v2614 = vpack.c.bf16 %v2587, %v2588
        %v2615 = vpack.c.bf16 %v2585, %v2586
        %v2616 = vpack.c.bf16 %v2583, %v2584
        %v2617 = vpack.c.bf16 %v2605, %v2582
        %s2618 = scalar_lea.vmem [#allocation7], 128
        %v2619 = vld [vmem:[%s2618] sm:$0xf]
        %v2620 = vld [vmem:[%s2618 + $0x4] sm:$0xf]
        %v2621 = vld [vmem:[%s2618 + $0x8] sm:$0xf]
        %v2622 = vld [vmem:[%s2618 + $0xc] sm:$0xf]
        %v2623 = vld [vmem:[%s2618 + $0x10] sm:$0xf]
        %v2624 = vld [vmem:[%s2618 + $0x14] sm:$0xf]
        %v2625 = vld [vmem:[%s2618 + $0x18] sm:$0xf]
        %v2626 = vld [vmem:[%s2618 + $0x1c] sm:$0xf]
        %v2635 = vunpack.c.l.b16 %v2619
        %v2636 = vunpack.c.l.b16 %v2620
        %v2637 = vunpack.c.l.b16 %v2621
        %v2638 = vunpack.c.l.b16 %v2622
        %v2639 = vunpack.c.l.b16 %v2623
        %v2640 = vunpack.c.l.b16 %v2624
        %v2641 = vunpack.c.l.b16 %v2625
        %v2642 = vunpack.c.l.b16 %v2626
        %v2643 = vpack.c.b16 %v2636, %v2635
        %v2644 = vpack.c.b16 %v2638, %v2637
        %v2645 = vpack.c.b16 %v2640, %v2639
        %v2646 = vpack.c.b16 %v2642, %v2641
        %v2652 = vsel %vm1685, %v2606, 0
        %v2655 = vsel %vm1685, %v2607, 0
        %v2658 = vsel %vm1685, %v2608, 0
        %v2661 = vsel %vm1685, %v2609, 0
        %v2664 = vsel %vm1685, %v2610, 0
        %v2667 = vsel %vm1685, %v2611, 0
        %v2670 = vsel %vm1685, %v2612, 0
        %v2673 = vsel %vm1685, %v2613, 0
        %v2676 = vsel %vm1685, %v2614, 0
        %v2679 = vsel %vm1685, %v2615, 0
        %v2682 = vsel %vm1685, %v2616, 0
        %v2685 = vsel %vm1685, %v2617, 0
        %2687 = vmatprep.subr.bf16.mxu0 0
        %2688 = vmatpush1.bf16.msra.mxu0 0
        %2689 = vmatprep.subr.bf16.mxu0 0
        %2690 = vmatpush1.bf16.msra.mxu0 0
        %2691 = vmatprep.subr.bf16.mxu0 0
        %2692 = vmatpush1.bf16.msra.mxu0 0
        %2693 = vmatprep.subr.bf16.mxu0 0
        %2694 = vmatpush1.bf16.msra.mxu0 0
        %2695 = vmatprep.subr.bf16.mxu0 0
        %2696 = vmatpush1.bf16.msra.mxu0 %v2646
        %2697 = vmatprep.subr.bf16.mxu0 0
        %2698 = vmatpush1.bf16.msra.mxu0 %v2645
        %2699 = vmatprep.subr.bf16.mxu0 0
        %2700 = vmatpush1.bf16.msra.mxu0 %v2644
        %2701 = vmatprep.subr.bf16.mxu0 0
        %2702 = vmatpush1.bf16.msra.mxu0 %v2643
        %2703 = vmatprep.subr.bf16.mxu0 0
        %2704 = vmatpush2.bf16.msra.mxu0 0
        %2705 = vmatprep.subr.bf16.mxu0 0
        %2706 = vmatpush2.bf16.msra.mxu0 0
        %2707 = vmatprep.subr.bf16.mxu0 0
        %2708 = vmatpush2.bf16.msra.mxu0 0
        %2709 = vmatprep.subr.bf16.mxu0 0
        %2710 = vmatpush2.bf16.msra.mxu0 0
        %2711 = vmatprep.subr.bf16.mxu0 0
        %2712 = vmatpush2.bf16.msra.mxu0 0
        %2713 = vmatprep.subr.bf16.mxu0 0
        %2714 = vmatpush2.bf16.msra.mxu0 0
        %2715 = vmatprep.subr.bf16.mxu0 0
        %2716 = vmatpush2.bf16.msra.mxu0 0
        %2717 = vmatprep.subr.bf16.mxu0 0
        %2718 = vmatpush2.bf16.msra.mxu0 0
        %2719 = vmatprep.mubr.bf16.mxu0 0
        %2720 = vmatmul.mubr.bf16.gmra.mxu0 %v2652
        %v2721 = vpop.f32.mrf.mxu0
        %v2722 = vadd.f32 0.0, %v2721
        %v2723 = vpop.f32.mrf.mxu0
        %v2724 = vpop.f32.mrf.mxu0
        %v2725 = vadd.f32 0.0, %v2724
        %v2726 = vpop.f32.mrf.mxu0
        %2727 = vmatprep.mubr.bf16.mxu0 0
        %2728 = vmatmul.mubr.bf16.gmra.mxu0 %v2655
        %v2729 = vpop.f32.mrf.mxu0
        %v2730 = vadd.f32 0.0, %v2729
        %v2731 = vpop.f32.mrf.mxu0
        %v2732 = vpop.f32.mrf.mxu0
        %v2733 = vadd.f32 0.0, %v2732
        %v2734 = vpop.f32.mrf.mxu0
        %2735 = vmatprep.mubr.bf16.mxu0 0
        %2736 = vmatmul.mubr.bf16.gmra.mxu0 %v2658
        %v2737 = vpop.f32.mrf.mxu0
        %v2738 = vadd.f32 0.0, %v2737
        %v2739 = vpop.f32.mrf.mxu0
        %v2740 = vpop.f32.mrf.mxu0
        %v2741 = vadd.f32 0.0, %v2740
        %v2742 = vpop.f32.mrf.mxu0
        %2743 = vmatprep.mubr.bf16.mxu0 0
        %2744 = vmatmul.mubr.bf16.gmra.mxu0 %v2661
        %v2745 = vpop.f32.mrf.mxu0
        %v2746 = vadd.f32 0.0, %v2745
        %v2747 = vpop.f32.mrf.mxu0
        %v2748 = vpop.f32.mrf.mxu0
        %v2749 = vadd.f32 0.0, %v2748
        %v2750 = vpop.f32.mrf.mxu0
        %2751 = vmatprep.mubr.bf16.mxu0 0
        %2752 = vmatmul.mubr.bf16.gmra.mxu0 %v2664
        %v2753 = vpop.f32.mrf.mxu0
        %v2754 = vadd.f32 0.0, %v2753
        %v2755 = vpop.f32.mrf.mxu0
        %v2756 = vpop.f32.mrf.mxu0
        %v2757 = vadd.f32 0.0, %v2756
        %v2758 = vpop.f32.mrf.mxu0
        %2759 = vmatprep.mubr.bf16.mxu0 0
        %2760 = vmatmul.mubr.bf16.gmra.mxu0 %v2667
        %v2761 = vpop.f32.mrf.mxu0
        %v2762 = vadd.f32 0.0, %v2761
        %v2763 = vpop.f32.mrf.mxu0
        %v2764 = vpop.f32.mrf.mxu0
        %v2765 = vadd.f32 0.0, %v2764
        %v2766 = vpop.f32.mrf.mxu0
        %2767 = vmatprep.mubr.bf16.mxu0 0
        %2768 = vmatmul.mubr.bf16.gmra.mxu0 %v2670
        %v2769 = vpop.f32.mrf.mxu0
        %v2770 = vadd.f32 0.0, %v2769
        %v2771 = vpop.f32.mrf.mxu0
        %v2772 = vpop.f32.mrf.mxu0
        %v2773 = vadd.f32 0.0, %v2772
        %v2774 = vpop.f32.mrf.mxu0
        %2775 = vmatprep.mubr.bf16.mxu0 0
        %2776 = vmatmul.mubr.bf16.gmra.mxu0 %v2673
        %v2777 = vpop.f32.mrf.mxu0
        %v2778 = vadd.f32 0.0, %v2777
        %v2779 = vpop.f32.mrf.mxu0
        %v2780 = vpop.f32.mrf.mxu0
        %v2781 = vadd.f32 0.0, %v2780
        %v2782 = vpop.f32.mrf.mxu0
        %2783 = vmatprep.mubr.bf16.mxu0 0
        %2784 = vmatmul.mubr.bf16.gmra.mxu0 %v2676
        %v2785 = vpop.f32.mrf.mxu0
        %v2786 = vadd.f32 0.0, %v2785
        %v2787 = vpop.f32.mrf.mxu0
        %v2788 = vpop.f32.mrf.mxu0
        %v2789 = vadd.f32 0.0, %v2788
        %v2790 = vpop.f32.mrf.mxu0
        %2791 = vmatprep.mubr.bf16.mxu0 0
        %2792 = vmatmul.mubr.bf16.gmra.mxu0 %v2679
        %v2793 = vpop.f32.mrf.mxu0
        %v2794 = vadd.f32 0.0, %v2793
        %v2795 = vpop.f32.mrf.mxu0
        %v2796 = vpop.f32.mrf.mxu0
        %v2797 = vadd.f32 0.0, %v2796
        %v2798 = vpop.f32.mrf.mxu0
        %2799 = vmatprep.mubr.bf16.mxu0 0
        %2800 = vmatmul.mubr.bf16.gmra.mxu0 %v2682
        %v2801 = vpop.f32.mrf.mxu0
        %v2802 = vadd.f32 0.0, %v2801
        %v2803 = vpop.f32.mrf.mxu0
        %v2804 = vpop.f32.mrf.mxu0
        %v2805 = vadd.f32 0.0, %v2804
        %v2806 = vpop.f32.mrf.mxu0
        %2807 = vmatprep.mubr.bf16.mxu0 0
        %2808 = vmatmul.mubr.bf16.gmra.mxu0 %v2685
        %v2809 = vpop.f32.mrf.mxu0
        %v2810 = vadd.f32 0.0, %v2809
        %v2811 = vpop.f32.mrf.mxu0
        %v2812 = vpop.f32.mrf.mxu0
        %v2813 = vadd.f32 0.0, %v2812
        %v2814 = vpop.f32.mrf.mxu0
        %2815 = vdwg.mxu0
        %v2816 = vadd.f32 %v2533, %v2722
        %v2817 = vadd.f32 %v2534, %v2725
        %v2818 = vadd.f32 %v2535, %v2730
        %v2819 = vadd.f32 %v2536, %v2733
        %v2820 = vadd.f32 %v2537, %v2738
        %v2821 = vadd.f32 %v2538, %v2741
        %v2822 = vadd.f32 %v2539, %v2746
        %v2823 = vadd.f32 %v2540, %v2749
        %v2824 = vadd.f32 %v2541, %v2754
        %v2825 = vadd.f32 %v2542, %v2757
        %v2826 = vadd.f32 %v2543, %v2762
        %v2827 = vadd.f32 %v2544, %v2765
        %v2828 = vadd.f32 %v2545, %v2770
        %v2829 = vadd.f32 %v2546, %v2773
        %v2830 = vadd.f32 %v2547, %v2778
        %v2831 = vadd.f32 %v2548, %v2781
        %v2832 = vadd.f32 %v2549, %v2786
        %v2833 = vadd.f32 %v2550, %v2789
        %v2834 = vadd.f32 %v2551, %v2794
        %v2835 = vadd.f32 %v2552, %v2797
        %v2836 = vadd.f32 %v2553, %v2802
        %v2837 = vadd.f32 %v2554, %v2805
        %v2838 = vadd.f32 %v2555, %v2810
        %v2839 = vadd.f32 %v2556, %v2813
        %v2840 = vld [vmem:[#allocation8] sm:$0x1]
        %v2842 = vlaneseq
        %v2843 = vshrl.u32 %v2842, 7
        %v2844 = vsub.s32 0, %v2843
        %v2845 = vrot.slane %v2840, %v2844
        %v2847 = vadd.f32 %v2816, %v2845
        %v2848 = vadd.f32 %v2817, %v2845
        %v2849 = vadd.f32 %v2818, %v2845
        %v2850 = vadd.f32 %v2819, %v2845
        %v2851 = vadd.f32 %v2820, %v2845
        %v2852 = vadd.f32 %v2821, %v2845
        %v2853 = vadd.f32 %v2822, %v2845
        %v2854 = vadd.f32 %v2823, %v2845
        %v2855 = vadd.f32 %v2824, %v2845
        %v2856 = vadd.f32 %v2825, %v2845
        %v2857 = vadd.f32 %v2826, %v2845
        %v2858 = vadd.f32 %v2827, %v2845
        %v2859 = vadd.f32 %v2828, %v2845
        %v2860 = vadd.f32 %v2829, %v2845
        %v2861 = vadd.f32 %v2830, %v2845
        %v2862 = vadd.f32 %v2831, %v2845
        %v2863 = vadd.f32 %v2832, %v2845
        %v2864 = vadd.f32 %v2833, %v2845
        %v2865 = vadd.f32 %v2834, %v2845
        %v2866 = vadd.f32 %v2835, %v2845
        %v2867 = vadd.f32 %v2836, %v2845
        %v2868 = vadd.f32 %v2837, %v2845
        %v2869 = vadd.f32 %v2838, %v2845
        %v2870 = vadd.f32 %v2839, %v2845
        %v2871 = vmax.f32 %v2847, 0.0
        %v2872 = vmax.f32 %v2848, 0.0
        %v2873 = vmax.f32 %v2849, 0.0
        %v2874 = vmax.f32 %v2850, 0.0
        %v2875 = vmax.f32 %v2851, 0.0
        %v2876 = vmax.f32 %v2852, 0.0
        %v2877 = vmax.f32 %v2853, 0.0
        %v2878 = vmax.f32 %v2854, 0.0
        %v2879 = vmax.f32 %v2855, 0.0
        %v2880 = vmax.f32 %v2856, 0.0
        %v2881 = vmax.f32 %v2857, 0.0
        %v2882 = vmax.f32 %v2858, 0.0
        %v2883 = vmax.f32 %v2859, 0.0
        %v2884 = vmax.f32 %v2860, 0.0
        %v2885 = vmax.f32 %v2861, 0.0
        %v2886 = vmax.f32 %v2862, 0.0
        %v2887 = vmax.f32 %v2863, 0.0
        %v2888 = vmax.f32 %v2864, 0.0
        %v2889 = vmax.f32 %v2865, 0.0
        %v2890 = vmax.f32 %v2866, 0.0
        %v2891 = vmax.f32 %v2867, 0.0
        %v2892 = vmax.f32 %v2868, 0.0
        %v2893 = vmax.f32 %v2869, 0.0
        %v2894 = vmax.f32 %v2870, 0.0
        %v2895 = vmul.f32 %v2871, %v1107
        %v2896 = vmul.f32 %v2872, %v1108
        %v2897 = vmul.f32 %v2873, %v1109
        %v2898 = vmul.f32 %v2874, %v1110
        %v2899 = vmul.f32 %v2875, %v1111
        %v2900 = vmul.f32 %v2876, %v1112
        %v2901 = vmul.f32 %v2877, %v1113
        %v2902 = vmul.f32 %v2878, %v1114
        %v2903 = vmul.f32 %v2879, %v1115
        %v2904 = vmul.f32 %v2880, %v1116
        %v2905 = vmul.f32 %v2881, %v1117
        %v2906 = vmul.f32 %v2882, %v1118
        %v2907 = vmul.f32 %v2883, %v1119
        %v2908 = vmul.f32 %v2884, %v1120
        %v2909 = vmul.f32 %v2885, %v1121
        %v2910 = vmul.f32 %v2886, %v1122
        %v2911 = vmul.f32 %v2887, %v1123
        %v2912 = vmul.f32 %v2888, %v1124
        %v2913 = vmul.f32 %v2889, %v1125
        %v2914 = vmul.f32 %v2890, %v1126
        %v2915 = vmul.f32 %v2891, %v1127
        %v2916 = vmul.f32 %v2892, %v1128
        %v2917 = vmul.f32 %v2893, %v1129
        %v2918 = vmul.f32 %v2894, %v1130
        %v2919 = vrot.slane %v2895, 7
        %v2920 = vrot.slane %v2896, 7
        %v2921 = vrot.slane %v2897, 7
        %v2922 = vrot.slane %v2898, 7
        %v2923 = vrot.slane %v2899, 7
        %v2924 = vrot.slane %v2900, 7
        %v2925 = vrot.slane %v2901, 7
        %v2926 = vrot.slane %v2902, 7
        %v2927 = vrot.slane %v2903, 7
        %v2928 = vrot.slane %v2904, 7
        %v2929 = vrot.slane %v2905, 7
        %v2930 = vrot.slane %v2906, 7
        %v2931 = vrot.slane %v2907, 7
        %v2932 = vrot.slane %v2908, 7
        %v2933 = vrot.slane %v2909, 7
        %v2934 = vrot.slane %v2910, 7
        %v2935 = vrot.slane %v2911, 7
        %v2936 = vrot.slane %v2912, 7
        %v2937 = vrot.slane %v2913, 7
        %v2938 = vrot.slane %v2914, 7
        %v2939 = vrot.slane %v2915, 7
        %v2940 = vrot.slane %v2916, 7
        %v2941 = vrot.slane %v2917, 7
        %v2942 = vrot.slane %v2918, 7
        %v2943 = vsel %vm1615, %v2941, %v2942
        %v2944 = vsel %vm1615, %v2940, %v2941
        %v2945 = vsel %vm1615, %v2939, %v2940
        %v2946 = vsel %vm1615, %v2938, %v2939
        %v2947 = vsel %vm1615, %v2937, %v2938
        %v2948 = vsel %vm1615, %v2936, %v2937
        %v2949 = vsel %vm1615, %v2935, %v2936
        %v2950 = vsel %vm1615, %v2934, %v2935
        %v2951 = vsel %vm1615, %v2933, %v2934
        %v2952 = vsel %vm1615, %v2932, %v2933
        %v2953 = vsel %vm1615, %v2931, %v2932
        %v2954 = vsel %vm1615, %v2930, %v2931
        %v2955 = vsel %vm1615, %v2929, %v2930
        %v2956 = vsel %vm1615, %v2928, %v2929
        %v2957 = vsel %vm1615, %v2927, %v2928
        %v2958 = vsel %vm1615, %v2926, %v2927
        %v2959 = vsel %vm1615, %v2925, %v2926
        %v2960 = vsel %vm1615, %v2924, %v2925
        %v2961 = vsel %vm1615, %v2923, %v2924
        %v2962 = vsel %vm1615, %v2922, %v2923
        %v2963 = vsel %vm1615, %v2921, %v2922
        %v2964 = vsel %vm1615, %v2920, %v2921
        %v2965 = vsel %vm1615, %v2919, %v2920
        %v2966 = vsel %vm1615, %v2942, %v2919
        %v2967 = vpack.c.bf16 %v2965, %v2966
        %v2968 = vpack.c.bf16 %v2963, %v2964
        %v2969 = vpack.c.bf16 %v2961, %v2962
        %v2970 = vpack.c.bf16 %v2959, %v2960
        %v2971 = vpack.c.bf16 %v2957, %v2958
        %v2972 = vpack.c.bf16 %v2955, %v2956
        %v2973 = vpack.c.bf16 %v2953, %v2954
        %v2974 = vpack.c.bf16 %v2951, %v2952
        %v2975 = vpack.c.bf16 %v2949, %v2950
        %v2976 = vpack.c.bf16 %v2947, %v2948
        %v2977 = vpack.c.bf16 %v2945, %v2946
        %v2978 = vpack.c.bf16 %v2943, %v2944
        %v2979 = vld [vmem:[#allocation10] sm:$0xf]
        %v2980 = vld [vmem:[#allocation10 + $0x4] sm:$0xf]
        %v2981 = vld [vmem:[#allocation10 + $0x8] sm:$0xf]
        %v2982 = vld [vmem:[#allocation10 + $0xc] sm:$0xf]
        %v2983 = vld [vmem:[#allocation10 + $0x10] sm:$0xf]
        %v2984 = vld [vmem:[#allocation10 + $0x14] sm:$0xf]
        %v2985 = vld [vmem:[#allocation10 + $0x18] sm:$0xf]
        %v2986 = vld [vmem:[#allocation10 + $0x1c] sm:$0xf]
        %v2987 = vpack.c.bf16 %v2896, %v2895
        %v2988 = vpack.c.bf16 %v2898, %v2897
        %v2989 = vpack.c.bf16 %v2900, %v2899
        %v2990 = vpack.c.bf16 %v2902, %v2901
        %v2991 = vpack.c.bf16 %v2904, %v2903
        %v2992 = vpack.c.bf16 %v2906, %v2905
        %v2993 = vpack.c.bf16 %v2908, %v2907
        %v2994 = vpack.c.bf16 %v2910, %v2909
        %v2995 = vpack.c.bf16 %v2912, %v2911
        %v2996 = vpack.c.bf16 %v2914, %v2913
        %v2997 = vpack.c.bf16 %v2916, %v2915
        %v2998 = vpack.c.bf16 %v2918, %v2917
        %s2999 = scalar_lea.vmem [#allocation10], 32
        %v3000 = vld [vmem:[%s2999] sm:$0xf]
        %v3001 = vld [vmem:[%s2999 + $0x4] sm:$0xf]
        %v3002 = vld [vmem:[%s2999 + $0x8] sm:$0xf]
        %v3003 = vld [vmem:[%s2999 + $0xc] sm:$0xf]
        %v3004 = vld [vmem:[%s2999 + $0x10] sm:$0xf]
        %v3005 = vld [vmem:[%s2999 + $0x14] sm:$0xf]
        %v3006 = vld [vmem:[%s2999 + $0x18] sm:$0xf]
        %v3007 = vld [vmem:[%s2999 + $0x1c] sm:$0xf]
        %v3016 = vunpack.c.l.b16 %v3000
        %v3017 = vunpack.c.l.b16 %v3001
        %v3018 = vunpack.c.l.b16 %v3002
        %v3019 = vunpack.c.l.b16 %v3003
        %v3020 = vunpack.c.l.b16 %v3004
        %v3021 = vunpack.c.l.b16 %v3005
        %v3022 = vunpack.c.l.b16 %v3006
        %v3023 = vunpack.c.l.b16 %v3007
        %v3024 = vpack.c.b16 %v3017, %v3016
        %v3025 = vpack.c.b16 %v3019, %v3018
        %v3026 = vpack.c.b16 %v3021, %v3020
        %v3027 = vpack.c.b16 %v3023, %v3022
        %v3033 = vsel %vm1685, %v2987, 0
        %v3036 = vsel %vm1685, %v2988, 0
        %v3039 = vsel %vm1685, %v2989, 0
        %v3042 = vsel %vm1685, %v2990, 0
        %v3045 = vsel %vm1685, %v2991, 0
        %v3048 = vsel %vm1685, %v2992, 0
        %v3051 = vsel %vm1685, %v2993, 0
        %v3054 = vsel %vm1685, %v2994, 0
        %v3057 = vsel %vm1685, %v2995, 0
        %v3060 = vsel %vm1685, %v2996, 0
        %v3063 = vsel %vm1685, %v2997, 0
        %v3066 = vsel %vm1685, %v2998, 0
        %3068 = vmatprep.subr.bf16.mxu0 0
        %3069 = vmatpush1.bf16.msra.mxu0 0
        %3070 = vmatprep.subr.bf16.mxu0 0
        %3071 = vmatpush1.bf16.msra.mxu0 0
        %3072 = vmatprep.subr.bf16.mxu0 0
        %3073 = vmatpush1.bf16.msra.mxu0 0
        %3074 = vmatprep.subr.bf16.mxu0 0
        %3075 = vmatpush1.bf16.msra.mxu0 0
        %3076 = vmatprep.subr.bf16.mxu0 0
        %3077 = vmatpush1.bf16.msra.mxu0 %v3027
        %3078 = vmatprep.subr.bf16.mxu0 0
        %3079 = vmatpush1.bf16.msra.mxu0 %v3026
        %3080 = vmatprep.subr.bf16.mxu0 0
        %3081 = vmatpush1.bf16.msra.mxu0 %v3025
        %3082 = vmatprep.subr.bf16.mxu0 0
        %3083 = vmatpush1.bf16.msra.mxu0 %v3024
        %3084 = vmatprep.subr.bf16.mxu0 0
        %3085 = vmatpush2.bf16.msra.mxu0 0
        %3086 = vmatprep.subr.bf16.mxu0 0
        %3087 = vmatpush2.bf16.msra.mxu0 0
        %3088 = vmatprep.subr.bf16.mxu0 0
        %3089 = vmatpush2.bf16.msra.mxu0 0
        %3090 = vmatprep.subr.bf16.mxu0 0
        %3091 = vmatpush2.bf16.msra.mxu0 0
        %3092 = vmatprep.subr.bf16.mxu0 0
        %3093 = vmatpush2.bf16.msra.mxu0 0
        %3094 = vmatprep.subr.bf16.mxu0 0
        %3095 = vmatpush2.bf16.msra.mxu0 0
        %3096 = vmatprep.subr.bf16.mxu0 0
        %3097 = vmatpush2.bf16.msra.mxu0 0
        %3098 = vmatprep.subr.bf16.mxu0 0
        %3099 = vmatpush2.bf16.msra.mxu0 0
        %3100 = vmatprep.mubr.bf16.mxu0 0
        %3101 = vmatmul.mubr.bf16.gmra.mxu0 %v3033
        %v3102 = vpop.f32.mrf.mxu0
        %v3103 = vadd.f32 0.0, %v3102
        %v3104 = vpop.f32.mrf.mxu0
        %v3105 = vpop.f32.mrf.mxu0
        %v3106 = vadd.f32 0.0, %v3105
        %v3107 = vpop.f32.mrf.mxu0
        %3108 = vmatprep.mubr.bf16.mxu0 0
        %3109 = vmatmul.mubr.bf16.gmra.mxu0 %v3036
        %v3110 = vpop.f32.mrf.mxu0
        %v3111 = vadd.f32 0.0, %v3110
        %v3112 = vpop.f32.mrf.mxu0
        %v3113 = vpop.f32.mrf.mxu0
        %v3114 = vadd.f32 0.0, %v3113
        %v3115 = vpop.f32.mrf.mxu0
        %3116 = vmatprep.mubr.bf16.mxu0 0
        %3117 = vmatmul.mubr.bf16.gmra.mxu0 %v3039
        %v3118 = vpop.f32.mrf.mxu0
        %v3119 = vadd.f32 0.0, %v3118
        %v3120 = vpop.f32.mrf.mxu0
        %v3121 = vpop.f32.mrf.mxu0
        %v3122 = vadd.f32 0.0, %v3121
        %v3123 = vpop.f32.mrf.mxu0
        %3124 = vmatprep.mubr.bf16.mxu0 0
        %3125 = vmatmul.mubr.bf16.gmra.mxu0 %v3042
        %v3126 = vpop.f32.mrf.mxu0
        %v3127 = vadd.f32 0.0, %v3126
        %v3128 = vpop.f32.mrf.mxu0
        %v3129 = vpop.f32.mrf.mxu0
        %v3130 = vadd.f32 0.0, %v3129
        %v3131 = vpop.f32.mrf.mxu0
        %3132 = vmatprep.mubr.bf16.mxu0 0
        %3133 = vmatmul.mubr.bf16.gmra.mxu0 %v3045
        %v3134 = vpop.f32.mrf.mxu0
        %v3135 = vadd.f32 0.0, %v3134
        %v3136 = vpop.f32.mrf.mxu0
        %v3137 = vpop.f32.mrf.mxu0
        %v3138 = vadd.f32 0.0, %v3137
        %v3139 = vpop.f32.mrf.mxu0
        %3140 = vmatprep.mubr.bf16.mxu0 0
        %3141 = vmatmul.mubr.bf16.gmra.mxu0 %v3048
        %v3142 = vpop.f32.mrf.mxu0
        %v3143 = vadd.f32 0.0, %v3142
        %v3144 = vpop.f32.mrf.mxu0
        %v3145 = vpop.f32.mrf.mxu0
        %v3146 = vadd.f32 0.0, %v3145
        %v3147 = vpop.f32.mrf.mxu0
        %3148 = vmatprep.mubr.bf16.mxu0 0
        %3149 = vmatmul.mubr.bf16.gmra.mxu0 %v3051
        %v3150 = vpop.f32.mrf.mxu0
        %v3151 = vadd.f32 0.0, %v3150
        %v3152 = vpop.f32.mrf.mxu0
        %v3153 = vpop.f32.mrf.mxu0
        %v3154 = vadd.f32 0.0, %v3153
        %v3155 = vpop.f32.mrf.mxu0
        %3156 = vmatprep.mubr.bf16.mxu0 0
        %3157 = vmatmul.mubr.bf16.gmra.mxu0 %v3054
        %v3158 = vpop.f32.mrf.mxu0
        %v3159 = vadd.f32 0.0, %v3158
        %v3160 = vpop.f32.mrf.mxu0
        %v3161 = vpop.f32.mrf.mxu0
        %v3162 = vadd.f32 0.0, %v3161
        %v3163 = vpop.f32.mrf.mxu0
        %3164 = vmatprep.mubr.bf16.mxu0 0
        %3165 = vmatmul.mubr.bf16.gmra.mxu0 %v3057
        %v3166 = vpop.f32.mrf.mxu0
        %v3167 = vadd.f32 0.0, %v3166
        %v3168 = vpop.f32.mrf.mxu0
        %v3169 = vpop.f32.mrf.mxu0
        %v3170 = vadd.f32 0.0, %v3169
        %v3171 = vpop.f32.mrf.mxu0
        %3172 = vmatprep.mubr.bf16.mxu0 0
        %3173 = vmatmul.mubr.bf16.gmra.mxu0 %v3060
        %v3174 = vpop.f32.mrf.mxu0
        %v3175 = vadd.f32 0.0, %v3174
        %v3176 = vpop.f32.mrf.mxu0
        %v3177 = vpop.f32.mrf.mxu0
        %v3178 = vadd.f32 0.0, %v3177
        %v3179 = vpop.f32.mrf.mxu0
        %3180 = vmatprep.mubr.bf16.mxu0 0
        %3181 = vmatmul.mubr.bf16.gmra.mxu0 %v3063
        %v3182 = vpop.f32.mrf.mxu0
        %v3183 = vadd.f32 0.0, %v3182
        %v3184 = vpop.f32.mrf.mxu0
        %v3185 = vpop.f32.mrf.mxu0
        %v3186 = vadd.f32 0.0, %v3185
        %v3187 = vpop.f32.mrf.mxu0
        %3188 = vmatprep.mubr.bf16.mxu0 0
        %3189 = vmatmul.mubr.bf16.gmra.mxu0 %v3066
        %v3190 = vpop.f32.mrf.mxu0
        %v3191 = vadd.f32 0.0, %v3190
        %v3192 = vpop.f32.mrf.mxu0
        %v3193 = vpop.f32.mrf.mxu0
        %v3194 = vadd.f32 0.0, %v3193
        %v3195 = vpop.f32.mrf.mxu0
        %3196 = vdwg.mxu0
        %v3205 = vunpack.c.l.b16 %v2979
        %v3206 = vunpack.c.l.b16 %v2980
        %v3207 = vunpack.c.l.b16 %v2981
        %v3208 = vunpack.c.l.b16 %v2982
        %v3209 = vunpack.c.l.b16 %v2983
        %v3210 = vunpack.c.l.b16 %v2984
        %v3211 = vunpack.c.l.b16 %v2985
        %v3212 = vunpack.c.l.b16 %v2986
        %v3213 = vpack.c.b16 %v3206, %v3205
        %v3214 = vpack.c.b16 %v3208, %v3207
        %v3215 = vpack.c.b16 %v3210, %v3209
        %v3216 = vpack.c.b16 %v3212, %v3211
        %v3222 = vsel %vm1685, %v2967, 0
        %v3225 = vsel %vm1685, %v2968, 0
        %v3228 = vsel %vm1685, %v2969, 0
        %v3231 = vsel %vm1685, %v2970, 0
        %v3234 = vsel %vm1685, %v2971, 0
        %v3237 = vsel %vm1685, %v2972, 0
        %v3240 = vsel %vm1685, %v2973, 0
        %v3243 = vsel %vm1685, %v2974, 0
        %v3246 = vsel %vm1685, %v2975, 0
        %v3249 = vsel %vm1685, %v2976, 0
        %v3252 = vsel %vm1685, %v2977, 0
        %v3255 = vsel %vm1685, %v2978, 0
        %3257 = vmatprep.subr.bf16.mxu0 0
        %3258 = vmatpush1.bf16.msra.mxu0 0
        %3259 = vmatprep.subr.bf16.mxu0 0
        %3260 = vmatpush1.bf16.msra.mxu0 0
        %3261 = vmatprep.subr.bf16.mxu0 0
        %3262 = vmatpush1.bf16.msra.mxu0 0
        %3263 = vmatprep.subr.bf16.mxu0 0
        %3264 = vmatpush1.bf16.msra.mxu0 0
        %3265 = vmatprep.subr.bf16.mxu0 0
        %3266 = vmatpush1.bf16.msra.mxu0 %v3216
        %3267 = vmatprep.subr.bf16.mxu0 0
        %3268 = vmatpush1.bf16.msra.mxu0 %v3215
        %3269 = vmatprep.subr.bf16.mxu0 0
        %3270 = vmatpush1.bf16.msra.mxu0 %v3214
        %3271 = vmatprep.subr.bf16.mxu0 0
        %3272 = vmatpush1.bf16.msra.mxu0 %v3213
        %3273 = vmatprep.subr.bf16.mxu0 0
        %3274 = vmatpush2.bf16.msra.mxu0 0
        %3275 = vmatprep.subr.bf16.mxu0 0
        %3276 = vmatpush2.bf16.msra.mxu0 0
        %3277 = vmatprep.subr.bf16.mxu0 0
        %3278 = vmatpush2.bf16.msra.mxu0 0
        %3279 = vmatprep.subr.bf16.mxu0 0
        %3280 = vmatpush2.bf16.msra.mxu0 0
        %3281 = vmatprep.subr.bf16.mxu0 0
        %3282 = vmatpush2.bf16.msra.mxu0 0
        %3283 = vmatprep.subr.bf16.mxu0 0
        %3284 = vmatpush2.bf16.msra.mxu0 0
        %3285 = vmatprep.subr.bf16.mxu0 0
        %3286 = vmatpush2.bf16.msra.mxu0 0
        %3287 = vmatprep.subr.bf16.mxu0 0
        %3288 = vmatpush2.bf16.msra.mxu0 0
        %3289 = vmatprep.mubr.bf16.mxu0 0
        %3290 = vmatmul.mubr.bf16.gmra.mxu0 %v3222
        %v3291 = vpop.f32.mrf.mxu0
        %v3292 = vadd.f32 %v3103, %v3291
        %v3293 = vpop.f32.mrf.mxu0
        %v3294 = vpop.f32.mrf.mxu0
        %v3295 = vadd.f32 %v3106, %v3294
        %v3296 = vpop.f32.mrf.mxu0
        %3297 = vmatprep.mubr.bf16.mxu0 0
        %3298 = vmatmul.mubr.bf16.gmra.mxu0 %v3225
        %v3299 = vpop.f32.mrf.mxu0
        %v3300 = vadd.f32 %v3111, %v3299
        %v3301 = vpop.f32.mrf.mxu0
        %v3302 = vpop.f32.mrf.mxu0
        %v3303 = vadd.f32 %v3114, %v3302
        %v3304 = vpop.f32.mrf.mxu0
        %3305 = vmatprep.mubr.bf16.mxu0 0
        %3306 = vmatmul.mubr.bf16.gmra.mxu0 %v3228
        %v3307 = vpop.f32.mrf.mxu0
        %v3308 = vadd.f32 %v3119, %v3307
        %v3309 = vpop.f32.mrf.mxu0
        %v3310 = vpop.f32.mrf.mxu0
        %v3311 = vadd.f32 %v3122, %v3310
        %v3312 = vpop.f32.mrf.mxu0
        %3313 = vmatprep.mubr.bf16.mxu0 0
        %3314 = vmatmul.mubr.bf16.gmra.mxu0 %v3231
        %v3315 = vpop.f32.mrf.mxu0
        %v3316 = vadd.f32 %v3127, %v3315
        %v3317 = vpop.f32.mrf.mxu0
        %v3318 = vpop.f32.mrf.mxu0
        %v3319 = vadd.f32 %v3130, %v3318
        %v3320 = vpop.f32.mrf.mxu0
        %3321 = vmatprep.mubr.bf16.mxu0 0
        %3322 = vmatmul.mubr.bf16.gmra.mxu0 %v3234
        %v3323 = vpop.f32.mrf.mxu0
        %v3324 = vadd.f32 %v3135, %v3323
        %v3325 = vpop.f32.mrf.mxu0
        %v3326 = vpop.f32.mrf.mxu0
        %v3327 = vadd.f32 %v3138, %v3326
        %v3328 = vpop.f32.mrf.mxu0
        %3329 = vmatprep.mubr.bf16.mxu0 0
        %3330 = vmatmul.mubr.bf16.gmra.mxu0 %v3237
        %v3331 = vpop.f32.mrf.mxu0
        %v3332 = vadd.f32 %v3143, %v3331
        %v3333 = vpop.f32.mrf.mxu0
        %v3334 = vpop.f32.mrf.mxu0
        %v3335 = vadd.f32 %v3146, %v3334
        %v3336 = vpop.f32.mrf.mxu0
        %3337 = vmatprep.mubr.bf16.mxu0 0
        %3338 = vmatmul.mubr.bf16.gmra.mxu0 %v3240
        %v3339 = vpop.f32.mrf.mxu0
        %v3340 = vadd.f32 %v3151, %v3339
        %v3341 = vpop.f32.mrf.mxu0
        %v3342 = vpop.f32.mrf.mxu0
        %v3343 = vadd.f32 %v3154, %v3342
        %v3344 = vpop.f32.mrf.mxu0
        %3345 = vmatprep.mubr.bf16.mxu0 0
        %3346 = vmatmul.mubr.bf16.gmra.mxu0 %v3243
        %v3347 = vpop.f32.mrf.mxu0
        %v3348 = vadd.f32 %v3159, %v3347
        %v3349 = vpop.f32.mrf.mxu0
        %v3350 = vpop.f32.mrf.mxu0
        %v3351 = vadd.f32 %v3162, %v3350
        %v3352 = vpop.f32.mrf.mxu0
        %3353 = vmatprep.mubr.bf16.mxu0 0
        %3354 = vmatmul.mubr.bf16.gmra.mxu0 %v3246
        %v3355 = vpop.f32.mrf.mxu0
        %v3356 = vadd.f32 %v3167, %v3355
        %v3357 = vpop.f32.mrf.mxu0
        %v3358 = vpop.f32.mrf.mxu0
        %v3359 = vadd.f32 %v3170, %v3358
        %v3360 = vpop.f32.mrf.mxu0
        %3361 = vmatprep.mubr.bf16.mxu0 0
        %3362 = vmatmul.mubr.bf16.gmra.mxu0 %v3249
        %v3363 = vpop.f32.mrf.mxu0
        %v3364 = vadd.f32 %v3175, %v3363
        %v3365 = vpop.f32.mrf.mxu0
        %v3366 = vpop.f32.mrf.mxu0
        %v3367 = vadd.f32 %v3178, %v3366
        %v3368 = vpop.f32.mrf.mxu0
        %3369 = vmatprep.mubr.bf16.mxu0 0
        %3370 = vmatmul.mubr.bf16.gmra.mxu0 %v3252
        %v3371 = vpop.f32.mrf.mxu0
        %v3372 = vadd.f32 %v3183, %v3371
        %v3373 = vpop.f32.mrf.mxu0
        %v3374 = vpop.f32.mrf.mxu0
        %v3375 = vadd.f32 %v3186, %v3374
        %v3376 = vpop.f32.mrf.mxu0
        %3377 = vmatprep.mubr.bf16.mxu0 0
        %3378 = vmatmul.mubr.bf16.gmra.mxu0 %v3255
        %v3379 = vpop.f32.mrf.mxu0
        %v3380 = vadd.f32 %v3191, %v3379
        %v3381 = vpop.f32.mrf.mxu0
        %v3382 = vpop.f32.mrf.mxu0
        %v3383 = vadd.f32 %v3194, %v3382
        %v3384 = vpop.f32.mrf.mxu0
        %3385 = vdwg.mxu0
        %v3386 = vrot.slane %v2895, 1
        %v3387 = vrot.slane %v2896, 1
        %v3388 = vrot.slane %v2897, 1
        %v3389 = vrot.slane %v2898, 1
        %v3390 = vrot.slane %v2899, 1
        %v3391 = vrot.slane %v2900, 1
        %v3392 = vrot.slane %v2901, 1
        %v3393 = vrot.slane %v2902, 1
        %v3394 = vrot.slane %v2903, 1
        %v3395 = vrot.slane %v2904, 1
        %v3396 = vrot.slane %v2905, 1
        %v3397 = vrot.slane %v2906, 1
        %v3398 = vrot.slane %v2907, 1
        %v3399 = vrot.slane %v2908, 1
        %v3400 = vrot.slane %v2909, 1
        %v3401 = vrot.slane %v2910, 1
        %v3402 = vrot.slane %v2911, 1
        %v3403 = vrot.slane %v2912, 1
        %v3404 = vrot.slane %v2913, 1
        %v3405 = vrot.slane %v2914, 1
        %v3406 = vrot.slane %v2915, 1
        %v3407 = vrot.slane %v2916, 1
        %v3408 = vrot.slane %v2917, 1
        %v3409 = vrot.slane %v2918, 1
        %v3410 = vsel %vm2298, %v3408, %v3409
        %v3411 = vsel %vm2298, %v3407, %v3408
        %v3412 = vsel %vm2298, %v3406, %v3407
        %v3413 = vsel %vm2298, %v3405, %v3406
        %v3414 = vsel %vm2298, %v3404, %v3405
        %v3415 = vsel %vm2298, %v3403, %v3404
        %v3416 = vsel %vm2298, %v3402, %v3403
        %v3417 = vsel %vm2298, %v3401, %v3402
        %v3418 = vsel %vm2298, %v3400, %v3401
        %v3419 = vsel %vm2298, %v3399, %v3400
        %v3420 = vsel %vm2298, %v3398, %v3399
        %v3421 = vsel %vm2298, %v3397, %v3398
        %v3422 = vsel %vm2298, %v3396, %v3397
        %v3423 = vsel %vm2298, %v3395, %v3396
        %v3424 = vsel %vm2298, %v3394, %v3395
        %v3425 = vsel %vm2298, %v3393, %v3394
        %v3426 = vsel %vm2298, %v3392, %v3393
        %v3427 = vsel %vm2298, %v3391, %v3392
        %v3428 = vsel %vm2298, %v3390, %v3391
        %v3429 = vsel %vm2298, %v3389, %v3390
        %v3430 = vsel %vm2298, %v3388, %v3389
        %v3431 = vsel %vm2298, %v3387, %v3388
        %v3432 = vsel %vm2298, %v3386, %v3387
        %v3433 = vsel %vm2298, %v3409, %v3386
        %v3434 = vpack.c.bf16 %v3431, %v3432
        %v3435 = vpack.c.bf16 %v3429, %v3430
        %v3436 = vpack.c.bf16 %v3427, %v3428
        %v3437 = vpack.c.bf16 %v3425, %v3426
        %v3438 = vpack.c.bf16 %v3423, %v3424
        %v3439 = vpack.c.bf16 %v3421, %v3422
        %v3440 = vpack.c.bf16 %v3419, %v3420
        %v3441 = vpack.c.bf16 %v3417, %v3418
        %v3442 = vpack.c.bf16 %v3415, %v3416
        %v3443 = vpack.c.bf16 %v3413, %v3414
        %v3444 = vpack.c.bf16 %v3411, %v3412
        %v3445 = vpack.c.bf16 %v3433, %v3410
        %s3446 = scalar_lea.vmem [#allocation10], 64
        %v3447 = vld [vmem:[%s3446] sm:$0xf]
        %v3448 = vld [vmem:[%s3446 + $0x4] sm:$0xf]
        %v3449 = vld [vmem:[%s3446 + $0x8] sm:$0xf]
        %v3450 = vld [vmem:[%s3446 + $0xc] sm:$0xf]
        %v3451 = vld [vmem:[%s3446 + $0x10] sm:$0xf]
        %v3452 = vld [vmem:[%s3446 + $0x14] sm:$0xf]
        %v3453 = vld [vmem:[%s3446 + $0x18] sm:$0xf]
        %v3454 = vld [vmem:[%s3446 + $0x1c] sm:$0xf]
        %v3463 = vunpack.c.l.b16 %v3447
        %v3464 = vunpack.c.l.b16 %v3448
        %v3465 = vunpack.c.l.b16 %v3449
        %v3466 = vunpack.c.l.b16 %v3450
        %v3467 = vunpack.c.l.b16 %v3451
        %v3468 = vunpack.c.l.b16 %v3452
        %v3469 = vunpack.c.l.b16 %v3453
        %v3470 = vunpack.c.l.b16 %v3454
        %v3471 = vpack.c.b16 %v3464, %v3463
        %v3472 = vpack.c.b16 %v3466, %v3465
        %v3473 = vpack.c.b16 %v3468, %v3467
        %v3474 = vpack.c.b16 %v3470, %v3469
        %v3480 = vsel %vm1685, %v3434, 0
        %v3483 = vsel %vm1685, %v3435, 0
        %v3486 = vsel %vm1685, %v3436, 0
        %v3489 = vsel %vm1685, %v3437, 0
        %v3492 = vsel %vm1685, %v3438, 0
        %v3495 = vsel %vm1685, %v3439, 0
        %v3498 = vsel %vm1685, %v3440, 0
        %v3501 = vsel %vm1685, %v3441, 0
        %v3504 = vsel %vm1685, %v3442, 0
        %v3507 = vsel %vm1685, %v3443, 0
        %v3510 = vsel %vm1685, %v3444, 0
        %v3513 = vsel %vm1685, %v3445, 0
        %3515 = vmatprep.subr.bf16.mxu0 0
        %3516 = vmatpush1.bf16.msra.mxu0 0
        %3517 = vmatprep.subr.bf16.mxu0 0
        %3518 = vmatpush1.bf16.msra.mxu0 0
        %3519 = vmatprep.subr.bf16.mxu0 0
        %3520 = vmatpush1.bf16.msra.mxu0 0
        %3521 = vmatprep.subr.bf16.mxu0 0
        %3522 = vmatpush1.bf16.msra.mxu0 0
        %3523 = vmatprep.subr.bf16.mxu0 0
        %3524 = vmatpush1.bf16.msra.mxu0 %v3474
        %3525 = vmatprep.subr.bf16.mxu0 0
        %3526 = vmatpush1.bf16.msra.mxu0 %v3473
        %3527 = vmatprep.subr.bf16.mxu0 0
        %3528 = vmatpush1.bf16.msra.mxu0 %v3472
        %3529 = vmatprep.subr.bf16.mxu0 0
        %3530 = vmatpush1.bf16.msra.mxu0 %v3471
        %3531 = vmatprep.subr.bf16.mxu0 0
        %3532 = vmatpush2.bf16.msra.mxu0 0
        %3533 = vmatprep.subr.bf16.mxu0 0
        %3534 = vmatpush2.bf16.msra.mxu0 0
        %3535 = vmatprep.subr.bf16.mxu0 0
        %3536 = vmatpush2.bf16.msra.mxu0 0
        %3537 = vmatprep.subr.bf16.mxu0 0
        %3538 = vmatpush2.bf16.msra.mxu0 0
        %3539 = vmatprep.subr.bf16.mxu0 0
        %3540 = vmatpush2.bf16.msra.mxu0 0
        %3541 = vmatprep.subr.bf16.mxu0 0
        %3542 = vmatpush2.bf16.msra.mxu0 0
        %3543 = vmatprep.subr.bf16.mxu0 0
        %3544 = vmatpush2.bf16.msra.mxu0 0
        %3545 = vmatprep.subr.bf16.mxu0 0
        %3546 = vmatpush2.bf16.msra.mxu0 0
        %3547 = vmatprep.mubr.bf16.mxu0 0
        %3548 = vmatmul.mubr.bf16.gmra.mxu0 %v3480
        %v3549 = vpop.f32.mrf.mxu0
        %v3550 = vadd.f32 0.0, %v3549
        %v3551 = vpop.f32.mrf.mxu0
        %v3552 = vpop.f32.mrf.mxu0
        %v3553 = vadd.f32 0.0, %v3552
        %v3554 = vpop.f32.mrf.mxu0
        %3555 = vmatprep.mubr.bf16.mxu0 0
        %3556 = vmatmul.mubr.bf16.gmra.mxu0 %v3483
        %v3557 = vpop.f32.mrf.mxu0
        %v3558 = vadd.f32 0.0, %v3557
        %v3559 = vpop.f32.mrf.mxu0
        %v3560 = vpop.f32.mrf.mxu0
        %v3561 = vadd.f32 0.0, %v3560
        %v3562 = vpop.f32.mrf.mxu0
        %3563 = vmatprep.mubr.bf16.mxu0 0
        %3564 = vmatmul.mubr.bf16.gmra.mxu0 %v3486
        %v3565 = vpop.f32.mrf.mxu0
        %v3566 = vadd.f32 0.0, %v3565
        %v3567 = vpop.f32.mrf.mxu0
        %v3568 = vpop.f32.mrf.mxu0
        %v3569 = vadd.f32 0.0, %v3568
        %v3570 = vpop.f32.mrf.mxu0
        %3571 = vmatprep.mubr.bf16.mxu0 0
        %3572 = vmatmul.mubr.bf16.gmra.mxu0 %v3489
        %v3573 = vpop.f32.mrf.mxu0
        %v3574 = vadd.f32 0.0, %v3573
        %v3575 = vpop.f32.mrf.mxu0
        %v3576 = vpop.f32.mrf.mxu0
        %v3577 = vadd.f32 0.0, %v3576
        %v3578 = vpop.f32.mrf.mxu0
        %3579 = vmatprep.mubr.bf16.mxu0 0
        %3580 = vmatmul.mubr.bf16.gmra.mxu0 %v3492
        %v3581 = vpop.f32.mrf.mxu0
        %v3582 = vadd.f32 0.0, %v3581
        %v3583 = vpop.f32.mrf.mxu0
        %v3584 = vpop.f32.mrf.mxu0
        %v3585 = vadd.f32 0.0, %v3584
        %v3586 = vpop.f32.mrf.mxu0
        %3587 = vmatprep.mubr.bf16.mxu0 0
        %3588 = vmatmul.mubr.bf16.gmra.mxu0 %v3495
        %v3589 = vpop.f32.mrf.mxu0
        %v3590 = vadd.f32 0.0, %v3589
        %v3591 = vpop.f32.mrf.mxu0
        %v3592 = vpop.f32.mrf.mxu0
        %v3593 = vadd.f32 0.0, %v3592
        %v3594 = vpop.f32.mrf.mxu0
        %3595 = vmatprep.mubr.bf16.mxu0 0
        %3596 = vmatmul.mubr.bf16.gmra.mxu0 %v3498
        %v3597 = vpop.f32.mrf.mxu0
        %v3598 = vadd.f32 0.0, %v3597
        %v3599 = vpop.f32.mrf.mxu0
        %v3600 = vpop.f32.mrf.mxu0
        %v3601 = vadd.f32 0.0, %v3600
        %v3602 = vpop.f32.mrf.mxu0
        %3603 = vmatprep.mubr.bf16.mxu0 0
        %3604 = vmatmul.mubr.bf16.gmra.mxu0 %v3501
        %v3605 = vpop.f32.mrf.mxu0
        %v3606 = vadd.f32 0.0, %v3605
        %v3607 = vpop.f32.mrf.mxu0
        %v3608 = vpop.f32.mrf.mxu0
        %v3609 = vadd.f32 0.0, %v3608
        %v3610 = vpop.f32.mrf.mxu0
        %3611 = vmatprep.mubr.bf16.mxu0 0
        %3612 = vmatmul.mubr.bf16.gmra.mxu0 %v3504
        %v3613 = vpop.f32.mrf.mxu0
        %v3614 = vadd.f32 0.0, %v3613
        %v3615 = vpop.f32.mrf.mxu0
        %v3616 = vpop.f32.mrf.mxu0
        %v3617 = vadd.f32 0.0, %v3616
        %v3618 = vpop.f32.mrf.mxu0
        %3619 = vmatprep.mubr.bf16.mxu0 0
        %3620 = vmatmul.mubr.bf16.gmra.mxu0 %v3507
        %v3621 = vpop.f32.mrf.mxu0
        %v3622 = vadd.f32 0.0, %v3621
        %v3623 = vpop.f32.mrf.mxu0
        %v3624 = vpop.f32.mrf.mxu0
        %v3625 = vadd.f32 0.0, %v3624
        %v3626 = vpop.f32.mrf.mxu0
        %3627 = vmatprep.mubr.bf16.mxu0 0
        %3628 = vmatmul.mubr.bf16.gmra.mxu0 %v3510
        %v3629 = vpop.f32.mrf.mxu0
        %v3630 = vadd.f32 0.0, %v3629
        %v3631 = vpop.f32.mrf.mxu0
        %v3632 = vpop.f32.mrf.mxu0
        %v3633 = vadd.f32 0.0, %v3632
        %v3634 = vpop.f32.mrf.mxu0
        %3635 = vmatprep.mubr.bf16.mxu0 0
        %3636 = vmatmul.mubr.bf16.gmra.mxu0 %v3513
        %v3637 = vpop.f32.mrf.mxu0
        %v3638 = vadd.f32 0.0, %v3637
        %v3639 = vpop.f32.mrf.mxu0
        %v3640 = vpop.f32.mrf.mxu0
        %v3641 = vadd.f32 0.0, %v3640
        %v3642 = vpop.f32.mrf.mxu0
        %3643 = vdwg.mxu0
        %v3644 = vadd.f32 %v3292, %v3550
        %v3645 = vadd.f32 %v3295, %v3553
        %v3646 = vadd.f32 %v3300, %v3558
        %v3647 = vadd.f32 %v3303, %v3561
        %v3648 = vadd.f32 %v3308, %v3566
        %v3649 = vadd.f32 %v3311, %v3569
        %v3650 = vadd.f32 %v3316, %v3574
        %v3651 = vadd.f32 %v3319, %v3577
        %v3652 = vadd.f32 %v3324, %v3582
        %v3653 = vadd.f32 %v3327, %v3585
        %v3654 = vadd.f32 %v3332, %v3590
        %v3655 = vadd.f32 %v3335, %v3593
        %v3656 = vadd.f32 %v3340, %v3598
        %v3657 = vadd.f32 %v3343, %v3601
        %v3658 = vadd.f32 %v3348, %v3606
        %v3659 = vadd.f32 %v3351, %v3609
        %v3660 = vadd.f32 %v3356, %v3614
        %v3661 = vadd.f32 %v3359, %v3617
        %v3662 = vadd.f32 %v3364, %v3622
        %v3663 = vadd.f32 %v3367, %v3625
        %v3664 = vadd.f32 %v3372, %v3630
        %v3665 = vadd.f32 %v3375, %v3633
        %v3666 = vadd.f32 %v3380, %v3638
        %v3667 = vadd.f32 %v3383, %v3641
        %v3668 = vld [vmem:[#allocation11] sm:$0x1]
        %v3670 = vlaneseq
        %v3671 = vshrl.u32 %v3670, 7
        %v3672 = vsub.s32 0, %v3671
        %v3673 = vrot.slane %v3668, %v3672
        %v3675 = vadd.f32 %v3644, %v3673
        %v3676 = vadd.f32 %v3645, %v3673
        %v3677 = vadd.f32 %v3646, %v3673
        %v3678 = vadd.f32 %v3647, %v3673
        %v3679 = vadd.f32 %v3648, %v3673
        %v3680 = vadd.f32 %v3649, %v3673
        %v3681 = vadd.f32 %v3650, %v3673
        %v3682 = vadd.f32 %v3651, %v3673
        %v3683 = vadd.f32 %v3652, %v3673
        %v3684 = vadd.f32 %v3653, %v3673
        %v3685 = vadd.f32 %v3654, %v3673
        %v3686 = vadd.f32 %v3655, %v3673
        %v3687 = vadd.f32 %v3656, %v3673
        %v3688 = vadd.f32 %v3657, %v3673
        %v3689 = vadd.f32 %v3658, %v3673
        %v3690 = vadd.f32 %v3659, %v3673
        %v3691 = vadd.f32 %v3660, %v3673
        %v3692 = vadd.f32 %v3661, %v3673
        %v3693 = vadd.f32 %v3662, %v3673
        %v3694 = vadd.f32 %v3663, %v3673
        %v3695 = vadd.f32 %v3664, %v3673
        %v3696 = vadd.f32 %v3665, %v3673
        %v3697 = vadd.f32 %v3666, %v3673
        %v3698 = vadd.f32 %v3667, %v3673
        %v3699 = vmax.f32 %v3675, 0.0
        %v3700 = vmax.f32 %v3676, 0.0
        %v3701 = vmax.f32 %v3677, 0.0
        %v3702 = vmax.f32 %v3678, 0.0
        %v3703 = vmax.f32 %v3679, 0.0
        %v3704 = vmax.f32 %v3680, 0.0
        %v3705 = vmax.f32 %v3681, 0.0
        %v3706 = vmax.f32 %v3682, 0.0
        %v3707 = vmax.f32 %v3683, 0.0
        %v3708 = vmax.f32 %v3684, 0.0
        %v3709 = vmax.f32 %v3685, 0.0
        %v3710 = vmax.f32 %v3686, 0.0
        %v3711 = vmax.f32 %v3687, 0.0
        %v3712 = vmax.f32 %v3688, 0.0
        %v3713 = vmax.f32 %v3689, 0.0
        %v3714 = vmax.f32 %v3690, 0.0
        %v3715 = vmax.f32 %v3691, 0.0
        %v3716 = vmax.f32 %v3692, 0.0
        %v3717 = vmax.f32 %v3693, 0.0
        %v3718 = vmax.f32 %v3694, 0.0
        %v3719 = vmax.f32 %v3695, 0.0
        %v3720 = vmax.f32 %v3696, 0.0
        %v3721 = vmax.f32 %v3697, 0.0
        %v3722 = vmax.f32 %v3698, 0.0
        %v3723 = vmul.f32 %v3699, %v1107
        %v3724 = vmul.f32 %v3700, %v1108
        %v3725 = vmul.f32 %v3701, %v1109
        %v3726 = vmul.f32 %v3702, %v1110
        %v3727 = vmul.f32 %v3703, %v1111
        %v3728 = vmul.f32 %v3704, %v1112
        %v3729 = vmul.f32 %v3705, %v1113
        %v3730 = vmul.f32 %v3706, %v1114
        %v3731 = vmul.f32 %v3707, %v1115
        %v3732 = vmul.f32 %v3708, %v1116
        %v3733 = vmul.f32 %v3709, %v1117
        %v3734 = vmul.f32 %v3710, %v1118
        %v3735 = vmul.f32 %v3711, %v1119
        %v3736 = vmul.f32 %v3712, %v1120
        %v3737 = vmul.f32 %v3713, %v1121
        %v3738 = vmul.f32 %v3714, %v1122
        %v3739 = vmul.f32 %v3715, %v1123
        %v3740 = vmul.f32 %v3716, %v1124
        %v3741 = vmul.f32 %v3717, %v1125
        %v3742 = vmul.f32 %v3718, %v1126
        %v3743 = vmul.f32 %v3719, %v1127
        %v3744 = vmul.f32 %v3720, %v1128
        %v3745 = vmul.f32 %v3721, %v1129
        %v3746 = vmul.f32 %v3722, %v1130
        %3771 = vrot.lane.b32.xlu0 %v1498, 64
        %v3772 = vpop.permute.xlu0 %3771
        %3773 = vrot.lane.b32.xlu0 %v1499, 64
        %v3774 = vpop.permute.xlu0 %3773
        %3775 = vrot.lane.b32.xlu0 %v1500, 64
        %v3776 = vpop.permute.xlu0 %3775
        %3777 = vrot.lane.b32.xlu0 %v1501, 64
        %v3778 = vpop.permute.xlu0 %3777
        %3779 = vrot.lane.b32.xlu0 %v1502, 64
        %v3780 = vpop.permute.xlu0 %3779
        %3781 = vrot.lane.b32.xlu0 %v1503, 64
        %v3782 = vpop.permute.xlu0 %3781
        %3783 = vrot.lane.b32.xlu0 %v1504, 64
        %v3784 = vpop.permute.xlu0 %3783
        %3785 = vrot.lane.b32.xlu0 %v1505, 64
        %v3786 = vpop.permute.xlu0 %3785
        %3787 = vrot.lane.b32.xlu0 %v1506, 64
        %v3788 = vpop.permute.xlu0 %3787
        %3789 = vrot.lane.b32.xlu0 %v1507, 64
        %v3790 = vpop.permute.xlu0 %3789
        %3791 = vrot.lane.b32.xlu0 %v1508, 64
        %v3792 = vpop.permute.xlu0 %3791
        %3793 = vrot.lane.b32.xlu0 %v1509, 64
        %v3794 = vpop.permute.xlu0 %3793
        %3795 = vrot.lane.b32.xlu0 %v1510, 64
        %v3796 = vpop.permute.xlu0 %3795
        %3797 = vrot.lane.b32.xlu0 %v1511, 64
        %v3798 = vpop.permute.xlu0 %3797
        %3799 = vrot.lane.b32.xlu0 %v1512, 64
        %v3800 = vpop.permute.xlu0 %3799
        %3801 = vrot.lane.b32.xlu0 %v1513, 64
        %v3802 = vpop.permute.xlu0 %3801
        %3803 = vrot.lane.b32.xlu0 %v1514, 64
        %v3804 = vpop.permute.xlu0 %3803
        %3805 = vrot.lane.b32.xlu0 %v1515, 64
        %v3806 = vpop.permute.xlu0 %3805
        %3807 = vrot.lane.b32.xlu0 %v1516, 64
        %v3808 = vpop.permute.xlu0 %3807
        %3809 = vrot.lane.b32.xlu0 %v1517, 64
        %v3810 = vpop.permute.xlu0 %3809
        %3811 = vrot.lane.b32.xlu0 %v1518, 64
        %v3812 = vpop.permute.xlu0 %3811
        %3813 = vrot.lane.b32.xlu0 %v1519, 64
        %v3814 = vpop.permute.xlu0 %3813
        %3815 = vrot.lane.b32.xlu0 %v1520, 64
        %v3816 = vpop.permute.xlu0 %3815
        %3817 = vrot.lane.b32.xlu0 %v1521, 64
        %v3818 = vpop.permute.xlu0 %3817
        %v3843 = vadd.f32 %v3723, %v3772
        %v3844 = vadd.f32 %v3724, %v3774
        %v3845 = vadd.f32 %v3725, %v3776
        %v3846 = vadd.f32 %v3726, %v3778
        %v3847 = vadd.f32 %v3727, %v3780
        %v3848 = vadd.f32 %v3728, %v3782
        %v3849 = vadd.f32 %v3729, %v3784
        %v3850 = vadd.f32 %v3730, %v3786
        %v3851 = vadd.f32 %v3731, %v3788
        %v3852 = vadd.f32 %v3732, %v3790
        %v3853 = vadd.f32 %v3733, %v3792
        %v3854 = vadd.f32 %v3734, %v3794
        %v3855 = vadd.f32 %v3735, %v3796
        %v3856 = vadd.f32 %v3736, %v3798
        %v3857 = vadd.f32 %v3737, %v3800
        %v3858 = vadd.f32 %v3738, %v3802
        %v3859 = vadd.f32 %v3739, %v3804
        %v3860 = vadd.f32 %v3740, %v3806
        %v3861 = vadd.f32 %v3741, %v3808
        %v3862 = vadd.f32 %v3742, %v3810
        %v3863 = vadd.f32 %v3743, %v3812
        %v3864 = vadd.f32 %v3744, %v3814
        %v3865 = vadd.f32 %v3745, %v3816
        %v3866 = vadd.f32 %v3746, %v3818
        %v3867 = vmax.f32 %v3843, 0.0
        %v3868 = vmax.f32 %v3844, 0.0
        %v3869 = vmax.f32 %v3845, 0.0
        %v3870 = vmax.f32 %v3846, 0.0
        %v3871 = vmax.f32 %v3847, 0.0
        %v3872 = vmax.f32 %v3848, 0.0
        %v3873 = vmax.f32 %v3849, 0.0
        %v3874 = vmax.f32 %v3850, 0.0
        %v3875 = vmax.f32 %v3851, 0.0
        %v3876 = vmax.f32 %v3852, 0.0
        %v3877 = vmax.f32 %v3853, 0.0
        %v3878 = vmax.f32 %v3854, 0.0
        %v3879 = vmax.f32 %v3855, 0.0
        %v3880 = vmax.f32 %v3856, 0.0
        %v3881 = vmax.f32 %v3857, 0.0
        %v3882 = vmax.f32 %v3858, 0.0
        %v3883 = vmax.f32 %v3859, 0.0
        %v3884 = vmax.f32 %v3860, 0.0
        %v3885 = vmax.f32 %v3861, 0.0
        %v3886 = vmax.f32 %v3862, 0.0
        %v3887 = vmax.f32 %v3863, 0.0
        %v3888 = vmax.f32 %v3864, 0.0
        %v3889 = vmax.f32 %v3865, 0.0
        %v3890 = vmax.f32 %v3866, 0.0
        %v3891 = vpack.c.bf16 %v3868, %v3867
        %v3892 = vpack.c.bf16 %v3870, %v3869
        %v3893 = vpack.c.bf16 %v3872, %v3871
        %v3894 = vpack.c.bf16 %v3874, %v3873
        %v3895 = vpack.c.bf16 %v3876, %v3875
        %v3896 = vpack.c.bf16 %v3878, %v3877
        %v3897 = vpack.c.bf16 %v3880, %v3879
        %v3898 = vpack.c.bf16 %v3882, %v3881
        %v3899 = vpack.c.bf16 %v3884, %v3883
        %v3900 = vpack.c.bf16 %v3886, %v3885
        %v3901 = vpack.c.bf16 %v3888, %v3887
        %v3902 = vpack.c.bf16 %v3890, %v3889
        %v3903 = vld [vmem:[%s8] sm:$0xff]
        %v3904 = vld [vmem:[%s8 + $0x8] sm:$0xff]
        %v3905 = vld [vmem:[%s8 + $0x10] sm:$0xff]
        %v3906 = vld [vmem:[%s8 + $0x18] sm:$0xff]
        %v3907 = vld [vmem:[%s8 + $0x20] sm:$0xff]
        %v3908 = vld [vmem:[%s8 + $0x28] sm:$0xff]
        %v3909 = vld [vmem:[%s8 + $0x30] sm:$0xff]
        %v3910 = vld [vmem:[%s8 + $0x38] sm:$0xff]
        %v3919 = vunpack.c.l.b16 %v3903
        %v3920 = vunpack.c.h.b16 %v3903
        %v3921 = vunpack.c.l.b16 %v3904
        %v3922 = vunpack.c.h.b16 %v3904
        %v3923 = vunpack.c.l.b16 %v3905
        %v3924 = vunpack.c.h.b16 %v3905
        %v3925 = vunpack.c.l.b16 %v3906
        %v3926 = vunpack.c.h.b16 %v3906
        %v3927 = vunpack.c.l.b16 %v3907
        %v3928 = vunpack.c.h.b16 %v3907
        %v3929 = vunpack.c.l.b16 %v3908
        %v3930 = vunpack.c.h.b16 %v3908
        %v3931 = vunpack.c.l.b16 %v3909
        %v3932 = vunpack.c.h.b16 %v3909
        %v3933 = vunpack.c.l.b16 %v3910
        %v3934 = vunpack.c.h.b16 %v3910
        %v3935 = vpack.c.b16 %v3921, %v3919
        %v3936 = vpack.c.b16 %v3922, %v3920
        %v3937 = vpack.c.b16 %v3925, %v3923
        %v3938 = vpack.c.b16 %v3926, %v3924
        %v3939 = vpack.c.b16 %v3929, %v3927
        %v3940 = vpack.c.b16 %v3930, %v3928
        %v3941 = vpack.c.b16 %v3933, %v3931
        %v3942 = vpack.c.b16 %v3934, %v3932
        %v3952 = vsel %vm1685, %v3891, 0
        %v3955 = vsel %vm1685, %v3892, 0
        %v3958 = vsel %vm1685, %v3893, 0
        %v3961 = vsel %vm1685, %v3894, 0
        %v3964 = vsel %vm1685, %v3895, 0
        %v3967 = vsel %vm1685, %v3896, 0
        %v3970 = vsel %vm1685, %v3897, 0
        %v3973 = vsel %vm1685, %v3898, 0
        %v3976 = vsel %vm1685, %v3899, 0
        %v3979 = vsel %vm1685, %v3900, 0
        %v3982 = vsel %vm1685, %v3901, 0
        %v3985 = vsel %vm1685, %v3902, 0
        %3987 = vmatprep.subr.bf16.mxu0 0
        %3988 = vmatpush1.bf16.msra.mxu0 0
        %3989 = vmatprep.subr.bf16.mxu0 0
        %3990 = vmatpush1.bf16.msra.mxu0 0
        %3991 = vmatprep.subr.bf16.mxu0 0
        %3992 = vmatpush1.bf16.msra.mxu0 0
        %3993 = vmatprep.subr.bf16.mxu0 0
        %3994 = vmatpush1.bf16.msra.mxu0 0
        %3995 = vmatprep.subr.bf16.mxu0 %v3942
        %3996 = vmatpush1.bf16.msra.mxu0 %v3941
        %3997 = vmatprep.subr.bf16.mxu0 %v3940
        %3998 = vmatpush1.bf16.msra.mxu0 %v3939
        %3999 = vmatprep.subr.bf16.mxu0 %v3938
        %4000 = vmatpush1.bf16.msra.mxu0 %v3937
        %4001 = vmatprep.subr.bf16.mxu0 %v3936
        %4002 = vmatpush1.bf16.msra.mxu0 %v3935
        %4003 = vmatprep.subr.bf16.mxu0 0
        %4004 = vmatpush2.bf16.msra.mxu0 0
        %4005 = vmatprep.subr.bf16.mxu0 0
        %4006 = vmatpush2.bf16.msra.mxu0 0
        %4007 = vmatprep.subr.bf16.mxu0 0
        %4008 = vmatpush2.bf16.msra.mxu0 0
        %4009 = vmatprep.subr.bf16.mxu0 0
        %4010 = vmatpush2.bf16.msra.mxu0 0
        %4011 = vmatprep.subr.bf16.mxu0 0
        %4012 = vmatpush2.bf16.msra.mxu0 0
        %4013 = vmatprep.subr.bf16.mxu0 0
        %4014 = vmatpush2.bf16.msra.mxu0 0
        %4015 = vmatprep.subr.bf16.mxu0 0
        %4016 = vmatpush2.bf16.msra.mxu0 0
        %4017 = vmatprep.subr.bf16.mxu0 0
        %4018 = vmatpush2.bf16.msra.mxu0 0
        %4019 = vmatprep.mubr.bf16.mxu0 0
        %4020 = vmatmul.mubr.bf16.gmra.mxu0 %v3952
        %v4021 = vpop.f32.mrf.mxu0
        %v4022 = vadd.f32 0.0, %v4021
        %v4023 = vpop.f32.mrf.mxu0
        %v4024 = vadd.f32 0.0, %v4023
        %v4025 = vpop.f32.mrf.mxu0
        %v4026 = vadd.f32 0.0, %v4025
        %v4027 = vpop.f32.mrf.mxu0
        %v4028 = vadd.f32 0.0, %v4027
        %4029 = vmatprep.mubr.bf16.mxu0 0
        %4030 = vmatmul.mubr.bf16.gmra.mxu0 %v3955
        %v4031 = vpop.f32.mrf.mxu0
        %v4032 = vadd.f32 0.0, %v4031
        %v4033 = vpop.f32.mrf.mxu0
        %v4034 = vadd.f32 0.0, %v4033
        %v4035 = vpop.f32.mrf.mxu0
        %v4036 = vadd.f32 0.0, %v4035
        %v4037 = vpop.f32.mrf.mxu0
        %v4038 = vadd.f32 0.0, %v4037
        %4039 = vmatprep.mubr.bf16.mxu0 0
        %4040 = vmatmul.mubr.bf16.gmra.mxu0 %v3958
        %v4041 = vpop.f32.mrf.mxu0
        %v4042 = vadd.f32 0.0, %v4041
        %v4043 = vpop.f32.mrf.mxu0
        %v4044 = vadd.f32 0.0, %v4043
        %v4045 = vpop.f32.mrf.mxu0
        %v4046 = vadd.f32 0.0, %v4045
        %v4047 = vpop.f32.mrf.mxu0
        %v4048 = vadd.f32 0.0, %v4047
        %4049 = vmatprep.mubr.bf16.mxu0 0
        %4050 = vmatmul.mubr.bf16.gmra.mxu0 %v3961
        %v4051 = vpop.f32.mrf.mxu0
        %v4052 = vadd.f32 0.0, %v4051
        %v4053 = vpop.f32.mrf.mxu0
        %v4054 = vadd.f32 0.0, %v4053
        %v4055 = vpop.f32.mrf.mxu0
        %v4056 = vadd.f32 0.0, %v4055
        %v4057 = vpop.f32.mrf.mxu0
        %v4058 = vadd.f32 0.0, %v4057
        %4059 = vmatprep.mubr.bf16.mxu0 0
        %4060 = vmatmul.mubr.bf16.gmra.mxu0 %v3964
        %v4061 = vpop.f32.mrf.mxu0
        %v4062 = vadd.f32 0.0, %v4061
        %v4063 = vpop.f32.mrf.mxu0
        %v4064 = vadd.f32 0.0, %v4063
        %v4065 = vpop.f32.mrf.mxu0
        %v4066 = vadd.f32 0.0, %v4065
        %v4067 = vpop.f32.mrf.mxu0
        %v4068 = vadd.f32 0.0, %v4067
        %4069 = vmatprep.mubr.bf16.mxu0 0
        %4070 = vmatmul.mubr.bf16.gmra.mxu0 %v3967
        %v4071 = vpop.f32.mrf.mxu0
        %v4072 = vadd.f32 0.0, %v4071
        %v4073 = vpop.f32.mrf.mxu0
        %v4074 = vadd.f32 0.0, %v4073
        %v4075 = vpop.f32.mrf.mxu0
        %v4076 = vadd.f32 0.0, %v4075
        %v4077 = vpop.f32.mrf.mxu0
        %v4078 = vadd.f32 0.0, %v4077
        %4079 = vmatprep.mubr.bf16.mxu0 0
        %4080 = vmatmul.mubr.bf16.gmra.mxu0 %v3970
        %v4081 = vpop.f32.mrf.mxu0
        %v4082 = vadd.f32 0.0, %v4081
        %v4083 = vpop.f32.mrf.mxu0
        %v4084 = vadd.f32 0.0, %v4083
        %v4085 = vpop.f32.mrf.mxu0
        %v4086 = vadd.f32 0.0, %v4085
        %v4087 = vpop.f32.mrf.mxu0
        %v4088 = vadd.f32 0.0, %v4087
        %4089 = vmatprep.mubr.bf16.mxu0 0
        %4090 = vmatmul.mubr.bf16.gmra.mxu0 %v3973
        %v4091 = vpop.f32.mrf.mxu0
        %v4092 = vadd.f32 0.0, %v4091
        %v4093 = vpop.f32.mrf.mxu0
        %v4094 = vadd.f32 0.0, %v4093
        %v4095 = vpop.f32.mrf.mxu0
        %v4096 = vadd.f32 0.0, %v4095
        %v4097 = vpop.f32.mrf.mxu0
        %v4098 = vadd.f32 0.0, %v4097
        %4099 = vmatprep.mubr.bf16.mxu0 0
        %4100 = vmatmul.mubr.bf16.gmra.mxu0 %v3976
        %v4101 = vpop.f32.mrf.mxu0
        %v4102 = vadd.f32 0.0, %v4101
        %v4103 = vpop.f32.mrf.mxu0
        %v4104 = vadd.f32 0.0, %v4103
        %v4105 = vpop.f32.mrf.mxu0
        %v4106 = vadd.f32 0.0, %v4105
        %v4107 = vpop.f32.mrf.mxu0
        %v4108 = vadd.f32 0.0, %v4107
        %4109 = vmatprep.mubr.bf16.mxu0 0
        %4110 = vmatmul.mubr.bf16.gmra.mxu0 %v3979
        %v4111 = vpop.f32.mrf.mxu0
        %v4112 = vadd.f32 0.0, %v4111
        %v4113 = vpop.f32.mrf.mxu0
        %v4114 = vadd.f32 0.0, %v4113
        %v4115 = vpop.f32.mrf.mxu0
        %v4116 = vadd.f32 0.0, %v4115
        %v4117 = vpop.f32.mrf.mxu0
        %v4118 = vadd.f32 0.0, %v4117
        %4119 = vmatprep.mubr.bf16.mxu0 0
        %4120 = vmatmul.mubr.bf16.gmra.mxu0 %v3982
        %v4121 = vpop.f32.mrf.mxu0
        %v4122 = vadd.f32 0.0, %v4121
        %v4123 = vpop.f32.mrf.mxu0
        %v4124 = vadd.f32 0.0, %v4123
        %v4125 = vpop.f32.mrf.mxu0
        %v4126 = vadd.f32 0.0, %v4125
        %v4127 = vpop.f32.mrf.mxu0
        %v4128 = vadd.f32 0.0, %v4127
        %4129 = vmatprep.mubr.bf16.mxu0 0
        %4130 = vmatmul.mubr.bf16.gmra.mxu0 %v3985
        %v4131 = vpop.f32.mrf.mxu0
        %v4132 = vadd.f32 0.0, %v4131
        %v4133 = vpop.f32.mrf.mxu0
        %v4134 = vadd.f32 0.0, %v4133
        %v4135 = vpop.f32.mrf.mxu0
        %v4136 = vadd.f32 0.0, %v4135
        %v4137 = vpop.f32.mrf.mxu0
        %v4138 = vadd.f32 0.0, %v4137
        %4139 = vdwg.mxu0
        %v4140 = vrot.slane %v3867, 5
        %v4141 = vrot.slane %v3868, 5
        %v4142 = vrot.slane %v3869, 5
        %v4143 = vrot.slane %v3870, 5
        %v4144 = vrot.slane %v3871, 5
        %v4145 = vrot.slane %v3872, 5
        %v4146 = vrot.slane %v3873, 5
        %v4147 = vrot.slane %v3874, 5
        %v4148 = vrot.slane %v3875, 5
        %v4149 = vrot.slane %v3876, 5
        %v4150 = vrot.slane %v3877, 5
        %v4151 = vrot.slane %v3878, 5
        %v4152 = vrot.slane %v3879, 5
        %v4153 = vrot.slane %v3880, 5
        %v4154 = vrot.slane %v3881, 5
        %v4155 = vrot.slane %v3882, 5
        %v4156 = vrot.slane %v3883, 5
        %v4157 = vrot.slane %v3884, 5
        %v4158 = vrot.slane %v3885, 5
        %v4159 = vrot.slane %v3886, 5
        %v4160 = vrot.slane %v3887, 5
        %v4161 = vrot.slane %v3888, 5
        %v4162 = vrot.slane %v3889, 5
        %v4163 = vrot.slane %v3890, 5
        %vm4164 = vcmp.lt.s32.totalorder %v1035, 3
        %v4165 = vsel %vm4164, %v4162, %v4163
        %v4166 = vsel %vm4164, %v4161, %v4162
        %v4167 = vsel %vm4164, %v4160, %v4161
        %v4168 = vsel %vm4164, %v4159, %v4160
        %v4169 = vsel %vm4164, %v4158, %v4159
        %v4170 = vsel %vm4164, %v4157, %v4158
        %v4171 = vsel %vm4164, %v4156, %v4157
        %v4172 = vsel %vm4164, %v4155, %v4156
        %v4173 = vsel %vm4164, %v4154, %v4155
        %v4174 = vsel %vm4164, %v4153, %v4154
        %v4175 = vsel %vm4164, %v4152, %v4153
        %v4176 = vsel %vm4164, %v4151, %v4152
        %v4177 = vsel %vm4164, %v4150, %v4151
        %v4178 = vsel %vm4164, %v4149, %v4150
        %v4179 = vsel %vm4164, %v4148, %v4149
        %v4180 = vsel %vm4164, %v4147, %v4148
        %v4181 = vsel %vm4164, %v4146, %v4147
        %v4182 = vsel %vm4164, %v4145, %v4146
        %v4183 = vsel %vm4164, %v4144, %v4145
        %v4184 = vsel %vm4164, %v4143, %v4144
        %v4185 = vsel %vm4164, %v4142, %v4143
        %v4186 = vsel %vm4164, %v4141, %v4142
        %v4187 = vsel %vm4164, %v4140, %v4141
        %v4188 = vsel %vm4164, %v4163, %v4140
        %v4189 = vpack.c.bf16 %v4187, %v4188
        %v4190 = vpack.c.bf16 %v4185, %v4186
        %v4191 = vpack.c.bf16 %v4183, %v4184
        %v4192 = vpack.c.bf16 %v4181, %v4182
        %v4193 = vpack.c.bf16 %v4179, %v4180
        %v4194 = vpack.c.bf16 %v4177, %v4178
        %v4195 = vpack.c.bf16 %v4175, %v4176
        %v4196 = vpack.c.bf16 %v4173, %v4174
        %v4197 = vpack.c.bf16 %v4171, %v4172
        %v4198 = vpack.c.bf16 %v4169, %v4170
        %v4199 = vpack.c.bf16 %v4167, %v4168
        %v4200 = vpack.c.bf16 %v4165, %v4166
        %v4201 = vld [vmem:[%s9] sm:$0xf]
        %v4202 = vld [vmem:[%s9 + $0x4] sm:$0xf]
        %v4203 = vld [vmem:[%s9 + $0x8] sm:$0xf]
        %v4204 = vld [vmem:[%s9 + $0xc] sm:$0xf]
        %v4205 = vld [vmem:[%s9 + $0x10] sm:$0xf]
        %v4206 = vld [vmem:[%s9 + $0x14] sm:$0xf]
        %v4207 = vld [vmem:[%s9 + $0x18] sm:$0xf]
        %v4208 = vld [vmem:[%s9 + $0x1c] sm:$0xf]
        %v4217 = vunpack.c.l.b16 %v4201
        %v4218 = vunpack.c.l.b16 %v4202
        %v4219 = vunpack.c.l.b16 %v4203
        %v4220 = vunpack.c.l.b16 %v4204
        %v4221 = vunpack.c.l.b16 %v4205
        %v4222 = vunpack.c.l.b16 %v4206
        %v4223 = vunpack.c.l.b16 %v4207
        %v4224 = vunpack.c.l.b16 %v4208
        %v4225 = vpack.c.b16 %v4218, %v4217
        %v4226 = vpack.c.b16 %v4220, %v4219
        %v4227 = vpack.c.b16 %v4222, %v4221
        %v4228 = vpack.c.b16 %v4224, %v4223
        %v4234 = vsel %vm1685, %v4189, 0
        %v4237 = vsel %vm1685, %v4190, 0
        %v4240 = vsel %vm1685, %v4191, 0
        %v4243 = vsel %vm1685, %v4192, 0
        %v4246 = vsel %vm1685, %v4193, 0
        %v4249 = vsel %vm1685, %v4194, 0
        %v4252 = vsel %vm1685, %v4195, 0
        %v4255 = vsel %vm1685, %v4196, 0
        %v4258 = vsel %vm1685, %v4197, 0
        %v4261 = vsel %vm1685, %v4198, 0
        %v4264 = vsel %vm1685, %v4199, 0
        %v4267 = vsel %vm1685, %v4200, 0
        %4269 = vmatprep.subr.bf16.mxu0 0
        %4270 = vmatpush1.bf16.msra.mxu0 0
        %4271 = vmatprep.subr.bf16.mxu0 0
        %4272 = vmatpush1.bf16.msra.mxu0 0
        %4273 = vmatprep.subr.bf16.mxu0 0
        %4274 = vmatpush1.bf16.msra.mxu0 0
        %4275 = vmatprep.subr.bf16.mxu0 0
        %4276 = vmatpush1.bf16.msra.mxu0 0
        %4277 = vmatprep.subr.bf16.mxu0 0
        %4278 = vmatpush1.bf16.msra.mxu0 %v4228
        %4279 = vmatprep.subr.bf16.mxu0 0
        %4280 = vmatpush1.bf16.msra.mxu0 %v4227
        %4281 = vmatprep.subr.bf16.mxu0 0
        %4282 = vmatpush1.bf16.msra.mxu0 %v4226
        %4283 = vmatprep.subr.bf16.mxu0 0
        %4284 = vmatpush1.bf16.msra.mxu0 %v4225
        %4285 = vmatprep.subr.bf16.mxu0 0
        %4286 = vmatpush2.bf16.msra.mxu0 0
        %4287 = vmatprep.subr.bf16.mxu0 0
        %4288 = vmatpush2.bf16.msra.mxu0 0
        %4289 = vmatprep.subr.bf16.mxu0 0
        %4290 = vmatpush2.bf16.msra.mxu0 0
        %4291 = vmatprep.subr.bf16.mxu0 0
        %4292 = vmatpush2.bf16.msra.mxu0 0
        %4293 = vmatprep.subr.bf16.mxu0 0
        %4294 = vmatpush2.bf16.msra.mxu0 0
        %4295 = vmatprep.subr.bf16.mxu0 0
        %4296 = vmatpush2.bf16.msra.mxu0 0
        %4297 = vmatprep.subr.bf16.mxu0 0
        %4298 = vmatpush2.bf16.msra.mxu0 0
        %4299 = vmatprep.subr.bf16.mxu0 0
        %4300 = vmatpush2.bf16.msra.mxu0 0
        %4301 = vmatprep.mubr.bf16.mxu0 0
        %4302 = vmatmul.mubr.bf16.gmra.mxu0 %v4234
        %v4303 = vpop.f32.mrf.mxu0
        %v4304 = vadd.f32 0.0, %v4303
        %v4305 = vpop.f32.mrf.mxu0
        %v4306 = vpop.f32.mrf.mxu0
        %v4307 = vadd.f32 0.0, %v4306
        %v4308 = vpop.f32.mrf.mxu0
        %4309 = vmatprep.mubr.bf16.mxu0 0
        %4310 = vmatmul.mubr.bf16.gmra.mxu0 %v4237
        %v4311 = vpop.f32.mrf.mxu0
        %v4312 = vadd.f32 0.0, %v4311
        %v4313 = vpop.f32.mrf.mxu0
        %v4314 = vpop.f32.mrf.mxu0
        %v4315 = vadd.f32 0.0, %v4314
        %v4316 = vpop.f32.mrf.mxu0
        %4317 = vmatprep.mubr.bf16.mxu0 0
        %4318 = vmatmul.mubr.bf16.gmra.mxu0 %v4240
        %v4319 = vpop.f32.mrf.mxu0
        %v4320 = vadd.f32 0.0, %v4319
        %v4321 = vpop.f32.mrf.mxu0
        %v4322 = vpop.f32.mrf.mxu0
        %v4323 = vadd.f32 0.0, %v4322
        %v4324 = vpop.f32.mrf.mxu0
        %4325 = vmatprep.mubr.bf16.mxu0 0
        %4326 = vmatmul.mubr.bf16.gmra.mxu0 %v4243
        %v4327 = vpop.f32.mrf.mxu0
        %v4328 = vadd.f32 0.0, %v4327
        %v4329 = vpop.f32.mrf.mxu0
        %v4330 = vpop.f32.mrf.mxu0
        %v4331 = vadd.f32 0.0, %v4330
        %v4332 = vpop.f32.mrf.mxu0
        %4333 = vmatprep.mubr.bf16.mxu0 0
        %4334 = vmatmul.mubr.bf16.gmra.mxu0 %v4246
        %v4335 = vpop.f32.mrf.mxu0
        %v4336 = vadd.f32 0.0, %v4335
        %v4337 = vpop.f32.mrf.mxu0
        %v4338 = vpop.f32.mrf.mxu0
        %v4339 = vadd.f32 0.0, %v4338
        %v4340 = vpop.f32.mrf.mxu0
        %4341 = vmatprep.mubr.bf16.mxu0 0
        %4342 = vmatmul.mubr.bf16.gmra.mxu0 %v4249
        %v4343 = vpop.f32.mrf.mxu0
        %v4344 = vadd.f32 0.0, %v4343
        %v4345 = vpop.f32.mrf.mxu0
        %v4346 = vpop.f32.mrf.mxu0
        %v4347 = vadd.f32 0.0, %v4346
        %v4348 = vpop.f32.mrf.mxu0
        %4349 = vmatprep.mubr.bf16.mxu0 0
        %4350 = vmatmul.mubr.bf16.gmra.mxu0 %v4252
        %v4351 = vpop.f32.mrf.mxu0
        %v4352 = vadd.f32 0.0, %v4351
        %v4353 = vpop.f32.mrf.mxu0
        %v4354 = vpop.f32.mrf.mxu0
        %v4355 = vadd.f32 0.0, %v4354
        %v4356 = vpop.f32.mrf.mxu0
        %4357 = vmatprep.mubr.bf16.mxu0 0
        %4358 = vmatmul.mubr.bf16.gmra.mxu0 %v4255
        %v4359 = vpop.f32.mrf.mxu0
        %v4360 = vadd.f32 0.0, %v4359
        %v4361 = vpop.f32.mrf.mxu0
        %v4362 = vpop.f32.mrf.mxu0
        %v4363 = vadd.f32 0.0, %v4362
        %v4364 = vpop.f32.mrf.mxu0
        %4365 = vmatprep.mubr.bf16.mxu0 0
        %4366 = vmatmul.mubr.bf16.gmra.mxu0 %v4258
        %v4367 = vpop.f32.mrf.mxu0
        %v4368 = vadd.f32 0.0, %v4367
        %v4369 = vpop.f32.mrf.mxu0
        %v4370 = vpop.f32.mrf.mxu0
        %v4371 = vadd.f32 0.0, %v4370
        %v4372 = vpop.f32.mrf.mxu0
        %4373 = vmatprep.mubr.bf16.mxu0 0
        %4374 = vmatmul.mubr.bf16.gmra.mxu0 %v4261
        %v4375 = vpop.f32.mrf.mxu0
        %v4376 = vadd.f32 0.0, %v4375
        %v4377 = vpop.f32.mrf.mxu0
        %v4378 = vpop.f32.mrf.mxu0
        %v4379 = vadd.f32 0.0, %v4378
        %v4380 = vpop.f32.mrf.mxu0
        %4381 = vmatprep.mubr.bf16.mxu0 0
        %4382 = vmatmul.mubr.bf16.gmra.mxu0 %v4264
        %v4383 = vpop.f32.mrf.mxu0
        %v4384 = vadd.f32 0.0, %v4383
        %v4385 = vpop.f32.mrf.mxu0
        %v4386 = vpop.f32.mrf.mxu0
        %v4387 = vadd.f32 0.0, %v4386
        %v4388 = vpop.f32.mrf.mxu0
        %4389 = vmatprep.mubr.bf16.mxu0 0
        %4390 = vmatmul.mubr.bf16.gmra.mxu0 %v4267
        %v4391 = vpop.f32.mrf.mxu0
        %v4392 = vadd.f32 0.0, %v4391
        %v4393 = vpop.f32.mrf.mxu0
        %v4394 = vpop.f32.mrf.mxu0
        %v4395 = vadd.f32 0.0, %v4394
        %v4396 = vpop.f32.mrf.mxu0
        %4397 = vdwg.mxu0
        %v4398 = vadd.f32 %v4022, %v4304
        %v4399 = vadd.f32 %v4026, %v4307
        %v4400 = vadd.f32 %v4032, %v4312
        %v4401 = vadd.f32 %v4036, %v4315
        %v4402 = vadd.f32 %v4042, %v4320
        %v4403 = vadd.f32 %v4046, %v4323
        %v4404 = vadd.f32 %v4052, %v4328
        %v4405 = vadd.f32 %v4056, %v4331
        %v4406 = vadd.f32 %v4062, %v4336
        %v4407 = vadd.f32 %v4066, %v4339
        %v4408 = vadd.f32 %v4072, %v4344
        %v4409 = vadd.f32 %v4076, %v4347
        %v4410 = vadd.f32 %v4082, %v4352
        %v4411 = vadd.f32 %v4086, %v4355
        %v4412 = vadd.f32 %v4092, %v4360
        %v4413 = vadd.f32 %v4096, %v4363
        %v4414 = vadd.f32 %v4102, %v4368
        %v4415 = vadd.f32 %v4106, %v4371
        %v4416 = vadd.f32 %v4112, %v4376
        %v4417 = vadd.f32 %v4116, %v4379
        %v4418 = vadd.f32 %v4122, %v4384
        %v4419 = vadd.f32 %v4126, %v4387
        %v4420 = vadd.f32 %v4132, %v4392
        %v4421 = vadd.f32 %v4136, %v4395
        %v4422 = vrot.slane %v3867, 6
        %v4423 = vrot.slane %v3868, 6
        %v4424 = vrot.slane %v3869, 6
        %v4425 = vrot.slane %v3870, 6
        %v4426 = vrot.slane %v3871, 6
        %v4427 = vrot.slane %v3872, 6
        %v4428 = vrot.slane %v3873, 6
        %v4429 = vrot.slane %v3874, 6
        %v4430 = vrot.slane %v3875, 6
        %v4431 = vrot.slane %v3876, 6
        %v4432 = vrot.slane %v3877, 6
        %v4433 = vrot.slane %v3878, 6
        %v4434 = vrot.slane %v3879, 6
        %v4435 = vrot.slane %v3880, 6
        %v4436 = vrot.slane %v3881, 6
        %v4437 = vrot.slane %v3882, 6
        %v4438 = vrot.slane %v3883, 6
        %v4439 = vrot.slane %v3884, 6
        %v4440 = vrot.slane %v3885, 6
        %v4441 = vrot.slane %v3886, 6
        %v4442 = vrot.slane %v3887, 6
        %v4443 = vrot.slane %v3888, 6
        %v4444 = vrot.slane %v3889, 6
        %v4445 = vrot.slane %v3890, 6
        %v4446 = vsel %vm1546, %v4444, %v4445
        %v4447 = vsel %vm1546, %v4443, %v4444
        %v4448 = vsel %vm1546, %v4442, %v4443
        %v4449 = vsel %vm1546, %v4441, %v4442
        %v4450 = vsel %vm1546, %v4440, %v4441
        %v4451 = vsel %vm1546, %v4439, %v4440
        %v4452 = vsel %vm1546, %v4438, %v4439
        %v4453 = vsel %vm1546, %v4437, %v4438
        %v4454 = vsel %vm1546, %v4436, %v4437
        %v4455 = vsel %vm1546, %v4435, %v4436
        %v4456 = vsel %vm1546, %v4434, %v4435
        %v4457 = vsel %vm1546, %v4433, %v4434
        %v4458 = vsel %vm1546, %v4432, %v4433
        %v4459 = vsel %vm1546, %v4431, %v4432
        %v4460 = vsel %vm1546, %v4430, %v4431
        %v4461 = vsel %vm1546, %v4429, %v4430
        %v4462 = vsel %vm1546, %v4428, %v4429
        %v4463 = vsel %vm1546, %v4427, %v4428
        %v4464 = vsel %vm1546, %v4426, %v4427
        %v4465 = vsel %vm1546, %v4425, %v4426
        %v4466 = vsel %vm1546, %v4424, %v4425
        %v4467 = vsel %vm1546, %v4423, %v4424
        %v4468 = vsel %vm1546, %v4422, %v4423
        %v4469 = vsel %vm1546, %v4445, %v4422
        %v4470 = vpack.c.bf16 %v4468, %v4469
        %v4471 = vpack.c.bf16 %v4466, %v4467
        %v4472 = vpack.c.bf16 %v4464, %v4465
        %v4473 = vpack.c.bf16 %v4462, %v4463
        %v4474 = vpack.c.bf16 %v4460, %v4461
        %v4475 = vpack.c.bf16 %v4458, %v4459
        %v4476 = vpack.c.bf16 %v4456, %v4457
        %v4477 = vpack.c.bf16 %v4454, %v4455
        %v4478 = vpack.c.bf16 %v4452, %v4453
        %v4479 = vpack.c.bf16 %v4450, %v4451
        %v4480 = vpack.c.bf16 %v4448, %v4449
        %v4481 = vpack.c.bf16 %v4446, %v4447
        %s4482 = scalar_lea.vmem %s9, 32
        %v4483 = vld [vmem:[%s4482] sm:$0xf]
        %v4484 = vld [vmem:[%s4482 + $0x4] sm:$0xf]
        %v4485 = vld [vmem:[%s4482 + $0x8] sm:$0xf]
        %v4486 = vld [vmem:[%s4482 + $0xc] sm:$0xf]
        %v4487 = vld [vmem:[%s4482 + $0x10] sm:$0xf]
        %v4488 = vld [vmem:[%s4482 + $0x14] sm:$0xf]
        %v4489 = vld [vmem:[%s4482 + $0x18] sm:$0xf]
        %v4490 = vld [vmem:[%s4482 + $0x1c] sm:$0xf]
        %v4499 = vunpack.c.l.b16 %v4483
        %v4500 = vunpack.c.l.b16 %v4484
        %v4501 = vunpack.c.l.b16 %v4485
        %v4502 = vunpack.c.l.b16 %v4486
        %v4503 = vunpack.c.l.b16 %v4487
        %v4504 = vunpack.c.l.b16 %v4488
        %v4505 = vunpack.c.l.b16 %v4489
        %v4506 = vunpack.c.l.b16 %v4490
        %v4507 = vpack.c.b16 %v4500, %v4499
        %v4508 = vpack.c.b16 %v4502, %v4501
        %v4509 = vpack.c.b16 %v4504, %v4503
        %v4510 = vpack.c.b16 %v4506, %v4505
        %v4516 = vsel %vm1685, %v4470, 0
        %v4519 = vsel %vm1685, %v4471, 0
        %v4522 = vsel %vm1685, %v4472, 0
        %v4525 = vsel %vm1685, %v4473, 0
        %v4528 = vsel %vm1685, %v4474, 0
        %v4531 = vsel %vm1685, %v4475, 0
        %v4534 = vsel %vm1685, %v4476, 0
        %v4537 = vsel %vm1685, %v4477, 0
        %v4540 = vsel %vm1685, %v4478, 0
        %v4543 = vsel %vm1685, %v4479, 0
        %v4546 = vsel %vm1685, %v4480, 0
        %v4549 = vsel %vm1685, %v4481, 0
        %4551 = vmatprep.subr.bf16.mxu0 0
        %4552 = vmatpush1.bf16.msra.mxu0 0
        %4553 = vmatprep.subr.bf16.mxu0 0
        %4554 = vmatpush1.bf16.msra.mxu0 0
        %4555 = vmatprep.subr.bf16.mxu0 0
        %4556 = vmatpush1.bf16.msra.mxu0 0
        %4557 = vmatprep.subr.bf16.mxu0 0
        %4558 = vmatpush1.bf16.msra.mxu0 0
        %4559 = vmatprep.subr.bf16.mxu0 0
        %4560 = vmatpush1.bf16.msra.mxu0 %v4510
        %4561 = vmatprep.subr.bf16.mxu0 0
        %4562 = vmatpush1.bf16.msra.mxu0 %v4509
        %4563 = vmatprep.subr.bf16.mxu0 0
        %4564 = vmatpush1.bf16.msra.mxu0 %v4508
        %4565 = vmatprep.subr.bf16.mxu0 0
        %4566 = vmatpush1.bf16.msra.mxu0 %v4507
        %4567 = vmatprep.subr.bf16.mxu0 0
        %4568 = vmatpush2.bf16.msra.mxu0 0
        %4569 = vmatprep.subr.bf16.mxu0 0
        %4570 = vmatpush2.bf16.msra.mxu0 0
        %4571 = vmatprep.subr.bf16.mxu0 0
        %4572 = vmatpush2.bf16.msra.mxu0 0
        %4573 = vmatprep.subr.bf16.mxu0 0
        %4574 = vmatpush2.bf16.msra.mxu0 0
        %4575 = vmatprep.subr.bf16.mxu0 0
        %4576 = vmatpush2.bf16.msra.mxu0 0
        %4577 = vmatprep.subr.bf16.mxu0 0
        %4578 = vmatpush2.bf16.msra.mxu0 0
        %4579 = vmatprep.subr.bf16.mxu0 0
        %4580 = vmatpush2.bf16.msra.mxu0 0
        %4581 = vmatprep.subr.bf16.mxu0 0
        %4582 = vmatpush2.bf16.msra.mxu0 0
        %4583 = vmatprep.mubr.bf16.mxu0 0
        %4584 = vmatmul.mubr.bf16.gmra.mxu0 %v4516
        %v4585 = vpop.f32.mrf.mxu0
        %v4586 = vadd.f32 0.0, %v4585
        %v4587 = vpop.f32.mrf.mxu0
        %v4588 = vpop.f32.mrf.mxu0
        %v4589 = vadd.f32 0.0, %v4588
        %v4590 = vpop.f32.mrf.mxu0
        %4591 = vmatprep.mubr.bf16.mxu0 0
        %4592 = vmatmul.mubr.bf16.gmra.mxu0 %v4519
        %v4593 = vpop.f32.mrf.mxu0
        %v4594 = vadd.f32 0.0, %v4593
        %v4595 = vpop.f32.mrf.mxu0
        %v4596 = vpop.f32.mrf.mxu0
        %v4597 = vadd.f32 0.0, %v4596
        %v4598 = vpop.f32.mrf.mxu0
        %4599 = vmatprep.mubr.bf16.mxu0 0
        %4600 = vmatmul.mubr.bf16.gmra.mxu0 %v4522
        %v4601 = vpop.f32.mrf.mxu0
        %v4602 = vadd.f32 0.0, %v4601
        %v4603 = vpop.f32.mrf.mxu0
        %v4604 = vpop.f32.mrf.mxu0
        %v4605 = vadd.f32 0.0, %v4604
        %v4606 = vpop.f32.mrf.mxu0
        %4607 = vmatprep.mubr.bf16.mxu0 0
        %4608 = vmatmul.mubr.bf16.gmra.mxu0 %v4525
        %v4609 = vpop.f32.mrf.mxu0
        %v4610 = vadd.f32 0.0, %v4609
        %v4611 = vpop.f32.mrf.mxu0
        %v4612 = vpop.f32.mrf.mxu0
        %v4613 = vadd.f32 0.0, %v4612
        %v4614 = vpop.f32.mrf.mxu0
        %4615 = vmatprep.mubr.bf16.mxu0 0
        %4616 = vmatmul.mubr.bf16.gmra.mxu0 %v4528
        %v4617 = vpop.f32.mrf.mxu0
        %v4618 = vadd.f32 0.0, %v4617
        %v4619 = vpop.f32.mrf.mxu0
        %v4620 = vpop.f32.mrf.mxu0
        %v4621 = vadd.f32 0.0, %v4620
        %v4622 = vpop.f32.mrf.mxu0
        %4623 = vmatprep.mubr.bf16.mxu0 0
        %4624 = vmatmul.mubr.bf16.gmra.mxu0 %v4531
        %v4625 = vpop.f32.mrf.mxu0
        %v4626 = vadd.f32 0.0, %v4625
        %v4627 = vpop.f32.mrf.mxu0
        %v4628 = vpop.f32.mrf.mxu0
        %v4629 = vadd.f32 0.0, %v4628
        %v4630 = vpop.f32.mrf.mxu0
        %4631 = vmatprep.mubr.bf16.mxu0 0
        %4632 = vmatmul.mubr.bf16.gmra.mxu0 %v4534
        %v4633 = vpop.f32.mrf.mxu0
        %v4634 = vadd.f32 0.0, %v4633
        %v4635 = vpop.f32.mrf.mxu0
        %v4636 = vpop.f32.mrf.mxu0
        %v4637 = vadd.f32 0.0, %v4636
        %v4638 = vpop.f32.mrf.mxu0
        %4639 = vmatprep.mubr.bf16.mxu0 0
        %4640 = vmatmul.mubr.bf16.gmra.mxu0 %v4537
        %v4641 = vpop.f32.mrf.mxu0
        %v4642 = vadd.f32 0.0, %v4641
        %v4643 = vpop.f32.mrf.mxu0
        %v4644 = vpop.f32.mrf.mxu0
        %v4645 = vadd.f32 0.0, %v4644
        %v4646 = vpop.f32.mrf.mxu0
        %4647 = vmatprep.mubr.bf16.mxu0 0
        %4648 = vmatmul.mubr.bf16.gmra.mxu0 %v4540
        %v4649 = vpop.f32.mrf.mxu0
        %v4650 = vadd.f32 0.0, %v4649
        %v4651 = vpop.f32.mrf.mxu0
        %v4652 = vpop.f32.mrf.mxu0
        %v4653 = vadd.f32 0.0, %v4652
        %v4654 = vpop.f32.mrf.mxu0
        %4655 = vmatprep.mubr.bf16.mxu0 0
        %4656 = vmatmul.mubr.bf16.gmra.mxu0 %v4543
        %v4657 = vpop.f32.mrf.mxu0
        %v4658 = vadd.f32 0.0, %v4657
        %v4659 = vpop.f32.mrf.mxu0
        %v4660 = vpop.f32.mrf.mxu0
        %v4661 = vadd.f32 0.0, %v4660
        %v4662 = vpop.f32.mrf.mxu0
        %4663 = vmatprep.mubr.bf16.mxu0 0
        %4664 = vmatmul.mubr.bf16.gmra.mxu0 %v4546
        %v4665 = vpop.f32.mrf.mxu0
        %v4666 = vadd.f32 0.0, %v4665
        %v4667 = vpop.f32.mrf.mxu0
        %v4668 = vpop.f32.mrf.mxu0
        %v4669 = vadd.f32 0.0, %v4668
        %v4670 = vpop.f32.mrf.mxu0
        %4671 = vmatprep.mubr.bf16.mxu0 0
        %4672 = vmatmul.mubr.bf16.gmra.mxu0 %v4549
        %v4673 = vpop.f32.mrf.mxu0
        %v4674 = vadd.f32 0.0, %v4673
        %v4675 = vpop.f32.mrf.mxu0
        %v4676 = vpop.f32.mrf.mxu0
        %v4677 = vadd.f32 0.0, %v4676
        %v4678 = vpop.f32.mrf.mxu0
        %4679 = vdwg.mxu0
        %v4680 = vadd.f32 %v4398, %v4586
        %v4681 = vadd.f32 %v4399, %v4589
        %v4682 = vadd.f32 %v4400, %v4594
        %v4683 = vadd.f32 %v4401, %v4597
        %v4684 = vadd.f32 %v4402, %v4602
        %v4685 = vadd.f32 %v4403, %v4605
        %v4686 = vadd.f32 %v4404, %v4610
        %v4687 = vadd.f32 %v4405, %v4613
        %v4688 = vadd.f32 %v4406, %v4618
        %v4689 = vadd.f32 %v4407, %v4621
        %v4690 = vadd.f32 %v4408, %v4626
        %v4691 = vadd.f32 %v4409, %v4629
        %v4692 = vadd.f32 %v4410, %v4634
        %v4693 = vadd.f32 %v4411, %v4637
        %v4694 = vadd.f32 %v4412, %v4642
        %v4695 = vadd.f32 %v4413, %v4645
        %v4696 = vadd.f32 %v4414, %v4650
        %v4697 = vadd.f32 %v4415, %v4653
        %v4698 = vadd.f32 %v4416, %v4658
        %v4699 = vadd.f32 %v4417, %v4661
        %v4700 = vadd.f32 %v4418, %v4666
        %v4701 = vadd.f32 %v4419, %v4669
        %v4702 = vadd.f32 %v4420, %v4674
        %v4703 = vadd.f32 %v4421, %v4677
        %v4704 = vrot.slane %v3867, 7
        %v4705 = vrot.slane %v3868, 7
        %v4706 = vrot.slane %v3869, 7
        %v4707 = vrot.slane %v3870, 7
        %v4708 = vrot.slane %v3871, 7
        %v4709 = vrot.slane %v3872, 7
        %v4710 = vrot.slane %v3873, 7
        %v4711 = vrot.slane %v3874, 7
        %v4712 = vrot.slane %v3875, 7
        %v4713 = vrot.slane %v3876, 7
        %v4714 = vrot.slane %v3877, 7
        %v4715 = vrot.slane %v3878, 7
        %v4716 = vrot.slane %v3879, 7
        %v4717 = vrot.slane %v3880, 7
        %v4718 = vrot.slane %v3881, 7
        %v4719 = vrot.slane %v3882, 7
        %v4720 = vrot.slane %v3883, 7
        %v4721 = vrot.slane %v3884, 7
        %v4722 = vrot.slane %v3885, 7
        %v4723 = vrot.slane %v3886, 7
        %v4724 = vrot.slane %v3887, 7
        %v4725 = vrot.slane %v3888, 7
        %v4726 = vrot.slane %v3889, 7
        %v4727 = vrot.slane %v3890, 7
        %v4728 = vsel %vm1615, %v4726, %v4727
        %v4729 = vsel %vm1615, %v4725, %v4726
        %v4730 = vsel %vm1615, %v4724, %v4725
        %v4731 = vsel %vm1615, %v4723, %v4724
        %v4732 = vsel %vm1615, %v4722, %v4723
        %v4733 = vsel %vm1615, %v4721, %v4722
        %v4734 = vsel %vm1615, %v4720, %v4721
        %v4735 = vsel %vm1615, %v4719, %v4720
        %v4736 = vsel %vm1615, %v4718, %v4719
        %v4737 = vsel %vm1615, %v4717, %v4718
        %v4738 = vsel %vm1615, %v4716, %v4717
        %v4739 = vsel %vm1615, %v4715, %v4716
        %v4740 = vsel %vm1615, %v4714, %v4715
        %v4741 = vsel %vm1615, %v4713, %v4714
        %v4742 = vsel %vm1615, %v4712, %v4713
        %v4743 = vsel %vm1615, %v4711, %v4712
        %v4744 = vsel %vm1615, %v4710, %v4711
        %v4745 = vsel %vm1615, %v4709, %v4710
        %v4746 = vsel %vm1615, %v4708, %v4709
        %v4747 = vsel %vm1615, %v4707, %v4708
        %v4748 = vsel %vm1615, %v4706, %v4707
        %v4749 = vsel %vm1615, %v4705, %v4706
        %v4750 = vsel %vm1615, %v4704, %v4705
        %v4751 = vsel %vm1615, %v4727, %v4704
        %v4752 = vpack.c.bf16 %v4750, %v4751
        %v4753 = vpack.c.bf16 %v4748, %v4749
        %v4754 = vpack.c.bf16 %v4746, %v4747
        %v4755 = vpack.c.bf16 %v4744, %v4745
        %v4756 = vpack.c.bf16 %v4742, %v4743
        %v4757 = vpack.c.bf16 %v4740, %v4741
        %v4758 = vpack.c.bf16 %v4738, %v4739
        %v4759 = vpack.c.bf16 %v4736, %v4737
        %v4760 = vpack.c.bf16 %v4734, %v4735
        %v4761 = vpack.c.bf16 %v4732, %v4733
        %v4762 = vpack.c.bf16 %v4730, %v4731
        %v4763 = vpack.c.bf16 %v4728, %v4729
        %s4764 = scalar_lea.vmem %s9, 64
        %v4765 = vld [vmem:[%s4764] sm:$0xf]
        %v4766 = vld [vmem:[%s4764 + $0x4] sm:$0xf]
        %v4767 = vld [vmem:[%s4764 + $0x8] sm:$0xf]
        %v4768 = vld [vmem:[%s4764 + $0xc] sm:$0xf]
        %v4769 = vld [vmem:[%s4764 + $0x10] sm:$0xf]
        %v4770 = vld [vmem:[%s4764 + $0x14] sm:$0xf]
        %v4771 = vld [vmem:[%s4764 + $0x18] sm:$0xf]
        %v4772 = vld [vmem:[%s4764 + $0x1c] sm:$0xf]
        %v4781 = vunpack.c.l.b16 %v4765
        %v4782 = vunpack.c.l.b16 %v4766
        %v4783 = vunpack.c.l.b16 %v4767
        %v4784 = vunpack.c.l.b16 %v4768
        %v4785 = vunpack.c.l.b16 %v4769
        %v4786 = vunpack.c.l.b16 %v4770
        %v4787 = vunpack.c.l.b16 %v4771
        %v4788 = vunpack.c.l.b16 %v4772
        %v4789 = vpack.c.b16 %v4782, %v4781
        %v4790 = vpack.c.b16 %v4784, %v4783
        %v4791 = vpack.c.b16 %v4786, %v4785
        %v4792 = vpack.c.b16 %v4788, %v4787
        %v4798 = vsel %vm1685, %v4752, 0
        %v4801 = vsel %vm1685, %v4753, 0
        %v4804 = vsel %vm1685, %v4754, 0
        %v4807 = vsel %vm1685, %v4755, 0
        %v4810 = vsel %vm1685, %v4756, 0
        %v4813 = vsel %vm1685, %v4757, 0
        %v4816 = vsel %vm1685, %v4758, 0
        %v4819 = vsel %vm1685, %v4759, 0
        %v4822 = vsel %vm1685, %v4760, 0
        %v4825 = vsel %vm1685, %v4761, 0
        %v4828 = vsel %vm1685, %v4762, 0
        %v4831 = vsel %vm1685, %v4763, 0
        %4833 = vmatprep.subr.bf16.mxu0 0
        %4834 = vmatpush1.bf16.msra.mxu0 0
        %4835 = vmatprep.subr.bf16.mxu0 0
        %4836 = vmatpush1.bf16.msra.mxu0 0
        %4837 = vmatprep.subr.bf16.mxu0 0
        %4838 = vmatpush1.bf16.msra.mxu0 0
        %4839 = vmatprep.subr.bf16.mxu0 0
        %4840 = vmatpush1.bf16.msra.mxu0 0
        %4841 = vmatprep.subr.bf16.mxu0 0
        %4842 = vmatpush1.bf16.msra.mxu0 %v4792
        %4843 = vmatprep.subr.bf16.mxu0 0
        %4844 = vmatpush1.bf16.msra.mxu0 %v4791
        %4845 = vmatprep.subr.bf16.mxu0 0
        %4846 = vmatpush1.bf16.msra.mxu0 %v4790
        %4847 = vmatprep.subr.bf16.mxu0 0
        %4848 = vmatpush1.bf16.msra.mxu0 %v4789
        %4849 = vmatprep.subr.bf16.mxu0 0
        %4850 = vmatpush2.bf16.msra.mxu0 0
        %4851 = vmatprep.subr.bf16.mxu0 0
        %4852 = vmatpush2.bf16.msra.mxu0 0
        %4853 = vmatprep.subr.bf16.mxu0 0
        %4854 = vmatpush2.bf16.msra.mxu0 0
        %4855 = vmatprep.subr.bf16.mxu0 0
        %4856 = vmatpush2.bf16.msra.mxu0 0
        %4857 = vmatprep.subr.bf16.mxu0 0
        %4858 = vmatpush2.bf16.msra.mxu0 0
        %4859 = vmatprep.subr.bf16.mxu0 0
        %4860 = vmatpush2.bf16.msra.mxu0 0
        %4861 = vmatprep.subr.bf16.mxu0 0
        %4862 = vmatpush2.bf16.msra.mxu0 0
        %4863 = vmatprep.subr.bf16.mxu0 0
        %4864 = vmatpush2.bf16.msra.mxu0 0
        %4865 = vmatprep.mubr.bf16.mxu0 0
        %4866 = vmatmul.mubr.bf16.gmra.mxu0 %v4798
        %v4867 = vpop.f32.mrf.mxu0
        %v4868 = vadd.f32 0.0, %v4867
        %v4869 = vpop.f32.mrf.mxu0
        %v4870 = vpop.f32.mrf.mxu0
        %v4871 = vadd.f32 0.0, %v4870
        %v4872 = vpop.f32.mrf.mxu0
        %4873 = vmatprep.mubr.bf16.mxu0 0
        %4874 = vmatmul.mubr.bf16.gmra.mxu0 %v4801
        %v4875 = vpop.f32.mrf.mxu0
        %v4876 = vadd.f32 0.0, %v4875
        %v4877 = vpop.f32.mrf.mxu0
        %v4878 = vpop.f32.mrf.mxu0
        %v4879 = vadd.f32 0.0, %v4878
        %v4880 = vpop.f32.mrf.mxu0
        %4881 = vmatprep.mubr.bf16.mxu0 0
        %4882 = vmatmul.mubr.bf16.gmra.mxu0 %v4804
        %v4883 = vpop.f32.mrf.mxu0
        %v4884 = vadd.f32 0.0, %v4883
        %v4885 = vpop.f32.mrf.mxu0
        %v4886 = vpop.f32.mrf.mxu0
        %v4887 = vadd.f32 0.0, %v4886
        %v4888 = vpop.f32.mrf.mxu0
        %4889 = vmatprep.mubr.bf16.mxu0 0
        %4890 = vmatmul.mubr.bf16.gmra.mxu0 %v4807
        %v4891 = vpop.f32.mrf.mxu0
        %v4892 = vadd.f32 0.0, %v4891
        %v4893 = vpop.f32.mrf.mxu0
        %v4894 = vpop.f32.mrf.mxu0
        %v4895 = vadd.f32 0.0, %v4894
        %v4896 = vpop.f32.mrf.mxu0
        %4897 = vmatprep.mubr.bf16.mxu0 0
        %4898 = vmatmul.mubr.bf16.gmra.mxu0 %v4810
        %v4899 = vpop.f32.mrf.mxu0
        %v4900 = vadd.f32 0.0, %v4899
        %v4901 = vpop.f32.mrf.mxu0
        %v4902 = vpop.f32.mrf.mxu0
        %v4903 = vadd.f32 0.0, %v4902
        %v4904 = vpop.f32.mrf.mxu0
        %4905 = vmatprep.mubr.bf16.mxu0 0
        %4906 = vmatmul.mubr.bf16.gmra.mxu0 %v4813
        %v4907 = vpop.f32.mrf.mxu0
        %v4908 = vadd.f32 0.0, %v4907
        %v4909 = vpop.f32.mrf.mxu0
        %v4910 = vpop.f32.mrf.mxu0
        %v4911 = vadd.f32 0.0, %v4910
        %v4912 = vpop.f32.mrf.mxu0
        %4913 = vmatprep.mubr.bf16.mxu0 0
        %4914 = vmatmul.mubr.bf16.gmra.mxu0 %v4816
        %v4915 = vpop.f32.mrf.mxu0
        %v4916 = vadd.f32 0.0, %v4915
        %v4917 = vpop.f32.mrf.mxu0
        %v4918 = vpop.f32.mrf.mxu0
        %v4919 = vadd.f32 0.0, %v4918
        %v4920 = vpop.f32.mrf.mxu0
        %4921 = vmatprep.mubr.bf16.mxu0 0
        %4922 = vmatmul.mubr.bf16.gmra.mxu0 %v4819
        %v4923 = vpop.f32.mrf.mxu0
        %v4924 = vadd.f32 0.0, %v4923
        %v4925 = vpop.f32.mrf.mxu0
        %v4926 = vpop.f32.mrf.mxu0
        %v4927 = vadd.f32 0.0, %v4926
        %v4928 = vpop.f32.mrf.mxu0
        %4929 = vmatprep.mubr.bf16.mxu0 0
        %4930 = vmatmul.mubr.bf16.gmra.mxu0 %v4822
        %v4931 = vpop.f32.mrf.mxu0
        %v4932 = vadd.f32 0.0, %v4931
        %v4933 = vpop.f32.mrf.mxu0
        %v4934 = vpop.f32.mrf.mxu0
        %v4935 = vadd.f32 0.0, %v4934
        %v4936 = vpop.f32.mrf.mxu0
        %4937 = vmatprep.mubr.bf16.mxu0 0
        %4938 = vmatmul.mubr.bf16.gmra.mxu0 %v4825
        %v4939 = vpop.f32.mrf.mxu0
        %v4940 = vadd.f32 0.0, %v4939
        %v4941 = vpop.f32.mrf.mxu0
        %v4942 = vpop.f32.mrf.mxu0
        %v4943 = vadd.f32 0.0, %v4942
        %v4944 = vpop.f32.mrf.mxu0
        %4945 = vmatprep.mubr.bf16.mxu0 0
        %4946 = vmatmul.mubr.bf16.gmra.mxu0 %v4828
        %v4947 = vpop.f32.mrf.mxu0
        %v4948 = vadd.f32 0.0, %v4947
        %v4949 = vpop.f32.mrf.mxu0
        %v4950 = vpop.f32.mrf.mxu0
        %v4951 = vadd.f32 0.0, %v4950
        %v4952 = vpop.f32.mrf.mxu0
        %4953 = vmatprep.mubr.bf16.mxu0 0
        %4954 = vmatmul.mubr.bf16.gmra.mxu0 %v4831
        %v4955 = vpop.f32.mrf.mxu0
        %v4956 = vadd.f32 0.0, %v4955
        %v4957 = vpop.f32.mrf.mxu0
        %v4958 = vpop.f32.mrf.mxu0
        %v4959 = vadd.f32 0.0, %v4958
        %v4960 = vpop.f32.mrf.mxu0
        %4961 = vdwg.mxu0
        %v4962 = vadd.f32 %v4680, %v4868
        %v4963 = vadd.f32 %v4681, %v4871
        %v4964 = vadd.f32 %v4682, %v4876
        %v4965 = vadd.f32 %v4683, %v4879
        %v4966 = vadd.f32 %v4684, %v4884
        %v4967 = vadd.f32 %v4685, %v4887
        %v4968 = vadd.f32 %v4686, %v4892
        %v4969 = vadd.f32 %v4687, %v4895
        %v4970 = vadd.f32 %v4688, %v4900
        %v4971 = vadd.f32 %v4689, %v4903
        %v4972 = vadd.f32 %v4690, %v4908
        %v4973 = vadd.f32 %v4691, %v4911
        %v4974 = vadd.f32 %v4692, %v4916
        %v4975 = vadd.f32 %v4693, %v4919
        %v4976 = vadd.f32 %v4694, %v4924
        %v4977 = vadd.f32 %v4695, %v4927
        %v4978 = vadd.f32 %v4696, %v4932
        %v4979 = vadd.f32 %v4697, %v4935
        %v4980 = vadd.f32 %v4698, %v4940
        %v4981 = vadd.f32 %v4699, %v4943
        %v4982 = vadd.f32 %v4700, %v4948
        %v4983 = vadd.f32 %v4701, %v4951
        %v4984 = vadd.f32 %v4702, %v4956
        %v4985 = vadd.f32 %v4703, %v4959
        %v4986 = vrot.slane %v3867, 1
        %v4987 = vrot.slane %v3868, 1
        %v4988 = vrot.slane %v3869, 1
        %v4989 = vrot.slane %v3870, 1
        %v4990 = vrot.slane %v3871, 1
        %v4991 = vrot.slane %v3872, 1
        %v4992 = vrot.slane %v3873, 1
        %v4993 = vrot.slane %v3874, 1
        %v4994 = vrot.slane %v3875, 1
        %v4995 = vrot.slane %v3876, 1
        %v4996 = vrot.slane %v3877, 1
        %v4997 = vrot.slane %v3878, 1
        %v4998 = vrot.slane %v3879, 1
        %v4999 = vrot.slane %v3880, 1
        %v5000 = vrot.slane %v3881, 1
        %v5001 = vrot.slane %v3882, 1
        %v5002 = vrot.slane %v3883, 1
        %v5003 = vrot.slane %v3884, 1
        %v5004 = vrot.slane %v3885, 1
        %v5005 = vrot.slane %v3886, 1
        %v5006 = vrot.slane %v3887, 1
        %v5007 = vrot.slane %v3888, 1
        %v5008 = vrot.slane %v3889, 1
        %v5009 = vrot.slane %v3890, 1
        %v5010 = vsel %vm2298, %v5008, %v5009
        %v5011 = vsel %vm2298, %v5007, %v5008
        %v5012 = vsel %vm2298, %v5006, %v5007
        %v5013 = vsel %vm2298, %v5005, %v5006
        %v5014 = vsel %vm2298, %v5004, %v5005
        %v5015 = vsel %vm2298, %v5003, %v5004
        %v5016 = vsel %vm2298, %v5002, %v5003
        %v5017 = vsel %vm2298, %v5001, %v5002
        %v5018 = vsel %vm2298, %v5000, %v5001
        %v5019 = vsel %vm2298, %v4999, %v5000
        %v5020 = vsel %vm2298, %v4998, %v4999
        %v5021 = vsel %vm2298, %v4997, %v4998
        %v5022 = vsel %vm2298, %v4996, %v4997
        %v5023 = vsel %vm2298, %v4995, %v4996
        %v5024 = vsel %vm2298, %v4994, %v4995
        %v5025 = vsel %vm2298, %v4993, %v4994
        %v5026 = vsel %vm2298, %v4992, %v4993
        %v5027 = vsel %vm2298, %v4991, %v4992
        %v5028 = vsel %vm2298, %v4990, %v4991
        %v5029 = vsel %vm2298, %v4989, %v4990
        %v5030 = vsel %vm2298, %v4988, %v4989
        %v5031 = vsel %vm2298, %v4987, %v4988
        %v5032 = vsel %vm2298, %v4986, %v4987
        %v5033 = vsel %vm2298, %v5009, %v4986
        %v5034 = vpack.c.bf16 %v5031, %v5032
        %v5035 = vpack.c.bf16 %v5029, %v5030
        %v5036 = vpack.c.bf16 %v5027, %v5028
        %v5037 = vpack.c.bf16 %v5025, %v5026
        %v5038 = vpack.c.bf16 %v5023, %v5024
        %v5039 = vpack.c.bf16 %v5021, %v5022
        %v5040 = vpack.c.bf16 %v5019, %v5020
        %v5041 = vpack.c.bf16 %v5017, %v5018
        %v5042 = vpack.c.bf16 %v5015, %v5016
        %v5043 = vpack.c.bf16 %v5013, %v5014
        %v5044 = vpack.c.bf16 %v5011, %v5012
        %v5045 = vpack.c.bf16 %v5033, %v5010
        %s5046 = scalar_lea.vmem %s9, 96
        %v5047 = vld [vmem:[%s5046] sm:$0xf]
        %v5048 = vld [vmem:[%s5046 + $0x4] sm:$0xf]
        %v5049 = vld [vmem:[%s5046 + $0x8] sm:$0xf]
        %v5050 = vld [vmem:[%s5046 + $0xc] sm:$0xf]
        %v5051 = vld [vmem:[%s5046 + $0x10] sm:$0xf]
        %v5052 = vld [vmem:[%s5046 + $0x14] sm:$0xf]
        %v5053 = vld [vmem:[%s5046 + $0x18] sm:$0xf]
        %v5054 = vld [vmem:[%s5046 + $0x1c] sm:$0xf]
        %v5063 = vunpack.c.l.b16 %v5047
        %v5064 = vunpack.c.l.b16 %v5048
        %v5065 = vunpack.c.l.b16 %v5049
        %v5066 = vunpack.c.l.b16 %v5050
        %v5067 = vunpack.c.l.b16 %v5051
        %v5068 = vunpack.c.l.b16 %v5052
        %v5069 = vunpack.c.l.b16 %v5053
        %v5070 = vunpack.c.l.b16 %v5054
        %v5071 = vpack.c.b16 %v5064, %v5063
        %v5072 = vpack.c.b16 %v5066, %v5065
        %v5073 = vpack.c.b16 %v5068, %v5067
        %v5074 = vpack.c.b16 %v5070, %v5069
        %v5080 = vsel %vm1685, %v5034, 0
        %v5083 = vsel %vm1685, %v5035, 0
        %v5086 = vsel %vm1685, %v5036, 0
        %v5089 = vsel %vm1685, %v5037, 0
        %v5092 = vsel %vm1685, %v5038, 0
        %v5095 = vsel %vm1685, %v5039, 0
        %v5098 = vsel %vm1685, %v5040, 0
        %v5101 = vsel %vm1685, %v5041, 0
        %v5104 = vsel %vm1685, %v5042, 0
        %v5107 = vsel %vm1685, %v5043, 0
        %v5110 = vsel %vm1685, %v5044, 0
        %v5113 = vsel %vm1685, %v5045, 0
        %5115 = vmatprep.subr.bf16.mxu0 0
        %5116 = vmatpush1.bf16.msra.mxu0 0
        %5117 = vmatprep.subr.bf16.mxu0 0
        %5118 = vmatpush1.bf16.msra.mxu0 0
        %5119 = vmatprep.subr.bf16.mxu0 0
        %5120 = vmatpush1.bf16.msra.mxu0 0
        %5121 = vmatprep.subr.bf16.mxu0 0
        %5122 = vmatpush1.bf16.msra.mxu0 0
        %5123 = vmatprep.subr.bf16.mxu0 0
        %5124 = vmatpush1.bf16.msra.mxu0 %v5074
        %5125 = vmatprep.subr.bf16.mxu0 0
        %5126 = vmatpush1.bf16.msra.mxu0 %v5073
        %5127 = vmatprep.subr.bf16.mxu0 0
        %5128 = vmatpush1.bf16.msra.mxu0 %v5072
        %5129 = vmatprep.subr.bf16.mxu0 0
        %5130 = vmatpush1.bf16.msra.mxu0 %v5071
        %5131 = vmatprep.subr.bf16.mxu0 0
        %5132 = vmatpush2.bf16.msra.mxu0 0
        %5133 = vmatprep.subr.bf16.mxu0 0
        %5134 = vmatpush2.bf16.msra.mxu0 0
        %5135 = vmatprep.subr.bf16.mxu0 0
        %5136 = vmatpush2.bf16.msra.mxu0 0
        %5137 = vmatprep.subr.bf16.mxu0 0
        %5138 = vmatpush2.bf16.msra.mxu0 0
        %5139 = vmatprep.subr.bf16.mxu0 0
        %5140 = vmatpush2.bf16.msra.mxu0 0
        %5141 = vmatprep.subr.bf16.mxu0 0
        %5142 = vmatpush2.bf16.msra.mxu0 0
        %5143 = vmatprep.subr.bf16.mxu0 0
        %5144 = vmatpush2.bf16.msra.mxu0 0
        %5145 = vmatprep.subr.bf16.mxu0 0
        %5146 = vmatpush2.bf16.msra.mxu0 0
        %5147 = vmatprep.mubr.bf16.mxu0 0
        %5148 = vmatmul.mubr.bf16.gmra.mxu0 %v5080
        %v5149 = vpop.f32.mrf.mxu0
        %v5150 = vadd.f32 0.0, %v5149
        %v5151 = vpop.f32.mrf.mxu0
        %v5152 = vpop.f32.mrf.mxu0
        %v5153 = vadd.f32 0.0, %v5152
        %v5154 = vpop.f32.mrf.mxu0
        %5155 = vmatprep.mubr.bf16.mxu0 0
        %5156 = vmatmul.mubr.bf16.gmra.mxu0 %v5083
        %v5157 = vpop.f32.mrf.mxu0
        %v5158 = vadd.f32 0.0, %v5157
        %v5159 = vpop.f32.mrf.mxu0
        %v5160 = vpop.f32.mrf.mxu0
        %v5161 = vadd.f32 0.0, %v5160
        %v5162 = vpop.f32.mrf.mxu0
        %5163 = vmatprep.mubr.bf16.mxu0 0
        %5164 = vmatmul.mubr.bf16.gmra.mxu0 %v5086
        %v5165 = vpop.f32.mrf.mxu0
        %v5166 = vadd.f32 0.0, %v5165
        %v5167 = vpop.f32.mrf.mxu0
        %v5168 = vpop.f32.mrf.mxu0
        %v5169 = vadd.f32 0.0, %v5168
        %v5170 = vpop.f32.mrf.mxu0
        %5171 = vmatprep.mubr.bf16.mxu0 0
        %5172 = vmatmul.mubr.bf16.gmra.mxu0 %v5089
        %v5173 = vpop.f32.mrf.mxu0
        %v5174 = vadd.f32 0.0, %v5173
        %v5175 = vpop.f32.mrf.mxu0
        %v5176 = vpop.f32.mrf.mxu0
        %v5177 = vadd.f32 0.0, %v5176
        %v5178 = vpop.f32.mrf.mxu0
        %5179 = vmatprep.mubr.bf16.mxu0 0
        %5180 = vmatmul.mubr.bf16.gmra.mxu0 %v5092
        %v5181 = vpop.f32.mrf.mxu0
        %v5182 = vadd.f32 0.0, %v5181
        %v5183 = vpop.f32.mrf.mxu0
        %v5184 = vpop.f32.mrf.mxu0
        %v5185 = vadd.f32 0.0, %v5184
        %v5186 = vpop.f32.mrf.mxu0
        %5187 = vmatprep.mubr.bf16.mxu0 0
        %5188 = vmatmul.mubr.bf16.gmra.mxu0 %v5095
        %v5189 = vpop.f32.mrf.mxu0
        %v5190 = vadd.f32 0.0, %v5189
        %v5191 = vpop.f32.mrf.mxu0
        %v5192 = vpop.f32.mrf.mxu0
        %v5193 = vadd.f32 0.0, %v5192
        %v5194 = vpop.f32.mrf.mxu0
        %5195 = vmatprep.mubr.bf16.mxu0 0
        %5196 = vmatmul.mubr.bf16.gmra.mxu0 %v5098
        %v5197 = vpop.f32.mrf.mxu0
        %v5198 = vadd.f32 0.0, %v5197
        %v5199 = vpop.f32.mrf.mxu0
        %v5200 = vpop.f32.mrf.mxu0
        %v5201 = vadd.f32 0.0, %v5200
        %v5202 = vpop.f32.mrf.mxu0
        %5203 = vmatprep.mubr.bf16.mxu0 0
        %5204 = vmatmul.mubr.bf16.gmra.mxu0 %v5101
        %v5205 = vpop.f32.mrf.mxu0
        %v5206 = vadd.f32 0.0, %v5205
        %v5207 = vpop.f32.mrf.mxu0
        %v5208 = vpop.f32.mrf.mxu0
        %v5209 = vadd.f32 0.0, %v5208
        %v5210 = vpop.f32.mrf.mxu0
        %5211 = vmatprep.mubr.bf16.mxu0 0
        %5212 = vmatmul.mubr.bf16.gmra.mxu0 %v5104
        %v5213 = vpop.f32.mrf.mxu0
        %v5214 = vadd.f32 0.0, %v5213
        %v5215 = vpop.f32.mrf.mxu0
        %v5216 = vpop.f32.mrf.mxu0
        %v5217 = vadd.f32 0.0, %v5216
        %v5218 = vpop.f32.mrf.mxu0
        %5219 = vmatprep.mubr.bf16.mxu0 0
        %5220 = vmatmul.mubr.bf16.gmra.mxu0 %v5107
        %v5221 = vpop.f32.mrf.mxu0
        %v5222 = vadd.f32 0.0, %v5221
        %v5223 = vpop.f32.mrf.mxu0
        %v5224 = vpop.f32.mrf.mxu0
        %v5225 = vadd.f32 0.0, %v5224
        %v5226 = vpop.f32.mrf.mxu0
        %5227 = vmatprep.mubr.bf16.mxu0 0
        %5228 = vmatmul.mubr.bf16.gmra.mxu0 %v5110
        %v5229 = vpop.f32.mrf.mxu0
        %v5230 = vadd.f32 0.0, %v5229
        %v5231 = vpop.f32.mrf.mxu0
        %v5232 = vpop.f32.mrf.mxu0
        %v5233 = vadd.f32 0.0, %v5232
        %v5234 = vpop.f32.mrf.mxu0
        %5235 = vmatprep.mubr.bf16.mxu0 0
        %5236 = vmatmul.mubr.bf16.gmra.mxu0 %v5113
        %v5237 = vpop.f32.mrf.mxu0
        %v5238 = vadd.f32 0.0, %v5237
        %v5239 = vpop.f32.mrf.mxu0
        %v5240 = vpop.f32.mrf.mxu0
        %v5241 = vadd.f32 0.0, %v5240
        %v5242 = vpop.f32.mrf.mxu0
        %5243 = vdwg.mxu0
        %v5244 = vadd.f32 %v4962, %v5150
        %v5245 = vadd.f32 %v4963, %v5153
        %v5246 = vadd.f32 %v4964, %v5158
        %v5247 = vadd.f32 %v4965, %v5161
        %v5248 = vadd.f32 %v4966, %v5166
        %v5249 = vadd.f32 %v4967, %v5169
        %v5250 = vadd.f32 %v4968, %v5174
        %v5251 = vadd.f32 %v4969, %v5177
        %v5252 = vadd.f32 %v4970, %v5182
        %v5253 = vadd.f32 %v4971, %v5185
        %v5254 = vadd.f32 %v4972, %v5190
        %v5255 = vadd.f32 %v4973, %v5193
        %v5256 = vadd.f32 %v4974, %v5198
        %v5257 = vadd.f32 %v4975, %v5201
        %v5258 = vadd.f32 %v4976, %v5206
        %v5259 = vadd.f32 %v4977, %v5209
        %v5260 = vadd.f32 %v4978, %v5214
        %v5261 = vadd.f32 %v4979, %v5217
        %v5262 = vadd.f32 %v4980, %v5222
        %v5263 = vadd.f32 %v4981, %v5225
        %v5264 = vadd.f32 %v4982, %v5230
        %v5265 = vadd.f32 %v4983, %v5233
        %v5266 = vadd.f32 %v4984, %v5238
        %v5267 = vadd.f32 %v4985, %v5241
        %v5268 = vrot.slane %v3867, 2
        %v5269 = vrot.slane %v3868, 2
        %v5270 = vrot.slane %v3869, 2
        %v5271 = vrot.slane %v3870, 2
        %v5272 = vrot.slane %v3871, 2
        %v5273 = vrot.slane %v3872, 2
        %v5274 = vrot.slane %v3873, 2
        %v5275 = vrot.slane %v3874, 2
        %v5276 = vrot.slane %v3875, 2
        %v5277 = vrot.slane %v3876, 2
        %v5278 = vrot.slane %v3877, 2
        %v5279 = vrot.slane %v3878, 2
        %v5280 = vrot.slane %v3879, 2
        %v5281 = vrot.slane %v3880, 2
        %v5282 = vrot.slane %v3881, 2
        %v5283 = vrot.slane %v3882, 2
        %v5284 = vrot.slane %v3883, 2
        %v5285 = vrot.slane %v3884, 2
        %v5286 = vrot.slane %v3885, 2
        %v5287 = vrot.slane %v3886, 2
        %v5288 = vrot.slane %v3887, 2
        %v5289 = vrot.slane %v3888, 2
        %v5290 = vrot.slane %v3889, 2
        %v5291 = vrot.slane %v3890, 2
        %v5292 = vsel %vm2581, %v5290, %v5291
        %v5293 = vsel %vm2581, %v5289, %v5290
        %v5294 = vsel %vm2581, %v5288, %v5289
        %v5295 = vsel %vm2581, %v5287, %v5288
        %v5296 = vsel %vm2581, %v5286, %v5287
        %v5297 = vsel %vm2581, %v5285, %v5286
        %v5298 = vsel %vm2581, %v5284, %v5285
        %v5299 = vsel %vm2581, %v5283, %v5284
        %v5300 = vsel %vm2581, %v5282, %v5283
        %v5301 = vsel %vm2581, %v5281, %v5282
        %v5302 = vsel %vm2581, %v5280, %v5281
        %v5303 = vsel %vm2581, %v5279, %v5280
        %v5304 = vsel %vm2581, %v5278, %v5279
        %v5305 = vsel %vm2581, %v5277, %v5278
        %v5306 = vsel %vm2581, %v5276, %v5277
        %v5307 = vsel %vm2581, %v5275, %v5276
        %v5308 = vsel %vm2581, %v5274, %v5275
        %v5309 = vsel %vm2581, %v5273, %v5274
        %v5310 = vsel %vm2581, %v5272, %v5273
        %v5311 = vsel %vm2581, %v5271, %v5272
        %v5312 = vsel %vm2581, %v5270, %v5271
        %v5313 = vsel %vm2581, %v5269, %v5270
        %v5314 = vsel %vm2581, %v5268, %v5269
        %v5315 = vsel %vm2581, %v5291, %v5268
        %v5316 = vpack.c.bf16 %v5313, %v5314
        %v5317 = vpack.c.bf16 %v5311, %v5312
        %v5318 = vpack.c.bf16 %v5309, %v5310
        %v5319 = vpack.c.bf16 %v5307, %v5308
        %v5320 = vpack.c.bf16 %v5305, %v5306
        %v5321 = vpack.c.bf16 %v5303, %v5304
        %v5322 = vpack.c.bf16 %v5301, %v5302
        %v5323 = vpack.c.bf16 %v5299, %v5300
        %v5324 = vpack.c.bf16 %v5297, %v5298
        %v5325 = vpack.c.bf16 %v5295, %v5296
        %v5326 = vpack.c.bf16 %v5293, %v5294
        %v5327 = vpack.c.bf16 %v5315, %v5292
        %s5328 = scalar_lea.vmem %s9, 128
        %v5329 = vld [vmem:[%s5328] sm:$0xf]
        %v5330 = vld [vmem:[%s5328 + $0x4] sm:$0xf]
        %v5331 = vld [vmem:[%s5328 + $0x8] sm:$0xf]
        %v5332 = vld [vmem:[%s5328 + $0xc] sm:$0xf]
        %v5333 = vld [vmem:[%s5328 + $0x10] sm:$0xf]
        %v5334 = vld [vmem:[%s5328 + $0x14] sm:$0xf]
        %v5335 = vld [vmem:[%s5328 + $0x18] sm:$0xf]
        %v5336 = vld [vmem:[%s5328 + $0x1c] sm:$0xf]
        %v5345 = vunpack.c.l.b16 %v5329
        %v5346 = vunpack.c.l.b16 %v5330
        %v5347 = vunpack.c.l.b16 %v5331
        %v5348 = vunpack.c.l.b16 %v5332
        %v5349 = vunpack.c.l.b16 %v5333
        %v5350 = vunpack.c.l.b16 %v5334
        %v5351 = vunpack.c.l.b16 %v5335
        %v5352 = vunpack.c.l.b16 %v5336
        %v5353 = vpack.c.b16 %v5346, %v5345
        %v5354 = vpack.c.b16 %v5348, %v5347
        %v5355 = vpack.c.b16 %v5350, %v5349
        %v5356 = vpack.c.b16 %v5352, %v5351
        %v5362 = vsel %vm1685, %v5316, 0
        %v5365 = vsel %vm1685, %v5317, 0
        %v5368 = vsel %vm1685, %v5318, 0
        %v5371 = vsel %vm1685, %v5319, 0
        %v5374 = vsel %vm1685, %v5320, 0
        %v5377 = vsel %vm1685, %v5321, 0
        %v5380 = vsel %vm1685, %v5322, 0
        %v5383 = vsel %vm1685, %v5323, 0
        %v5386 = vsel %vm1685, %v5324, 0
        %v5389 = vsel %vm1685, %v5325, 0
        %v5392 = vsel %vm1685, %v5326, 0
        %v5395 = vsel %vm1685, %v5327, 0
        %5397 = vmatprep.subr.bf16.mxu0 0
        %5398 = vmatpush1.bf16.msra.mxu0 0
        %5399 = vmatprep.subr.bf16.mxu0 0
        %5400 = vmatpush1.bf16.msra.mxu0 0
        %5401 = vmatprep.subr.bf16.mxu0 0
        %5402 = vmatpush1.bf16.msra.mxu0 0
        %5403 = vmatprep.subr.bf16.mxu0 0
        %5404 = vmatpush1.bf16.msra.mxu0 0
        %5405 = vmatprep.subr.bf16.mxu0 0
        %5406 = vmatpush1.bf16.msra.mxu0 %v5356
        %5407 = vmatprep.subr.bf16.mxu0 0
        %5408 = vmatpush1.bf16.msra.mxu0 %v5355
        %5409 = vmatprep.subr.bf16.mxu0 0
        %5410 = vmatpush1.bf16.msra.mxu0 %v5354
        %5411 = vmatprep.subr.bf16.mxu0 0
        %5412 = vmatpush1.bf16.msra.mxu0 %v5353
        %5413 = vmatprep.subr.bf16.mxu0 0
        %5414 = vmatpush2.bf16.msra.mxu0 0
        %5415 = vmatprep.subr.bf16.mxu0 0
        %5416 = vmatpush2.bf16.msra.mxu0 0
        %5417 = vmatprep.subr.bf16.mxu0 0
        %5418 = vmatpush2.bf16.msra.mxu0 0
        %5419 = vmatprep.subr.bf16.mxu0 0
        %5420 = vmatpush2.bf16.msra.mxu0 0
        %5421 = vmatprep.subr.bf16.mxu0 0
        %5422 = vmatpush2.bf16.msra.mxu0 0
        %5423 = vmatprep.subr.bf16.mxu0 0
        %5424 = vmatpush2.bf16.msra.mxu0 0
        %5425 = vmatprep.subr.bf16.mxu0 0
        %5426 = vmatpush2.bf16.msra.mxu0 0
        %5427 = vmatprep.subr.bf16.mxu0 0
        %5428 = vmatpush2.bf16.msra.mxu0 0
        %5429 = vmatprep.mubr.bf16.mxu0 0
        %5430 = vmatmul.mubr.bf16.gmra.mxu0 %v5362
        %v5431 = vpop.f32.mrf.mxu0
        %v5432 = vadd.f32 0.0, %v5431
        %v5433 = vpop.f32.mrf.mxu0
        %v5434 = vpop.f32.mrf.mxu0
        %v5435 = vadd.f32 0.0, %v5434
        %v5436 = vpop.f32.mrf.mxu0
        %5437 = vmatprep.mubr.bf16.mxu0 0
        %5438 = vmatmul.mubr.bf16.gmra.mxu0 %v5365
        %v5439 = vpop.f32.mrf.mxu0
        %v5440 = vadd.f32 0.0, %v5439
        %v5441 = vpop.f32.mrf.mxu0
        %v5442 = vpop.f32.mrf.mxu0
        %v5443 = vadd.f32 0.0, %v5442
        %v5444 = vpop.f32.mrf.mxu0
        %5445 = vmatprep.mubr.bf16.mxu0 0
        %5446 = vmatmul.mubr.bf16.gmra.mxu0 %v5368
        %v5447 = vpop.f32.mrf.mxu0
        %v5448 = vadd.f32 0.0, %v5447
        %v5449 = vpop.f32.mrf.mxu0
        %v5450 = vpop.f32.mrf.mxu0
        %v5451 = vadd.f32 0.0, %v5450
        %v5452 = vpop.f32.mrf.mxu0
        %5453 = vmatprep.mubr.bf16.mxu0 0
        %5454 = vmatmul.mubr.bf16.gmra.mxu0 %v5371
        %v5455 = vpop.f32.mrf.mxu0
        %v5456 = vadd.f32 0.0, %v5455
        %v5457 = vpop.f32.mrf.mxu0
        %v5458 = vpop.f32.mrf.mxu0
        %v5459 = vadd.f32 0.0, %v5458
        %v5460 = vpop.f32.mrf.mxu0
        %5461 = vmatprep.mubr.bf16.mxu0 0
        %5462 = vmatmul.mubr.bf16.gmra.mxu0 %v5374
        %v5463 = vpop.f32.mrf.mxu0
        %v5464 = vadd.f32 0.0, %v5463
        %v5465 = vpop.f32.mrf.mxu0
        %v5466 = vpop.f32.mrf.mxu0
        %v5467 = vadd.f32 0.0, %v5466
        %v5468 = vpop.f32.mrf.mxu0
        %5469 = vmatprep.mubr.bf16.mxu0 0
        %5470 = vmatmul.mubr.bf16.gmra.mxu0 %v5377
        %v5471 = vpop.f32.mrf.mxu0
        %v5472 = vadd.f32 0.0, %v5471
        %v5473 = vpop.f32.mrf.mxu0
        %v5474 = vpop.f32.mrf.mxu0
        %v5475 = vadd.f32 0.0, %v5474
        %v5476 = vpop.f32.mrf.mxu0
        %5477 = vmatprep.mubr.bf16.mxu0 0
        %5478 = vmatmul.mubr.bf16.gmra.mxu0 %v5380
        %v5479 = vpop.f32.mrf.mxu0
        %v5480 = vadd.f32 0.0, %v5479
        %v5481 = vpop.f32.mrf.mxu0
        %v5482 = vpop.f32.mrf.mxu0
        %v5483 = vadd.f32 0.0, %v5482
        %v5484 = vpop.f32.mrf.mxu0
        %5485 = vmatprep.mubr.bf16.mxu0 0
        %5486 = vmatmul.mubr.bf16.gmra.mxu0 %v5383
        %v5487 = vpop.f32.mrf.mxu0
        %v5488 = vadd.f32 0.0, %v5487
        %v5489 = vpop.f32.mrf.mxu0
        %v5490 = vpop.f32.mrf.mxu0
        %v5491 = vadd.f32 0.0, %v5490
        %v5492 = vpop.f32.mrf.mxu0
        %5493 = vmatprep.mubr.bf16.mxu0 0
        %5494 = vmatmul.mubr.bf16.gmra.mxu0 %v5386
        %v5495 = vpop.f32.mrf.mxu0
        %v5496 = vadd.f32 0.0, %v5495
        %v5497 = vpop.f32.mrf.mxu0
        %v5498 = vpop.f32.mrf.mxu0
        %v5499 = vadd.f32 0.0, %v5498
        %v5500 = vpop.f32.mrf.mxu0
        %5501 = vmatprep.mubr.bf16.mxu0 0
        %5502 = vmatmul.mubr.bf16.gmra.mxu0 %v5389
        %v5503 = vpop.f32.mrf.mxu0
        %v5504 = vadd.f32 0.0, %v5503
        %v5505 = vpop.f32.mrf.mxu0
        %v5506 = vpop.f32.mrf.mxu0
        %v5507 = vadd.f32 0.0, %v5506
        %v5508 = vpop.f32.mrf.mxu0
        %5509 = vmatprep.mubr.bf16.mxu0 0
        %5510 = vmatmul.mubr.bf16.gmra.mxu0 %v5392
        %v5511 = vpop.f32.mrf.mxu0
        %v5512 = vadd.f32 0.0, %v5511
        %v5513 = vpop.f32.mrf.mxu0
        %v5514 = vpop.f32.mrf.mxu0
        %v5515 = vadd.f32 0.0, %v5514
        %v5516 = vpop.f32.mrf.mxu0
        %5517 = vmatprep.mubr.bf16.mxu0 0
        %5518 = vmatmul.mubr.bf16.gmra.mxu0 %v5395
        %v5519 = vpop.f32.mrf.mxu0
        %v5520 = vadd.f32 0.0, %v5519
        %v5521 = vpop.f32.mrf.mxu0
        %v5522 = vpop.f32.mrf.mxu0
        %v5523 = vadd.f32 0.0, %v5522
        %v5524 = vpop.f32.mrf.mxu0
        %5525 = vdwg.mxu0
        %v5526 = vadd.f32 %v5244, %v5432
        %v5527 = vadd.f32 %v5245, %v5435
        %v5528 = vadd.f32 %v5246, %v5440
        %v5529 = vadd.f32 %v5247, %v5443
        %v5530 = vadd.f32 %v5248, %v5448
        %v5531 = vadd.f32 %v5249, %v5451
        %v5532 = vadd.f32 %v5250, %v5456
        %v5533 = vadd.f32 %v5251, %v5459
        %v5534 = vadd.f32 %v5252, %v5464
        %v5535 = vadd.f32 %v5253, %v5467
        %v5536 = vadd.f32 %v5254, %v5472
        %v5537 = vadd.f32 %v5255, %v5475
        %v5538 = vadd.f32 %v5256, %v5480
        %v5539 = vadd.f32 %v5257, %v5483
        %v5540 = vadd.f32 %v5258, %v5488
        %v5541 = vadd.f32 %v5259, %v5491
        %v5542 = vadd.f32 %v5260, %v5496
        %v5543 = vadd.f32 %v5261, %v5499
        %v5544 = vadd.f32 %v5262, %v5504
        %v5545 = vadd.f32 %v5263, %v5507
        %v5546 = vadd.f32 %v5264, %v5512
        %v5547 = vadd.f32 %v5265, %v5515
        %v5548 = vadd.f32 %v5266, %v5520
        %v5549 = vadd.f32 %v5267, %v5523
        %v5550 = vrot.slane %v3867, 3
        %v5551 = vrot.slane %v3868, 3
        %v5552 = vrot.slane %v3869, 3
        %v5553 = vrot.slane %v3870, 3
        %v5554 = vrot.slane %v3871, 3
        %v5555 = vrot.slane %v3872, 3
        %v5556 = vrot.slane %v3873, 3
        %v5557 = vrot.slane %v3874, 3
        %v5558 = vrot.slane %v3875, 3
        %v5559 = vrot.slane %v3876, 3
        %v5560 = vrot.slane %v3877, 3
        %v5561 = vrot.slane %v3878, 3
        %v5562 = vrot.slane %v3879, 3
        %v5563 = vrot.slane %v3880, 3
        %v5564 = vrot.slane %v3881, 3
        %v5565 = vrot.slane %v3882, 3
        %v5566 = vrot.slane %v3883, 3
        %v5567 = vrot.slane %v3884, 3
        %v5568 = vrot.slane %v3885, 3
        %v5569 = vrot.slane %v3886, 3
        %v5570 = vrot.slane %v3887, 3
        %v5571 = vrot.slane %v3888, 3
        %v5572 = vrot.slane %v3889, 3
        %v5573 = vrot.slane %v3890, 3
        %vm5574 = vcmp.lt.s32.totalorder %v1035, 5
        %v5575 = vsel %vm5574, %v5572, %v5573
        %v5576 = vsel %vm5574, %v5571, %v5572
        %v5577 = vsel %vm5574, %v5570, %v5571
        %v5578 = vsel %vm5574, %v5569, %v5570
        %v5579 = vsel %vm5574, %v5568, %v5569
        %v5580 = vsel %vm5574, %v5567, %v5568
        %v5581 = vsel %vm5574, %v5566, %v5567
        %v5582 = vsel %vm5574, %v5565, %v5566
        %v5583 = vsel %vm5574, %v5564, %v5565
        %v5584 = vsel %vm5574, %v5563, %v5564
        %v5585 = vsel %vm5574, %v5562, %v5563
        %v5586 = vsel %vm5574, %v5561, %v5562
        %v5587 = vsel %vm5574, %v5560, %v5561
        %v5588 = vsel %vm5574, %v5559, %v5560
        %v5589 = vsel %vm5574, %v5558, %v5559
        %v5590 = vsel %vm5574, %v5557, %v5558
        %v5591 = vsel %vm5574, %v5556, %v5557
        %v5592 = vsel %vm5574, %v5555, %v5556
        %v5593 = vsel %vm5574, %v5554, %v5555
        %v5594 = vsel %vm5574, %v5553, %v5554
        %v5595 = vsel %vm5574, %v5552, %v5553
        %v5596 = vsel %vm5574, %v5551, %v5552
        %v5597 = vsel %vm5574, %v5550, %v5551
        %v5598 = vsel %vm5574, %v5573, %v5550
        %v5599 = vpack.c.bf16 %v5596, %v5597
        %v5600 = vpack.c.bf16 %v5594, %v5595
        %v5601 = vpack.c.bf16 %v5592, %v5593
        %v5602 = vpack.c.bf16 %v5590, %v5591
        %v5603 = vpack.c.bf16 %v5588, %v5589
        %v5604 = vpack.c.bf16 %v5586, %v5587
        %v5605 = vpack.c.bf16 %v5584, %v5585
        %v5606 = vpack.c.bf16 %v5582, %v5583
        %v5607 = vpack.c.bf16 %v5580, %v5581
        %v5608 = vpack.c.bf16 %v5578, %v5579
        %v5609 = vpack.c.bf16 %v5576, %v5577
        %v5610 = vpack.c.bf16 %v5598, %v5575
        %s5611 = scalar_lea.vmem %s9, 160
        %v5612 = vld [vmem:[%s5611] sm:$0xf]
        %v5613 = vld [vmem:[%s5611 + $0x4] sm:$0xf]
        %v5614 = vld [vmem:[%s5611 + $0x8] sm:$0xf]
        %v5615 = vld [vmem:[%s5611 + $0xc] sm:$0xf]
        %v5616 = vld [vmem:[%s5611 + $0x10] sm:$0xf]
        %v5617 = vld [vmem:[%s5611 + $0x14] sm:$0xf]
        %v5618 = vld [vmem:[%s5611 + $0x18] sm:$0xf]
        %v5619 = vld [vmem:[%s5611 + $0x1c] sm:$0xf]
        %v5628 = vunpack.c.l.b16 %v5612
        %v5629 = vunpack.c.l.b16 %v5613
        %v5630 = vunpack.c.l.b16 %v5614
        %v5631 = vunpack.c.l.b16 %v5615
        %v5632 = vunpack.c.l.b16 %v5616
        %v5633 = vunpack.c.l.b16 %v5617
        %v5634 = vunpack.c.l.b16 %v5618
        %v5635 = vunpack.c.l.b16 %v5619
        %v5636 = vpack.c.b16 %v5629, %v5628
        %v5637 = vpack.c.b16 %v5631, %v5630
        %v5638 = vpack.c.b16 %v5633, %v5632
        %v5639 = vpack.c.b16 %v5635, %v5634
        %v5645 = vsel %vm1685, %v5599, 0
        %v5648 = vsel %vm1685, %v5600, 0
        %v5651 = vsel %vm1685, %v5601, 0
        %v5654 = vsel %vm1685, %v5602, 0
        %v5657 = vsel %vm1685, %v5603, 0
        %v5660 = vsel %vm1685, %v5604, 0
        %v5663 = vsel %vm1685, %v5605, 0
        %v5666 = vsel %vm1685, %v5606, 0
        %v5669 = vsel %vm1685, %v5607, 0
        %v5672 = vsel %vm1685, %v5608, 0
        %v5675 = vsel %vm1685, %v5609, 0
        %v5678 = vsel %vm1685, %v5610, 0
        %5680 = vmatprep.subr.bf16.mxu0 0
        %5681 = vmatpush1.bf16.msra.mxu0 0
        %5682 = vmatprep.subr.bf16.mxu0 0
        %5683 = vmatpush1.bf16.msra.mxu0 0
        %5684 = vmatprep.subr.bf16.mxu0 0
        %5685 = vmatpush1.bf16.msra.mxu0 0
        %5686 = vmatprep.subr.bf16.mxu0 0
        %5687 = vmatpush1.bf16.msra.mxu0 0
        %5688 = vmatprep.subr.bf16.mxu0 0
        %5689 = vmatpush1.bf16.msra.mxu0 %v5639
        %5690 = vmatprep.subr.bf16.mxu0 0
        %5691 = vmatpush1.bf16.msra.mxu0 %v5638
        %5692 = vmatprep.subr.bf16.mxu0 0
        %5693 = vmatpush1.bf16.msra.mxu0 %v5637
        %5694 = vmatprep.subr.bf16.mxu0 0
        %5695 = vmatpush1.bf16.msra.mxu0 %v5636
        %5696 = vmatprep.subr.bf16.mxu0 0
        %5697 = vmatpush2.bf16.msra.mxu0 0
        %5698 = vmatprep.subr.bf16.mxu0 0
        %5699 = vmatpush2.bf16.msra.mxu0 0
        %5700 = vmatprep.subr.bf16.mxu0 0
        %5701 = vmatpush2.bf16.msra.mxu0 0
        %5702 = vmatprep.subr.bf16.mxu0 0
        %5703 = vmatpush2.bf16.msra.mxu0 0
        %5704 = vmatprep.subr.bf16.mxu0 0
        %5705 = vmatpush2.bf16.msra.mxu0 0
        %5706 = vmatprep.subr.bf16.mxu0 0
        %5707 = vmatpush2.bf16.msra.mxu0 0
        %5708 = vmatprep.subr.bf16.mxu0 0
        %5709 = vmatpush2.bf16.msra.mxu0 0
        %5710 = vmatprep.subr.bf16.mxu0 0
        %5711 = vmatpush2.bf16.msra.mxu0 0
        %5712 = vmatprep.mubr.bf16.mxu0 0
        %5713 = vmatmul.mubr.bf16.gmra.mxu0 %v5645
        %v5714 = vpop.f32.mrf.mxu0
        %v5715 = vadd.f32 0.0, %v5714
        %v5716 = vpop.f32.mrf.mxu0
        %v5717 = vpop.f32.mrf.mxu0
        %v5718 = vadd.f32 0.0, %v5717
        %v5719 = vpop.f32.mrf.mxu0
        %5720 = vmatprep.mubr.bf16.mxu0 0
        %5721 = vmatmul.mubr.bf16.gmra.mxu0 %v5648
        %v5722 = vpop.f32.mrf.mxu0
        %v5723 = vadd.f32 0.0, %v5722
        %v5724 = vpop.f32.mrf.mxu0
        %v5725 = vpop.f32.mrf.mxu0
        %v5726 = vadd.f32 0.0, %v5725
        %v5727 = vpop.f32.mrf.mxu0
        %5728 = vmatprep.mubr.bf16.mxu0 0
        %5729 = vmatmul.mubr.bf16.gmra.mxu0 %v5651
        %v5730 = vpop.f32.mrf.mxu0
        %v5731 = vadd.f32 0.0, %v5730
        %v5732 = vpop.f32.mrf.mxu0
        %v5733 = vpop.f32.mrf.mxu0
        %v5734 = vadd.f32 0.0, %v5733
        %v5735 = vpop.f32.mrf.mxu0
        %5736 = vmatprep.mubr.bf16.mxu0 0
        %5737 = vmatmul.mubr.bf16.gmra.mxu0 %v5654
        %v5738 = vpop.f32.mrf.mxu0
        %v5739 = vadd.f32 0.0, %v5738
        %v5740 = vpop.f32.mrf.mxu0
        %v5741 = vpop.f32.mrf.mxu0
        %v5742 = vadd.f32 0.0, %v5741
        %v5743 = vpop.f32.mrf.mxu0
        %5744 = vmatprep.mubr.bf16.mxu0 0
        %5745 = vmatmul.mubr.bf16.gmra.mxu0 %v5657
        %v5746 = vpop.f32.mrf.mxu0
        %v5747 = vadd.f32 0.0, %v5746
        %v5748 = vpop.f32.mrf.mxu0
        %v5749 = vpop.f32.mrf.mxu0
        %v5750 = vadd.f32 0.0, %v5749
        %v5751 = vpop.f32.mrf.mxu0
        %5752 = vmatprep.mubr.bf16.mxu0 0
        %5753 = vmatmul.mubr.bf16.gmra.mxu0 %v5660
        %v5754 = vpop.f32.mrf.mxu0
        %v5755 = vadd.f32 0.0, %v5754
        %v5756 = vpop.f32.mrf.mxu0
        %v5757 = vpop.f32.mrf.mxu0
        %v5758 = vadd.f32 0.0, %v5757
        %v5759 = vpop.f32.mrf.mxu0
        %5760 = vmatprep.mubr.bf16.mxu0 0
        %5761 = vmatmul.mubr.bf16.gmra.mxu0 %v5663
        %v5762 = vpop.f32.mrf.mxu0
        %v5763 = vadd.f32 0.0, %v5762
        %v5764 = vpop.f32.mrf.mxu0
        %v5765 = vpop.f32.mrf.mxu0
        %v5766 = vadd.f32 0.0, %v5765
        %v5767 = vpop.f32.mrf.mxu0
        %5768 = vmatprep.mubr.bf16.mxu0 0
        %5769 = vmatmul.mubr.bf16.gmra.mxu0 %v5666
        %v5770 = vpop.f32.mrf.mxu0
        %v5771 = vadd.f32 0.0, %v5770
        %v5772 = vpop.f32.mrf.mxu0
        %v5773 = vpop.f32.mrf.mxu0
        %v5774 = vadd.f32 0.0, %v5773
        %v5775 = vpop.f32.mrf.mxu0
        %5776 = vmatprep.mubr.bf16.mxu0 0
        %5777 = vmatmul.mubr.bf16.gmra.mxu0 %v5669
        %v5778 = vpop.f32.mrf.mxu0
        %v5779 = vadd.f32 0.0, %v5778
        %v5780 = vpop.f32.mrf.mxu0
        %v5781 = vpop.f32.mrf.mxu0
        %v5782 = vadd.f32 0.0, %v5781
        %v5783 = vpop.f32.mrf.mxu0
        %5784 = vmatprep.mubr.bf16.mxu0 0
        %5785 = vmatmul.mubr.bf16.gmra.mxu0 %v5672
        %v5786 = vpop.f32.mrf.mxu0
        %v5787 = vadd.f32 0.0, %v5786
        %v5788 = vpop.f32.mrf.mxu0
        %v5789 = vpop.f32.mrf.mxu0
        %v5790 = vadd.f32 0.0, %v5789
        %v5791 = vpop.f32.mrf.mxu0
        %5792 = vmatprep.mubr.bf16.mxu0 0
        %5793 = vmatmul.mubr.bf16.gmra.mxu0 %v5675
        %v5794 = vpop.f32.mrf.mxu0
        %v5795 = vadd.f32 0.0, %v5794
        %v5796 = vpop.f32.mrf.mxu0
        %v5797 = vpop.f32.mrf.mxu0
        %v5798 = vadd.f32 0.0, %v5797
        %v5799 = vpop.f32.mrf.mxu0
        %5800 = vmatprep.mubr.bf16.mxu0 0
        %5801 = vmatmul.mubr.bf16.gmra.mxu0 %v5678
        %v5802 = vpop.f32.mrf.mxu0
        %v5803 = vadd.f32 0.0, %v5802
        %v5804 = vpop.f32.mrf.mxu0
        %v5805 = vpop.f32.mrf.mxu0
        %v5806 = vadd.f32 0.0, %v5805
        %v5807 = vpop.f32.mrf.mxu0
        %5808 = vdwg.mxu0
        %v5809 = vadd.f32 %v5526, %v5715
        %v5810 = vadd.f32 %v5527, %v5718
        %v5811 = vadd.f32 %v5528, %v5723
        %v5812 = vadd.f32 %v5529, %v5726
        %v5813 = vadd.f32 %v5530, %v5731
        %v5814 = vadd.f32 %v5531, %v5734
        %v5815 = vadd.f32 %v5532, %v5739
        %v5816 = vadd.f32 %v5533, %v5742
        %v5817 = vadd.f32 %v5534, %v5747
        %v5818 = vadd.f32 %v5535, %v5750
        %v5819 = vadd.f32 %v5536, %v5755
        %v5820 = vadd.f32 %v5537, %v5758
        %v5821 = vadd.f32 %v5538, %v5763
        %v5822 = vadd.f32 %v5539, %v5766
        %v5823 = vadd.f32 %v5540, %v5771
        %v5824 = vadd.f32 %v5541, %v5774
        %v5825 = vadd.f32 %v5542, %v5779
        %v5826 = vadd.f32 %v5543, %v5782
        %v5827 = vadd.f32 %v5544, %v5787
        %v5828 = vadd.f32 %v5545, %v5790
        %v5829 = vadd.f32 %v5546, %v5795
        %v5830 = vadd.f32 %v5547, %v5798
        %v5831 = vadd.f32 %v5548, %v5803
        %v5832 = vadd.f32 %v5549, %v5806
        %v5833 = vld [vmem:[#allocation13] sm:$0x1]
        %v5835 = vlaneseq
        %v5836 = vshrl.u32 %v5835, 7
        %v5837 = vsub.s32 0, %v5836
        %v5838 = vrot.slane %v5833, %v5837
        %v5840 = vadd.f32 %v5809, %v5838
        %v5841 = vadd.f32 %v5810, %v5838
        %v5842 = vadd.f32 %v5811, %v5838
        %v5843 = vadd.f32 %v5812, %v5838
        %v5844 = vadd.f32 %v5813, %v5838
        %v5845 = vadd.f32 %v5814, %v5838
        %v5846 = vadd.f32 %v5815, %v5838
        %v5847 = vadd.f32 %v5816, %v5838
        %v5848 = vadd.f32 %v5817, %v5838
        %v5849 = vadd.f32 %v5818, %v5838
        %v5850 = vadd.f32 %v5819, %v5838
        %v5851 = vadd.f32 %v5820, %v5838
        %v5852 = vadd.f32 %v5821, %v5838
        %v5853 = vadd.f32 %v5822, %v5838
        %v5854 = vadd.f32 %v5823, %v5838
        %v5855 = vadd.f32 %v5824, %v5838
        %v5856 = vadd.f32 %v5825, %v5838
        %v5857 = vadd.f32 %v5826, %v5838
        %v5858 = vadd.f32 %v5827, %v5838
        %v5859 = vadd.f32 %v5828, %v5838
        %v5860 = vadd.f32 %v5829, %v5838
        %v5861 = vadd.f32 %v5830, %v5838
        %v5862 = vadd.f32 %v5831, %v5838
        %v5863 = vadd.f32 %v5832, %v5838
        %v5864 = vmax.f32 %v5840, 0.0
        %v5865 = vmax.f32 %v5841, 0.0
        %v5866 = vmax.f32 %v5842, 0.0
        %v5867 = vmax.f32 %v5843, 0.0
        %v5868 = vmax.f32 %v5844, 0.0
        %v5869 = vmax.f32 %v5845, 0.0
        %v5870 = vmax.f32 %v5846, 0.0
        %v5871 = vmax.f32 %v5847, 0.0
        %v5872 = vmax.f32 %v5848, 0.0
        %v5873 = vmax.f32 %v5849, 0.0
        %v5874 = vmax.f32 %v5850, 0.0
        %v5875 = vmax.f32 %v5851, 0.0
        %v5876 = vmax.f32 %v5852, 0.0
        %v5877 = vmax.f32 %v5853, 0.0
        %v5878 = vmax.f32 %v5854, 0.0
        %v5879 = vmax.f32 %v5855, 0.0
        %v5880 = vmax.f32 %v5856, 0.0
        %v5881 = vmax.f32 %v5857, 0.0
        %v5882 = vmax.f32 %v5858, 0.0
        %v5883 = vmax.f32 %v5859, 0.0
        %v5884 = vmax.f32 %v5860, 0.0
        %v5885 = vmax.f32 %v5861, 0.0
        %v5886 = vmax.f32 %v5862, 0.0
        %v5887 = vmax.f32 %v5863, 0.0
        %v5888 = vmul.f32 %v5864, %v1107
        %v5889 = vmul.f32 %v5865, %v1108
        %v5890 = vmul.f32 %v5866, %v1109
        %v5891 = vmul.f32 %v5867, %v1110
        %v5892 = vmul.f32 %v5868, %v1111
        %v5893 = vmul.f32 %v5869, %v1112
        %v5894 = vmul.f32 %v5870, %v1113
        %v5895 = vmul.f32 %v5871, %v1114
        %v5896 = vmul.f32 %v5872, %v1115
        %v5897 = vmul.f32 %v5873, %v1116
        %v5898 = vmul.f32 %v5874, %v1117
        %v5899 = vmul.f32 %v5875, %v1118
        %v5900 = vmul.f32 %v5876, %v1119
        %v5901 = vmul.f32 %v5877, %v1120
        %v5902 = vmul.f32 %v5878, %v1121
        %v5903 = vmul.f32 %v5879, %v1122
        %v5904 = vmul.f32 %v5880, %v1123
        %v5905 = vmul.f32 %v5881, %v1124
        %v5906 = vmul.f32 %v5882, %v1125
        %v5907 = vmul.f32 %v5883, %v1126
        %v5908 = vmul.f32 %v5884, %v1127
        %v5909 = vmul.f32 %v5885, %v1128
        %v5910 = vmul.f32 %v5886, %v1129
        %v5911 = vmul.f32 %v5887, %v1130
        %v5912 = vld [vmem:[#allocation14] sm:$0x1]
        %v5914 = vlaneseq
        %v5915 = vshrl.u32 %v5914, 7
        %v5916 = vsub.s32 0, %v5915
        %v5917 = vrot.slane %v5912, %v5916
        %v5919 = vadd.f32 %v4024, %v5917
        %v5920 = vadd.f32 %v4028, %v5917
        %v5921 = vadd.f32 %v4034, %v5917
        %v5922 = vadd.f32 %v4038, %v5917
        %v5923 = vadd.f32 %v4044, %v5917
        %v5924 = vadd.f32 %v4048, %v5917
        %v5925 = vadd.f32 %v4054, %v5917
        %v5926 = vadd.f32 %v4058, %v5917
        %v5927 = vadd.f32 %v4064, %v5917
        %v5928 = vadd.f32 %v4068, %v5917
        %v5929 = vadd.f32 %v4074, %v5917
        %v5930 = vadd.f32 %v4078, %v5917
        %v5931 = vadd.f32 %v4084, %v5917
        %v5932 = vadd.f32 %v4088, %v5917
        %v5933 = vadd.f32 %v4094, %v5917
        %v5934 = vadd.f32 %v4098, %v5917
        %v5935 = vadd.f32 %v4104, %v5917
        %v5936 = vadd.f32 %v4108, %v5917
        %v5937 = vadd.f32 %v4114, %v5917
        %v5938 = vadd.f32 %v4118, %v5917
        %v5939 = vadd.f32 %v4124, %v5917
        %v5940 = vadd.f32 %v4128, %v5917
        %v5941 = vadd.f32 %v4134, %v5917
        %v5942 = vadd.f32 %v4138, %v5917
        %v5943 = vmul.f32 %v5919, %v1107
        %v5944 = vmul.f32 %v5920, %v1108
        %v5945 = vmul.f32 %v5921, %v1109
        %v5946 = vmul.f32 %v5922, %v1110
        %v5947 = vmul.f32 %v5923, %v1111
        %v5948 = vmul.f32 %v5924, %v1112
        %v5949 = vmul.f32 %v5925, %v1113
        %v5950 = vmul.f32 %v5926, %v1114
        %v5951 = vmul.f32 %v5927, %v1115
        %v5952 = vmul.f32 %v5928, %v1116
        %v5953 = vmul.f32 %v5929, %v1117
        %v5954 = vmul.f32 %v5930, %v1118
        %v5955 = vmul.f32 %v5931, %v1119
        %v5956 = vmul.f32 %v5932, %v1120
        %v5957 = vmul.f32 %v5933, %v1121
        %v5958 = vmul.f32 %v5934, %v1122
        %v5959 = vmul.f32 %v5935, %v1123
        %v5960 = vmul.f32 %v5936, %v1124
        %v5961 = vmul.f32 %v5937, %v1125
        %v5962 = vmul.f32 %v5938, %v1126
        %v5963 = vmul.f32 %v5939, %v1127
        %v5964 = vmul.f32 %v5940, %v1128
        %v5965 = vmul.f32 %v5941, %v1129
        %v5966 = vmul.f32 %v5942, %v1130
        %v5967 = vrot.slane %v5888, 6
        %v5968 = vrot.slane %v5889, 6
        %v5969 = vrot.slane %v5890, 6
        %v5970 = vrot.slane %v5891, 6
        %v5971 = vrot.slane %v5892, 6
        %v5972 = vrot.slane %v5893, 6
        %v5973 = vrot.slane %v5894, 6
        %v5974 = vrot.slane %v5895, 6
        %v5975 = vrot.slane %v5896, 6
        %v5976 = vrot.slane %v5897, 6
        %v5977 = vrot.slane %v5898, 6
        %v5978 = vrot.slane %v5899, 6
        %v5979 = vrot.slane %v5900, 6
        %v5980 = vrot.slane %v5901, 6
        %v5981 = vrot.slane %v5902, 6
        %v5982 = vrot.slane %v5903, 6
        %v5983 = vrot.slane %v5904, 6
        %v5984 = vrot.slane %v5905, 6
        %v5985 = vrot.slane %v5906, 6
        %v5986 = vrot.slane %v5907, 6
        %v5987 = vrot.slane %v5908, 6
        %v5988 = vrot.slane %v5909, 6
        %v5989 = vrot.slane %v5910, 6
        %v5990 = vrot.slane %v5911, 6
        %v5991 = vsel %vm1546, %v5989, %v5990
        %v5992 = vsel %vm1546, %v5988, %v5989
        %v5993 = vsel %vm1546, %v5987, %v5988
        %v5994 = vsel %vm1546, %v5986, %v5987
        %v5995 = vsel %vm1546, %v5985, %v5986
        %v5996 = vsel %vm1546, %v5984, %v5985
        %v5997 = vsel %vm1546, %v5983, %v5984
        %v5998 = vsel %vm1546, %v5982, %v5983
        %v5999 = vsel %vm1546, %v5981, %v5982
        %v6000 = vsel %vm1546, %v5980, %v5981
        %v6001 = vsel %vm1546, %v5979, %v5980
        %v6002 = vsel %vm1546, %v5978, %v5979
        %v6003 = vsel %vm1546, %v5977, %v5978
        %v6004 = vsel %vm1546, %v5976, %v5977
        %v6005 = vsel %vm1546, %v5975, %v5976
        %v6006 = vsel %vm1546, %v5974, %v5975
        %v6007 = vsel %vm1546, %v5973, %v5974
        %v6008 = vsel %vm1546, %v5972, %v5973
        %v6009 = vsel %vm1546, %v5971, %v5972
        %v6010 = vsel %vm1546, %v5970, %v5971
        %v6011 = vsel %vm1546, %v5969, %v5970
        %v6012 = vsel %vm1546, %v5968, %v5969
        %v6013 = vsel %vm1546, %v5967, %v5968
        %v6014 = vsel %vm1546, %v5990, %v5967
        %v6015 = vpack.c.bf16 %v6013, %v6014
        %v6016 = vpack.c.bf16 %v6011, %v6012
        %v6017 = vpack.c.bf16 %v6009, %v6010
        %v6018 = vpack.c.bf16 %v6007, %v6008
        %v6019 = vpack.c.bf16 %v6005, %v6006
        %v6020 = vpack.c.bf16 %v6003, %v6004
        %v6021 = vpack.c.bf16 %v6001, %v6002
        %v6022 = vpack.c.bf16 %v5999, %v6000
        %v6023 = vpack.c.bf16 %v5997, %v5998
        %v6024 = vpack.c.bf16 %v5995, %v5996
        %v6025 = vpack.c.bf16 %v5993, %v5994
        %v6026 = vpack.c.bf16 %v5991, %v5992
        %v6027 = vrot.slane %v5888, 7
        %v6028 = vrot.slane %v5889, 7
        %v6029 = vrot.slane %v5890, 7
        %v6030 = vrot.slane %v5891, 7
        %v6031 = vrot.slane %v5892, 7
        %v6032 = vrot.slane %v5893, 7
        %v6033 = vrot.slane %v5894, 7
        %v6034 = vrot.slane %v5895, 7
        %v6035 = vrot.slane %v5896, 7
        %v6036 = vrot.slane %v5897, 7
        %v6037 = vrot.slane %v5898, 7
        %v6038 = vrot.slane %v5899, 7
        %v6039 = vrot.slane %v5900, 7
        %v6040 = vrot.slane %v5901, 7
        %v6041 = vrot.slane %v5902, 7
        %v6042 = vrot.slane %v5903, 7
        %v6043 = vrot.slane %v5904, 7
        %v6044 = vrot.slane %v5905, 7
        %v6045 = vrot.slane %v5906, 7
        %v6046 = vrot.slane %v5907, 7
        %v6047 = vrot.slane %v5908, 7
        %v6048 = vrot.slane %v5909, 7
        %v6049 = vrot.slane %v5910, 7
        %v6050 = vrot.slane %v5911, 7
        %v6051 = vsel %vm1615, %v6049, %v6050
        %v6052 = vsel %vm1615, %v6048, %v6049
        %v6053 = vsel %vm1615, %v6047, %v6048
        %v6054 = vsel %vm1615, %v6046, %v6047
        %v6055 = vsel %vm1615, %v6045, %v6046
        %v6056 = vsel %vm1615, %v6044, %v6045
        %v6057 = vsel %vm1615, %v6043, %v6044
        %v6058 = vsel %vm1615, %v6042, %v6043
        %v6059 = vsel %vm1615, %v6041, %v6042
        %v6060 = vsel %vm1615, %v6040, %v6041
        %v6061 = vsel %vm1615, %v6039, %v6040
        %v6062 = vsel %vm1615, %v6038, %v6039
        %v6063 = vsel %vm1615, %v6037, %v6038
        %v6064 = vsel %vm1615, %v6036, %v6037
        %v6065 = vsel %vm1615, %v6035, %v6036
        %v6066 = vsel %vm1615, %v6034, %v6035
        %v6067 = vsel %vm1615, %v6033, %v6034
        %v6068 = vsel %vm1615, %v6032, %v6033
        %v6069 = vsel %vm1615, %v6031, %v6032
        %v6070 = vsel %vm1615, %v6030, %v6031
        %v6071 = vsel %vm1615, %v6029, %v6030
        %v6072 = vsel %vm1615, %v6028, %v6029
        %v6073 = vsel %vm1615, %v6027, %v6028
        %v6074 = vsel %vm1615, %v6050, %v6027
        %v6075 = vpack.c.bf16 %v6073, %v6074
        %v6076 = vpack.c.bf16 %v6071, %v6072
        %v6077 = vpack.c.bf16 %v6069, %v6070
        %v6078 = vpack.c.bf16 %v6067, %v6068
        %v6079 = vpack.c.bf16 %v6065, %v6066
        %v6080 = vpack.c.bf16 %v6063, %v6064
        %v6081 = vpack.c.bf16 %v6061, %v6062
        %v6082 = vpack.c.bf16 %v6059, %v6060
        %v6083 = vpack.c.bf16 %v6057, %v6058
        %v6084 = vpack.c.bf16 %v6055, %v6056
        %v6085 = vpack.c.bf16 %v6053, %v6054
        %v6086 = vpack.c.bf16 %v6051, %v6052
        %v6087 = vpack.c.bf16 %v5889, %v5888
        %v6088 = vpack.c.bf16 %v5891, %v5890
        %v6089 = vpack.c.bf16 %v5893, %v5892
        %v6090 = vpack.c.bf16 %v5895, %v5894
        %v6091 = vpack.c.bf16 %v5897, %v5896
        %v6092 = vpack.c.bf16 %v5899, %v5898
        %v6093 = vpack.c.bf16 %v5901, %v5900
        %v6094 = vpack.c.bf16 %v5903, %v5902
        %v6095 = vpack.c.bf16 %v5905, %v5904
        %v6096 = vpack.c.bf16 %v5907, %v5906
        %v6097 = vpack.c.bf16 %v5909, %v5908
        %v6098 = vpack.c.bf16 %v5911, %v5910
        %v6099 = vrot.slane %v5888, 1
        %v6100 = vrot.slane %v5889, 1
        %v6101 = vrot.slane %v5890, 1
        %v6102 = vrot.slane %v5891, 1
        %v6103 = vrot.slane %v5892, 1
        %v6104 = vrot.slane %v5893, 1
        %v6105 = vrot.slane %v5894, 1
        %v6106 = vrot.slane %v5895, 1
        %v6107 = vrot.slane %v5896, 1
        %v6108 = vrot.slane %v5897, 1
        %v6109 = vrot.slane %v5898, 1
        %v6110 = vrot.slane %v5899, 1
        %v6111 = vrot.slane %v5900, 1
        %v6112 = vrot.slane %v5901, 1
        %v6113 = vrot.slane %v5902, 1
        %v6114 = vrot.slane %v5903, 1
        %v6115 = vrot.slane %v5904, 1
        %v6116 = vrot.slane %v5905, 1
        %v6117 = vrot.slane %v5906, 1
        %v6118 = vrot.slane %v5907, 1
        %v6119 = vrot.slane %v5908, 1
        %v6120 = vrot.slane %v5909, 1
        %v6121 = vrot.slane %v5910, 1
        %v6122 = vrot.slane %v5911, 1
        %v6123 = vsel %vm2298, %v6121, %v6122
        %v6124 = vsel %vm2298, %v6120, %v6121
        %v6125 = vsel %vm2298, %v6119, %v6120
        %v6126 = vsel %vm2298, %v6118, %v6119
        %v6127 = vsel %vm2298, %v6117, %v6118
        %v6128 = vsel %vm2298, %v6116, %v6117
        %v6129 = vsel %vm2298, %v6115, %v6116
        %v6130 = vsel %vm2298, %v6114, %v6115
        %v6131 = vsel %vm2298, %v6113, %v6114
        %v6132 = vsel %vm2298, %v6112, %v6113
        %v6133 = vsel %vm2298, %v6111, %v6112
        %v6134 = vsel %vm2298, %v6110, %v6111
        %v6135 = vsel %vm2298, %v6109, %v6110
        %v6136 = vsel %vm2298, %v6108, %v6109
        %v6137 = vsel %vm2298, %v6107, %v6108
        %v6138 = vsel %vm2298, %v6106, %v6107
        %v6139 = vsel %vm2298, %v6105, %v6106
        %v6140 = vsel %vm2298, %v6104, %v6105
        %v6141 = vsel %vm2298, %v6103, %v6104
        %v6142 = vsel %vm2298, %v6102, %v6103
        %v6143 = vsel %vm2298, %v6101, %v6102
        %v6144 = vsel %vm2298, %v6100, %v6101
        %v6145 = vsel %vm2298, %v6099, %v6100
        %v6146 = vsel %vm2298, %v6122, %v6099
        %v6147 = vpack.c.bf16 %v6144, %v6145
        %v6148 = vpack.c.bf16 %v6142, %v6143
        %v6149 = vpack.c.bf16 %v6140, %v6141
        %v6150 = vpack.c.bf16 %v6138, %v6139
        %v6151 = vpack.c.bf16 %v6136, %v6137
        %v6152 = vpack.c.bf16 %v6134, %v6135
        %v6153 = vpack.c.bf16 %v6132, %v6133
        %v6154 = vpack.c.bf16 %v6130, %v6131
        %v6155 = vpack.c.bf16 %v6128, %v6129
        %v6156 = vpack.c.bf16 %v6126, %v6127
        %v6157 = vpack.c.bf16 %v6124, %v6125
        %v6158 = vpack.c.bf16 %v6146, %v6123
        %v6159 = vrot.slane %v5888, 2
        %v6160 = vrot.slane %v5889, 2
        %v6161 = vrot.slane %v5890, 2
        %v6162 = vrot.slane %v5891, 2
        %v6163 = vrot.slane %v5892, 2
        %v6164 = vrot.slane %v5893, 2
        %v6165 = vrot.slane %v5894, 2
        %v6166 = vrot.slane %v5895, 2
        %v6167 = vrot.slane %v5896, 2
        %v6168 = vrot.slane %v5897, 2
        %v6169 = vrot.slane %v5898, 2
        %v6170 = vrot.slane %v5899, 2
        %v6171 = vrot.slane %v5900, 2
        %v6172 = vrot.slane %v5901, 2
        %v6173 = vrot.slane %v5902, 2
        %v6174 = vrot.slane %v5903, 2
        %v6175 = vrot.slane %v5904, 2
        %v6176 = vrot.slane %v5905, 2
        %v6177 = vrot.slane %v5906, 2
        %v6178 = vrot.slane %v5907, 2
        %v6179 = vrot.slane %v5908, 2
        %v6180 = vrot.slane %v5909, 2
        %v6181 = vrot.slane %v5910, 2
        %v6182 = vrot.slane %v5911, 2
        %v6183 = vsel %vm2581, %v6181, %v6182
        %v6184 = vsel %vm2581, %v6180, %v6181
        %v6185 = vsel %vm2581, %v6179, %v6180
        %v6186 = vsel %vm2581, %v6178, %v6179
        %v6187 = vsel %vm2581, %v6177, %v6178
        %v6188 = vsel %vm2581, %v6176, %v6177
        %v6189 = vsel %vm2581, %v6175, %v6176
        %v6190 = vsel %vm2581, %v6174, %v6175
        %v6191 = vsel %vm2581, %v6173, %v6174
        %v6192 = vsel %vm2581, %v6172, %v6173
        %v6193 = vsel %vm2581, %v6171, %v6172
        %v6194 = vsel %vm2581, %v6170, %v6171
        %v6195 = vsel %vm2581, %v6169, %v6170
        %v6196 = vsel %vm2581, %v6168, %v6169
        %v6197 = vsel %vm2581, %v6167, %v6168
        %v6198 = vsel %vm2581, %v6166, %v6167
        %v6199 = vsel %vm2581, %v6165, %v6166
        %v6200 = vsel %vm2581, %v6164, %v6165
        %v6201 = vsel %vm2581, %v6163, %v6164
        %v6202 = vsel %vm2581, %v6162, %v6163
        %v6203 = vsel %vm2581, %v6161, %v6162
        %v6204 = vsel %vm2581, %v6160, %v6161
        %v6205 = vsel %vm2581, %v6159, %v6160
        %v6206 = vsel %vm2581, %v6182, %v6159
        %v6207 = vpack.c.bf16 %v6204, %v6205
        %v6208 = vpack.c.bf16 %v6202, %v6203
        %v6209 = vpack.c.bf16 %v6200, %v6201
        %v6210 = vpack.c.bf16 %v6198, %v6199
        %v6211 = vpack.c.bf16 %v6196, %v6197
        %v6212 = vpack.c.bf16 %v6194, %v6195
        %v6213 = vpack.c.bf16 %v6192, %v6193
        %v6214 = vpack.c.bf16 %v6190, %v6191
        %v6215 = vpack.c.bf16 %v6188, %v6189
        %v6216 = vpack.c.bf16 %v6186, %v6187
        %v6217 = vpack.c.bf16 %v6184, %v6185
        %v6218 = vpack.c.bf16 %v6206, %v6183
        %v6219 = vld [vmem:[#allocation16] sm:$0xf]
        %v6220 = vld [vmem:[#allocation16 + $0x4] sm:$0xf]
        %v6221 = vld [vmem:[#allocation16 + $0x8] sm:$0xf]
        %v6222 = vld [vmem:[#allocation16 + $0xc] sm:$0xf]
        %v6223 = vld [vmem:[#allocation16 + $0x10] sm:$0xf]
        %v6224 = vld [vmem:[#allocation16 + $0x14] sm:$0xf]
        %v6225 = vld [vmem:[#allocation16 + $0x18] sm:$0xf]
        %v6226 = vld [vmem:[#allocation16 + $0x1c] sm:$0xf]
        %v6227 = vld [vmem:[#allocation16 + $0x20] sm:$0xf]
        %v6228 = vld [vmem:[#allocation16 + $0x24] sm:$0xf]
        %v6229 = vld [vmem:[#allocation16 + $0x28] sm:$0xf]
        %v6230 = vld [vmem:[#allocation16 + $0x2c] sm:$0xf]
        %v6231 = vld [vmem:[#allocation16 + $0x30] sm:$0xf]
        %v6232 = vld [vmem:[#allocation16 + $0x34] sm:$0xf]
        %v6233 = vld [vmem:[#allocation16 + $0x38] sm:$0xf]
        %v6234 = vld [vmem:[#allocation16 + $0x3c] sm:$0xf]
        %v6235 = vld [vmem:[#allocation16 + $0x40] sm:$0xf]
        %v6236 = vld [vmem:[#allocation16 + $0x44] sm:$0xf]
        %v6237 = vld [vmem:[#allocation16 + $0x48] sm:$0xf]
        %v6238 = vld [vmem:[#allocation16 + $0x4c] sm:$0xf]
        %v6239 = vld [vmem:[#allocation16 + $0x50] sm:$0xf]
        %v6240 = vld [vmem:[#allocation16 + $0x54] sm:$0xf]
        %v6241 = vld [vmem:[#allocation16 + $0x58] sm:$0xf]
        %v6242 = vld [vmem:[#allocation16 + $0x5c] sm:$0xf]
        %v6243 = vld [vmem:[#allocation16 + $0x60] sm:$0xf]
        %v6244 = vld [vmem:[#allocation16 + $0x64] sm:$0xf]
        %v6245 = vld [vmem:[#allocation16 + $0x68] sm:$0xf]
        %v6246 = vld [vmem:[#allocation16 + $0x6c] sm:$0xf]
        %v6247 = vld [vmem:[#allocation16 + $0x70] sm:$0xf]
        %v6248 = vld [vmem:[#allocation16 + $0x74] sm:$0xf]
        %v6249 = vld [vmem:[#allocation16 + $0x78] sm:$0xf]
        %v6250 = vld [vmem:[#allocation16 + $0x7c] sm:$0xf]
        %v6251 = vld [vmem:[#allocation16 + $0x80] sm:$0xf]
        %v6252 = vld [vmem:[#allocation16 + $0x84] sm:$0xf]
        %v6253 = vld [vmem:[#allocation16 + $0x88] sm:$0xf]
        %v6254 = vld [vmem:[#allocation16 + $0x8c] sm:$0xf]
        %v6255 = vld [vmem:[#allocation16 + $0x90] sm:$0xf]
        %v6256 = vld [vmem:[#allocation16 + $0x94] sm:$0xf]
        %v6257 = vld [vmem:[#allocation16 + $0x98] sm:$0xf]
        %v6258 = vld [vmem:[#allocation16 + $0x9c] sm:$0xf]
        %v6259 = vld [vmem:[#allocation16 + $0xa0] sm:$0xf]
        %v6260 = vld [vmem:[#allocation16 + $0xa4] sm:$0xf]
        %v6261 = vld [vmem:[#allocation16 + $0xa8] sm:$0xf]
        %v6262 = vld [vmem:[#allocation16 + $0xac] sm:$0xf]
        %v6263 = vld [vmem:[#allocation16 + $0xb0] sm:$0xf]
        %v6264 = vld [vmem:[#allocation16 + $0xb4] sm:$0xf]
        %v6265 = vld [vmem:[#allocation16 + $0xb8] sm:$0xf]
        %v6266 = vld [vmem:[#allocation16 + $0xbc] sm:$0xf]
        %v6267 = vld [vmem:[#allocation16 + $0xc0] sm:$0xf]
        %v6268 = vld [vmem:[#allocation16 + $0xc4] sm:$0xf]
        %v6269 = vld [vmem:[#allocation16 + $0xc8] sm:$0xf]
        %v6270 = vld [vmem:[#allocation16 + $0xcc] sm:$0xf]
        %v6271 = vld [vmem:[#allocation16 + $0xd0] sm:$0xf]
        %v6272 = vld [vmem:[#allocation16 + $0xd4] sm:$0xf]
        %v6273 = vld [vmem:[#allocation16 + $0xd8] sm:$0xf]
        %v6274 = vld [vmem:[#allocation16 + $0xdc] sm:$0xf]
        %v6275 = vld [vmem:[#allocation16 + $0xe0] sm:$0xf]
        %v6276 = vld [vmem:[#allocation16 + $0xe4] sm:$0xf]
        %v6277 = vld [vmem:[#allocation16 + $0xe8] sm:$0xf]
        %v6278 = vld [vmem:[#allocation16 + $0xec] sm:$0xf]
        %v6279 = vld [vmem:[#allocation16 + $0xf0] sm:$0xf]
        %v6280 = vld [vmem:[#allocation16 + $0xf4] sm:$0xf]
        %v6281 = vld [vmem:[#allocation16 + $0xf8] sm:$0xf]
        %v6282 = vld [vmem:[#allocation16 + $0xfc] sm:$0xf]
        %v6283 = vld [vmem:[#allocation16 + $0x100] sm:$0xf]
        %v6284 = vld [vmem:[#allocation16 + $0x104] sm:$0xf]
        %v6285 = vld [vmem:[#allocation16 + $0x108] sm:$0xf]
        %v6286 = vld [vmem:[#allocation16 + $0x10c] sm:$0xf]
        %v6287 = vld [vmem:[#allocation16 + $0x110] sm:$0xf]
        %v6288 = vld [vmem:[#allocation16 + $0x114] sm:$0xf]
        %v6289 = vld [vmem:[#allocation16 + $0x118] sm:$0xf]
        %v6290 = vld [vmem:[#allocation16 + $0x11c] sm:$0xf]
        %v6291 = vld [vmem:[#allocation16 + $0x120] sm:$0xf]
        %v6292 = vld [vmem:[#allocation16 + $0x124] sm:$0xf]
        %v6293 = vld [vmem:[#allocation16 + $0x128] sm:$0xf]
        %v6294 = vld [vmem:[#allocation16 + $0x12c] sm:$0xf]
        %v6295 = vld [vmem:[#allocation16 + $0x130] sm:$0xf]
        %v6296 = vld [vmem:[#allocation16 + $0x134] sm:$0xf]
        %v6297 = vld [vmem:[#allocation16 + $0x138] sm:$0xf]
        %v6298 = vld [vmem:[#allocation16 + $0x13c] sm:$0xf]
        %v6299 = vld [vmem:[#allocation17] sm:$0x1]
        %v6301 = vlaneseq
        %v6302 = vshrl.u32 %v6301, 7
        %v6303 = vsub.s32 0, %v6302
        %v6304 = vrot.slane %v6299, %v6303
        %v6386 = vunpack.c.l.b16 %v6219
        %v6387 = vunpack.c.l.b16 %v6220
        %v6388 = vunpack.c.l.b16 %v6221
        %v6389 = vunpack.c.l.b16 %v6222
        %v6390 = vunpack.c.l.b16 %v6223
        %v6391 = vunpack.c.l.b16 %v6224
        %v6392 = vunpack.c.l.b16 %v6225
        %v6393 = vunpack.c.l.b16 %v6226
        %v6394 = vunpack.c.l.b16 %v6227
        %v6395 = vunpack.c.l.b16 %v6228
        %v6396 = vunpack.c.l.b16 %v6229
        %v6397 = vunpack.c.l.b16 %v6230
        %v6398 = vunpack.c.l.b16 %v6231
        %v6399 = vunpack.c.l.b16 %v6232
        %v6400 = vunpack.c.l.b16 %v6233
        %v6401 = vunpack.c.l.b16 %v6234
        %v6402 = vunpack.c.l.b16 %v6235
        %v6403 = vunpack.c.l.b16 %v6236
        %v6404 = vunpack.c.l.b16 %v6237
        %v6405 = vunpack.c.l.b16 %v6238
        %v6406 = vunpack.c.l.b16 %v6239
        %v6407 = vunpack.c.l.b16 %v6240
        %v6408 = vunpack.c.l.b16 %v6241
        %v6409 = vunpack.c.l.b16 %v6242
        %v6410 = vunpack.c.l.b16 %v6243
        %v6411 = vunpack.c.l.b16 %v6244
        %v6412 = vunpack.c.l.b16 %v6245
        %v6413 = vunpack.c.l.b16 %v6246
        %v6414 = vunpack.c.l.b16 %v6247
        %v6415 = vunpack.c.l.b16 %v6248
        %v6416 = vunpack.c.l.b16 %v6249
        %v6417 = vunpack.c.l.b16 %v6250
        %v6418 = vunpack.c.l.b16 %v6251
        %v6419 = vunpack.c.l.b16 %v6252
        %v6420 = vunpack.c.l.b16 %v6253
        %v6421 = vunpack.c.l.b16 %v6254
        %v6422 = vunpack.c.l.b16 %v6255
        %v6423 = vunpack.c.l.b16 %v6256
        %v6424 = vunpack.c.l.b16 %v6257
        %v6425 = vunpack.c.l.b16 %v6258
        %v6426 = vunpack.c.l.b16 %v6259
        %v6427 = vunpack.c.l.b16 %v6260
        %v6428 = vunpack.c.l.b16 %v6261
        %v6429 = vunpack.c.l.b16 %v6262
        %v6430 = vunpack.c.l.b16 %v6263
        %v6431 = vunpack.c.l.b16 %v6264
        %v6432 = vunpack.c.l.b16 %v6265
        %v6433 = vunpack.c.l.b16 %v6266
        %v6434 = vunpack.c.l.b16 %v6267
        %v6435 = vunpack.c.l.b16 %v6268
        %v6436 = vunpack.c.l.b16 %v6269
        %v6437 = vunpack.c.l.b16 %v6270
        %v6438 = vunpack.c.l.b16 %v6271
        %v6439 = vunpack.c.l.b16 %v6272
        %v6440 = vunpack.c.l.b16 %v6273
        %v6441 = vunpack.c.l.b16 %v6274
        %v6442 = vunpack.c.l.b16 %v6275
        %v6443 = vunpack.c.l.b16 %v6276
        %v6444 = vunpack.c.l.b16 %v6277
        %v6445 = vunpack.c.l.b16 %v6278
        %v6446 = vunpack.c.l.b16 %v6279
        %v6447 = vunpack.c.l.b16 %v6280
        %v6448 = vunpack.c.l.b16 %v6281
        %v6449 = vunpack.c.l.b16 %v6282
        %v6450 = vunpack.c.l.b16 %v6283
        %v6451 = vunpack.c.l.b16 %v6284
        %v6452 = vunpack.c.l.b16 %v6285
        %v6453 = vunpack.c.l.b16 %v6286
        %v6454 = vunpack.c.l.b16 %v6287
        %v6455 = vunpack.c.l.b16 %v6288
        %v6456 = vunpack.c.l.b16 %v6289
        %v6457 = vunpack.c.l.b16 %v6290
        %v6458 = vunpack.c.l.b16 %v6291
        %v6459 = vunpack.c.l.b16 %v6292
        %v6460 = vunpack.c.l.b16 %v6293
        %v6461 = vunpack.c.l.b16 %v6294
        %v6462 = vunpack.c.l.b16 %v6295
        %v6463 = vunpack.c.l.b16 %v6296
        %v6464 = vunpack.c.l.b16 %v6297
        %v6465 = vunpack.c.l.b16 %v6298
        %v6466 = vpack.c.b16 %v6387, %v6386
        %v6467 = vpack.c.b16 %v6389, %v6388
        %v6468 = vpack.c.b16 %v6391, %v6390
        %v6469 = vpack.c.b16 %v6393, %v6392
        %v6470 = vpack.c.b16 %v6395, %v6394
        %v6471 = vpack.c.b16 %v6397, %v6396
        %v6472 = vpack.c.b16 %v6399, %v6398
        %v6473 = vpack.c.b16 %v6401, %v6400
        %v6474 = vpack.c.b16 %v6403, %v6402
        %v6475 = vpack.c.b16 %v6405, %v6404
        %v6476 = vpack.c.b16 %v6407, %v6406
        %v6477 = vpack.c.b16 %v6409, %v6408
        %v6478 = vpack.c.b16 %v6411, %v6410
        %v6479 = vpack.c.b16 %v6413, %v6412
        %v6480 = vpack.c.b16 %v6415, %v6414
        %v6481 = vpack.c.b16 %v6417, %v6416
        %v6482 = vpack.c.b16 %v6419, %v6418
        %v6483 = vpack.c.b16 %v6421, %v6420
        %v6484 = vpack.c.b16 %v6423, %v6422
        %v6485 = vpack.c.b16 %v6425, %v6424
        %v6486 = vpack.c.b16 %v6427, %v6426
        %v6487 = vpack.c.b16 %v6429, %v6428
        %v6488 = vpack.c.b16 %v6431, %v6430
        %v6489 = vpack.c.b16 %v6433, %v6432
        %v6490 = vpack.c.b16 %v6435, %v6434
        %v6491 = vpack.c.b16 %v6437, %v6436
        %v6492 = vpack.c.b16 %v6439, %v6438
        %v6493 = vpack.c.b16 %v6441, %v6440
        %v6494 = vpack.c.b16 %v6443, %v6442
        %v6495 = vpack.c.b16 %v6445, %v6444
        %v6496 = vpack.c.b16 %v6447, %v6446
        %v6497 = vpack.c.b16 %v6449, %v6448
        %v6498 = vpack.c.b16 %v6451, %v6450
        %v6499 = vpack.c.b16 %v6453, %v6452
        %v6500 = vpack.c.b16 %v6455, %v6454
        %v6501 = vpack.c.b16 %v6457, %v6456
        %v6502 = vpack.c.b16 %v6459, %v6458
        %v6503 = vpack.c.b16 %v6461, %v6460
        %v6504 = vpack.c.b16 %v6463, %v6462
        %v6505 = vpack.c.b16 %v6465, %v6464
        %6546 = vmatprep.subr.bf16.mxu0 0
        %6547 = vmatpush1.bf16.msra.mxu0 %v6473
        %6548 = vmatprep.subr.bf16.mxu0 0
        %6549 = vmatpush1.bf16.msra.mxu0 %v6472
        %6550 = vmatprep.subr.bf16.mxu0 0
        %6551 = vmatpush1.bf16.msra.mxu0 %v6471
        %6552 = vmatprep.subr.bf16.mxu0 0
        %6553 = vmatpush1.bf16.msra.mxu0 %v6470
        %6554 = vmatprep.subr.bf16.mxu0 0
        %6555 = vmatpush1.bf16.msra.mxu0 %v6469
        %6556 = vmatprep.subr.bf16.mxu0 0
        %6557 = vmatpush1.bf16.msra.mxu0 %v6468
        %6558 = vmatprep.subr.bf16.mxu0 0
        %6559 = vmatpush1.bf16.msra.mxu0 %v6467
        %6560 = vmatprep.subr.bf16.mxu0 0
        %6561 = vmatpush1.bf16.msra.mxu0 %v6466
        %6562 = vmatprep.subr.bf16.mxu0 0
        %6563 = vmatpush2.bf16.msra.mxu0 %v6481
        %6564 = vmatprep.subr.bf16.mxu0 0
        %6565 = vmatpush2.bf16.msra.mxu0 %v6480
        %6566 = vmatprep.subr.bf16.mxu0 0
        %6567 = vmatpush2.bf16.msra.mxu0 %v6479
        %6568 = vmatprep.subr.bf16.mxu0 0
        %6569 = vmatpush2.bf16.msra.mxu0 %v6478
        %6570 = vmatprep.subr.bf16.mxu0 0
        %6571 = vmatpush2.bf16.msra.mxu0 %v6477
        %6572 = vmatprep.subr.bf16.mxu0 0
        %6573 = vmatpush2.bf16.msra.mxu0 %v6476
        %6574 = vmatprep.subr.bf16.mxu0 0
        %6575 = vmatpush2.bf16.msra.mxu0 %v6475
        %6576 = vmatprep.subr.bf16.mxu0 0
        %6577 = vmatpush2.bf16.msra.mxu0 %v6474
        %6578 = vmatprep.mubr.bf16.mxu0 %v6075
        %6579 = vmatmul.mubr.bf16.gmra.mxu0 %v6015
        %v6580 = vpop.f32.mrf.mxu0
        %v6581 = vadd.f32 %v6304, %v6580
        %v6582 = vpop.f32.mrf.mxu0
        %v6583 = vpop.f32.mrf.mxu0
        %v6584 = vadd.f32 %v6304, %v6583
        %v6585 = vpop.f32.mrf.mxu0
        %6586 = vmatprep.mubr.bf16.mxu0 %v6076
        %6587 = vmatmul.mubr.bf16.gmra.mxu0 %v6016
        %v6588 = vpop.f32.mrf.mxu0
        %v6589 = vadd.f32 %v6304, %v6588
        %v6590 = vpop.f32.mrf.mxu0
        %v6591 = vpop.f32.mrf.mxu0
        %v6592 = vadd.f32 %v6304, %v6591
        %v6593 = vpop.f32.mrf.mxu0
        %6594 = vmatprep.mubr.bf16.mxu0 %v6077
        %6595 = vmatmul.mubr.bf16.gmra.mxu0 %v6017
        %v6596 = vpop.f32.mrf.mxu0
        %v6597 = vadd.f32 %v6304, %v6596
        %v6598 = vpop.f32.mrf.mxu0
        %v6599 = vpop.f32.mrf.mxu0
        %v6600 = vadd.f32 %v6304, %v6599
        %v6601 = vpop.f32.mrf.mxu0
        %6602 = vmatprep.mubr.bf16.mxu0 %v6078
        %6603 = vmatmul.mubr.bf16.gmra.mxu0 %v6018
        %v6604 = vpop.f32.mrf.mxu0
        %v6605 = vadd.f32 %v6304, %v6604
        %v6606 = vpop.f32.mrf.mxu0
        %v6607 = vpop.f32.mrf.mxu0
        %v6608 = vadd.f32 %v6304, %v6607
        %v6609 = vpop.f32.mrf.mxu0
        %6610 = vmatprep.mubr.bf16.mxu0 %v6079
        %6611 = vmatmul.mubr.bf16.gmra.mxu0 %v6019
        %v6612 = vpop.f32.mrf.mxu0
        %v6613 = vadd.f32 %v6304, %v6612
        %v6614 = vpop.f32.mrf.mxu0
        %v6615 = vpop.f32.mrf.mxu0
        %v6616 = vadd.f32 %v6304, %v6615
        %v6617 = vpop.f32.mrf.mxu0
        %6618 = vmatprep.mubr.bf16.mxu0 %v6080
        %6619 = vmatmul.mubr.bf16.gmra.mxu0 %v6020
        %v6620 = vpop.f32.mrf.mxu0
        %v6621 = vadd.f32 %v6304, %v6620
        %v6622 = vpop.f32.mrf.mxu0
        %v6623 = vpop.f32.mrf.mxu0
        %v6624 = vadd.f32 %v6304, %v6623
        %v6625 = vpop.f32.mrf.mxu0
        %6626 = vmatprep.mubr.bf16.mxu0 %v6081
        %6627 = vmatmul.mubr.bf16.gmra.mxu0 %v6021
        %v6628 = vpop.f32.mrf.mxu0
        %v6629 = vadd.f32 %v6304, %v6628
        %v6630 = vpop.f32.mrf.mxu0
        %v6631 = vpop.f32.mrf.mxu0
        %v6632 = vadd.f32 %v6304, %v6631
        %v6633 = vpop.f32.mrf.mxu0
        %6634 = vmatprep.mubr.bf16.mxu0 %v6082
        %6635 = vmatmul.mubr.bf16.gmra.mxu0 %v6022
        %v6636 = vpop.f32.mrf.mxu0
        %v6637 = vadd.f32 %v6304, %v6636
        %v6638 = vpop.f32.mrf.mxu0
        %v6639 = vpop.f32.mrf.mxu0
        %v6640 = vadd.f32 %v6304, %v6639
        %v6641 = vpop.f32.mrf.mxu0
        %6642 = vmatprep.mubr.bf16.mxu0 %v6083
        %6643 = vmatmul.mubr.bf16.gmra.mxu0 %v6023
        %v6644 = vpop.f32.mrf.mxu0
        %v6645 = vadd.f32 %v6304, %v6644
        %v6646 = vpop.f32.mrf.mxu0
        %v6647 = vpop.f32.mrf.mxu0
        %v6648 = vadd.f32 %v6304, %v6647
        %v6649 = vpop.f32.mrf.mxu0
        %6650 = vmatprep.mubr.bf16.mxu0 %v6084
        %6651 = vmatmul.mubr.bf16.gmra.mxu0 %v6024
        %v6652 = vpop.f32.mrf.mxu0
        %v6653 = vadd.f32 %v6304, %v6652
        %v6654 = vpop.f32.mrf.mxu0
        %v6655 = vpop.f32.mrf.mxu0
        %v6656 = vadd.f32 %v6304, %v6655
        %v6657 = vpop.f32.mrf.mxu0
        %6658 = vmatprep.mubr.bf16.mxu0 %v6085
        %6659 = vmatmul.mubr.bf16.gmra.mxu0 %v6025
        %v6660 = vpop.f32.mrf.mxu0
        %v6661 = vadd.f32 %v6304, %v6660
        %v6662 = vpop.f32.mrf.mxu0
        %v6663 = vpop.f32.mrf.mxu0
        %v6664 = vadd.f32 %v6304, %v6663
        %v6665 = vpop.f32.mrf.mxu0
        %6666 = vmatprep.mubr.bf16.mxu0 %v6086
        %6667 = vmatmul.mubr.bf16.gmra.mxu0 %v6026
        %v6668 = vpop.f32.mrf.mxu0
        %v6669 = vadd.f32 %v6304, %v6668
        %v6670 = vpop.f32.mrf.mxu0
        %v6671 = vpop.f32.mrf.mxu0
        %v6672 = vadd.f32 %v6304, %v6671
        %v6673 = vpop.f32.mrf.mxu0
        %6674 = vdwg.mxu0
        %6675 = vmatprep.subr.bf16.mxu0 0
        %6676 = vmatpush1.bf16.msra.mxu0 %v6489
        %6677 = vmatprep.subr.bf16.mxu0 0
        %6678 = vmatpush1.bf16.msra.mxu0 %v6488
        %6679 = vmatprep.subr.bf16.mxu0 0
        %6680 = vmatpush1.bf16.msra.mxu0 %v6487
        %6681 = vmatprep.subr.bf16.mxu0 0
        %6682 = vmatpush1.bf16.msra.mxu0 %v6486
        %6683 = vmatprep.subr.bf16.mxu0 0
        %6684 = vmatpush1.bf16.msra.mxu0 %v6485
        %6685 = vmatprep.subr.bf16.mxu0 0
        %6686 = vmatpush1.bf16.msra.mxu0 %v6484
        %6687 = vmatprep.subr.bf16.mxu0 0
        %6688 = vmatpush1.bf16.msra.mxu0 %v6483
        %6689 = vmatprep.subr.bf16.mxu0 0
        %6690 = vmatpush1.bf16.msra.mxu0 %v6482
        %6691 = vmatprep.subr.bf16.mxu0 0
        %6692 = vmatpush2.bf16.msra.mxu0 %v6497
        %6693 = vmatprep.subr.bf16.mxu0 0
        %6694 = vmatpush2.bf16.msra.mxu0 %v6496
        %6695 = vmatprep.subr.bf16.mxu0 0
        %6696 = vmatpush2.bf16.msra.mxu0 %v6495
        %6697 = vmatprep.subr.bf16.mxu0 0
        %6698 = vmatpush2.bf16.msra.mxu0 %v6494
        %6699 = vmatprep.subr.bf16.mxu0 0
        %6700 = vmatpush2.bf16.msra.mxu0 %v6493
        %6701 = vmatprep.subr.bf16.mxu0 0
        %6702 = vmatpush2.bf16.msra.mxu0 %v6492
        %6703 = vmatprep.subr.bf16.mxu0 0
        %6704 = vmatpush2.bf16.msra.mxu0 %v6491
        %6705 = vmatprep.subr.bf16.mxu0 0
        %6706 = vmatpush2.bf16.msra.mxu0 %v6490
        %6707 = vmatprep.mubr.bf16.mxu0 %v6147
        %6708 = vmatmul.mubr.bf16.gmra.mxu0 %v6087
        %v6709 = vpop.f32.mrf.mxu0
        %v6710 = vadd.f32 %v6581, %v6709
        %v6711 = vpop.f32.mrf.mxu0
        %v6712 = vpop.f32.mrf.mxu0
        %v6713 = vadd.f32 %v6584, %v6712
        %v6714 = vpop.f32.mrf.mxu0
        %6715 = vmatprep.mubr.bf16.mxu0 %v6148
        %6716 = vmatmul.mubr.bf16.gmra.mxu0 %v6088
        %v6717 = vpop.f32.mrf.mxu0
        %v6718 = vadd.f32 %v6589, %v6717
        %v6719 = vpop.f32.mrf.mxu0
        %v6720 = vpop.f32.mrf.mxu0
        %v6721 = vadd.f32 %v6592, %v6720
        %v6722 = vpop.f32.mrf.mxu0
        %6723 = vmatprep.mubr.bf16.mxu0 %v6149
        %6724 = vmatmul.mubr.bf16.gmra.mxu0 %v6089
        %v6725 = vpop.f32.mrf.mxu0
        %v6726 = vadd.f32 %v6597, %v6725
        %v6727 = vpop.f32.mrf.mxu0
        %v6728 = vpop.f32.mrf.mxu0
        %v6729 = vadd.f32 %v6600, %v6728
        %v6730 = vpop.f32.mrf.mxu0
        %6731 = vmatprep.mubr.bf16.mxu0 %v6150
        %6732 = vmatmul.mubr.bf16.gmra.mxu0 %v6090
        %v6733 = vpop.f32.mrf.mxu0
        %v6734 = vadd.f32 %v6605, %v6733
        %v6735 = vpop.f32.mrf.mxu0
        %v6736 = vpop.f32.mrf.mxu0
        %v6737 = vadd.f32 %v6608, %v6736
        %v6738 = vpop.f32.mrf.mxu0
        %6739 = vmatprep.mubr.bf16.mxu0 %v6151
        %6740 = vmatmul.mubr.bf16.gmra.mxu0 %v6091
        %v6741 = vpop.f32.mrf.mxu0
        %v6742 = vadd.f32 %v6613, %v6741
        %v6743 = vpop.f32.mrf.mxu0
        %v6744 = vpop.f32.mrf.mxu0
        %v6745 = vadd.f32 %v6616, %v6744
        %v6746 = vpop.f32.mrf.mxu0
        %6747 = vmatprep.mubr.bf16.mxu0 %v6152
        %6748 = vmatmul.mubr.bf16.gmra.mxu0 %v6092
        %v6749 = vpop.f32.mrf.mxu0
        %v6750 = vadd.f32 %v6621, %v6749
        %v6751 = vpop.f32.mrf.mxu0
        %v6752 = vpop.f32.mrf.mxu0
        %v6753 = vadd.f32 %v6624, %v6752
        %v6754 = vpop.f32.mrf.mxu0
        %6755 = vmatprep.mubr.bf16.mxu0 %v6153
        %6756 = vmatmul.mubr.bf16.gmra.mxu0 %v6093
        %v6757 = vpop.f32.mrf.mxu0
        %v6758 = vadd.f32 %v6629, %v6757
        %v6759 = vpop.f32.mrf.mxu0
        %v6760 = vpop.f32.mrf.mxu0
        %v6761 = vadd.f32 %v6632, %v6760
        %v6762 = vpop.f32.mrf.mxu0
        %6763 = vmatprep.mubr.bf16.mxu0 %v6154
        %6764 = vmatmul.mubr.bf16.gmra.mxu0 %v6094
        %v6765 = vpop.f32.mrf.mxu0
        %v6766 = vadd.f32 %v6637, %v6765
        %v6767 = vpop.f32.mrf.mxu0
        %v6768 = vpop.f32.mrf.mxu0
        %v6769 = vadd.f32 %v6640, %v6768
        %v6770 = vpop.f32.mrf.mxu0
        %6771 = vmatprep.mubr.bf16.mxu0 %v6155
        %6772 = vmatmul.mubr.bf16.gmra.mxu0 %v6095
        %v6773 = vpop.f32.mrf.mxu0
        %v6774 = vadd.f32 %v6645, %v6773
        %v6775 = vpop.f32.mrf.mxu0
        %v6776 = vpop.f32.mrf.mxu0
        %v6777 = vadd.f32 %v6648, %v6776
        %v6778 = vpop.f32.mrf.mxu0
        %6779 = vmatprep.mubr.bf16.mxu0 %v6156
        %6780 = vmatmul.mubr.bf16.gmra.mxu0 %v6096
        %v6781 = vpop.f32.mrf.mxu0
        %v6782 = vadd.f32 %v6653, %v6781
        %v6783 = vpop.f32.mrf.mxu0
        %v6784 = vpop.f32.mrf.mxu0
        %v6785 = vadd.f32 %v6656, %v6784
        %v6786 = vpop.f32.mrf.mxu0
        %6787 = vmatprep.mubr.bf16.mxu0 %v6157
        %6788 = vmatmul.mubr.bf16.gmra.mxu0 %v6097
        %v6789 = vpop.f32.mrf.mxu0
        %v6790 = vadd.f32 %v6661, %v6789
        %v6791 = vpop.f32.mrf.mxu0
        %v6792 = vpop.f32.mrf.mxu0
        %v6793 = vadd.f32 %v6664, %v6792
        %v6794 = vpop.f32.mrf.mxu0
        %6795 = vmatprep.mubr.bf16.mxu0 %v6158
        %6796 = vmatmul.mubr.bf16.gmra.mxu0 %v6098
        %v6797 = vpop.f32.mrf.mxu0
        %v6798 = vadd.f32 %v6669, %v6797
        %v6799 = vpop.f32.mrf.mxu0
        %v6800 = vpop.f32.mrf.mxu0
        %v6801 = vadd.f32 %v6672, %v6800
        %v6802 = vpop.f32.mrf.mxu0
        %6803 = vdwg.mxu0
        %6804 = vmatprep.subr.bf16.mxu0 0
        %6805 = vmatpush1.bf16.msra.mxu0 %v6505
        %6806 = vmatprep.subr.bf16.mxu0 0
        %6807 = vmatpush1.bf16.msra.mxu0 %v6504
        %6808 = vmatprep.subr.bf16.mxu0 0
        %6809 = vmatpush1.bf16.msra.mxu0 %v6503
        %6810 = vmatprep.subr.bf16.mxu0 0
        %6811 = vmatpush1.bf16.msra.mxu0 %v6502
        %6812 = vmatprep.subr.bf16.mxu0 0
        %6813 = vmatpush1.bf16.msra.mxu0 %v6501
        %6814 = vmatprep.subr.bf16.mxu0 0
        %6815 = vmatpush1.bf16.msra.mxu0 %v6500
        %6816 = vmatprep.subr.bf16.mxu0 0
        %6817 = vmatpush1.bf16.msra.mxu0 %v6499
        %6818 = vmatprep.subr.bf16.mxu0 0
        %6819 = vmatpush1.bf16.msra.mxu0 %v6498
        %6820 = vmatprep.subr.bf16.mxu0 0
        %6821 = vmatpush2.bf16.msra.mxu0 0
        %6822 = vmatprep.subr.bf16.mxu0 0
        %6823 = vmatpush2.bf16.msra.mxu0 0
        %6824 = vmatprep.subr.bf16.mxu0 0
        %6825 = vmatpush2.bf16.msra.mxu0 0
        %6826 = vmatprep.subr.bf16.mxu0 0
        %6827 = vmatpush2.bf16.msra.mxu0 0
        %6828 = vmatprep.subr.bf16.mxu0 0
        %6829 = vmatpush2.bf16.msra.mxu0 0
        %6830 = vmatprep.subr.bf16.mxu0 0
        %6831 = vmatpush2.bf16.msra.mxu0 0
        %6832 = vmatprep.subr.bf16.mxu0 0
        %6833 = vmatpush2.bf16.msra.mxu0 0
        %6834 = vmatprep.subr.bf16.mxu0 0
        %6835 = vmatpush2.bf16.msra.mxu0 0
        %6836 = vmatprep.mubr.bf16.mxu0 0
        %6837 = vmatmul.mubr.bf16.gmra.mxu0 %v6207
        %v6838 = vpop.f32.mrf.mxu0
        %v6839 = vadd.f32 %v6710, %v6838
        %v6840 = vpop.f32.mrf.mxu0
        %v6841 = vpop.f32.mrf.mxu0
        %v6842 = vadd.f32 %v6713, %v6841
        %v6843 = vpop.f32.mrf.mxu0
        %6844 = vmatprep.mubr.bf16.mxu0 0
        %6845 = vmatmul.mubr.bf16.gmra.mxu0 %v6208
        %v6846 = vpop.f32.mrf.mxu0
        %v6847 = vadd.f32 %v6718, %v6846
        %v6848 = vpop.f32.mrf.mxu0
        %v6849 = vpop.f32.mrf.mxu0
        %v6850 = vadd.f32 %v6721, %v6849
        %v6851 = vpop.f32.mrf.mxu0
        %6852 = vmatprep.mubr.bf16.mxu0 0
        %6853 = vmatmul.mubr.bf16.gmra.mxu0 %v6209
        %v6854 = vpop.f32.mrf.mxu0
        %v6855 = vadd.f32 %v6726, %v6854
        %v6856 = vpop.f32.mrf.mxu0
        %v6857 = vpop.f32.mrf.mxu0
        %v6858 = vadd.f32 %v6729, %v6857
        %v6859 = vpop.f32.mrf.mxu0
        %6860 = vmatprep.mubr.bf16.mxu0 0
        %6861 = vmatmul.mubr.bf16.gmra.mxu0 %v6210
        %v6862 = vpop.f32.mrf.mxu0
        %v6863 = vadd.f32 %v6734, %v6862
        %v6864 = vpop.f32.mrf.mxu0
        %v6865 = vpop.f32.mrf.mxu0
        %v6866 = vadd.f32 %v6737, %v6865
        %v6867 = vpop.f32.mrf.mxu0
        %6868 = vmatprep.mubr.bf16.mxu0 0
        %6869 = vmatmul.mubr.bf16.gmra.mxu0 %v6211
        %v6870 = vpop.f32.mrf.mxu0
        %v6871 = vadd.f32 %v6742, %v6870
        %v6872 = vpop.f32.mrf.mxu0
        %v6873 = vpop.f32.mrf.mxu0
        %v6874 = vadd.f32 %v6745, %v6873
        %v6875 = vpop.f32.mrf.mxu0
        %6876 = vmatprep.mubr.bf16.mxu0 0
        %6877 = vmatmul.mubr.bf16.gmra.mxu0 %v6212
        %v6878 = vpop.f32.mrf.mxu0
        %v6879 = vadd.f32 %v6750, %v6878
        %v6880 = vpop.f32.mrf.mxu0
        %v6881 = vpop.f32.mrf.mxu0
        %v6882 = vadd.f32 %v6753, %v6881
        %v6883 = vpop.f32.mrf.mxu0
        %6884 = vmatprep.mubr.bf16.mxu0 0
        %6885 = vmatmul.mubr.bf16.gmra.mxu0 %v6213
        %v6886 = vpop.f32.mrf.mxu0
        %v6887 = vadd.f32 %v6758, %v6886
        %v6888 = vpop.f32.mrf.mxu0
        %v6889 = vpop.f32.mrf.mxu0
        %v6890 = vadd.f32 %v6761, %v6889
        %v6891 = vpop.f32.mrf.mxu0
        %6892 = vmatprep.mubr.bf16.mxu0 0
        %6893 = vmatmul.mubr.bf16.gmra.mxu0 %v6214
        %v6894 = vpop.f32.mrf.mxu0
        %v6895 = vadd.f32 %v6766, %v6894
        %v6896 = vpop.f32.mrf.mxu0
        %v6897 = vpop.f32.mrf.mxu0
        %v6898 = vadd.f32 %v6769, %v6897
        %v6899 = vpop.f32.mrf.mxu0
        %6900 = vmatprep.mubr.bf16.mxu0 0
        %6901 = vmatmul.mubr.bf16.gmra.mxu0 %v6215
        %v6902 = vpop.f32.mrf.mxu0
        %v6903 = vadd.f32 %v6774, %v6902
        %v6904 = vpop.f32.mrf.mxu0
        %v6905 = vpop.f32.mrf.mxu0
        %v6906 = vadd.f32 %v6777, %v6905
        %v6907 = vpop.f32.mrf.mxu0
        %6908 = vmatprep.mubr.bf16.mxu0 0
        %6909 = vmatmul.mubr.bf16.gmra.mxu0 %v6216
        %v6910 = vpop.f32.mrf.mxu0
        %v6911 = vadd.f32 %v6782, %v6910
        %v6912 = vpop.f32.mrf.mxu0
        %v6913 = vpop.f32.mrf.mxu0
        %v6914 = vadd.f32 %v6785, %v6913
        %v6915 = vpop.f32.mrf.mxu0
        %6916 = vmatprep.mubr.bf16.mxu0 0
        %6917 = vmatmul.mubr.bf16.gmra.mxu0 %v6217
        %v6918 = vpop.f32.mrf.mxu0
        %v6919 = vadd.f32 %v6790, %v6918
        %v6920 = vpop.f32.mrf.mxu0
        %v6921 = vpop.f32.mrf.mxu0
        %v6922 = vadd.f32 %v6793, %v6921
        %v6923 = vpop.f32.mrf.mxu0
        %6924 = vmatprep.mubr.bf16.mxu0 0
        %6925 = vmatmul.mubr.bf16.gmra.mxu0 %v6218
        %v6926 = vpop.f32.mrf.mxu0
        %v6927 = vadd.f32 %v6798, %v6926
        %v6928 = vpop.f32.mrf.mxu0
        %v6929 = vpop.f32.mrf.mxu0
        %v6930 = vadd.f32 %v6801, %v6929
        %v6931 = vpop.f32.mrf.mxu0
        %6932 = vdwg.mxu0
        %v6933 = vmax.f32 %v6839, 0.0
        %v6934 = vmax.f32 %v6842, 0.0
        %v6935 = vmax.f32 %v6847, 0.0
        %v6936 = vmax.f32 %v6850, 0.0
        %v6937 = vmax.f32 %v6855, 0.0
        %v6938 = vmax.f32 %v6858, 0.0
        %v6939 = vmax.f32 %v6863, 0.0
        %v6940 = vmax.f32 %v6866, 0.0
        %v6941 = vmax.f32 %v6871, 0.0
        %v6942 = vmax.f32 %v6874, 0.0
        %v6943 = vmax.f32 %v6879, 0.0
        %v6944 = vmax.f32 %v6882, 0.0
        %v6945 = vmax.f32 %v6887, 0.0
        %v6946 = vmax.f32 %v6890, 0.0
        %v6947 = vmax.f32 %v6895, 0.0
        %v6948 = vmax.f32 %v6898, 0.0
        %v6949 = vmax.f32 %v6903, 0.0
        %v6950 = vmax.f32 %v6906, 0.0
        %v6951 = vmax.f32 %v6911, 0.0
        %v6952 = vmax.f32 %v6914, 0.0
        %v6953 = vmax.f32 %v6919, 0.0
        %v6954 = vmax.f32 %v6922, 0.0
        %v6955 = vmax.f32 %v6927, 0.0
        %v6956 = vmax.f32 %v6930, 0.0
        %v6957 = vmul.f32 %v6933, %v1107
        %v6958 = vmul.f32 %v6934, %v1108
        %v6959 = vmul.f32 %v6935, %v1109
        %v6960 = vmul.f32 %v6936, %v1110
        %v6961 = vmul.f32 %v6937, %v1111
        %v6962 = vmul.f32 %v6938, %v1112
        %v6963 = vmul.f32 %v6939, %v1113
        %v6964 = vmul.f32 %v6940, %v1114
        %v6965 = vmul.f32 %v6941, %v1115
        %v6966 = vmul.f32 %v6942, %v1116
        %v6967 = vmul.f32 %v6943, %v1117
        %v6968 = vmul.f32 %v6944, %v1118
        %v6969 = vmul.f32 %v6945, %v1119
        %v6970 = vmul.f32 %v6946, %v1120
        %v6971 = vmul.f32 %v6947, %v1121
        %v6972 = vmul.f32 %v6948, %v1122
        %v6973 = vmul.f32 %v6949, %v1123
        %v6974 = vmul.f32 %v6950, %v1124
        %v6975 = vmul.f32 %v6951, %v1125
        %v6976 = vmul.f32 %v6952, %v1126
        %v6977 = vmul.f32 %v6953, %v1127
        %v6978 = vmul.f32 %v6954, %v1128
        %v6979 = vmul.f32 %v6955, %v1129
        %v6980 = vmul.f32 %v6956, %v1130
        %v6981 = vrot.slane %v6957, 7
        %v6982 = vrot.slane %v6958, 7
        %v6983 = vrot.slane %v6959, 7
        %v6984 = vrot.slane %v6960, 7
        %v6985 = vrot.slane %v6961, 7
        %v6986 = vrot.slane %v6962, 7
        %v6987 = vrot.slane %v6963, 7
        %v6988 = vrot.slane %v6964, 7
        %v6989 = vrot.slane %v6965, 7
        %v6990 = vrot.slane %v6966, 7
        %v6991 = vrot.slane %v6967, 7
        %v6992 = vrot.slane %v6968, 7
        %v6993 = vrot.slane %v6969, 7
        %v6994 = vrot.slane %v6970, 7
        %v6995 = vrot.slane %v6971, 7
        %v6996 = vrot.slane %v6972, 7
        %v6997 = vrot.slane %v6973, 7
        %v6998 = vrot.slane %v6974, 7
        %v6999 = vrot.slane %v6975, 7
        %v7000 = vrot.slane %v6976, 7
        %v7001 = vrot.slane %v6977, 7
        %v7002 = vrot.slane %v6978, 7
        %v7003 = vrot.slane %v6979, 7
        %v7004 = vrot.slane %v6980, 7
        %v7005 = vsel %vm1615, %v7003, %v7004
        %v7006 = vsel %vm1615, %v7002, %v7003
        %v7007 = vsel %vm1615, %v7001, %v7002
        %v7008 = vsel %vm1615, %v7000, %v7001
        %v7009 = vsel %vm1615, %v6999, %v7000
        %v7010 = vsel %vm1615, %v6998, %v6999
        %v7011 = vsel %vm1615, %v6997, %v6998
        %v7012 = vsel %vm1615, %v6996, %v6997
        %v7013 = vsel %vm1615, %v6995, %v6996
        %v7014 = vsel %vm1615, %v6994, %v6995
        %v7015 = vsel %vm1615, %v6993, %v6994
        %v7016 = vsel %vm1615, %v6992, %v6993
        %v7017 = vsel %vm1615, %v6991, %v6992
        %v7018 = vsel %vm1615, %v6990, %v6991
        %v7019 = vsel %vm1615, %v6989, %v6990
        %v7020 = vsel %vm1615, %v6988, %v6989
        %v7021 = vsel %vm1615, %v6987, %v6988
        %v7022 = vsel %vm1615, %v6986, %v6987
        %v7023 = vsel %vm1615, %v6985, %v6986
        %v7024 = vsel %vm1615, %v6984, %v6985
        %v7025 = vsel %vm1615, %v6983, %v6984
        %v7026 = vsel %vm1615, %v6982, %v6983
        %v7027 = vsel %vm1615, %v6981, %v6982
        %v7028 = vsel %vm1615, %v7004, %v6981
        %v7029 = vpack.c.bf16 %v7027, %v7028
        %v7030 = vpack.c.bf16 %v7025, %v7026
        %v7031 = vpack.c.bf16 %v7023, %v7024
        %v7032 = vpack.c.bf16 %v7021, %v7022
        %v7033 = vpack.c.bf16 %v7019, %v7020
        %v7034 = vpack.c.bf16 %v7017, %v7018
        %v7035 = vpack.c.bf16 %v7015, %v7016
        %v7036 = vpack.c.bf16 %v7013, %v7014
        %v7037 = vpack.c.bf16 %v7011, %v7012
        %v7038 = vpack.c.bf16 %v7009, %v7010
        %v7039 = vpack.c.bf16 %v7007, %v7008
        %v7040 = vpack.c.bf16 %v7005, %v7006
        %v7041 = vpack.c.bf16 %v6958, %v6957
        %v7042 = vpack.c.bf16 %v6960, %v6959
        %v7043 = vpack.c.bf16 %v6962, %v6961
        %v7044 = vpack.c.bf16 %v6964, %v6963
        %v7045 = vpack.c.bf16 %v6966, %v6965
        %v7046 = vpack.c.bf16 %v6968, %v6967
        %v7047 = vpack.c.bf16 %v6970, %v6969
        %v7048 = vpack.c.bf16 %v6972, %v6971
        %v7049 = vpack.c.bf16 %v6974, %v6973
        %v7050 = vpack.c.bf16 %v6976, %v6975
        %v7051 = vpack.c.bf16 %v6978, %v6977
        %v7052 = vpack.c.bf16 %v6980, %v6979
        %v7053 = vrot.slane %v6957, 1
        %v7054 = vrot.slane %v6958, 1
        %v7055 = vrot.slane %v6959, 1
        %v7056 = vrot.slane %v6960, 1
        %v7057 = vrot.slane %v6961, 1
        %v7058 = vrot.slane %v6962, 1
        %v7059 = vrot.slane %v6963, 1
        %v7060 = vrot.slane %v6964, 1
        %v7061 = vrot.slane %v6965, 1
        %v7062 = vrot.slane %v6966, 1
        %v7063 = vrot.slane %v6967, 1
        %v7064 = vrot.slane %v6968, 1
        %v7065 = vrot.slane %v6969, 1
        %v7066 = vrot.slane %v6970, 1
        %v7067 = vrot.slane %v6971, 1
        %v7068 = vrot.slane %v6972, 1
        %v7069 = vrot.slane %v6973, 1
        %v7070 = vrot.slane %v6974, 1
        %v7071 = vrot.slane %v6975, 1
        %v7072 = vrot.slane %v6976, 1
        %v7073 = vrot.slane %v6977, 1
        %v7074 = vrot.slane %v6978, 1
        %v7075 = vrot.slane %v6979, 1
        %v7076 = vrot.slane %v6980, 1
        %v7077 = vsel %vm2298, %v7075, %v7076
        %v7078 = vsel %vm2298, %v7074, %v7075
        %v7079 = vsel %vm2298, %v7073, %v7074
        %v7080 = vsel %vm2298, %v7072, %v7073
        %v7081 = vsel %vm2298, %v7071, %v7072
        %v7082 = vsel %vm2298, %v7070, %v7071
        %v7083 = vsel %vm2298, %v7069, %v7070
        %v7084 = vsel %vm2298, %v7068, %v7069
        %v7085 = vsel %vm2298, %v7067, %v7068
        %v7086 = vsel %vm2298, %v7066, %v7067
        %v7087 = vsel %vm2298, %v7065, %v7066
        %v7088 = vsel %vm2298, %v7064, %v7065
        %v7089 = vsel %vm2298, %v7063, %v7064
        %v7090 = vsel %vm2298, %v7062, %v7063
        %v7091 = vsel %vm2298, %v7061, %v7062
        %v7092 = vsel %vm2298, %v7060, %v7061
        %v7093 = vsel %vm2298, %v7059, %v7060
        %v7094 = vsel %vm2298, %v7058, %v7059
        %v7095 = vsel %vm2298, %v7057, %v7058
        %v7096 = vsel %vm2298, %v7056, %v7057
        %v7097 = vsel %vm2298, %v7055, %v7056
        %v7098 = vsel %vm2298, %v7054, %v7055
        %v7099 = vsel %vm2298, %v7053, %v7054
        %v7100 = vsel %vm2298, %v7076, %v7053
        %v7101 = vpack.c.bf16 %v7098, %v7099
        %v7102 = vpack.c.bf16 %v7096, %v7097
        %v7103 = vpack.c.bf16 %v7094, %v7095
        %v7104 = vpack.c.bf16 %v7092, %v7093
        %v7105 = vpack.c.bf16 %v7090, %v7091
        %v7106 = vpack.c.bf16 %v7088, %v7089
        %v7107 = vpack.c.bf16 %v7086, %v7087
        %v7108 = vpack.c.bf16 %v7084, %v7085
        %v7109 = vpack.c.bf16 %v7082, %v7083
        %v7110 = vpack.c.bf16 %v7080, %v7081
        %v7111 = vpack.c.bf16 %v7078, %v7079
        %v7112 = vpack.c.bf16 %v7100, %v7077
        %v7113 = vld [vmem:[#allocation19] sm:$0xf]
        %v7114 = vld [vmem:[#allocation19 + $0x4] sm:$0xf]
        %v7115 = vld [vmem:[#allocation19 + $0x8] sm:$0xf]
        %v7116 = vld [vmem:[#allocation19 + $0xc] sm:$0xf]
        %v7117 = vld [vmem:[#allocation19 + $0x10] sm:$0xf]
        %v7118 = vld [vmem:[#allocation19 + $0x14] sm:$0xf]
        %v7119 = vld [vmem:[#allocation19 + $0x18] sm:$0xf]
        %v7120 = vld [vmem:[#allocation19 + $0x1c] sm:$0xf]
        %v7121 = vld [vmem:[#allocation19 + $0x20] sm:$0xf]
        %v7122 = vld [vmem:[#allocation19 + $0x24] sm:$0xf]
        %v7123 = vld [vmem:[#allocation19 + $0x28] sm:$0xf]
        %v7124 = vld [vmem:[#allocation19 + $0x2c] sm:$0xf]
        %v7125 = vld [vmem:[#allocation19 + $0x30] sm:$0xf]
        %v7126 = vld [vmem:[#allocation19 + $0x34] sm:$0xf]
        %v7127 = vld [vmem:[#allocation19 + $0x38] sm:$0xf]
        %v7128 = vld [vmem:[#allocation19 + $0x3c] sm:$0xf]
        %v7129 = vld [vmem:[#allocation19 + $0x40] sm:$0xf]
        %v7130 = vld [vmem:[#allocation19 + $0x44] sm:$0xf]
        %v7131 = vld [vmem:[#allocation19 + $0x48] sm:$0xf]
        %v7132 = vld [vmem:[#allocation19 + $0x4c] sm:$0xf]
        %v7133 = vld [vmem:[#allocation19 + $0x50] sm:$0xf]
        %v7134 = vld [vmem:[#allocation19 + $0x54] sm:$0xf]
        %v7135 = vld [vmem:[#allocation19 + $0x58] sm:$0xf]
        %v7136 = vld [vmem:[#allocation19 + $0x5c] sm:$0xf]
        %v7137 = vld [vmem:[#allocation19 + $0x60] sm:$0xf]
        %v7138 = vld [vmem:[#allocation19 + $0x64] sm:$0xf]
        %v7139 = vld [vmem:[#allocation19 + $0x68] sm:$0xf]
        %v7140 = vld [vmem:[#allocation19 + $0x6c] sm:$0xf]
        %v7141 = vld [vmem:[#allocation19 + $0x70] sm:$0xf]
        %v7142 = vld [vmem:[#allocation19 + $0x74] sm:$0xf]
        %v7143 = vld [vmem:[#allocation19 + $0x78] sm:$0xf]
        %v7144 = vld [vmem:[#allocation19 + $0x7c] sm:$0xf]
        %v7145 = vld [vmem:[#allocation19 + $0x80] sm:$0xf]
        %v7146 = vld [vmem:[#allocation19 + $0x84] sm:$0xf]
        %v7147 = vld [vmem:[#allocation19 + $0x88] sm:$0xf]
        %v7148 = vld [vmem:[#allocation19 + $0x8c] sm:$0xf]
        %v7149 = vld [vmem:[#allocation19 + $0x90] sm:$0xf]
        %v7150 = vld [vmem:[#allocation19 + $0x94] sm:$0xf]
        %v7151 = vld [vmem:[#allocation19 + $0x98] sm:$0xf]
        %v7152 = vld [vmem:[#allocation19 + $0x9c] sm:$0xf]
        %v7153 = vld [vmem:[#allocation19 + $0xa0] sm:$0xf]
        %v7154 = vld [vmem:[#allocation19 + $0xa4] sm:$0xf]
        %v7155 = vld [vmem:[#allocation19 + $0xa8] sm:$0xf]
        %v7156 = vld [vmem:[#allocation19 + $0xac] sm:$0xf]
        %v7157 = vld [vmem:[#allocation19 + $0xb0] sm:$0xf]
        %v7158 = vld [vmem:[#allocation19 + $0xb4] sm:$0xf]
        %v7159 = vld [vmem:[#allocation19 + $0xb8] sm:$0xf]
        %v7160 = vld [vmem:[#allocation19 + $0xbc] sm:$0xf]
        %v7161 = vld [vmem:[#allocation20] sm:$0x1]
        %v7163 = vlaneseq
        %v7164 = vshrl.u32 %v7163, 7
        %v7165 = vsub.s32 0, %v7164
        %v7166 = vrot.slane %v7161, %v7165
        %v7216 = vunpack.c.l.b16 %v7113
        %v7217 = vunpack.c.l.b16 %v7114
        %v7218 = vunpack.c.l.b16 %v7115
        %v7219 = vunpack.c.l.b16 %v7116
        %v7220 = vunpack.c.l.b16 %v7117
        %v7221 = vunpack.c.l.b16 %v7118
        %v7222 = vunpack.c.l.b16 %v7119
        %v7223 = vunpack.c.l.b16 %v7120
        %v7224 = vunpack.c.l.b16 %v7121
        %v7225 = vunpack.c.l.b16 %v7122
        %v7226 = vunpack.c.l.b16 %v7123
        %v7227 = vunpack.c.l.b16 %v7124
        %v7228 = vunpack.c.l.b16 %v7125
        %v7229 = vunpack.c.l.b16 %v7126
        %v7230 = vunpack.c.l.b16 %v7127
        %v7231 = vunpack.c.l.b16 %v7128
        %v7232 = vunpack.c.l.b16 %v7129
        %v7233 = vunpack.c.l.b16 %v7130
        %v7234 = vunpack.c.l.b16 %v7131
        %v7235 = vunpack.c.l.b16 %v7132
        %v7236 = vunpack.c.l.b16 %v7133
        %v7237 = vunpack.c.l.b16 %v7134
        %v7238 = vunpack.c.l.b16 %v7135
        %v7239 = vunpack.c.l.b16 %v7136
        %v7240 = vunpack.c.l.b16 %v7137
        %v7241 = vunpack.c.l.b16 %v7138
        %v7242 = vunpack.c.l.b16 %v7139
        %v7243 = vunpack.c.l.b16 %v7140
        %v7244 = vunpack.c.l.b16 %v7141
        %v7245 = vunpack.c.l.b16 %v7142
        %v7246 = vunpack.c.l.b16 %v7143
        %v7247 = vunpack.c.l.b16 %v7144
        %v7248 = vunpack.c.l.b16 %v7145
        %v7249 = vunpack.c.l.b16 %v7146
        %v7250 = vunpack.c.l.b16 %v7147
        %v7251 = vunpack.c.l.b16 %v7148
        %v7252 = vunpack.c.l.b16 %v7149
        %v7253 = vunpack.c.l.b16 %v7150
        %v7254 = vunpack.c.l.b16 %v7151
        %v7255 = vunpack.c.l.b16 %v7152
        %v7256 = vunpack.c.l.b16 %v7153
        %v7257 = vunpack.c.l.b16 %v7154
        %v7258 = vunpack.c.l.b16 %v7155
        %v7259 = vunpack.c.l.b16 %v7156
        %v7260 = vunpack.c.l.b16 %v7157
        %v7261 = vunpack.c.l.b16 %v7158
        %v7262 = vunpack.c.l.b16 %v7159
        %v7263 = vunpack.c.l.b16 %v7160
        %v7264 = vpack.c.b16 %v7217, %v7216
        %v7265 = vpack.c.b16 %v7219, %v7218
        %v7266 = vpack.c.b16 %v7221, %v7220
        %v7267 = vpack.c.b16 %v7223, %v7222
        %v7268 = vpack.c.b16 %v7225, %v7224
        %v7269 = vpack.c.b16 %v7227, %v7226
        %v7270 = vpack.c.b16 %v7229, %v7228
        %v7271 = vpack.c.b16 %v7231, %v7230
        %v7272 = vpack.c.b16 %v7233, %v7232
        %v7273 = vpack.c.b16 %v7235, %v7234
        %v7274 = vpack.c.b16 %v7237, %v7236
        %v7275 = vpack.c.b16 %v7239, %v7238
        %v7276 = vpack.c.b16 %v7241, %v7240
        %v7277 = vpack.c.b16 %v7243, %v7242
        %v7278 = vpack.c.b16 %v7245, %v7244
        %v7279 = vpack.c.b16 %v7247, %v7246
        %v7280 = vpack.c.b16 %v7249, %v7248
        %v7281 = vpack.c.b16 %v7251, %v7250
        %v7282 = vpack.c.b16 %v7253, %v7252
        %v7283 = vpack.c.b16 %v7255, %v7254
        %v7284 = vpack.c.b16 %v7257, %v7256
        %v7285 = vpack.c.b16 %v7259, %v7258
        %v7286 = vpack.c.b16 %v7261, %v7260
        %v7287 = vpack.c.b16 %v7263, %v7262
        %7312 = vmatprep.subr.bf16.mxu0 0
        %7313 = vmatpush1.bf16.msra.mxu0 %v7271
        %7314 = vmatprep.subr.bf16.mxu0 0
        %7315 = vmatpush1.bf16.msra.mxu0 %v7270
        %7316 = vmatprep.subr.bf16.mxu0 0
        %7317 = vmatpush1.bf16.msra.mxu0 %v7269
        %7318 = vmatprep.subr.bf16.mxu0 0
        %7319 = vmatpush1.bf16.msra.mxu0 %v7268
        %7320 = vmatprep.subr.bf16.mxu0 0
        %7321 = vmatpush1.bf16.msra.mxu0 %v7267
        %7322 = vmatprep.subr.bf16.mxu0 0
        %7323 = vmatpush1.bf16.msra.mxu0 %v7266
        %7324 = vmatprep.subr.bf16.mxu0 0
        %7325 = vmatpush1.bf16.msra.mxu0 %v7265
        %7326 = vmatprep.subr.bf16.mxu0 0
        %7327 = vmatpush1.bf16.msra.mxu0 %v7264
        %7328 = vmatprep.subr.bf16.mxu0 0
        %7329 = vmatpush2.bf16.msra.mxu0 %v7279
        %7330 = vmatprep.subr.bf16.mxu0 0
        %7331 = vmatpush2.bf16.msra.mxu0 %v7278
        %7332 = vmatprep.subr.bf16.mxu0 0
        %7333 = vmatpush2.bf16.msra.mxu0 %v7277
        %7334 = vmatprep.subr.bf16.mxu0 0
        %7335 = vmatpush2.bf16.msra.mxu0 %v7276
        %7336 = vmatprep.subr.bf16.mxu0 0
        %7337 = vmatpush2.bf16.msra.mxu0 %v7275
        %7338 = vmatprep.subr.bf16.mxu0 0
        %7339 = vmatpush2.bf16.msra.mxu0 %v7274
        %7340 = vmatprep.subr.bf16.mxu0 0
        %7341 = vmatpush2.bf16.msra.mxu0 %v7273
        %7342 = vmatprep.subr.bf16.mxu0 0
        %7343 = vmatpush2.bf16.msra.mxu0 %v7272
        %7344 = vmatprep.mubr.bf16.mxu0 %v7041
        %7345 = vmatmul.mubr.bf16.gmra.mxu0 %v7029
        %v7346 = vpop.f32.mrf.mxu0
        %v7347 = vadd.f32 %v7166, %v7346
        %v7348 = vpop.f32.mrf.mxu0
        %v7349 = vpop.f32.mrf.mxu0
        %v7350 = vadd.f32 %v7166, %v7349
        %v7351 = vpop.f32.mrf.mxu0
        %7352 = vmatprep.mubr.bf16.mxu0 %v7042
        %7353 = vmatmul.mubr.bf16.gmra.mxu0 %v7030
        %v7354 = vpop.f32.mrf.mxu0
        %v7355 = vadd.f32 %v7166, %v7354
        %v7356 = vpop.f32.mrf.mxu0
        %v7357 = vpop.f32.mrf.mxu0
        %v7358 = vadd.f32 %v7166, %v7357
        %v7359 = vpop.f32.mrf.mxu0
        %7360 = vmatprep.mubr.bf16.mxu0 %v7043
        %7361 = vmatmul.mubr.bf16.gmra.mxu0 %v7031
        %v7362 = vpop.f32.mrf.mxu0
        %v7363 = vadd.f32 %v7166, %v7362
        %v7364 = vpop.f32.mrf.mxu0
        %v7365 = vpop.f32.mrf.mxu0
        %v7366 = vadd.f32 %v7166, %v7365
        %v7367 = vpop.f32.mrf.mxu0
        %7368 = vmatprep.mubr.bf16.mxu0 %v7044
        %7369 = vmatmul.mubr.bf16.gmra.mxu0 %v7032
        %v7370 = vpop.f32.mrf.mxu0
        %v7371 = vadd.f32 %v7166, %v7370
        %v7372 = vpop.f32.mrf.mxu0
        %v7373 = vpop.f32.mrf.mxu0
        %v7374 = vadd.f32 %v7166, %v7373
        %v7375 = vpop.f32.mrf.mxu0
        %7376 = vmatprep.mubr.bf16.mxu0 %v7045
        %7377 = vmatmul.mubr.bf16.gmra.mxu0 %v7033
        %v7378 = vpop.f32.mrf.mxu0
        %v7379 = vadd.f32 %v7166, %v7378
        %v7380 = vpop.f32.mrf.mxu0
        %v7381 = vpop.f32.mrf.mxu0
        %v7382 = vadd.f32 %v7166, %v7381
        %v7383 = vpop.f32.mrf.mxu0
        %7384 = vmatprep.mubr.bf16.mxu0 %v7046
        %7385 = vmatmul.mubr.bf16.gmra.mxu0 %v7034
        %v7386 = vpop.f32.mrf.mxu0
        %v7387 = vadd.f32 %v7166, %v7386
        %v7388 = vpop.f32.mrf.mxu0
        %v7389 = vpop.f32.mrf.mxu0
        %v7390 = vadd.f32 %v7166, %v7389
        %v7391 = vpop.f32.mrf.mxu0
        %7392 = vmatprep.mubr.bf16.mxu0 %v7047
        %7393 = vmatmul.mubr.bf16.gmra.mxu0 %v7035
        %v7394 = vpop.f32.mrf.mxu0
        %v7395 = vadd.f32 %v7166, %v7394
        %v7396 = vpop.f32.mrf.mxu0
        %v7397 = vpop.f32.mrf.mxu0
        %v7398 = vadd.f32 %v7166, %v7397
        %v7399 = vpop.f32.mrf.mxu0
        %7400 = vmatprep.mubr.bf16.mxu0 %v7048
        %7401 = vmatmul.mubr.bf16.gmra.mxu0 %v7036
        %v7402 = vpop.f32.mrf.mxu0
        %v7403 = vadd.f32 %v7166, %v7402
        %v7404 = vpop.f32.mrf.mxu0
        %v7405 = vpop.f32.mrf.mxu0
        %v7406 = vadd.f32 %v7166, %v7405
        %v7407 = vpop.f32.mrf.mxu0
        %7408 = vmatprep.mubr.bf16.mxu0 %v7049
        %7409 = vmatmul.mubr.bf16.gmra.mxu0 %v7037
        %v7410 = vpop.f32.mrf.mxu0
        %v7411 = vadd.f32 %v7166, %v7410
        %v7412 = vpop.f32.mrf.mxu0
        %v7413 = vpop.f32.mrf.mxu0
        %v7414 = vadd.f32 %v7166, %v7413
        %v7415 = vpop.f32.mrf.mxu0
        %7416 = vmatprep.mubr.bf16.mxu0 %v7050
        %7417 = vmatmul.mubr.bf16.gmra.mxu0 %v7038
        %v7418 = vpop.f32.mrf.mxu0
        %v7419 = vadd.f32 %v7166, %v7418
        %v7420 = vpop.f32.mrf.mxu0
        %v7421 = vpop.f32.mrf.mxu0
        %v7422 = vadd.f32 %v7166, %v7421
        %v7423 = vpop.f32.mrf.mxu0
        %7424 = vmatprep.mubr.bf16.mxu0 %v7051
        %7425 = vmatmul.mubr.bf16.gmra.mxu0 %v7039
        %v7426 = vpop.f32.mrf.mxu0
        %v7427 = vadd.f32 %v7166, %v7426
        %v7428 = vpop.f32.mrf.mxu0
        %v7429 = vpop.f32.mrf.mxu0
        %v7430 = vadd.f32 %v7166, %v7429
        %v7431 = vpop.f32.mrf.mxu0
        %7432 = vmatprep.mubr.bf16.mxu0 %v7052
        %7433 = vmatmul.mubr.bf16.gmra.mxu0 %v7040
        %v7434 = vpop.f32.mrf.mxu0
        %v7435 = vadd.f32 %v7166, %v7434
        %v7436 = vpop.f32.mrf.mxu0
        %v7437 = vpop.f32.mrf.mxu0
        %v7438 = vadd.f32 %v7166, %v7437
        %v7439 = vpop.f32.mrf.mxu0
        %7440 = vdwg.mxu0
        %7441 = vmatprep.subr.bf16.mxu0 0
        %7442 = vmatpush1.bf16.msra.mxu0 %v7287
        %7443 = vmatprep.subr.bf16.mxu0 0
        %7444 = vmatpush1.bf16.msra.mxu0 %v7286
        %7445 = vmatprep.subr.bf16.mxu0 0
        %7446 = vmatpush1.bf16.msra.mxu0 %v7285
        %7447 = vmatprep.subr.bf16.mxu0 0
        %7448 = vmatpush1.bf16.msra.mxu0 %v7284
        %7449 = vmatprep.subr.bf16.mxu0 0
        %7450 = vmatpush1.bf16.msra.mxu0 %v7283
        %7451 = vmatprep.subr.bf16.mxu0 0
        %7452 = vmatpush1.bf16.msra.mxu0 %v7282
        %7453 = vmatprep.subr.bf16.mxu0 0
        %7454 = vmatpush1.bf16.msra.mxu0 %v7281
        %7455 = vmatprep.subr.bf16.mxu0 0
        %7456 = vmatpush1.bf16.msra.mxu0 %v7280
        %7457 = vmatprep.subr.bf16.mxu0 0
        %7458 = vmatpush2.bf16.msra.mxu0 0
        %7459 = vmatprep.subr.bf16.mxu0 0
        %7460 = vmatpush2.bf16.msra.mxu0 0
        %7461 = vmatprep.subr.bf16.mxu0 0
        %7462 = vmatpush2.bf16.msra.mxu0 0
        %7463 = vmatprep.subr.bf16.mxu0 0
        %7464 = vmatpush2.bf16.msra.mxu0 0
        %7465 = vmatprep.subr.bf16.mxu0 0
        %7466 = vmatpush2.bf16.msra.mxu0 0
        %7467 = vmatprep.subr.bf16.mxu0 0
        %7468 = vmatpush2.bf16.msra.mxu0 0
        %7469 = vmatprep.subr.bf16.mxu0 0
        %7470 = vmatpush2.bf16.msra.mxu0 0
        %7471 = vmatprep.subr.bf16.mxu0 0
        %7472 = vmatpush2.bf16.msra.mxu0 0
        %7473 = vmatprep.mubr.bf16.mxu0 0
        %7474 = vmatmul.mubr.bf16.gmra.mxu0 %v7101
        %v7475 = vpop.f32.mrf.mxu0
        %v7476 = vadd.f32 %v7347, %v7475
        %v7477 = vpop.f32.mrf.mxu0
        %v7478 = vpop.f32.mrf.mxu0
        %v7479 = vadd.f32 %v7350, %v7478
        %v7480 = vpop.f32.mrf.mxu0
        %7481 = vmatprep.mubr.bf16.mxu0 0
        %7482 = vmatmul.mubr.bf16.gmra.mxu0 %v7102
        %v7483 = vpop.f32.mrf.mxu0
        %v7484 = vadd.f32 %v7355, %v7483
        %v7485 = vpop.f32.mrf.mxu0
        %v7486 = vpop.f32.mrf.mxu0
        %v7487 = vadd.f32 %v7358, %v7486
        %v7488 = vpop.f32.mrf.mxu0
        %7489 = vmatprep.mubr.bf16.mxu0 0
        %7490 = vmatmul.mubr.bf16.gmra.mxu0 %v7103
        %v7491 = vpop.f32.mrf.mxu0
        %v7492 = vadd.f32 %v7363, %v7491
        %v7493 = vpop.f32.mrf.mxu0
        %v7494 = vpop.f32.mrf.mxu0
        %v7495 = vadd.f32 %v7366, %v7494
        %v7496 = vpop.f32.mrf.mxu0
        %7497 = vmatprep.mubr.bf16.mxu0 0
        %7498 = vmatmul.mubr.bf16.gmra.mxu0 %v7104
        %v7499 = vpop.f32.mrf.mxu0
        %v7500 = vadd.f32 %v7371, %v7499
        %v7501 = vpop.f32.mrf.mxu0
        %v7502 = vpop.f32.mrf.mxu0
        %v7503 = vadd.f32 %v7374, %v7502
        %v7504 = vpop.f32.mrf.mxu0
        %7505 = vmatprep.mubr.bf16.mxu0 0
        %7506 = vmatmul.mubr.bf16.gmra.mxu0 %v7105
        %v7507 = vpop.f32.mrf.mxu0
        %v7508 = vadd.f32 %v7379, %v7507
        %v7509 = vpop.f32.mrf.mxu0
        %v7510 = vpop.f32.mrf.mxu0
        %v7511 = vadd.f32 %v7382, %v7510
        %v7512 = vpop.f32.mrf.mxu0
        %7513 = vmatprep.mubr.bf16.mxu0 0
        %7514 = vmatmul.mubr.bf16.gmra.mxu0 %v7106
        %v7515 = vpop.f32.mrf.mxu0
        %v7516 = vadd.f32 %v7387, %v7515
        %v7517 = vpop.f32.mrf.mxu0
        %v7518 = vpop.f32.mrf.mxu0
        %v7519 = vadd.f32 %v7390, %v7518
        %v7520 = vpop.f32.mrf.mxu0
        %7521 = vmatprep.mubr.bf16.mxu0 0
        %7522 = vmatmul.mubr.bf16.gmra.mxu0 %v7107
        %v7523 = vpop.f32.mrf.mxu0
        %v7524 = vadd.f32 %v7395, %v7523
        %v7525 = vpop.f32.mrf.mxu0
        %v7526 = vpop.f32.mrf.mxu0
        %v7527 = vadd.f32 %v7398, %v7526
        %v7528 = vpop.f32.mrf.mxu0
        %7529 = vmatprep.mubr.bf16.mxu0 0
        %7530 = vmatmul.mubr.bf16.gmra.mxu0 %v7108
        %v7531 = vpop.f32.mrf.mxu0
        %v7532 = vadd.f32 %v7403, %v7531
        %v7533 = vpop.f32.mrf.mxu0
        %v7534 = vpop.f32.mrf.mxu0
        %v7535 = vadd.f32 %v7406, %v7534
        %v7536 = vpop.f32.mrf.mxu0
        %7537 = vmatprep.mubr.bf16.mxu0 0
        %7538 = vmatmul.mubr.bf16.gmra.mxu0 %v7109
        %v7539 = vpop.f32.mrf.mxu0
        %v7540 = vadd.f32 %v7411, %v7539
        %v7541 = vpop.f32.mrf.mxu0
        %v7542 = vpop.f32.mrf.mxu0
        %v7543 = vadd.f32 %v7414, %v7542
        %v7544 = vpop.f32.mrf.mxu0
        %7545 = vmatprep.mubr.bf16.mxu0 0
        %7546 = vmatmul.mubr.bf16.gmra.mxu0 %v7110
        %v7547 = vpop.f32.mrf.mxu0
        %v7548 = vadd.f32 %v7419, %v7547
        %v7549 = vpop.f32.mrf.mxu0
        %v7550 = vpop.f32.mrf.mxu0
        %v7551 = vadd.f32 %v7422, %v7550
        %v7552 = vpop.f32.mrf.mxu0
        %7553 = vmatprep.mubr.bf16.mxu0 0
        %7554 = vmatmul.mubr.bf16.gmra.mxu0 %v7111
        %v7555 = vpop.f32.mrf.mxu0
        %v7556 = vadd.f32 %v7427, %v7555
        %v7557 = vpop.f32.mrf.mxu0
        %v7558 = vpop.f32.mrf.mxu0
        %v7559 = vadd.f32 %v7430, %v7558
        %v7560 = vpop.f32.mrf.mxu0
        %7561 = vmatprep.mubr.bf16.mxu0 0
        %7562 = vmatmul.mubr.bf16.gmra.mxu0 %v7112
        %v7563 = vpop.f32.mrf.mxu0
        %v7564 = vadd.f32 %v7435, %v7563
        %v7565 = vpop.f32.mrf.mxu0
        %v7566 = vpop.f32.mrf.mxu0
        %v7567 = vadd.f32 %v7438, %v7566
        %v7568 = vpop.f32.mrf.mxu0
        %7569 = vdwg.mxu0
        %v7570 = vmax.f32 %v7476, 0.0
        %v7571 = vmax.f32 %v7479, 0.0
        %v7572 = vmax.f32 %v7484, 0.0
        %v7573 = vmax.f32 %v7487, 0.0
        %v7574 = vmax.f32 %v7492, 0.0
        %v7575 = vmax.f32 %v7495, 0.0
        %v7576 = vmax.f32 %v7500, 0.0
        %v7577 = vmax.f32 %v7503, 0.0
        %v7578 = vmax.f32 %v7508, 0.0
        %v7579 = vmax.f32 %v7511, 0.0
        %v7580 = vmax.f32 %v7516, 0.0
        %v7581 = vmax.f32 %v7519, 0.0
        %v7582 = vmax.f32 %v7524, 0.0
        %v7583 = vmax.f32 %v7527, 0.0
        %v7584 = vmax.f32 %v7532, 0.0
        %v7585 = vmax.f32 %v7535, 0.0
        %v7586 = vmax.f32 %v7540, 0.0
        %v7587 = vmax.f32 %v7543, 0.0
        %v7588 = vmax.f32 %v7548, 0.0
        %v7589 = vmax.f32 %v7551, 0.0
        %v7590 = vmax.f32 %v7556, 0.0
        %v7591 = vmax.f32 %v7559, 0.0
        %v7592 = vmax.f32 %v7564, 0.0
        %v7593 = vmax.f32 %v7567, 0.0
        %v7594 = vmul.f32 %v7570, %v1107
        %v7595 = vmul.f32 %v7571, %v1108
        %v7596 = vmul.f32 %v7572, %v1109
        %v7597 = vmul.f32 %v7573, %v1110
        %v7598 = vmul.f32 %v7574, %v1111
        %v7599 = vmul.f32 %v7575, %v1112
        %v7600 = vmul.f32 %v7576, %v1113
        %v7601 = vmul.f32 %v7577, %v1114
        %v7602 = vmul.f32 %v7578, %v1115
        %v7603 = vmul.f32 %v7579, %v1116
        %v7604 = vmul.f32 %v7580, %v1117
        %v7605 = vmul.f32 %v7581, %v1118
        %v7606 = vmul.f32 %v7582, %v1119
        %v7607 = vmul.f32 %v7583, %v1120
        %v7608 = vmul.f32 %v7584, %v1121
        %v7609 = vmul.f32 %v7585, %v1122
        %v7610 = vmul.f32 %v7586, %v1123
        %v7611 = vmul.f32 %v7587, %v1124
        %v7612 = vmul.f32 %v7588, %v1125
        %v7613 = vmul.f32 %v7589, %v1126
        %v7614 = vmul.f32 %v7590, %v1127
        %v7615 = vmul.f32 %v7591, %v1128
        %v7616 = vmul.f32 %v7592, %v1129
        %v7617 = vmul.f32 %v7593, %v1130
        %v7618 = vadd.f32 %v7594, %v5943
        %v7619 = vadd.f32 %v7595, %v5944
        %v7620 = vadd.f32 %v7596, %v5945
        %v7621 = vadd.f32 %v7597, %v5946
        %v7622 = vadd.f32 %v7598, %v5947
        %v7623 = vadd.f32 %v7599, %v5948
        %v7624 = vadd.f32 %v7600, %v5949
        %v7625 = vadd.f32 %v7601, %v5950
        %v7626 = vadd.f32 %v7602, %v5951
        %v7627 = vadd.f32 %v7603, %v5952
        %v7628 = vadd.f32 %v7604, %v5953
        %v7629 = vadd.f32 %v7605, %v5954
        %v7630 = vadd.f32 %v7606, %v5955
        %v7631 = vadd.f32 %v7607, %v5956
        %v7632 = vadd.f32 %v7608, %v5957
        %v7633 = vadd.f32 %v7609, %v5958
        %v7634 = vadd.f32 %v7610, %v5959
        %v7635 = vadd.f32 %v7611, %v5960
        %v7636 = vadd.f32 %v7612, %v5961
        %v7637 = vadd.f32 %v7613, %v5962
        %v7638 = vadd.f32 %v7614, %v5963
        %v7639 = vadd.f32 %v7615, %v5964
        %v7640 = vadd.f32 %v7616, %v5965
        %v7641 = vadd.f32 %v7617, %v5966
        %v7642 = vmax.f32 %v7618, 0.0
        %v7643 = vmax.f32 %v7619, 0.0
        %v7644 = vmax.f32 %v7620, 0.0
        %v7645 = vmax.f32 %v7621, 0.0
        %v7646 = vmax.f32 %v7622, 0.0
        %v7647 = vmax.f32 %v7623, 0.0
        %v7648 = vmax.f32 %v7624, 0.0
        %v7649 = vmax.f32 %v7625, 0.0
        %v7650 = vmax.f32 %v7626, 0.0
        %v7651 = vmax.f32 %v7627, 0.0
        %v7652 = vmax.f32 %v7628, 0.0
        %v7653 = vmax.f32 %v7629, 0.0
        %v7654 = vmax.f32 %v7630, 0.0
        %v7655 = vmax.f32 %v7631, 0.0
        %v7656 = vmax.f32 %v7632, 0.0
        %v7657 = vmax.f32 %v7633, 0.0
        %v7658 = vmax.f32 %v7634, 0.0
        %v7659 = vmax.f32 %v7635, 0.0
        %v7660 = vmax.f32 %v7636, 0.0
        %v7661 = vmax.f32 %v7637, 0.0
        %v7662 = vmax.f32 %v7638, 0.0
        %v7663 = vmax.f32 %v7639, 0.0
        %v7664 = vmax.f32 %v7640, 0.0
        %v7665 = vmax.f32 %v7641, 0.0
        %v7666 = vpack.c.bf16 %v7643, %v7642
        %v7667 = vpack.c.bf16 %v7645, %v7644
        %v7668 = vpack.c.bf16 %v7647, %v7646
        %v7669 = vpack.c.bf16 %v7649, %v7648
        %v7670 = vpack.c.bf16 %v7651, %v7650
        %v7671 = vpack.c.bf16 %v7653, %v7652
        %v7672 = vpack.c.bf16 %v7655, %v7654
        %v7673 = vpack.c.bf16 %v7657, %v7656
        %v7674 = vpack.c.bf16 %v7659, %v7658
        %v7675 = vpack.c.bf16 %v7661, %v7660
        %v7676 = vpack.c.bf16 %v7663, %v7662
        %v7677 = vpack.c.bf16 %v7665, %v7664
        %v7678 = vld [vmem:[#allocation22] sm:$0xff]
        %v7679 = vld [vmem:[#allocation22 + $0x8] sm:$0xff]
        %v7680 = vld [vmem:[#allocation22 + $0x10] sm:$0xff]
        %v7681 = vld [vmem:[#allocation22 + $0x18] sm:$0xff]
        %v7682 = vld [vmem:[#allocation22 + $0x20] sm:$0xff]
        %v7683 = vld [vmem:[#allocation22 + $0x28] sm:$0xff]
        %v7684 = vld [vmem:[#allocation22 + $0x30] sm:$0xff]
        %v7685 = vld [vmem:[#allocation22 + $0x38] sm:$0xff]
        %v7686 = vld [vmem:[#allocation22 + $0x40] sm:$0xff]
        %v7687 = vld [vmem:[#allocation22 + $0x48] sm:$0xff]
        %v7688 = vld [vmem:[#allocation22 + $0x50] sm:$0xff]
        %v7689 = vld [vmem:[#allocation22 + $0x58] sm:$0xff]
        %v7690 = vld [vmem:[#allocation22 + $0x60] sm:$0xff]
        %v7691 = vld [vmem:[#allocation22 + $0x68] sm:$0xff]
        %v7692 = vld [vmem:[#allocation22 + $0x70] sm:$0xff]
        %v7693 = vld [vmem:[#allocation22 + $0x78] sm:$0xff]
        %v7710 = vunpack.c.l.b16 %v7678
        %v7711 = vunpack.c.h.b16 %v7678
        %v7712 = vunpack.c.l.b16 %v7679
        %v7713 = vunpack.c.h.b16 %v7679
        %v7714 = vunpack.c.l.b16 %v7680
        %v7715 = vunpack.c.h.b16 %v7680
        %v7716 = vunpack.c.l.b16 %v7681
        %v7717 = vunpack.c.h.b16 %v7681
        %v7718 = vunpack.c.l.b16 %v7682
        %v7719 = vunpack.c.h.b16 %v7682
        %v7720 = vunpack.c.l.b16 %v7683
        %v7721 = vunpack.c.h.b16 %v7683
        %v7722 = vunpack.c.l.b16 %v7684
        %v7723 = vunpack.c.h.b16 %v7684
        %v7724 = vunpack.c.l.b16 %v7685
        %v7725 = vunpack.c.h.b16 %v7685
        %v7726 = vunpack.c.l.b16 %v7686
        %v7727 = vunpack.c.h.b16 %v7686
        %v7728 = vunpack.c.l.b16 %v7687
        %v7729 = vunpack.c.h.b16 %v7687
        %v7730 = vunpack.c.l.b16 %v7688
        %v7731 = vunpack.c.h.b16 %v7688
        %v7732 = vunpack.c.l.b16 %v7689
        %v7733 = vunpack.c.h.b16 %v7689
        %v7734 = vunpack.c.l.b16 %v7690
        %v7735 = vunpack.c.h.b16 %v7690
        %v7736 = vunpack.c.l.b16 %v7691
        %v7737 = vunpack.c.h.b16 %v7691
        %v7738 = vunpack.c.l.b16 %v7692
        %v7739 = vunpack.c.h.b16 %v7692
        %v7740 = vunpack.c.l.b16 %v7693
        %v7741 = vunpack.c.h.b16 %v7693
        %v7742 = vpack.c.b16 %v7712, %v7710
        %v7743 = vpack.c.b16 %v7713, %v7711
        %v7744 = vpack.c.b16 %v7716, %v7714
        %v7745 = vpack.c.b16 %v7717, %v7715
        %v7746 = vpack.c.b16 %v7720, %v7718
        %v7747 = vpack.c.b16 %v7721, %v7719
        %v7748 = vpack.c.b16 %v7724, %v7722
        %v7749 = vpack.c.b16 %v7725, %v7723
        %v7750 = vpack.c.b16 %v7728, %v7726
        %v7751 = vpack.c.b16 %v7729, %v7727
        %v7752 = vpack.c.b16 %v7732, %v7730
        %v7753 = vpack.c.b16 %v7733, %v7731
        %v7754 = vpack.c.b16 %v7736, %v7734
        %v7755 = vpack.c.b16 %v7737, %v7735
        %v7756 = vpack.c.b16 %v7740, %v7738
        %v7757 = vpack.c.b16 %v7741, %v7739
        %7774 = vmatprep.subr.bf16.mxu0 %v7757
        %7775 = vmatpush1.bf16.msra.mxu0 %v7756
        %7776 = vmatprep.subr.bf16.mxu0 %v7755
        %7777 = vmatpush1.bf16.msra.mxu0 %v7754
        %7778 = vmatprep.subr.bf16.mxu0 %v7753
        %7779 = vmatpush1.bf16.msra.mxu0 %v7752
        %7780 = vmatprep.subr.bf16.mxu0 %v7751
        %7781 = vmatpush1.bf16.msra.mxu0 %v7750
        %7782 = vmatprep.subr.bf16.mxu0 %v7749
        %7783 = vmatpush1.bf16.msra.mxu0 %v7748
        %7784 = vmatprep.subr.bf16.mxu0 %v7747
        %7785 = vmatpush1.bf16.msra.mxu0 %v7746
        %7786 = vmatprep.subr.bf16.mxu0 %v7745
        %7787 = vmatpush1.bf16.msra.mxu0 %v7744
        %7788 = vmatprep.subr.bf16.mxu0 %v7743
        %7789 = vmatpush1.bf16.msra.mxu0 %v7742
        %7790 = vmatprep.subr.bf16.mxu0 0
        %7791 = vmatpush2.bf16.msra.mxu0 0
        %7792 = vmatprep.subr.bf16.mxu0 0
        %7793 = vmatpush2.bf16.msra.mxu0 0
        %7794 = vmatprep.subr.bf16.mxu0 0
        %7795 = vmatpush2.bf16.msra.mxu0 0
        %7796 = vmatprep.subr.bf16.mxu0 0
        %7797 = vmatpush2.bf16.msra.mxu0 0
        %7798 = vmatprep.subr.bf16.mxu0 0
        %7799 = vmatpush2.bf16.msra.mxu0 0
        %7800 = vmatprep.subr.bf16.mxu0 0
        %7801 = vmatpush2.bf16.msra.mxu0 0
        %7802 = vmatprep.subr.bf16.mxu0 0
        %7803 = vmatpush2.bf16.msra.mxu0 0
        %7804 = vmatprep.subr.bf16.mxu0 0
        %7805 = vmatpush2.bf16.msra.mxu0 0
        %7806 = vmatprep.mubr.bf16.mxu0 0
        %7807 = vmatmul.mubr.bf16.gmra.mxu0 %v7666
        %v7808 = vpop.f32.mrf.mxu0
        %v7809 = vadd.f32 0.0, %v7808
        %v7810 = vpop.f32.mrf.mxu0
        %v7811 = vadd.f32 0.0, %v7810
        %v7812 = vpop.f32.mrf.mxu0
        %v7813 = vadd.f32 0.0, %v7812
        %v7814 = vpop.f32.mrf.mxu0
        %v7815 = vadd.f32 0.0, %v7814
        %7816 = vmatprep.mubr.bf16.mxu0 0
        %7817 = vmatmul.mubr.bf16.gmra.mxu0 %v7667
        %v7818 = vpop.f32.mrf.mxu0
        %v7819 = vadd.f32 0.0, %v7818
        %v7820 = vpop.f32.mrf.mxu0
        %v7821 = vadd.f32 0.0, %v7820
        %v7822 = vpop.f32.mrf.mxu0
        %v7823 = vadd.f32 0.0, %v7822
        %v7824 = vpop.f32.mrf.mxu0
        %v7825 = vadd.f32 0.0, %v7824
        %7826 = vmatprep.mubr.bf16.mxu0 0
        %7827 = vmatmul.mubr.bf16.gmra.mxu0 %v7668
        %v7828 = vpop.f32.mrf.mxu0
        %v7829 = vadd.f32 0.0, %v7828
        %v7830 = vpop.f32.mrf.mxu0
        %v7831 = vadd.f32 0.0, %v7830
        %v7832 = vpop.f32.mrf.mxu0
        %v7833 = vadd.f32 0.0, %v7832
        %v7834 = vpop.f32.mrf.mxu0
        %v7835 = vadd.f32 0.0, %v7834
        %7836 = vmatprep.mubr.bf16.mxu0 0
        %7837 = vmatmul.mubr.bf16.gmra.mxu0 %v7669
        %v7838 = vpop.f32.mrf.mxu0
        %v7839 = vadd.f32 0.0, %v7838
        %v7840 = vpop.f32.mrf.mxu0
        %v7841 = vadd.f32 0.0, %v7840
        %v7842 = vpop.f32.mrf.mxu0
        %v7843 = vadd.f32 0.0, %v7842
        %v7844 = vpop.f32.mrf.mxu0
        %v7845 = vadd.f32 0.0, %v7844
        %7846 = vmatprep.mubr.bf16.mxu0 0
        %7847 = vmatmul.mubr.bf16.gmra.mxu0 %v7670
        %v7848 = vpop.f32.mrf.mxu0
        %v7849 = vadd.f32 0.0, %v7848
        %v7850 = vpop.f32.mrf.mxu0
        %v7851 = vadd.f32 0.0, %v7850
        %v7852 = vpop.f32.mrf.mxu0
        %v7853 = vadd.f32 0.0, %v7852
        %v7854 = vpop.f32.mrf.mxu0
        %v7855 = vadd.f32 0.0, %v7854
        %7856 = vmatprep.mubr.bf16.mxu0 0
        %7857 = vmatmul.mubr.bf16.gmra.mxu0 %v7671
        %v7858 = vpop.f32.mrf.mxu0
        %v7859 = vadd.f32 0.0, %v7858
        %v7860 = vpop.f32.mrf.mxu0
        %v7861 = vadd.f32 0.0, %v7860
        %v7862 = vpop.f32.mrf.mxu0
        %v7863 = vadd.f32 0.0, %v7862
        %v7864 = vpop.f32.mrf.mxu0
        %v7865 = vadd.f32 0.0, %v7864
        %7866 = vmatprep.mubr.bf16.mxu0 0
        %7867 = vmatmul.mubr.bf16.gmra.mxu0 %v7672
        %v7868 = vpop.f32.mrf.mxu0
        %v7869 = vadd.f32 0.0, %v7868
        %v7870 = vpop.f32.mrf.mxu0
        %v7871 = vadd.f32 0.0, %v7870
        %v7872 = vpop.f32.mrf.mxu0
        %v7873 = vadd.f32 0.0, %v7872
        %v7874 = vpop.f32.mrf.mxu0
        %v7875 = vadd.f32 0.0, %v7874
        %7876 = vmatprep.mubr.bf16.mxu0 0
        %7877 = vmatmul.mubr.bf16.gmra.mxu0 %v7673
        %v7878 = vpop.f32.mrf.mxu0
        %v7879 = vadd.f32 0.0, %v7878
        %v7880 = vpop.f32.mrf.mxu0
        %v7881 = vadd.f32 0.0, %v7880
        %v7882 = vpop.f32.mrf.mxu0
        %v7883 = vadd.f32 0.0, %v7882
        %v7884 = vpop.f32.mrf.mxu0
        %v7885 = vadd.f32 0.0, %v7884
        %7886 = vmatprep.mubr.bf16.mxu0 0
        %7887 = vmatmul.mubr.bf16.gmra.mxu0 %v7674
        %v7888 = vpop.f32.mrf.mxu0
        %v7889 = vadd.f32 0.0, %v7888
        %v7890 = vpop.f32.mrf.mxu0
        %v7891 = vadd.f32 0.0, %v7890
        %v7892 = vpop.f32.mrf.mxu0
        %v7893 = vadd.f32 0.0, %v7892
        %v7894 = vpop.f32.mrf.mxu0
        %v7895 = vadd.f32 0.0, %v7894
        %7896 = vmatprep.mubr.bf16.mxu0 0
        %7897 = vmatmul.mubr.bf16.gmra.mxu0 %v7675
        %v7898 = vpop.f32.mrf.mxu0
        %v7899 = vadd.f32 0.0, %v7898
        %v7900 = vpop.f32.mrf.mxu0
        %v7901 = vadd.f32 0.0, %v7900
        %v7902 = vpop.f32.mrf.mxu0
        %v7903 = vadd.f32 0.0, %v7902
        %v7904 = vpop.f32.mrf.mxu0
        %v7905 = vadd.f32 0.0, %v7904
        %7906 = vmatprep.mubr.bf16.mxu0 0
        %7907 = vmatmul.mubr.bf16.gmra.mxu0 %v7676
        %v7908 = vpop.f32.mrf.mxu0
        %v7909 = vadd.f32 0.0, %v7908
        %v7910 = vpop.f32.mrf.mxu0
        %v7911 = vadd.f32 0.0, %v7910
        %v7912 = vpop.f32.mrf.mxu0
        %v7913 = vadd.f32 0.0, %v7912
        %v7914 = vpop.f32.mrf.mxu0
        %v7915 = vadd.f32 0.0, %v7914
        %7916 = vmatprep.mubr.bf16.mxu0 0
        %7917 = vmatmul.mubr.bf16.gmra.mxu0 %v7677
        %v7918 = vpop.f32.mrf.mxu0
        %v7919 = vadd.f32 0.0, %v7918
        %v7920 = vpop.f32.mrf.mxu0
        %v7921 = vadd.f32 0.0, %v7920
        %v7922 = vpop.f32.mrf.mxu0
        %v7923 = vadd.f32 0.0, %v7922
        %v7924 = vpop.f32.mrf.mxu0
        %v7925 = vadd.f32 0.0, %v7924
        %7926 = vdwg.mxu0
        %v7927 = vrot.slane %v7642, 5
        %v7928 = vrot.slane %v7643, 5
        %v7929 = vrot.slane %v7644, 5
        %v7930 = vrot.slane %v7645, 5
        %v7931 = vrot.slane %v7646, 5
        %v7932 = vrot.slane %v7647, 5
        %v7933 = vrot.slane %v7648, 5
        %v7934 = vrot.slane %v7649, 5
        %v7935 = vrot.slane %v7650, 5
        %v7936 = vrot.slane %v7651, 5
        %v7937 = vrot.slane %v7652, 5
        %v7938 = vrot.slane %v7653, 5
        %v7939 = vrot.slane %v7654, 5
        %v7940 = vrot.slane %v7655, 5
        %v7941 = vrot.slane %v7656, 5
        %v7942 = vrot.slane %v7657, 5
        %v7943 = vrot.slane %v7658, 5
        %v7944 = vrot.slane %v7659, 5
        %v7945 = vrot.slane %v7660, 5
        %v7946 = vrot.slane %v7661, 5
        %v7947 = vrot.slane %v7662, 5
        %v7948 = vrot.slane %v7663, 5
        %v7949 = vrot.slane %v7664, 5
        %v7950 = vrot.slane %v7665, 5
        %v7951 = vsel %vm4164, %v7949, %v7950
        %v7952 = vsel %vm4164, %v7948, %v7949
        %v7953 = vsel %vm4164, %v7947, %v7948
        %v7954 = vsel %vm4164, %v7946, %v7947
        %v7955 = vsel %vm4164, %v7945, %v7946
        %v7956 = vsel %vm4164, %v7944, %v7945
        %v7957 = vsel %vm4164, %v7943, %v7944
        %v7958 = vsel %vm4164, %v7942, %v7943
        %v7959 = vsel %vm4164, %v7941, %v7942
        %v7960 = vsel %vm4164, %v7940, %v7941
        %v7961 = vsel %vm4164, %v7939, %v7940
        %v7962 = vsel %vm4164, %v7938, %v7939
        %v7963 = vsel %vm4164, %v7937, %v7938
        %v7964 = vsel %vm4164, %v7936, %v7937
        %v7965 = vsel %vm4164, %v7935, %v7936
        %v7966 = vsel %vm4164, %v7934, %v7935
        %v7967 = vsel %vm4164, %v7933, %v7934
        %v7968 = vsel %vm4164, %v7932, %v7933
        %v7969 = vsel %vm4164, %v7931, %v7932
        %v7970 = vsel %vm4164, %v7930, %v7931
        %v7971 = vsel %vm4164, %v7929, %v7930
        %v7972 = vsel %vm4164, %v7928, %v7929
        %v7973 = vsel %vm4164, %v7927, %v7928
        %v7974 = vsel %vm4164, %v7950, %v7927
        %v7975 = vpack.c.bf16 %v7973, %v7974
        %v7976 = vpack.c.bf16 %v7971, %v7972
        %v7977 = vpack.c.bf16 %v7969, %v7970
        %v7978 = vpack.c.bf16 %v7967, %v7968
        %v7979 = vpack.c.bf16 %v7965, %v7966
        %v7980 = vpack.c.bf16 %v7963, %v7964
        %v7981 = vpack.c.bf16 %v7961, %v7962
        %v7982 = vpack.c.bf16 %v7959, %v7960
        %v7983 = vpack.c.bf16 %v7957, %v7958
        %v7984 = vpack.c.bf16 %v7955, %v7956
        %v7985 = vpack.c.bf16 %v7953, %v7954
        %v7986 = vpack.c.bf16 %v7951, %v7952
        %v7987 = vrot.slane %v7642, 6
        %v7988 = vrot.slane %v7643, 6
        %v7989 = vrot.slane %v7644, 6
        %v7990 = vrot.slane %v7645, 6
        %v7991 = vrot.slane %v7646, 6
        %v7992 = vrot.slane %v7647, 6
        %v7993 = vrot.slane %v7648, 6
        %v7994 = vrot.slane %v7649, 6
        %v7995 = vrot.slane %v7650, 6
        %v7996 = vrot.slane %v7651, 6
        %v7997 = vrot.slane %v7652, 6
        %v7998 = vrot.slane %v7653, 6
        %v7999 = vrot.slane %v7654, 6
        %v8000 = vrot.slane %v7655, 6
        %v8001 = vrot.slane %v7656, 6
        %v8002 = vrot.slane %v7657, 6
        %v8003 = vrot.slane %v7658, 6
        %v8004 = vrot.slane %v7659, 6
        %v8005 = vrot.slane %v7660, 6
        %v8006 = vrot.slane %v7661, 6
        %v8007 = vrot.slane %v7662, 6
        %v8008 = vrot.slane %v7663, 6
        %v8009 = vrot.slane %v7664, 6
        %v8010 = vrot.slane %v7665, 6
        %v8011 = vsel %vm1546, %v8009, %v8010
        %v8012 = vsel %vm1546, %v8008, %v8009
        %v8013 = vsel %vm1546, %v8007, %v8008
        %v8014 = vsel %vm1546, %v8006, %v8007
        %v8015 = vsel %vm1546, %v8005, %v8006
        %v8016 = vsel %vm1546, %v8004, %v8005
        %v8017 = vsel %vm1546, %v8003, %v8004
        %v8018 = vsel %vm1546, %v8002, %v8003
        %v8019 = vsel %vm1546, %v8001, %v8002
        %v8020 = vsel %vm1546, %v8000, %v8001
        %v8021 = vsel %vm1546, %v7999, %v8000
        %v8022 = vsel %vm1546, %v7998, %v7999
        %v8023 = vsel %vm1546, %v7997, %v7998
        %v8024 = vsel %vm1546, %v7996, %v7997
        %v8025 = vsel %vm1546, %v7995, %v7996
        %v8026 = vsel %vm1546, %v7994, %v7995
        %v8027 = vsel %vm1546, %v7993, %v7994
        %v8028 = vsel %vm1546, %v7992, %v7993
        %v8029 = vsel %vm1546, %v7991, %v7992
        %v8030 = vsel %vm1546, %v7990, %v7991
        %v8031 = vsel %vm1546, %v7989, %v7990
        %v8032 = vsel %vm1546, %v7988, %v7989
        %v8033 = vsel %vm1546, %v7987, %v7988
        %v8034 = vsel %vm1546, %v8010, %v7987
        %v8035 = vpack.c.bf16 %v8033, %v8034
        %v8036 = vpack.c.bf16 %v8031, %v8032
        %v8037 = vpack.c.bf16 %v8029, %v8030
        %v8038 = vpack.c.bf16 %v8027, %v8028
        %v8039 = vpack.c.bf16 %v8025, %v8026
        %v8040 = vpack.c.bf16 %v8023, %v8024
        %v8041 = vpack.c.bf16 %v8021, %v8022
        %v8042 = vpack.c.bf16 %v8019, %v8020
        %v8043 = vpack.c.bf16 %v8017, %v8018
        %v8044 = vpack.c.bf16 %v8015, %v8016
        %v8045 = vpack.c.bf16 %v8013, %v8014
        %v8046 = vpack.c.bf16 %v8011, %v8012
        %v8047 = vrot.slane %v7642, 7
        %v8048 = vrot.slane %v7643, 7
        %v8049 = vrot.slane %v7644, 7
        %v8050 = vrot.slane %v7645, 7
        %v8051 = vrot.slane %v7646, 7
        %v8052 = vrot.slane %v7647, 7
        %v8053 = vrot.slane %v7648, 7
        %v8054 = vrot.slane %v7649, 7
        %v8055 = vrot.slane %v7650, 7
        %v8056 = vrot.slane %v7651, 7
        %v8057 = vrot.slane %v7652, 7
        %v8058 = vrot.slane %v7653, 7
        %v8059 = vrot.slane %v7654, 7
        %v8060 = vrot.slane %v7655, 7
        %v8061 = vrot.slane %v7656, 7
        %v8062 = vrot.slane %v7657, 7
        %v8063 = vrot.slane %v7658, 7
        %v8064 = vrot.slane %v7659, 7
        %v8065 = vrot.slane %v7660, 7
        %v8066 = vrot.slane %v7661, 7
        %v8067 = vrot.slane %v7662, 7
        %v8068 = vrot.slane %v7663, 7
        %v8069 = vrot.slane %v7664, 7
        %v8070 = vrot.slane %v7665, 7
        %v8071 = vsel %vm1615, %v8069, %v8070
        %v8072 = vsel %vm1615, %v8068, %v8069
        %v8073 = vsel %vm1615, %v8067, %v8068
        %v8074 = vsel %vm1615, %v8066, %v8067
        %v8075 = vsel %vm1615, %v8065, %v8066
        %v8076 = vsel %vm1615, %v8064, %v8065
        %v8077 = vsel %vm1615, %v8063, %v8064
        %v8078 = vsel %vm1615, %v8062, %v8063
        %v8079 = vsel %vm1615, %v8061, %v8062
        %v8080 = vsel %vm1615, %v8060, %v8061
        %v8081 = vsel %vm1615, %v8059, %v8060
        %v8082 = vsel %vm1615, %v8058, %v8059
        %v8083 = vsel %vm1615, %v8057, %v8058
        %v8084 = vsel %vm1615, %v8056, %v8057
        %v8085 = vsel %vm1615, %v8055, %v8056
        %v8086 = vsel %vm1615, %v8054, %v8055
        %v8087 = vsel %vm1615, %v8053, %v8054
        %v8088 = vsel %vm1615, %v8052, %v8053
        %v8089 = vsel %vm1615, %v8051, %v8052
        %v8090 = vsel %vm1615, %v8050, %v8051
        %v8091 = vsel %vm1615, %v8049, %v8050
        %v8092 = vsel %vm1615, %v8048, %v8049
        %v8093 = vsel %vm1615, %v8047, %v8048
        %v8094 = vsel %vm1615, %v8070, %v8047
        %v8095 = vpack.c.bf16 %v8093, %v8094
        %v8096 = vpack.c.bf16 %v8091, %v8092
        %v8097 = vpack.c.bf16 %v8089, %v8090
        %v8098 = vpack.c.bf16 %v8087, %v8088
        %v8099 = vpack.c.bf16 %v8085, %v8086
        %v8100 = vpack.c.bf16 %v8083, %v8084
        %v8101 = vpack.c.bf16 %v8081, %v8082
        %v8102 = vpack.c.bf16 %v8079, %v8080
        %v8103 = vpack.c.bf16 %v8077, %v8078
        %v8104 = vpack.c.bf16 %v8075, %v8076
        %v8105 = vpack.c.bf16 %v8073, %v8074
        %v8106 = vpack.c.bf16 %v8071, %v8072
        %v8107 = vrot.slane %v7642, 1
        %v8108 = vrot.slane %v7643, 1
        %v8109 = vrot.slane %v7644, 1
        %v8110 = vrot.slane %v7645, 1
        %v8111 = vrot.slane %v7646, 1
        %v8112 = vrot.slane %v7647, 1
        %v8113 = vrot.slane %v7648, 1
        %v8114 = vrot.slane %v7649, 1
        %v8115 = vrot.slane %v7650, 1
        %v8116 = vrot.slane %v7651, 1
        %v8117 = vrot.slane %v7652, 1
        %v8118 = vrot.slane %v7653, 1
        %v8119 = vrot.slane %v7654, 1
        %v8120 = vrot.slane %v7655, 1
        %v8121 = vrot.slane %v7656, 1
        %v8122 = vrot.slane %v7657, 1
        %v8123 = vrot.slane %v7658, 1
        %v8124 = vrot.slane %v7659, 1
        %v8125 = vrot.slane %v7660, 1
        %v8126 = vrot.slane %v7661, 1
        %v8127 = vrot.slane %v7662, 1
        %v8128 = vrot.slane %v7663, 1
        %v8129 = vrot.slane %v7664, 1
        %v8130 = vrot.slane %v7665, 1
        %v8131 = vsel %vm2298, %v8129, %v8130
        %v8132 = vsel %vm2298, %v8128, %v8129
        %v8133 = vsel %vm2298, %v8127, %v8128
        %v8134 = vsel %vm2298, %v8126, %v8127
        %v8135 = vsel %vm2298, %v8125, %v8126
        %v8136 = vsel %vm2298, %v8124, %v8125
        %v8137 = vsel %vm2298, %v8123, %v8124
        %v8138 = vsel %vm2298, %v8122, %v8123
        %v8139 = vsel %vm2298, %v8121, %v8122
        %v8140 = vsel %vm2298, %v8120, %v8121
        %v8141 = vsel %vm2298, %v8119, %v8120
        %v8142 = vsel %vm2298, %v8118, %v8119
        %v8143 = vsel %vm2298, %v8117, %v8118
        %v8144 = vsel %vm2298, %v8116, %v8117
        %v8145 = vsel %vm2298, %v8115, %v8116
        %v8146 = vsel %vm2298, %v8114, %v8115
        %v8147 = vsel %vm2298, %v8113, %v8114
        %v8148 = vsel %vm2298, %v8112, %v8113
        %v8149 = vsel %vm2298, %v8111, %v8112
        %v8150 = vsel %vm2298, %v8110, %v8111
        %v8151 = vsel %vm2298, %v8109, %v8110
        %v8152 = vsel %vm2298, %v8108, %v8109
        %v8153 = vsel %vm2298, %v8107, %v8108
        %v8154 = vsel %vm2298, %v8130, %v8107
        %v8155 = vpack.c.bf16 %v8152, %v8153
        %v8156 = vpack.c.bf16 %v8150, %v8151
        %v8157 = vpack.c.bf16 %v8148, %v8149
        %v8158 = vpack.c.bf16 %v8146, %v8147
        %v8159 = vpack.c.bf16 %v8144, %v8145
        %v8160 = vpack.c.bf16 %v8142, %v8143
        %v8161 = vpack.c.bf16 %v8140, %v8141
        %v8162 = vpack.c.bf16 %v8138, %v8139
        %v8163 = vpack.c.bf16 %v8136, %v8137
        %v8164 = vpack.c.bf16 %v8134, %v8135
        %v8165 = vpack.c.bf16 %v8132, %v8133
        %v8166 = vpack.c.bf16 %v8154, %v8131
        %v8167 = vrot.slane %v7642, 2
        %v8168 = vrot.slane %v7643, 2
        %v8169 = vrot.slane %v7644, 2
        %v8170 = vrot.slane %v7645, 2
        %v8171 = vrot.slane %v7646, 2
        %v8172 = vrot.slane %v7647, 2
        %v8173 = vrot.slane %v7648, 2
        %v8174 = vrot.slane %v7649, 2
        %v8175 = vrot.slane %v7650, 2
        %v8176 = vrot.slane %v7651, 2
        %v8177 = vrot.slane %v7652, 2
        %v8178 = vrot.slane %v7653, 2
        %v8179 = vrot.slane %v7654, 2
        %v8180 = vrot.slane %v7655, 2
        %v8181 = vrot.slane %v7656, 2
        %v8182 = vrot.slane %v7657, 2
        %v8183 = vrot.slane %v7658, 2
        %v8184 = vrot.slane %v7659, 2
        %v8185 = vrot.slane %v7660, 2
        %v8186 = vrot.slane %v7661, 2
        %v8187 = vrot.slane %v7662, 2
        %v8188 = vrot.slane %v7663, 2
        %v8189 = vrot.slane %v7664, 2
        %v8190 = vrot.slane %v7665, 2
        %v8191 = vsel %vm2581, %v8189, %v8190
        %v8192 = vsel %vm2581, %v8188, %v8189
        %v8193 = vsel %vm2581, %v8187, %v8188
        %v8194 = vsel %vm2581, %v8186, %v8187
        %v8195 = vsel %vm2581, %v8185, %v8186
        %v8196 = vsel %vm2581, %v8184, %v8185
        %v8197 = vsel %vm2581, %v8183, %v8184
        %v8198 = vsel %vm2581, %v8182, %v8183
        %v8199 = vsel %vm2581, %v8181, %v8182
        %v8200 = vsel %vm2581, %v8180, %v8181
        %v8201 = vsel %vm2581, %v8179, %v8180
        %v8202 = vsel %vm2581, %v8178, %v8179
        %v8203 = vsel %vm2581, %v8177, %v8178
        %v8204 = vsel %vm2581, %v8176, %v8177
        %v8205 = vsel %vm2581, %v8175, %v8176
        %v8206 = vsel %vm2581, %v8174, %v8175
        %v8207 = vsel %vm2581, %v8173, %v8174
        %v8208 = vsel %vm2581, %v8172, %v8173
        %v8209 = vsel %vm2581, %v8171, %v8172
        %v8210 = vsel %vm2581, %v8170, %v8171
        %v8211 = vsel %vm2581, %v8169, %v8170
        %v8212 = vsel %vm2581, %v8168, %v8169
        %v8213 = vsel %vm2581, %v8167, %v8168
        %v8214 = vsel %vm2581, %v8190, %v8167
        %v8215 = vpack.c.bf16 %v8212, %v8213
        %v8216 = vpack.c.bf16 %v8210, %v8211
        %v8217 = vpack.c.bf16 %v8208, %v8209
        %v8218 = vpack.c.bf16 %v8206, %v8207
        %v8219 = vpack.c.bf16 %v8204, %v8205
        %v8220 = vpack.c.bf16 %v8202, %v8203
        %v8221 = vpack.c.bf16 %v8200, %v8201
        %v8222 = vpack.c.bf16 %v8198, %v8199
        %v8223 = vpack.c.bf16 %v8196, %v8197
        %v8224 = vpack.c.bf16 %v8194, %v8195
        %v8225 = vpack.c.bf16 %v8192, %v8193
        %v8226 = vpack.c.bf16 %v8214, %v8191
        %v8227 = vrot.slane %v7642, 3
        %v8228 = vrot.slane %v7643, 3
        %v8229 = vrot.slane %v7644, 3
        %v8230 = vrot.slane %v7645, 3
        %v8231 = vrot.slane %v7646, 3
        %v8232 = vrot.slane %v7647, 3
        %v8233 = vrot.slane %v7648, 3
        %v8234 = vrot.slane %v7649, 3
        %v8235 = vrot.slane %v7650, 3
        %v8236 = vrot.slane %v7651, 3
        %v8237 = vrot.slane %v7652, 3
        %v8238 = vrot.slane %v7653, 3
        %v8239 = vrot.slane %v7654, 3
        %v8240 = vrot.slane %v7655, 3
        %v8241 = vrot.slane %v7656, 3
        %v8242 = vrot.slane %v7657, 3
        %v8243 = vrot.slane %v7658, 3
        %v8244 = vrot.slane %v7659, 3
        %v8245 = vrot.slane %v7660, 3
        %v8246 = vrot.slane %v7661, 3
        %v8247 = vrot.slane %v7662, 3
        %v8248 = vrot.slane %v7663, 3
        %v8249 = vrot.slane %v7664, 3
        %v8250 = vrot.slane %v7665, 3
        %v8251 = vsel %vm5574, %v8249, %v8250
        %v8252 = vsel %vm5574, %v8248, %v8249
        %v8253 = vsel %vm5574, %v8247, %v8248
        %v8254 = vsel %vm5574, %v8246, %v8247
        %v8255 = vsel %vm5574, %v8245, %v8246
        %v8256 = vsel %vm5574, %v8244, %v8245
        %v8257 = vsel %vm5574, %v8243, %v8244
        %v8258 = vsel %vm5574, %v8242, %v8243
        %v8259 = vsel %vm5574, %v8241, %v8242
        %v8260 = vsel %vm5574, %v8240, %v8241
        %v8261 = vsel %vm5574, %v8239, %v8240
        %v8262 = vsel %vm5574, %v8238, %v8239
        %v8263 = vsel %vm5574, %v8237, %v8238
        %v8264 = vsel %vm5574, %v8236, %v8237
        %v8265 = vsel %vm5574, %v8235, %v8236
        %v8266 = vsel %vm5574, %v8234, %v8235
        %v8267 = vsel %vm5574, %v8233, %v8234
        %v8268 = vsel %vm5574, %v8232, %v8233
        %v8269 = vsel %vm5574, %v8231, %v8232
        %v8270 = vsel %vm5574, %v8230, %v8231
        %v8271 = vsel %vm5574, %v8229, %v8230
        %v8272 = vsel %vm5574, %v8228, %v8229
        %v8273 = vsel %vm5574, %v8227, %v8228
        %v8274 = vsel %vm5574, %v8250, %v8227
        %v8275 = vpack.c.bf16 %v8272, %v8273
        %v8276 = vpack.c.bf16 %v8270, %v8271
        %v8277 = vpack.c.bf16 %v8268, %v8269
        %v8278 = vpack.c.bf16 %v8266, %v8267
        %v8279 = vpack.c.bf16 %v8264, %v8265
        %v8280 = vpack.c.bf16 %v8262, %v8263
        %v8281 = vpack.c.bf16 %v8260, %v8261
        %v8282 = vpack.c.bf16 %v8258, %v8259
        %v8283 = vpack.c.bf16 %v8256, %v8257
        %v8284 = vpack.c.bf16 %v8254, %v8255
        %v8285 = vpack.c.bf16 %v8252, %v8253
        %v8286 = vpack.c.bf16 %v8274, %v8251
        %v8287 = vld [vmem:[%s17] sm:$0xf]
        %v8288 = vld [vmem:[%s17 + $0x4] sm:$0xf]
        %v8289 = vld [vmem:[%s17 + $0x8] sm:$0xf]
        %v8290 = vld [vmem:[%s17 + $0xc] sm:$0xf]
        %v8291 = vld [vmem:[%s17 + $0x10] sm:$0xf]
        %v8292 = vld [vmem:[%s17 + $0x14] sm:$0xf]
        %v8293 = vld [vmem:[%s17 + $0x18] sm:$0xf]
        %v8294 = vld [vmem:[%s17 + $0x1c] sm:$0xf]
        %v8295 = vld [vmem:[%s17 + $0x20] sm:$0xf]
        %v8296 = vld [vmem:[%s17 + $0x24] sm:$0xf]
        %v8297 = vld [vmem:[%s17 + $0x28] sm:$0xf]
        %v8298 = vld [vmem:[%s17 + $0x2c] sm:$0xf]
        %v8299 = vld [vmem:[%s17 + $0x30] sm:$0xf]
        %v8300 = vld [vmem:[%s17 + $0x34] sm:$0xf]
        %v8301 = vld [vmem:[%s17 + $0x38] sm:$0xf]
        %v8302 = vld [vmem:[%s17 + $0x3c] sm:$0xf]
        %v8303 = vld [vmem:[%s17 + $0x40] sm:$0xf]
        %v8304 = vld [vmem:[%s17 + $0x44] sm:$0xf]
        %v8305 = vld [vmem:[%s17 + $0x48] sm:$0xf]
        %v8306 = vld [vmem:[%s17 + $0x4c] sm:$0xf]
        %v8307 = vld [vmem:[%s17 + $0x50] sm:$0xf]
        %v8308 = vld [vmem:[%s17 + $0x54] sm:$0xf]
        %v8309 = vld [vmem:[%s17 + $0x58] sm:$0xf]
        %v8310 = vld [vmem:[%s17 + $0x5c] sm:$0xf]
        %v8311 = vld [vmem:[%s17 + $0x60] sm:$0xf]
        %v8312 = vld [vmem:[%s17 + $0x64] sm:$0xf]
        %v8313 = vld [vmem:[%s17 + $0x68] sm:$0xf]
        %v8314 = vld [vmem:[%s17 + $0x6c] sm:$0xf]
        %v8315 = vld [vmem:[%s17 + $0x70] sm:$0xf]
        %v8316 = vld [vmem:[%s17 + $0x74] sm:$0xf]
        %v8317 = vld [vmem:[%s17 + $0x78] sm:$0xf]
        %v8318 = vld [vmem:[%s17 + $0x7c] sm:$0xf]
        %v8319 = vld [vmem:[%s17 + $0x80] sm:$0xf]
        %v8320 = vld [vmem:[%s17 + $0x84] sm:$0xf]
        %v8321 = vld [vmem:[%s17 + $0x88] sm:$0xf]
        %v8322 = vld [vmem:[%s17 + $0x8c] sm:$0xf]
        %v8323 = vld [vmem:[%s17 + $0x90] sm:$0xf]
        %v8324 = vld [vmem:[%s17 + $0x94] sm:$0xf]
        %v8325 = vld [vmem:[%s17 + $0x98] sm:$0xf]
        %v8326 = vld [vmem:[%s17 + $0x9c] sm:$0xf]
        %v8327 = vld [vmem:[%s17 + $0xa0] sm:$0xf]
        %v8328 = vld [vmem:[%s17 + $0xa4] sm:$0xf]
        %v8329 = vld [vmem:[%s17 + $0xa8] sm:$0xf]
        %v8330 = vld [vmem:[%s17 + $0xac] sm:$0xf]
        %v8331 = vld [vmem:[%s17 + $0xb0] sm:$0xf]
        %v8332 = vld [vmem:[%s17 + $0xb4] sm:$0xf]
        %v8333 = vld [vmem:[%s17 + $0xb8] sm:$0xf]
        %v8334 = vld [vmem:[%s17 + $0xbc] sm:$0xf]
        %v8335 = vld [vmem:[%s17 + $0xc0] sm:$0xf]
        %v8336 = vld [vmem:[%s17 + $0xc4] sm:$0xf]
        %v8337 = vld [vmem:[%s17 + $0xc8] sm:$0xf]
        %v8338 = vld [vmem:[%s17 + $0xcc] sm:$0xf]
        %v8339 = vld [vmem:[%s17 + $0xd0] sm:$0xf]
        %v8340 = vld [vmem:[%s17 + $0xd4] sm:$0xf]
        %v8341 = vld [vmem:[%s17 + $0xd8] sm:$0xf]
        %v8342 = vld [vmem:[%s17 + $0xdc] sm:$0xf]
        %v8343 = vld [vmem:[%s17 + $0xe0] sm:$0xf]
        %v8344 = vld [vmem:[%s17 + $0xe4] sm:$0xf]
        %v8345 = vld [vmem:[%s17 + $0xe8] sm:$0xf]
        %v8346 = vld [vmem:[%s17 + $0xec] sm:$0xf]
        %v8347 = vld [vmem:[%s17 + $0xf0] sm:$0xf]
        %v8348 = vld [vmem:[%s17 + $0xf4] sm:$0xf]
        %v8349 = vld [vmem:[%s17 + $0xf8] sm:$0xf]
        %v8350 = vld [vmem:[%s17 + $0xfc] sm:$0xf]
        %v8351 = vld [vmem:[%s17 + $0x100] sm:$0xf]
        %v8352 = vld [vmem:[%s17 + $0x104] sm:$0xf]
        %v8353 = vld [vmem:[%s17 + $0x108] sm:$0xf]
        %v8354 = vld [vmem:[%s17 + $0x10c] sm:$0xf]
        %v8355 = vld [vmem:[%s17 + $0x110] sm:$0xf]
        %v8356 = vld [vmem:[%s17 + $0x114] sm:$0xf]
        %v8357 = vld [vmem:[%s17 + $0x118] sm:$0xf]
        %v8358 = vld [vmem:[%s17 + $0x11c] sm:$0xf]
        %v8359 = vld [vmem:[%s17 + $0x120] sm:$0xf]
        %v8360 = vld [vmem:[%s17 + $0x124] sm:$0xf]
        %v8361 = vld [vmem:[%s17 + $0x128] sm:$0xf]
        %v8362 = vld [vmem:[%s17 + $0x12c] sm:$0xf]
        %v8363 = vld [vmem:[%s17 + $0x130] sm:$0xf]
        %v8364 = vld [vmem:[%s17 + $0x134] sm:$0xf]
        %v8365 = vld [vmem:[%s17 + $0x138] sm:$0xf]
        %v8366 = vld [vmem:[%s17 + $0x13c] sm:$0xf]
        %v8367 = vld [vmem:[%s17 + $0x140] sm:$0xf]
        %v8368 = vld [vmem:[%s17 + $0x144] sm:$0xf]
        %v8369 = vld [vmem:[%s17 + $0x148] sm:$0xf]
        %v8370 = vld [vmem:[%s17 + $0x14c] sm:$0xf]
        %v8371 = vld [vmem:[%s17 + $0x150] sm:$0xf]
        %v8372 = vld [vmem:[%s17 + $0x154] sm:$0xf]
        %v8373 = vld [vmem:[%s17 + $0x158] sm:$0xf]
        %v8374 = vld [vmem:[%s17 + $0x15c] sm:$0xf]
        %v8375 = vld [vmem:[%s17 + $0x160] sm:$0xf]
        %v8376 = vld [vmem:[%s17 + $0x164] sm:$0xf]
        %v8377 = vld [vmem:[%s17 + $0x168] sm:$0xf]
        %v8378 = vld [vmem:[%s17 + $0x16c] sm:$0xf]
        %v8379 = vld [vmem:[%s17 + $0x170] sm:$0xf]
        %v8380 = vld [vmem:[%s17 + $0x174] sm:$0xf]
        %v8381 = vld [vmem:[%s17 + $0x178] sm:$0xf]
        %v8382 = vld [vmem:[%s17 + $0x17c] sm:$0xf]
        %v8479 = vunpack.c.l.b16 %v8287
        %v8480 = vunpack.c.l.b16 %v8288
        %v8481 = vunpack.c.l.b16 %v8289
        %v8482 = vunpack.c.l.b16 %v8290
        %v8483 = vunpack.c.l.b16 %v8291
        %v8484 = vunpack.c.l.b16 %v8292
        %v8485 = vunpack.c.l.b16 %v8293
        %v8486 = vunpack.c.l.b16 %v8294
        %v8487 = vunpack.c.l.b16 %v8295
        %v8488 = vunpack.c.l.b16 %v8296
        %v8489 = vunpack.c.l.b16 %v8297
        %v8490 = vunpack.c.l.b16 %v8298
        %v8491 = vunpack.c.l.b16 %v8299
        %v8492 = vunpack.c.l.b16 %v8300
        %v8493 = vunpack.c.l.b16 %v8301
        %v8494 = vunpack.c.l.b16 %v8302
        %v8495 = vunpack.c.l.b16 %v8303
        %v8496 = vunpack.c.l.b16 %v8304
        %v8497 = vunpack.c.l.b16 %v8305
        %v8498 = vunpack.c.l.b16 %v8306
        %v8499 = vunpack.c.l.b16 %v8307
        %v8500 = vunpack.c.l.b16 %v8308
        %v8501 = vunpack.c.l.b16 %v8309
        %v8502 = vunpack.c.l.b16 %v8310
        %v8503 = vunpack.c.l.b16 %v8311
        %v8504 = vunpack.c.l.b16 %v8312
        %v8505 = vunpack.c.l.b16 %v8313
        %v8506 = vunpack.c.l.b16 %v8314
        %v8507 = vunpack.c.l.b16 %v8315
        %v8508 = vunpack.c.l.b16 %v8316
        %v8509 = vunpack.c.l.b16 %v8317
        %v8510 = vunpack.c.l.b16 %v8318
        %v8511 = vunpack.c.l.b16 %v8319
        %v8512 = vunpack.c.l.b16 %v8320
        %v8513 = vunpack.c.l.b16 %v8321
        %v8514 = vunpack.c.l.b16 %v8322
        %v8515 = vunpack.c.l.b16 %v8323
        %v8516 = vunpack.c.l.b16 %v8324
        %v8517 = vunpack.c.l.b16 %v8325
        %v8518 = vunpack.c.l.b16 %v8326
        %v8519 = vunpack.c.l.b16 %v8327
        %v8520 = vunpack.c.l.b16 %v8328
        %v8521 = vunpack.c.l.b16 %v8329
        %v8522 = vunpack.c.l.b16 %v8330
        %v8523 = vunpack.c.l.b16 %v8331
        %v8524 = vunpack.c.l.b16 %v8332
        %v8525 = vunpack.c.l.b16 %v8333
        %v8526 = vunpack.c.l.b16 %v8334
        %v8527 = vunpack.c.l.b16 %v8335
        %v8528 = vunpack.c.l.b16 %v8336
        %v8529 = vunpack.c.l.b16 %v8337
        %v8530 = vunpack.c.l.b16 %v8338
        %v8531 = vunpack.c.l.b16 %v8339
        %v8532 = vunpack.c.l.b16 %v8340
        %v8533 = vunpack.c.l.b16 %v8341
        %v8534 = vunpack.c.l.b16 %v8342
        %v8535 = vunpack.c.l.b16 %v8343
        %v8536 = vunpack.c.l.b16 %v8344
        %v8537 = vunpack.c.l.b16 %v8345
        %v8538 = vunpack.c.l.b16 %v8346
        %v8539 = vunpack.c.l.b16 %v8347
        %v8540 = vunpack.c.l.b16 %v8348
        %v8541 = vunpack.c.l.b16 %v8349
        %v8542 = vunpack.c.l.b16 %v8350
        %v8543 = vunpack.c.l.b16 %v8351
        %v8544 = vunpack.c.l.b16 %v8352
        %v8545 = vunpack.c.l.b16 %v8353
        %v8546 = vunpack.c.l.b16 %v8354
        %v8547 = vunpack.c.l.b16 %v8355
        %v8548 = vunpack.c.l.b16 %v8356
        %v8549 = vunpack.c.l.b16 %v8357
        %v8550 = vunpack.c.l.b16 %v8358
        %v8551 = vunpack.c.l.b16 %v8359
        %v8552 = vunpack.c.l.b16 %v8360
        %v8553 = vunpack.c.l.b16 %v8361
        %v8554 = vunpack.c.l.b16 %v8362
        %v8555 = vunpack.c.l.b16 %v8363
        %v8556 = vunpack.c.l.b16 %v8364
        %v8557 = vunpack.c.l.b16 %v8365
        %v8558 = vunpack.c.l.b16 %v8366
        %v8559 = vunpack.c.l.b16 %v8367
        %v8560 = vunpack.c.l.b16 %v8368
        %v8561 = vunpack.c.l.b16 %v8369
        %v8562 = vunpack.c.l.b16 %v8370
        %v8563 = vunpack.c.l.b16 %v8371
        %v8564 = vunpack.c.l.b16 %v8372
        %v8565 = vunpack.c.l.b16 %v8373
        %v8566 = vunpack.c.l.b16 %v8374
        %v8567 = vunpack.c.l.b16 %v8375
        %v8568 = vunpack.c.l.b16 %v8376
        %v8569 = vunpack.c.l.b16 %v8377
        %v8570 = vunpack.c.l.b16 %v8378
        %v8571 = vunpack.c.l.b16 %v8379
        %v8572 = vunpack.c.l.b16 %v8380
        %v8573 = vunpack.c.l.b16 %v8381
        %v8574 = vunpack.c.l.b16 %v8382
        %v8575 = vpack.c.b16 %v8480, %v8479
        %v8576 = vpack.c.b16 %v8482, %v8481
        %v8577 = vpack.c.b16 %v8484, %v8483
        %v8578 = vpack.c.b16 %v8486, %v8485
        %v8579 = vpack.c.b16 %v8488, %v8487
        %v8580 = vpack.c.b16 %v8490, %v8489
        %v8581 = vpack.c.b16 %v8492, %v8491
        %v8582 = vpack.c.b16 %v8494, %v8493
        %v8583 = vpack.c.b16 %v8496, %v8495
        %v8584 = vpack.c.b16 %v8498, %v8497
        %v8585 = vpack.c.b16 %v8500, %v8499
        %v8586 = vpack.c.b16 %v8502, %v8501
        %v8587 = vpack.c.b16 %v8504, %v8503
        %v8588 = vpack.c.b16 %v8506, %v8505
        %v8589 = vpack.c.b16 %v8508, %v8507
        %v8590 = vpack.c.b16 %v8510, %v8509
        %v8591 = vpack.c.b16 %v8512, %v8511
        %v8592 = vpack.c.b16 %v8514, %v8513
        %v8593 = vpack.c.b16 %v8516, %v8515
        %v8594 = vpack.c.b16 %v8518, %v8517
        %v8595 = vpack.c.b16 %v8520, %v8519
        %v8596 = vpack.c.b16 %v8522, %v8521
        %v8597 = vpack.c.b16 %v8524, %v8523
        %v8598 = vpack.c.b16 %v8526, %v8525
        %v8599 = vpack.c.b16 %v8528, %v8527
        %v8600 = vpack.c.b16 %v8530, %v8529
        %v8601 = vpack.c.b16 %v8532, %v8531
        %v8602 = vpack.c.b16 %v8534, %v8533
        %v8603 = vpack.c.b16 %v8536, %v8535
        %v8604 = vpack.c.b16 %v8538, %v8537
        %v8605 = vpack.c.b16 %v8540, %v8539
        %v8606 = vpack.c.b16 %v8542, %v8541
        %v8607 = vpack.c.b16 %v8544, %v8543
        %v8608 = vpack.c.b16 %v8546, %v8545
        %v8609 = vpack.c.b16 %v8548, %v8547
        %v8610 = vpack.c.b16 %v8550, %v8549
        %v8611 = vpack.c.b16 %v8552, %v8551
        %v8612 = vpack.c.b16 %v8554, %v8553
        %v8613 = vpack.c.b16 %v8556, %v8555
        %v8614 = vpack.c.b16 %v8558, %v8557
        %v8615 = vpack.c.b16 %v8560, %v8559
        %v8616 = vpack.c.b16 %v8562, %v8561
        %v8617 = vpack.c.b16 %v8564, %v8563
        %v8618 = vpack.c.b16 %v8566, %v8565
        %v8619 = vpack.c.b16 %v8568, %v8567
        %v8620 = vpack.c.b16 %v8570, %v8569
        %v8621 = vpack.c.b16 %v8572, %v8571
        %v8622 = vpack.c.b16 %v8574, %v8573
        %8671 = vmatprep.subr.bf16.mxu0 0
        %8672 = vmatpush1.bf16.msra.mxu0 %v8582
        %8673 = vmatprep.subr.bf16.mxu0 0
        %8674 = vmatpush1.bf16.msra.mxu0 %v8581
        %8675 = vmatprep.subr.bf16.mxu0 0
        %8676 = vmatpush1.bf16.msra.mxu0 %v8580
        %8677 = vmatprep.subr.bf16.mxu0 0
        %8678 = vmatpush1.bf16.msra.mxu0 %v8579
        %8679 = vmatprep.subr.bf16.mxu0 0
        %8680 = vmatpush1.bf16.msra.mxu0 %v8578
        %8681 = vmatprep.subr.bf16.mxu0 0
        %8682 = vmatpush1.bf16.msra.mxu0 %v8577
        %8683 = vmatprep.subr.bf16.mxu0 0
        %8684 = vmatpush1.bf16.msra.mxu0 %v8576
        %8685 = vmatprep.subr.bf16.mxu0 0
        %8686 = vmatpush1.bf16.msra.mxu0 %v8575
        %8687 = vmatprep.subr.bf16.mxu0 0
        %8688 = vmatpush2.bf16.msra.mxu0 %v8590
        %8689 = vmatprep.subr.bf16.mxu0 0
        %8690 = vmatpush2.bf16.msra.mxu0 %v8589
        %8691 = vmatprep.subr.bf16.mxu0 0
        %8692 = vmatpush2.bf16.msra.mxu0 %v8588
        %8693 = vmatprep.subr.bf16.mxu0 0
        %8694 = vmatpush2.bf16.msra.mxu0 %v8587
        %8695 = vmatprep.subr.bf16.mxu0 0
        %8696 = vmatpush2.bf16.msra.mxu0 %v8586
        %8697 = vmatprep.subr.bf16.mxu0 0
        %8698 = vmatpush2.bf16.msra.mxu0 %v8585
        %8699 = vmatprep.subr.bf16.mxu0 0
        %8700 = vmatpush2.bf16.msra.mxu0 %v8584
        %8701 = vmatprep.subr.bf16.mxu0 0
        %8702 = vmatpush2.bf16.msra.mxu0 %v8583
        %8703 = vmatprep.mubr.bf16.mxu0 %v8035
        %8704 = vmatmul.mubr.bf16.gmra.mxu0 %v7975
        %v8705 = vpop.f32.mrf.mxu0
        %v8706 = vadd.f32 0.0, %v8705
        %v8707 = vpop.f32.mrf.mxu0
        %v8708 = vpop.f32.mrf.mxu0
        %v8709 = vadd.f32 0.0, %v8708
        %v8710 = vpop.f32.mrf.mxu0
        %8711 = vmatprep.mubr.bf16.mxu0 %v8036
        %8712 = vmatmul.mubr.bf16.gmra.mxu0 %v7976
        %v8713 = vpop.f32.mrf.mxu0
        %v8714 = vadd.f32 0.0, %v8713
        %v8715 = vpop.f32.mrf.mxu0
        %v8716 = vpop.f32.mrf.mxu0
        %v8717 = vadd.f32 0.0, %v8716
        %v8718 = vpop.f32.mrf.mxu0
        %8719 = vmatprep.mubr.bf16.mxu0 %v8037
        %8720 = vmatmul.mubr.bf16.gmra.mxu0 %v7977
        %v8721 = vpop.f32.mrf.mxu0
        %v8722 = vadd.f32 0.0, %v8721
        %v8723 = vpop.f32.mrf.mxu0
        %v8724 = vpop.f32.mrf.mxu0
        %v8725 = vadd.f32 0.0, %v8724
        %v8726 = vpop.f32.mrf.mxu0
        %8727 = vmatprep.mubr.bf16.mxu0 %v8038
        %8728 = vmatmul.mubr.bf16.gmra.mxu0 %v7978
        %v8729 = vpop.f32.mrf.mxu0
        %v8730 = vadd.f32 0.0, %v8729
        %v8731 = vpop.f32.mrf.mxu0
        %v8732 = vpop.f32.mrf.mxu0
        %v8733 = vadd.f32 0.0, %v8732
        %v8734 = vpop.f32.mrf.mxu0
        %8735 = vmatprep.mubr.bf16.mxu0 %v8039
        %8736 = vmatmul.mubr.bf16.gmra.mxu0 %v7979
        %v8737 = vpop.f32.mrf.mxu0
        %v8738 = vadd.f32 0.0, %v8737
        %v8739 = vpop.f32.mrf.mxu0
        %v8740 = vpop.f32.mrf.mxu0
        %v8741 = vadd.f32 0.0, %v8740
        %v8742 = vpop.f32.mrf.mxu0
        %8743 = vmatprep.mubr.bf16.mxu0 %v8040
        %8744 = vmatmul.mubr.bf16.gmra.mxu0 %v7980
        %v8745 = vpop.f32.mrf.mxu0
        %v8746 = vadd.f32 0.0, %v8745
        %v8747 = vpop.f32.mrf.mxu0
        %v8748 = vpop.f32.mrf.mxu0
        %v8749 = vadd.f32 0.0, %v8748
        %v8750 = vpop.f32.mrf.mxu0
        %8751 = vmatprep.mubr.bf16.mxu0 %v8041
        %8752 = vmatmul.mubr.bf16.gmra.mxu0 %v7981
        %v8753 = vpop.f32.mrf.mxu0
        %v8754 = vadd.f32 0.0, %v8753
        %v8755 = vpop.f32.mrf.mxu0
        %v8756 = vpop.f32.mrf.mxu0
        %v8757 = vadd.f32 0.0, %v8756
        %v8758 = vpop.f32.mrf.mxu0
        %8759 = vmatprep.mubr.bf16.mxu0 %v8042
        %8760 = vmatmul.mubr.bf16.gmra.mxu0 %v7982
        %v8761 = vpop.f32.mrf.mxu0
        %v8762 = vadd.f32 0.0, %v8761
        %v8763 = vpop.f32.mrf.mxu0
        %v8764 = vpop.f32.mrf.mxu0
        %v8765 = vadd.f32 0.0, %v8764
        %v8766 = vpop.f32.mrf.mxu0
        %8767 = vmatprep.mubr.bf16.mxu0 %v8043
        %8768 = vmatmul.mubr.bf16.gmra.mxu0 %v7983
        %v8769 = vpop.f32.mrf.mxu0
        %v8770 = vadd.f32 0.0, %v8769
        %v8771 = vpop.f32.mrf.mxu0
        %v8772 = vpop.f32.mrf.mxu0
        %v8773 = vadd.f32 0.0, %v8772
        %v8774 = vpop.f32.mrf.mxu0
        %8775 = vmatprep.mubr.bf16.mxu0 %v8044
        %8776 = vmatmul.mubr.bf16.gmra.mxu0 %v7984
        %v8777 = vpop.f32.mrf.mxu0
        %v8778 = vadd.f32 0.0, %v8777
        %v8779 = vpop.f32.mrf.mxu0
        %v8780 = vpop.f32.mrf.mxu0
        %v8781 = vadd.f32 0.0, %v8780
        %v8782 = vpop.f32.mrf.mxu0
        %8783 = vmatprep.mubr.bf16.mxu0 %v8045
        %8784 = vmatmul.mubr.bf16.gmra.mxu0 %v7985
        %v8785 = vpop.f32.mrf.mxu0
        %v8786 = vadd.f32 0.0, %v8785
        %v8787 = vpop.f32.mrf.mxu0
        %v8788 = vpop.f32.mrf.mxu0
        %v8789 = vadd.f32 0.0, %v8788
        %v8790 = vpop.f32.mrf.mxu0
        %8791 = vmatprep.mubr.bf16.mxu0 %v8046
        %8792 = vmatmul.mubr.bf16.gmra.mxu0 %v7986
        %v8793 = vpop.f32.mrf.mxu0
        %v8794 = vadd.f32 0.0, %v8793
        %v8795 = vpop.f32.mrf.mxu0
        %v8796 = vpop.f32.mrf.mxu0
        %v8797 = vadd.f32 0.0, %v8796
        %v8798 = vpop.f32.mrf.mxu0
        %8799 = vdwg.mxu0
        %8800 = vmatprep.subr.bf16.mxu0 0
        %8801 = vmatpush1.bf16.msra.mxu0 %v8598
        %8802 = vmatprep.subr.bf16.mxu0 0
        %8803 = vmatpush1.bf16.msra.mxu0 %v8597
        %8804 = vmatprep.subr.bf16.mxu0 0
        %8805 = vmatpush1.bf16.msra.mxu0 %v8596
        %8806 = vmatprep.subr.bf16.mxu0 0
        %8807 = vmatpush1.bf16.msra.mxu0 %v8595
        %8808 = vmatprep.subr.bf16.mxu0 0
        %8809 = vmatpush1.bf16.msra.mxu0 %v8594
        %8810 = vmatprep.subr.bf16.mxu0 0
        %8811 = vmatpush1.bf16.msra.mxu0 %v8593
        %8812 = vmatprep.subr.bf16.mxu0 0
        %8813 = vmatpush1.bf16.msra.mxu0 %v8592
        %8814 = vmatprep.subr.bf16.mxu0 0
        %8815 = vmatpush1.bf16.msra.mxu0 %v8591
        %8816 = vmatprep.subr.bf16.mxu0 0
        %8817 = vmatpush2.bf16.msra.mxu0 %v8606
        %8818 = vmatprep.subr.bf16.mxu0 0
        %8819 = vmatpush2.bf16.msra.mxu0 %v8605
        %8820 = vmatprep.subr.bf16.mxu0 0
        %8821 = vmatpush2.bf16.msra.mxu0 %v8604
        %8822 = vmatprep.subr.bf16.mxu0 0
        %8823 = vmatpush2.bf16.msra.mxu0 %v8603
        %8824 = vmatprep.subr.bf16.mxu0 0
        %8825 = vmatpush2.bf16.msra.mxu0 %v8602
        %8826 = vmatprep.subr.bf16.mxu0 0
        %8827 = vmatpush2.bf16.msra.mxu0 %v8601
        %8828 = vmatprep.subr.bf16.mxu0 0
        %8829 = vmatpush2.bf16.msra.mxu0 %v8600
        %8830 = vmatprep.subr.bf16.mxu0 0
        %8831 = vmatpush2.bf16.msra.mxu0 %v8599
        %8832 = vmatprep.mubr.bf16.mxu0 %v8155
        %8833 = vmatmul.mubr.bf16.gmra.mxu0 %v8095
        %v8834 = vpop.f32.mrf.mxu0
        %v8835 = vadd.f32 %v8706, %v8834
        %v8836 = vpop.f32.mrf.mxu0
        %v8837 = vpop.f32.mrf.mxu0
        %v8838 = vadd.f32 %v8709, %v8837
        %v8839 = vpop.f32.mrf.mxu0
        %8840 = vmatprep.mubr.bf16.mxu0 %v8156
        %8841 = vmatmul.mubr.bf16.gmra.mxu0 %v8096
        %v8842 = vpop.f32.mrf.mxu0
        %v8843 = vadd.f32 %v8714, %v8842
        %v8844 = vpop.f32.mrf.mxu0
        %v8845 = vpop.f32.mrf.mxu0
        %v8846 = vadd.f32 %v8717, %v8845
        %v8847 = vpop.f32.mrf.mxu0
        %8848 = vmatprep.mubr.bf16.mxu0 %v8157
        %8849 = vmatmul.mubr.bf16.gmra.mxu0 %v8097
        %v8850 = vpop.f32.mrf.mxu0
        %v8851 = vadd.f32 %v8722, %v8850
        %v8852 = vpop.f32.mrf.mxu0
        %v8853 = vpop.f32.mrf.mxu0
        %v8854 = vadd.f32 %v8725, %v8853
        %v8855 = vpop.f32.mrf.mxu0
        %8856 = vmatprep.mubr.bf16.mxu0 %v8158
        %8857 = vmatmul.mubr.bf16.gmra.mxu0 %v8098
        %v8858 = vpop.f32.mrf.mxu0
        %v8859 = vadd.f32 %v8730, %v8858
        %v8860 = vpop.f32.mrf.mxu0
        %v8861 = vpop.f32.mrf.mxu0
        %v8862 = vadd.f32 %v8733, %v8861
        %v8863 = vpop.f32.mrf.mxu0
        %8864 = vmatprep.mubr.bf16.mxu0 %v8159
        %8865 = vmatmul.mubr.bf16.gmra.mxu0 %v8099
        %v8866 = vpop.f32.mrf.mxu0
        %v8867 = vadd.f32 %v8738, %v8866
        %v8868 = vpop.f32.mrf.mxu0
        %v8869 = vpop.f32.mrf.mxu0
        %v8870 = vadd.f32 %v8741, %v8869
        %v8871 = vpop.f32.mrf.mxu0
        %8872 = vmatprep.mubr.bf16.mxu0 %v8160
        %8873 = vmatmul.mubr.bf16.gmra.mxu0 %v8100
        %v8874 = vpop.f32.mrf.mxu0
        %v8875 = vadd.f32 %v8746, %v8874
        %v8876 = vpop.f32.mrf.mxu0
        %v8877 = vpop.f32.mrf.mxu0
        %v8878 = vadd.f32 %v8749, %v8877
        %v8879 = vpop.f32.mrf.mxu0
        %8880 = vmatprep.mubr.bf16.mxu0 %v8161
        %8881 = vmatmul.mubr.bf16.gmra.mxu0 %v8101
        %v8882 = vpop.f32.mrf.mxu0
        %v8883 = vadd.f32 %v8754, %v8882
        %v8884 = vpop.f32.mrf.mxu0
        %v8885 = vpop.f32.mrf.mxu0
        %v8886 = vadd.f32 %v8757, %v8885
        %v8887 = vpop.f32.mrf.mxu0
        %8888 = vmatprep.mubr.bf16.mxu0 %v8162
        %8889 = vmatmul.mubr.bf16.gmra.mxu0 %v8102
        %v8890 = vpop.f32.mrf.mxu0
        %v8891 = vadd.f32 %v8762, %v8890
        %v8892 = vpop.f32.mrf.mxu0
        %v8893 = vpop.f32.mrf.mxu0
        %v8894 = vadd.f32 %v8765, %v8893
        %v8895 = vpop.f32.mrf.mxu0
        %8896 = vmatprep.mubr.bf16.mxu0 %v8163
        %8897 = vmatmul.mubr.bf16.gmra.mxu0 %v8103
        %v8898 = vpop.f32.mrf.mxu0
        %v8899 = vadd.f32 %v8770, %v8898
        %v8900 = vpop.f32.mrf.mxu0
        %v8901 = vpop.f32.mrf.mxu0
        %v8902 = vadd.f32 %v8773, %v8901
        %v8903 = vpop.f32.mrf.mxu0
        %8904 = vmatprep.mubr.bf16.mxu0 %v8164
        %8905 = vmatmul.mubr.bf16.gmra.mxu0 %v8104
        %v8906 = vpop.f32.mrf.mxu0
        %v8907 = vadd.f32 %v8778, %v8906
        %v8908 = vpop.f32.mrf.mxu0
        %v8909 = vpop.f32.mrf.mxu0
        %v8910 = vadd.f32 %v8781, %v8909
        %v8911 = vpop.f32.mrf.mxu0
        %8912 = vmatprep.mubr.bf16.mxu0 %v8165
        %8913 = vmatmul.mubr.bf16.gmra.mxu0 %v8105
        %v8914 = vpop.f32.mrf.mxu0
        %v8915 = vadd.f32 %v8786, %v8914
        %v8916 = vpop.f32.mrf.mxu0
        %v8917 = vpop.f32.mrf.mxu0
        %v8918 = vadd.f32 %v8789, %v8917
        %v8919 = vpop.f32.mrf.mxu0
        %8920 = vmatprep.mubr.bf16.mxu0 %v8166
        %8921 = vmatmul.mubr.bf16.gmra.mxu0 %v8106
        %v8922 = vpop.f32.mrf.mxu0
        %v8923 = vadd.f32 %v8794, %v8922
        %v8924 = vpop.f32.mrf.mxu0
        %v8925 = vpop.f32.mrf.mxu0
        %v8926 = vadd.f32 %v8797, %v8925
        %v8927 = vpop.f32.mrf.mxu0
        %8928 = vdwg.mxu0
        %8929 = vmatprep.subr.bf16.mxu0 0
        %8930 = vmatpush1.bf16.msra.mxu0 %v8614
        %8931 = vmatprep.subr.bf16.mxu0 0
        %8932 = vmatpush1.bf16.msra.mxu0 %v8613
        %8933 = vmatprep.subr.bf16.mxu0 0
        %8934 = vmatpush1.bf16.msra.mxu0 %v8612
        %8935 = vmatprep.subr.bf16.mxu0 0
        %8936 = vmatpush1.bf16.msra.mxu0 %v8611
        %8937 = vmatprep.subr.bf16.mxu0 0
        %8938 = vmatpush1.bf16.msra.mxu0 %v8610
        %8939 = vmatprep.subr.bf16.mxu0 0
        %8940 = vmatpush1.bf16.msra.mxu0 %v8609
        %8941 = vmatprep.subr.bf16.mxu0 0
        %8942 = vmatpush1.bf16.msra.mxu0 %v8608
        %8943 = vmatprep.subr.bf16.mxu0 0
        %8944 = vmatpush1.bf16.msra.mxu0 %v8607
        %8945 = vmatprep.subr.bf16.mxu0 0
        %8946 = vmatpush2.bf16.msra.mxu0 %v8622
        %8947 = vmatprep.subr.bf16.mxu0 0
        %8948 = vmatpush2.bf16.msra.mxu0 %v8621
        %8949 = vmatprep.subr.bf16.mxu0 0
        %8950 = vmatpush2.bf16.msra.mxu0 %v8620
        %8951 = vmatprep.subr.bf16.mxu0 0
        %8952 = vmatpush2.bf16.msra.mxu0 %v8619
        %8953 = vmatprep.subr.bf16.mxu0 0
        %8954 = vmatpush2.bf16.msra.mxu0 %v8618
        %8955 = vmatprep.subr.bf16.mxu0 0
        %8956 = vmatpush2.bf16.msra.mxu0 %v8617
        %8957 = vmatprep.subr.bf16.mxu0 0
        %8958 = vmatpush2.bf16.msra.mxu0 %v8616
        %8959 = vmatprep.subr.bf16.mxu0 0
        %8960 = vmatpush2.bf16.msra.mxu0 %v8615
        %8961 = vmatprep.mubr.bf16.mxu0 %v8275
        %8962 = vmatmul.mubr.bf16.gmra.mxu0 %v8215
        %v8963 = vpop.f32.mrf.mxu0
        %v8964 = vadd.f32 %v8835, %v8963
        %v8965 = vpop.f32.mrf.mxu0
        %v8966 = vpop.f32.mrf.mxu0
        %v8967 = vadd.f32 %v8838, %v8966
        %v8968 = vpop.f32.mrf.mxu0
        %8969 = vmatprep.mubr.bf16.mxu0 %v8276
        %8970 = vmatmul.mubr.bf16.gmra.mxu0 %v8216
        %v8971 = vpop.f32.mrf.mxu0
        %v8972 = vadd.f32 %v8843, %v8971
        %v8973 = vpop.f32.mrf.mxu0
        %v8974 = vpop.f32.mrf.mxu0
        %v8975 = vadd.f32 %v8846, %v8974
        %v8976 = vpop.f32.mrf.mxu0
        %8977 = vmatprep.mubr.bf16.mxu0 %v8277
        %8978 = vmatmul.mubr.bf16.gmra.mxu0 %v8217
        %v8979 = vpop.f32.mrf.mxu0
        %v8980 = vadd.f32 %v8851, %v8979
        %v8981 = vpop.f32.mrf.mxu0
        %v8982 = vpop.f32.mrf.mxu0
        %v8983 = vadd.f32 %v8854, %v8982
        %v8984 = vpop.f32.mrf.mxu0
        %8985 = vmatprep.mubr.bf16.mxu0 %v8278
        %8986 = vmatmul.mubr.bf16.gmra.mxu0 %v8218
        %v8987 = vpop.f32.mrf.mxu0
        %v8988 = vadd.f32 %v8859, %v8987
        %v8989 = vpop.f32.mrf.mxu0
        %v8990 = vpop.f32.mrf.mxu0
        %v8991 = vadd.f32 %v8862, %v8990
        %v8992 = vpop.f32.mrf.mxu0
        %8993 = vmatprep.mubr.bf16.mxu0 %v8279
        %8994 = vmatmul.mubr.bf16.gmra.mxu0 %v8219
        %v8995 = vpop.f32.mrf.mxu0
        %v8996 = vadd.f32 %v8867, %v8995
        %v8997 = vpop.f32.mrf.mxu0
        %v8998 = vpop.f32.mrf.mxu0
        %v8999 = vadd.f32 %v8870, %v8998
        %v9000 = vpop.f32.mrf.mxu0
        %9001 = vmatprep.mubr.bf16.mxu0 %v8280
        %9002 = vmatmul.mubr.bf16.gmra.mxu0 %v8220
        %v9003 = vpop.f32.mrf.mxu0
        %v9004 = vadd.f32 %v8875, %v9003
        %v9005 = vpop.f32.mrf.mxu0
        %v9006 = vpop.f32.mrf.mxu0
        %v9007 = vadd.f32 %v8878, %v9006
        %v9008 = vpop.f32.mrf.mxu0
        %9009 = vmatprep.mubr.bf16.mxu0 %v8281
        %9010 = vmatmul.mubr.bf16.gmra.mxu0 %v8221
        %v9011 = vpop.f32.mrf.mxu0
        %v9012 = vadd.f32 %v8883, %v9011
        %v9013 = vpop.f32.mrf.mxu0
        %v9014 = vpop.f32.mrf.mxu0
        %v9015 = vadd.f32 %v8886, %v9014
        %v9016 = vpop.f32.mrf.mxu0
        %9017 = vmatprep.mubr.bf16.mxu0 %v8282
        %9018 = vmatmul.mubr.bf16.gmra.mxu0 %v8222
        %v9019 = vpop.f32.mrf.mxu0
        %v9020 = vadd.f32 %v8891, %v9019
        %v9021 = vpop.f32.mrf.mxu0
        %v9022 = vpop.f32.mrf.mxu0
        %v9023 = vadd.f32 %v8894, %v9022
        %v9024 = vpop.f32.mrf.mxu0
        %9025 = vmatprep.mubr.bf16.mxu0 %v8283
        %9026 = vmatmul.mubr.bf16.gmra.mxu0 %v8223
        %v9027 = vpop.f32.mrf.mxu0
        %v9028 = vadd.f32 %v8899, %v9027
        %v9029 = vpop.f32.mrf.mxu0
        %v9030 = vpop.f32.mrf.mxu0
        %v9031 = vadd.f32 %v8902, %v9030
        %v9032 = vpop.f32.mrf.mxu0
        %9033 = vmatprep.mubr.bf16.mxu0 %v8284
        %9034 = vmatmul.mubr.bf16.gmra.mxu0 %v8224
        %v9035 = vpop.f32.mrf.mxu0
        %v9036 = vadd.f32 %v8907, %v9035
        %v9037 = vpop.f32.mrf.mxu0
        %v9038 = vpop.f32.mrf.mxu0
        %v9039 = vadd.f32 %v8910, %v9038
        %v9040 = vpop.f32.mrf.mxu0
        %9041 = vmatprep.mubr.bf16.mxu0 %v8285
        %9042 = vmatmul.mubr.bf16.gmra.mxu0 %v8225
        %v9043 = vpop.f32.mrf.mxu0
        %v9044 = vadd.f32 %v8915, %v9043
        %v9045 = vpop.f32.mrf.mxu0
        %v9046 = vpop.f32.mrf.mxu0
        %v9047 = vadd.f32 %v8918, %v9046
        %v9048 = vpop.f32.mrf.mxu0
        %9049 = vmatprep.mubr.bf16.mxu0 %v8286
        %9050 = vmatmul.mubr.bf16.gmra.mxu0 %v8226
        %v9051 = vpop.f32.mrf.mxu0
        %v9052 = vadd.f32 %v8923, %v9051
        %v9053 = vpop.f32.mrf.mxu0
        %v9054 = vpop.f32.mrf.mxu0
        %v9055 = vadd.f32 %v8926, %v9054
        %v9056 = vpop.f32.mrf.mxu0
        %9057 = vdwg.mxu0
        %v9058 = vadd.f32 %v7809, %v8964
        %v9059 = vadd.f32 %v7813, %v8967
        %v9060 = vadd.f32 %v7819, %v8972
        %v9061 = vadd.f32 %v7823, %v8975
        %v9062 = vadd.f32 %v7829, %v8980
        %v9063 = vadd.f32 %v7833, %v8983
        %v9064 = vadd.f32 %v7839, %v8988
        %v9065 = vadd.f32 %v7843, %v8991
        %v9066 = vadd.f32 %v7849, %v8996
        %v9067 = vadd.f32 %v7853, %v8999
        %v9068 = vadd.f32 %v7859, %v9004
        %v9069 = vadd.f32 %v7863, %v9007
        %v9070 = vadd.f32 %v7869, %v9012
        %v9071 = vadd.f32 %v7873, %v9015
        %v9072 = vadd.f32 %v7879, %v9020
        %v9073 = vadd.f32 %v7883, %v9023
        %v9074 = vadd.f32 %v7889, %v9028
        %v9075 = vadd.f32 %v7893, %v9031
        %v9076 = vadd.f32 %v7899, %v9036
        %v9077 = vadd.f32 %v7903, %v9039
        %v9078 = vadd.f32 %v7909, %v9044
        %v9079 = vadd.f32 %v7913, %v9047
        %v9080 = vadd.f32 %v7919, %v9052
        %v9081 = vadd.f32 %v7923, %v9055
        %v9082 = vld [vmem:[#allocation23] sm:$0x1]
        %v9084 = vlaneseq
        %v9085 = vshrl.u32 %v9084, 7
        %v9086 = vsub.s32 0, %v9085
        %v9087 = vrot.slane %v9082, %v9086
        %v9089 = vadd.f32 %v9058, %v9087
        %v9090 = vadd.f32 %v9059, %v9087
        %v9091 = vadd.f32 %v9060, %v9087
        %v9092 = vadd.f32 %v9061, %v9087
        %v9093 = vadd.f32 %v9062, %v9087
        %v9094 = vadd.f32 %v9063, %v9087
        %v9095 = vadd.f32 %v9064, %v9087
        %v9096 = vadd.f32 %v9065, %v9087
        %v9097 = vadd.f32 %v9066, %v9087
        %v9098 = vadd.f32 %v9067, %v9087
        %v9099 = vadd.f32 %v9068, %v9087
        %v9100 = vadd.f32 %v9069, %v9087
        %v9101 = vadd.f32 %v9070, %v9087
        %v9102 = vadd.f32 %v9071, %v9087
        %v9103 = vadd.f32 %v9072, %v9087
        %v9104 = vadd.f32 %v9073, %v9087
        %v9105 = vadd.f32 %v9074, %v9087
        %v9106 = vadd.f32 %v9075, %v9087
        %v9107 = vadd.f32 %v9076, %v9087
        %v9108 = vadd.f32 %v9077, %v9087
        %v9109 = vadd.f32 %v9078, %v9087
        %v9110 = vadd.f32 %v9079, %v9087
        %v9111 = vadd.f32 %v9080, %v9087
        %v9112 = vadd.f32 %v9081, %v9087
        %v9113 = vmax.f32 %v9089, 0.0
        %v9114 = vmax.f32 %v9090, 0.0
        %v9115 = vmax.f32 %v9091, 0.0
        %v9116 = vmax.f32 %v9092, 0.0
        %v9117 = vmax.f32 %v9093, 0.0
        %v9118 = vmax.f32 %v9094, 0.0
        %v9119 = vmax.f32 %v9095, 0.0
        %v9120 = vmax.f32 %v9096, 0.0
        %v9121 = vmax.f32 %v9097, 0.0
        %v9122 = vmax.f32 %v9098, 0.0
        %v9123 = vmax.f32 %v9099, 0.0
        %v9124 = vmax.f32 %v9100, 0.0
        %v9125 = vmax.f32 %v9101, 0.0
        %v9126 = vmax.f32 %v9102, 0.0
        %v9127 = vmax.f32 %v9103, 0.0
        %v9128 = vmax.f32 %v9104, 0.0
        %v9129 = vmax.f32 %v9105, 0.0
        %v9130 = vmax.f32 %v9106, 0.0
        %v9131 = vmax.f32 %v9107, 0.0
        %v9132 = vmax.f32 %v9108, 0.0
        %v9133 = vmax.f32 %v9109, 0.0
        %v9134 = vmax.f32 %v9110, 0.0
        %v9135 = vmax.f32 %v9111, 0.0
        %v9136 = vmax.f32 %v9112, 0.0
        %v9137 = vmul.f32 %v9113, %v1107
        %v9138 = vmul.f32 %v9114, %v1108
        %v9139 = vmul.f32 %v9115, %v1109
        %v9140 = vmul.f32 %v9116, %v1110
        %v9141 = vmul.f32 %v9117, %v1111
        %v9142 = vmul.f32 %v9118, %v1112
        %v9143 = vmul.f32 %v9119, %v1113
        %v9144 = vmul.f32 %v9120, %v1114
        %v9145 = vmul.f32 %v9121, %v1115
        %v9146 = vmul.f32 %v9122, %v1116
        %v9147 = vmul.f32 %v9123, %v1117
        %v9148 = vmul.f32 %v9124, %v1118
        %v9149 = vmul.f32 %v9125, %v1119
        %v9150 = vmul.f32 %v9126, %v1120
        %v9151 = vmul.f32 %v9127, %v1121
        %v9152 = vmul.f32 %v9128, %v1122
        %v9153 = vmul.f32 %v9129, %v1123
        %v9154 = vmul.f32 %v9130, %v1124
        %v9155 = vmul.f32 %v9131, %v1125
        %v9156 = vmul.f32 %v9132, %v1126
        %v9157 = vmul.f32 %v9133, %v1127
        %v9158 = vmul.f32 %v9134, %v1128
        %v9159 = vmul.f32 %v9135, %v1129
        %v9160 = vmul.f32 %v9136, %v1130
        %v9161 = vld [vmem:[#allocation25] sm:$0x1]
        %v9163 = vlaneseq
        %v9164 = vshrl.u32 %v9163, 7
        %v9165 = vsub.s32 0, %v9164
        %v9166 = vrot.slane %v9161, %v9165
        %v9168 = vadd.f32 %v7811, %v9166
        %v9169 = vadd.f32 %v7815, %v9166
        %v9170 = vadd.f32 %v7821, %v9166
        %v9171 = vadd.f32 %v7825, %v9166
        %v9172 = vadd.f32 %v7831, %v9166
        %v9173 = vadd.f32 %v7835, %v9166
        %v9174 = vadd.f32 %v7841, %v9166
        %v9175 = vadd.f32 %v7845, %v9166
        %v9176 = vadd.f32 %v7851, %v9166
        %v9177 = vadd.f32 %v7855, %v9166
        %v9178 = vadd.f32 %v7861, %v9166
        %v9179 = vadd.f32 %v7865, %v9166
        %v9180 = vadd.f32 %v7871, %v9166
        %v9181 = vadd.f32 %v7875, %v9166
        %v9182 = vadd.f32 %v7881, %v9166
        %v9183 = vadd.f32 %v7885, %v9166
        %v9184 = vadd.f32 %v7891, %v9166
        %v9185 = vadd.f32 %v7895, %v9166
        %v9186 = vadd.f32 %v7901, %v9166
        %v9187 = vadd.f32 %v7905, %v9166
        %v9188 = vadd.f32 %v7911, %v9166
        %v9189 = vadd.f32 %v7915, %v9166
        %v9190 = vadd.f32 %v7921, %v9166
        %v9191 = vadd.f32 %v7925, %v9166
        %v9192 = vmul.f32 %v9168, %v1107
        %v9193 = vmul.f32 %v9169, %v1108
        %v9194 = vmul.f32 %v9170, %v1109
        %v9195 = vmul.f32 %v9171, %v1110
        %v9196 = vmul.f32 %v9172, %v1111
        %v9197 = vmul.f32 %v9173, %v1112
        %v9198 = vmul.f32 %v9174, %v1113
        %v9199 = vmul.f32 %v9175, %v1114
        %v9200 = vmul.f32 %v9176, %v1115
        %v9201 = vmul.f32 %v9177, %v1116
        %v9202 = vmul.f32 %v9178, %v1117
        %v9203 = vmul.f32 %v9179, %v1118
        %v9204 = vmul.f32 %v9180, %v1119
        %v9205 = vmul.f32 %v9181, %v1120
        %v9206 = vmul.f32 %v9182, %v1121
        %v9207 = vmul.f32 %v9183, %v1122
        %v9208 = vmul.f32 %v9184, %v1123
        %v9209 = vmul.f32 %v9185, %v1124
        %v9210 = vmul.f32 %v9186, %v1125
        %v9211 = vmul.f32 %v9187, %v1126
        %v9212 = vmul.f32 %v9188, %v1127
        %v9213 = vmul.f32 %v9189, %v1128
        %v9214 = vmul.f32 %v9190, %v1129
        %v9215 = vmul.f32 %v9191, %v1130
        %v9216 = vrot.slane %v9137, 6
        %v9217 = vrot.slane %v9138, 6
        %v9218 = vrot.slane %v9139, 6
        %v9219 = vrot.slane %v9140, 6
        %v9220 = vrot.slane %v9141, 6
        %v9221 = vrot.slane %v9142, 6
        %v9222 = vrot.slane %v9143, 6
        %v9223 = vrot.slane %v9144, 6
        %v9224 = vrot.slane %v9145, 6
        %v9225 = vrot.slane %v9146, 6
        %v9226 = vrot.slane %v9147, 6
        %v9227 = vrot.slane %v9148, 6
        %v9228 = vrot.slane %v9149, 6
        %v9229 = vrot.slane %v9150, 6
        %v9230 = vrot.slane %v9151, 6
        %v9231 = vrot.slane %v9152, 6
        %v9232 = vrot.slane %v9153, 6
        %v9233 = vrot.slane %v9154, 6
        %v9234 = vrot.slane %v9155, 6
        %v9235 = vrot.slane %v9156, 6
        %v9236 = vrot.slane %v9157, 6
        %v9237 = vrot.slane %v9158, 6
        %v9238 = vrot.slane %v9159, 6
        %v9239 = vrot.slane %v9160, 6
        %v9240 = vsel %vm1546, %v9238, %v9239
        %v9241 = vsel %vm1546, %v9237, %v9238
        %v9242 = vsel %vm1546, %v9236, %v9237
        %v9243 = vsel %vm1546, %v9235, %v9236
        %v9244 = vsel %vm1546, %v9234, %v9235
        %v9245 = vsel %vm1546, %v9233, %v9234
        %v9246 = vsel %vm1546, %v9232, %v9233
        %v9247 = vsel %vm1546, %v9231, %v9232
        %v9248 = vsel %vm1546, %v9230, %v9231
        %v9249 = vsel %vm1546, %v9229, %v9230
        %v9250 = vsel %vm1546, %v9228, %v9229
        %v9251 = vsel %vm1546, %v9227, %v9228
        %v9252 = vsel %vm1546, %v9226, %v9227
        %v9253 = vsel %vm1546, %v9225, %v9226
        %v9254 = vsel %vm1546, %v9224, %v9225
        %v9255 = vsel %vm1546, %v9223, %v9224
        %v9256 = vsel %vm1546, %v9222, %v9223
        %v9257 = vsel %vm1546, %v9221, %v9222
        %v9258 = vsel %vm1546, %v9220, %v9221
        %v9259 = vsel %vm1546, %v9219, %v9220
        %v9260 = vsel %vm1546, %v9218, %v9219
        %v9261 = vsel %vm1546, %v9217, %v9218
        %v9262 = vsel %vm1546, %v9216, %v9217
        %v9263 = vsel %vm1546, %v9239, %v9216
        %v9264 = vpack.c.bf16 %v9262, %v9263
        %v9265 = vpack.c.bf16 %v9260, %v9261
        %v9266 = vpack.c.bf16 %v9258, %v9259
        %v9267 = vpack.c.bf16 %v9256, %v9257
        %v9268 = vpack.c.bf16 %v9254, %v9255
        %v9269 = vpack.c.bf16 %v9252, %v9253
        %v9270 = vpack.c.bf16 %v9250, %v9251
        %v9271 = vpack.c.bf16 %v9248, %v9249
        %v9272 = vpack.c.bf16 %v9246, %v9247
        %v9273 = vpack.c.bf16 %v9244, %v9245
        %v9274 = vpack.c.bf16 %v9242, %v9243
        %v9275 = vpack.c.bf16 %v9240, %v9241
        %v9276 = vrot.slane %v9137, 7
        %v9277 = vrot.slane %v9138, 7
        %v9278 = vrot.slane %v9139, 7
        %v9279 = vrot.slane %v9140, 7
        %v9280 = vrot.slane %v9141, 7
        %v9281 = vrot.slane %v9142, 7
        %v9282 = vrot.slane %v9143, 7
        %v9283 = vrot.slane %v9144, 7
        %v9284 = vrot.slane %v9145, 7
        %v9285 = vrot.slane %v9146, 7
        %v9286 = vrot.slane %v9147, 7
        %v9287 = vrot.slane %v9148, 7
        %v9288 = vrot.slane %v9149, 7
        %v9289 = vrot.slane %v9150, 7
        %v9290 = vrot.slane %v9151, 7
        %v9291 = vrot.slane %v9152, 7
        %v9292 = vrot.slane %v9153, 7
        %v9293 = vrot.slane %v9154, 7
        %v9294 = vrot.slane %v9155, 7
        %v9295 = vrot.slane %v9156, 7
        %v9296 = vrot.slane %v9157, 7
        %v9297 = vrot.slane %v9158, 7
        %v9298 = vrot.slane %v9159, 7
        %v9299 = vrot.slane %v9160, 7
        %v9300 = vsel %vm1615, %v9298, %v9299
        %v9301 = vsel %vm1615, %v9297, %v9298
        %v9302 = vsel %vm1615, %v9296, %v9297
        %v9303 = vsel %vm1615, %v9295, %v9296
        %v9304 = vsel %vm1615, %v9294, %v9295
        %v9305 = vsel %vm1615, %v9293, %v9294
        %v9306 = vsel %vm1615, %v9292, %v9293
        %v9307 = vsel %vm1615, %v9291, %v9292
        %v9308 = vsel %vm1615, %v9290, %v9291
        %v9309 = vsel %vm1615, %v9289, %v9290
        %v9310 = vsel %vm1615, %v9288, %v9289
        %v9311 = vsel %vm1615, %v9287, %v9288
        %v9312 = vsel %vm1615, %v9286, %v9287
        %v9313 = vsel %vm1615, %v9285, %v9286
        %v9314 = vsel %vm1615, %v9284, %v9285
        %v9315 = vsel %vm1615, %v9283, %v9284
        %v9316 = vsel %vm1615, %v9282, %v9283
        %v9317 = vsel %vm1615, %v9281, %v9282
        %v9318 = vsel %vm1615, %v9280, %v9281
        %v9319 = vsel %vm1615, %v9279, %v9280
        %v9320 = vsel %vm1615, %v9278, %v9279
        %v9321 = vsel %vm1615, %v9277, %v9278
        %v9322 = vsel %vm1615, %v9276, %v9277
        %v9323 = vsel %vm1615, %v9299, %v9276
        %v9324 = vpack.c.bf16 %v9322, %v9323
        %v9325 = vpack.c.bf16 %v9320, %v9321
        %v9326 = vpack.c.bf16 %v9318, %v9319
        %v9327 = vpack.c.bf16 %v9316, %v9317
        %v9328 = vpack.c.bf16 %v9314, %v9315
        %v9329 = vpack.c.bf16 %v9312, %v9313
        %v9330 = vpack.c.bf16 %v9310, %v9311
        %v9331 = vpack.c.bf16 %v9308, %v9309
        %v9332 = vpack.c.bf16 %v9306, %v9307
        %v9333 = vpack.c.bf16 %v9304, %v9305
        %v9334 = vpack.c.bf16 %v9302, %v9303
        %v9335 = vpack.c.bf16 %v9300, %v9301
        %v9336 = vpack.c.bf16 %v9138, %v9137
        %v9337 = vpack.c.bf16 %v9140, %v9139
        %v9338 = vpack.c.bf16 %v9142, %v9141
        %v9339 = vpack.c.bf16 %v9144, %v9143
        %v9340 = vpack.c.bf16 %v9146, %v9145
        %v9341 = vpack.c.bf16 %v9148, %v9147
        %v9342 = vpack.c.bf16 %v9150, %v9149
        %v9343 = vpack.c.bf16 %v9152, %v9151
        %v9344 = vpack.c.bf16 %v9154, %v9153
        %v9345 = vpack.c.bf16 %v9156, %v9155
        %v9346 = vpack.c.bf16 %v9158, %v9157
        %v9347 = vpack.c.bf16 %v9160, %v9159
        %v9348 = vrot.slane %v9137, 1
        %v9349 = vrot.slane %v9138, 1
        %v9350 = vrot.slane %v9139, 1
        %v9351 = vrot.slane %v9140, 1
        %v9352 = vrot.slane %v9141, 1
        %v9353 = vrot.slane %v9142, 1
        %v9354 = vrot.slane %v9143, 1
        %v9355 = vrot.slane %v9144, 1
        %v9356 = vrot.slane %v9145, 1
        %v9357 = vrot.slane %v9146, 1
        %v9358 = vrot.slane %v9147, 1
        %v9359 = vrot.slane %v9148, 1
        %v9360 = vrot.slane %v9149, 1
        %v9361 = vrot.slane %v9150, 1
        %v9362 = vrot.slane %v9151, 1
        %v9363 = vrot.slane %v9152, 1
        %v9364 = vrot.slane %v9153, 1
        %v9365 = vrot.slane %v9154, 1
        %v9366 = vrot.slane %v9155, 1
        %v9367 = vrot.slane %v9156, 1
        %v9368 = vrot.slane %v9157, 1
        %v9369 = vrot.slane %v9158, 1
        %v9370 = vrot.slane %v9159, 1
        %v9371 = vrot.slane %v9160, 1
        %v9372 = vsel %vm2298, %v9370, %v9371
        %v9373 = vsel %vm2298, %v9369, %v9370
        %v9374 = vsel %vm2298, %v9368, %v9369
        %v9375 = vsel %vm2298, %v9367, %v9368
        %v9376 = vsel %vm2298, %v9366, %v9367
        %v9377 = vsel %vm2298, %v9365, %v9366
        %v9378 = vsel %vm2298, %v9364, %v9365
        %v9379 = vsel %vm2298, %v9363, %v9364
        %v9380 = vsel %vm2298, %v9362, %v9363
        %v9381 = vsel %vm2298, %v9361, %v9362
        %v9382 = vsel %vm2298, %v9360, %v9361
        %v9383 = vsel %vm2298, %v9359, %v9360
        %v9384 = vsel %vm2298, %v9358, %v9359
        %v9385 = vsel %vm2298, %v9357, %v9358
        %v9386 = vsel %vm2298, %v9356, %v9357
        %v9387 = vsel %vm2298, %v9355, %v9356
        %v9388 = vsel %vm2298, %v9354, %v9355
        %v9389 = vsel %vm2298, %v9353, %v9354
        %v9390 = vsel %vm2298, %v9352, %v9353
        %v9391 = vsel %vm2298, %v9351, %v9352
        %v9392 = vsel %vm2298, %v9350, %v9351
        %v9393 = vsel %vm2298, %v9349, %v9350
        %v9394 = vsel %vm2298, %v9348, %v9349
        %v9395 = vsel %vm2298, %v9371, %v9348
        %v9396 = vpack.c.bf16 %v9393, %v9394
        %v9397 = vpack.c.bf16 %v9391, %v9392
        %v9398 = vpack.c.bf16 %v9389, %v9390
        %v9399 = vpack.c.bf16 %v9387, %v9388
        %v9400 = vpack.c.bf16 %v9385, %v9386
        %v9401 = vpack.c.bf16 %v9383, %v9384
        %v9402 = vpack.c.bf16 %v9381, %v9382
        %v9403 = vpack.c.bf16 %v9379, %v9380
        %v9404 = vpack.c.bf16 %v9377, %v9378
        %v9405 = vpack.c.bf16 %v9375, %v9376
        %v9406 = vpack.c.bf16 %v9373, %v9374
        %v9407 = vpack.c.bf16 %v9395, %v9372
        %v9408 = vrot.slane %v9137, 2
        %v9409 = vrot.slane %v9138, 2
        %v9410 = vrot.slane %v9139, 2
        %v9411 = vrot.slane %v9140, 2
        %v9412 = vrot.slane %v9141, 2
        %v9413 = vrot.slane %v9142, 2
        %v9414 = vrot.slane %v9143, 2
        %v9415 = vrot.slane %v9144, 2
        %v9416 = vrot.slane %v9145, 2
        %v9417 = vrot.slane %v9146, 2
        %v9418 = vrot.slane %v9147, 2
        %v9419 = vrot.slane %v9148, 2
        %v9420 = vrot.slane %v9149, 2
        %v9421 = vrot.slane %v9150, 2
        %v9422 = vrot.slane %v9151, 2
        %v9423 = vrot.slane %v9152, 2
        %v9424 = vrot.slane %v9153, 2
        %v9425 = vrot.slane %v9154, 2
        %v9426 = vrot.slane %v9155, 2
        %v9427 = vrot.slane %v9156, 2
        %v9428 = vrot.slane %v9157, 2
        %v9429 = vrot.slane %v9158, 2
        %v9430 = vrot.slane %v9159, 2
        %v9431 = vrot.slane %v9160, 2
        %v9432 = vsel %vm2581, %v9430, %v9431
        %v9433 = vsel %vm2581, %v9429, %v9430
        %v9434 = vsel %vm2581, %v9428, %v9429
        %v9435 = vsel %vm2581, %v9427, %v9428
        %v9436 = vsel %vm2581, %v9426, %v9427
        %v9437 = vsel %vm2581, %v9425, %v9426
        %v9438 = vsel %vm2581, %v9424, %v9425
        %v9439 = vsel %vm2581, %v9423, %v9424
        %v9440 = vsel %vm2581, %v9422, %v9423
        %v9441 = vsel %vm2581, %v9421, %v9422
        %v9442 = vsel %vm2581, %v9420, %v9421
        %v9443 = vsel %vm2581, %v9419, %v9420
        %v9444 = vsel %vm2581, %v9418, %v9419
        %v9445 = vsel %vm2581, %v9417, %v9418
        %v9446 = vsel %vm2581, %v9416, %v9417
        %v9447 = vsel %vm2581, %v9415, %v9416
        %v9448 = vsel %vm2581, %v9414, %v9415
        %v9449 = vsel %vm2581, %v9413, %v9414
        %v9450 = vsel %vm2581, %v9412, %v9413
        %v9451 = vsel %vm2581, %v9411, %v9412
        %v9452 = vsel %vm2581, %v9410, %v9411
        %v9453 = vsel %vm2581, %v9409, %v9410
        %v9454 = vsel %vm2581, %v9408, %v9409
        %v9455 = vsel %vm2581, %v9431, %v9408
        %v9456 = vpack.c.bf16 %v9453, %v9454
        %v9457 = vpack.c.bf16 %v9451, %v9452
        %v9458 = vpack.c.bf16 %v9449, %v9450
        %v9459 = vpack.c.bf16 %v9447, %v9448
        %v9460 = vpack.c.bf16 %v9445, %v9446
        %v9461 = vpack.c.bf16 %v9443, %v9444
        %v9462 = vpack.c.bf16 %v9441, %v9442
        %v9463 = vpack.c.bf16 %v9439, %v9440
        %v9464 = vpack.c.bf16 %v9437, %v9438
        %v9465 = vpack.c.bf16 %v9435, %v9436
        %v9466 = vpack.c.bf16 %v9433, %v9434
        %v9467 = vpack.c.bf16 %v9455, %v9432
        %v9468 = vld [vmem:[#allocation26] sm:$0xf]
        %v9469 = vld [vmem:[#allocation26 + $0x4] sm:$0xf]
        %v9470 = vld [vmem:[#allocation26 + $0x8] sm:$0xf]
        %v9471 = vld [vmem:[#allocation26 + $0xc] sm:$0xf]
        %v9472 = vld [vmem:[#allocation26 + $0x10] sm:$0xf]
        %v9473 = vld [vmem:[#allocation26 + $0x14] sm:$0xf]
        %v9474 = vld [vmem:[#allocation26 + $0x18] sm:$0xf]
        %v9475 = vld [vmem:[#allocation26 + $0x1c] sm:$0xf]
        %v9476 = vld [vmem:[#allocation26 + $0x20] sm:$0xf]
        %v9477 = vld [vmem:[#allocation26 + $0x24] sm:$0xf]
        %v9478 = vld [vmem:[#allocation26 + $0x28] sm:$0xf]
        %v9479 = vld [vmem:[#allocation26 + $0x2c] sm:$0xf]
        %v9480 = vld [vmem:[#allocation26 + $0x30] sm:$0xf]
        %v9481 = vld [vmem:[#allocation26 + $0x34] sm:$0xf]
        %v9482 = vld [vmem:[#allocation26 + $0x38] sm:$0xf]
        %v9483 = vld [vmem:[#allocation26 + $0x3c] sm:$0xf]
        %v9484 = vld [vmem:[#allocation26 + $0x40] sm:$0xf]
        %v9485 = vld [vmem:[#allocation26 + $0x44] sm:$0xf]
        %v9486 = vld [vmem:[#allocation26 + $0x48] sm:$0xf]
        %v9487 = vld [vmem:[#allocation26 + $0x4c] sm:$0xf]
        %v9488 = vld [vmem:[#allocation26 + $0x50] sm:$0xf]
        %v9489 = vld [vmem:[#allocation26 + $0x54] sm:$0xf]
        %v9490 = vld [vmem:[#allocation26 + $0x58] sm:$0xf]
        %v9491 = vld [vmem:[#allocation26 + $0x5c] sm:$0xf]
        %v9492 = vld [vmem:[#allocation26 + $0x60] sm:$0xf]
        %v9493 = vld [vmem:[#allocation26 + $0x64] sm:$0xf]
        %v9494 = vld [vmem:[#allocation26 + $0x68] sm:$0xf]
        %v9495 = vld [vmem:[#allocation26 + $0x6c] sm:$0xf]
        %v9496 = vld [vmem:[#allocation26 + $0x70] sm:$0xf]
        %v9497 = vld [vmem:[#allocation26 + $0x74] sm:$0xf]
        %v9498 = vld [vmem:[#allocation26 + $0x78] sm:$0xf]
        %v9499 = vld [vmem:[#allocation26 + $0x7c] sm:$0xf]
        %v9500 = vld [vmem:[#allocation26 + $0x80] sm:$0xf]
        %v9501 = vld [vmem:[#allocation26 + $0x84] sm:$0xf]
        %v9502 = vld [vmem:[#allocation26 + $0x88] sm:$0xf]
        %v9503 = vld [vmem:[#allocation26 + $0x8c] sm:$0xf]
        %v9504 = vld [vmem:[#allocation26 + $0x90] sm:$0xf]
        %v9505 = vld [vmem:[#allocation26 + $0x94] sm:$0xf]
        %v9506 = vld [vmem:[#allocation26 + $0x98] sm:$0xf]
        %v9507 = vld [vmem:[#allocation26 + $0x9c] sm:$0xf]
        %v9508 = vld [vmem:[#allocation26 + $0xa0] sm:$0xf]
        %v9509 = vld [vmem:[#allocation26 + $0xa4] sm:$0xf]
        %v9510 = vld [vmem:[#allocation26 + $0xa8] sm:$0xf]
        %v9511 = vld [vmem:[#allocation26 + $0xac] sm:$0xf]
        %v9512 = vld [vmem:[#allocation26 + $0xb0] sm:$0xf]
        %v9513 = vld [vmem:[#allocation26 + $0xb4] sm:$0xf]
        %v9514 = vld [vmem:[#allocation26 + $0xb8] sm:$0xf]
        %v9515 = vld [vmem:[#allocation26 + $0xbc] sm:$0xf]
        %v9516 = vld [vmem:[#allocation26 + $0xc0] sm:$0xf]
        %v9517 = vld [vmem:[#allocation26 + $0xc4] sm:$0xf]
        %v9518 = vld [vmem:[#allocation26 + $0xc8] sm:$0xf]
        %v9519 = vld [vmem:[#allocation26 + $0xcc] sm:$0xf]
        %v9520 = vld [vmem:[#allocation26 + $0xd0] sm:$0xf]
        %v9521 = vld [vmem:[#allocation26 + $0xd4] sm:$0xf]
        %v9522 = vld [vmem:[#allocation26 + $0xd8] sm:$0xf]
        %v9523 = vld [vmem:[#allocation26 + $0xdc] sm:$0xf]
        %v9524 = vld [vmem:[#allocation26 + $0xe0] sm:$0xf]
        %v9525 = vld [vmem:[#allocation26 + $0xe4] sm:$0xf]
        %v9526 = vld [vmem:[#allocation26 + $0xe8] sm:$0xf]
        %v9527 = vld [vmem:[#allocation26 + $0xec] sm:$0xf]
        %v9528 = vld [vmem:[#allocation26 + $0xf0] sm:$0xf]
        %v9529 = vld [vmem:[#allocation26 + $0xf4] sm:$0xf]
        %v9530 = vld [vmem:[#allocation26 + $0xf8] sm:$0xf]
        %v9531 = vld [vmem:[#allocation26 + $0xfc] sm:$0xf]
        %v9532 = vld [vmem:[#allocation26 + $0x100] sm:$0xf]
        %v9533 = vld [vmem:[#allocation26 + $0x104] sm:$0xf]
        %v9534 = vld [vmem:[#allocation26 + $0x108] sm:$0xf]
        %v9535 = vld [vmem:[#allocation26 + $0x10c] sm:$0xf]
        %v9536 = vld [vmem:[#allocation26 + $0x110] sm:$0xf]
        %v9537 = vld [vmem:[#allocation26 + $0x114] sm:$0xf]
        %v9538 = vld [vmem:[#allocation26 + $0x118] sm:$0xf]
        %v9539 = vld [vmem:[#allocation26 + $0x11c] sm:$0xf]
        %v9540 = vld [vmem:[#allocation26 + $0x120] sm:$0xf]
        %v9541 = vld [vmem:[#allocation26 + $0x124] sm:$0xf]
        %v9542 = vld [vmem:[#allocation26 + $0x128] sm:$0xf]
        %v9543 = vld [vmem:[#allocation26 + $0x12c] sm:$0xf]
        %v9544 = vld [vmem:[#allocation26 + $0x130] sm:$0xf]
        %v9545 = vld [vmem:[#allocation26 + $0x134] sm:$0xf]
        %v9546 = vld [vmem:[#allocation26 + $0x138] sm:$0xf]
        %v9547 = vld [vmem:[#allocation26 + $0x13c] sm:$0xf]
        %v9548 = vld [vmem:[%s21] sm:$0x1]
        %v9550 = vlaneseq
        %v9551 = vshrl.u32 %v9550, 7
        %v9552 = vsub.s32 0, %v9551
        %v9553 = vrot.slane %v9548, %v9552
        %v9635 = vunpack.c.l.b16 %v9468
        %v9636 = vunpack.c.l.b16 %v9469
        %v9637 = vunpack.c.l.b16 %v9470
        %v9638 = vunpack.c.l.b16 %v9471
        %v9639 = vunpack.c.l.b16 %v9472
        %v9640 = vunpack.c.l.b16 %v9473
        %v9641 = vunpack.c.l.b16 %v9474
        %v9642 = vunpack.c.l.b16 %v9475
        %v9643 = vunpack.c.l.b16 %v9476
        %v9644 = vunpack.c.l.b16 %v9477
        %v9645 = vunpack.c.l.b16 %v9478
        %v9646 = vunpack.c.l.b16 %v9479
        %v9647 = vunpack.c.l.b16 %v9480
        %v9648 = vunpack.c.l.b16 %v9481
        %v9649 = vunpack.c.l.b16 %v9482
        %v9650 = vunpack.c.l.b16 %v9483
        %v9651 = vunpack.c.l.b16 %v9484
        %v9652 = vunpack.c.l.b16 %v9485
        %v9653 = vunpack.c.l.b16 %v9486
        %v9654 = vunpack.c.l.b16 %v9487
        %v9655 = vunpack.c.l.b16 %v9488
        %v9656 = vunpack.c.l.b16 %v9489
        %v9657 = vunpack.c.l.b16 %v9490
        %v9658 = vunpack.c.l.b16 %v9491
        %v9659 = vunpack.c.l.b16 %v9492
        %v9660 = vunpack.c.l.b16 %v9493
        %v9661 = vunpack.c.l.b16 %v9494
        %v9662 = vunpack.c.l.b16 %v9495
        %v9663 = vunpack.c.l.b16 %v9496
        %v9664 = vunpack.c.l.b16 %v9497
        %v9665 = vunpack.c.l.b16 %v9498
        %v9666 = vunpack.c.l.b16 %v9499
        %v9667 = vunpack.c.l.b16 %v9500
        %v9668 = vunpack.c.l.b16 %v9501
        %v9669 = vunpack.c.l.b16 %v9502
        %v9670 = vunpack.c.l.b16 %v9503
        %v9671 = vunpack.c.l.b16 %v9504
        %v9672 = vunpack.c.l.b16 %v9505
        %v9673 = vunpack.c.l.b16 %v9506
        %v9674 = vunpack.c.l.b16 %v9507
        %v9675 = vunpack.c.l.b16 %v9508
        %v9676 = vunpack.c.l.b16 %v9509
        %v9677 = vunpack.c.l.b16 %v9510
        %v9678 = vunpack.c.l.b16 %v9511
        %v9679 = vunpack.c.l.b16 %v9512
        %v9680 = vunpack.c.l.b16 %v9513
        %v9681 = vunpack.c.l.b16 %v9514
        %v9682 = vunpack.c.l.b16 %v9515
        %v9683 = vunpack.c.l.b16 %v9516
        %v9684 = vunpack.c.l.b16 %v9517
        %v9685 = vunpack.c.l.b16 %v9518
        %v9686 = vunpack.c.l.b16 %v9519
        %v9687 = vunpack.c.l.b16 %v9520
        %v9688 = vunpack.c.l.b16 %v9521
        %v9689 = vunpack.c.l.b16 %v9522
        %v9690 = vunpack.c.l.b16 %v9523
        %v9691 = vunpack.c.l.b16 %v9524
        %v9692 = vunpack.c.l.b16 %v9525
        %v9693 = vunpack.c.l.b16 %v9526
        %v9694 = vunpack.c.l.b16 %v9527
        %v9695 = vunpack.c.l.b16 %v9528
        %v9696 = vunpack.c.l.b16 %v9529
        %v9697 = vunpack.c.l.b16 %v9530
        %v9698 = vunpack.c.l.b16 %v9531
        %v9699 = vunpack.c.l.b16 %v9532
        %v9700 = vunpack.c.l.b16 %v9533
        %v9701 = vunpack.c.l.b16 %v9534
        %v9702 = vunpack.c.l.b16 %v9535
        %v9703 = vunpack.c.l.b16 %v9536
        %v9704 = vunpack.c.l.b16 %v9537
        %v9705 = vunpack.c.l.b16 %v9538
        %v9706 = vunpack.c.l.b16 %v9539
        %v9707 = vunpack.c.l.b16 %v9540
        %v9708 = vunpack.c.l.b16 %v9541
        %v9709 = vunpack.c.l.b16 %v9542
        %v9710 = vunpack.c.l.b16 %v9543
        %v9711 = vunpack.c.l.b16 %v9544
        %v9712 = vunpack.c.l.b16 %v9545
        %v9713 = vunpack.c.l.b16 %v9546
        %v9714 = vunpack.c.l.b16 %v9547
        %v9715 = vpack.c.b16 %v9636, %v9635
        %v9716 = vpack.c.b16 %v9638, %v9637
        %v9717 = vpack.c.b16 %v9640, %v9639
        %v9718 = vpack.c.b16 %v9642, %v9641
        %v9719 = vpack.c.b16 %v9644, %v9643
        %v9720 = vpack.c.b16 %v9646, %v9645
        %v9721 = vpack.c.b16 %v9648, %v9647
        %v9722 = vpack.c.b16 %v9650, %v9649
        %v9723 = vpack.c.b16 %v9652, %v9651
        %v9724 = vpack.c.b16 %v9654, %v9653
        %v9725 = vpack.c.b16 %v9656, %v9655
        %v9726 = vpack.c.b16 %v9658, %v9657
        %v9727 = vpack.c.b16 %v9660, %v9659
        %v9728 = vpack.c.b16 %v9662, %v9661
        %v9729 = vpack.c.b16 %v9664, %v9663
        %v9730 = vpack.c.b16 %v9666, %v9665
        %v9731 = vpack.c.b16 %v9668, %v9667
        %v9732 = vpack.c.b16 %v9670, %v9669
        %v9733 = vpack.c.b16 %v9672, %v9671
        %v9734 = vpack.c.b16 %v9674, %v9673
        %v9735 = vpack.c.b16 %v9676, %v9675
        %v9736 = vpack.c.b16 %v9678, %v9677
        %v9737 = vpack.c.b16 %v9680, %v9679
        %v9738 = vpack.c.b16 %v9682, %v9681
        %v9739 = vpack.c.b16 %v9684, %v9683
        %v9740 = vpack.c.b16 %v9686, %v9685
        %v9741 = vpack.c.b16 %v9688, %v9687
        %v9742 = vpack.c.b16 %v9690, %v9689
        %v9743 = vpack.c.b16 %v9692, %v9691
        %v9744 = vpack.c.b16 %v9694, %v9693
        %v9745 = vpack.c.b16 %v9696, %v9695
        %v9746 = vpack.c.b16 %v9698, %v9697
        %v9747 = vpack.c.b16 %v9700, %v9699
        %v9748 = vpack.c.b16 %v9702, %v9701
        %v9749 = vpack.c.b16 %v9704, %v9703
        %v9750 = vpack.c.b16 %v9706, %v9705
        %v9751 = vpack.c.b16 %v9708, %v9707
        %v9752 = vpack.c.b16 %v9710, %v9709
        %v9753 = vpack.c.b16 %v9712, %v9711
        %v9754 = vpack.c.b16 %v9714, %v9713
        %9795 = vmatprep.subr.bf16.mxu0 0
        %9796 = vmatpush1.bf16.msra.mxu0 %v9722
        %9797 = vmatprep.subr.bf16.mxu0 0
        %9798 = vmatpush1.bf16.msra.mxu0 %v9721
        %9799 = vmatprep.subr.bf16.mxu0 0
        %9800 = vmatpush1.bf16.msra.mxu0 %v9720
        %9801 = vmatprep.subr.bf16.mxu0 0
        %9802 = vmatpush1.bf16.msra.mxu0 %v9719
        %9803 = vmatprep.subr.bf16.mxu0 0
        %9804 = vmatpush1.bf16.msra.mxu0 %v9718
        %9805 = vmatprep.subr.bf16.mxu0 0
        %9806 = vmatpush1.bf16.msra.mxu0 %v9717
        %9807 = vmatprep.subr.bf16.mxu0 0
        %9808 = vmatpush1.bf16.msra.mxu0 %v9716
        %9809 = vmatprep.subr.bf16.mxu0 0
        %9810 = vmatpush1.bf16.msra.mxu0 %v9715
        %9811 = vmatprep.subr.bf16.mxu0 0
        %9812 = vmatpush2.bf16.msra.mxu0 %v9730
        %9813 = vmatprep.subr.bf16.mxu0 0
        %9814 = vmatpush2.bf16.msra.mxu0 %v9729
        %9815 = vmatprep.subr.bf16.mxu0 0
        %9816 = vmatpush2.bf16.msra.mxu0 %v9728
        %9817 = vmatprep.subr.bf16.mxu0 0
        %9818 = vmatpush2.bf16.msra.mxu0 %v9727
        %9819 = vmatprep.subr.bf16.mxu0 0
        %9820 = vmatpush2.bf16.msra.mxu0 %v9726
        %9821 = vmatprep.subr.bf16.mxu0 0
        %9822 = vmatpush2.bf16.msra.mxu0 %v9725
        %9823 = vmatprep.subr.bf16.mxu0 0
        %9824 = vmatpush2.bf16.msra.mxu0 %v9724
        %9825 = vmatprep.subr.bf16.mxu0 0
        %9826 = vmatpush2.bf16.msra.mxu0 %v9723
        %9827 = vmatprep.mubr.bf16.mxu0 %v9324
        %9828 = vmatmul.mubr.bf16.gmra.mxu0 %v9264
        %v9829 = vpop.f32.mrf.mxu0
        %v9830 = vadd.f32 %v9553, %v9829
        %v9831 = vpop.f32.mrf.mxu0
        %v9832 = vpop.f32.mrf.mxu0
        %v9833 = vadd.f32 %v9553, %v9832
        %v9834 = vpop.f32.mrf.mxu0
        %9835 = vmatprep.mubr.bf16.mxu0 %v9325
        %9836 = vmatmul.mubr.bf16.gmra.mxu0 %v9265
        %v9837 = vpop.f32.mrf.mxu0
        %v9838 = vadd.f32 %v9553, %v9837
        %v9839 = vpop.f32.mrf.mxu0
        %v9840 = vpop.f32.mrf.mxu0
        %v9841 = vadd.f32 %v9553, %v9840
        %v9842 = vpop.f32.mrf.mxu0
        %9843 = vmatprep.mubr.bf16.mxu0 %v9326
        %9844 = vmatmul.mubr.bf16.gmra.mxu0 %v9266
        %v9845 = vpop.f32.mrf.mxu0
        %v9846 = vadd.f32 %v9553, %v9845
        %v9847 = vpop.f32.mrf.mxu0
        %v9848 = vpop.f32.mrf.mxu0
        %v9849 = vadd.f32 %v9553, %v9848
        %v9850 = vpop.f32.mrf.mxu0
        %9851 = vmatprep.mubr.bf16.mxu0 %v9327
        %9852 = vmatmul.mubr.bf16.gmra.mxu0 %v9267
        %v9853 = vpop.f32.mrf.mxu0
        %v9854 = vadd.f32 %v9553, %v9853
        %v9855 = vpop.f32.mrf.mxu0
        %v9856 = vpop.f32.mrf.mxu0
        %v9857 = vadd.f32 %v9553, %v9856
        %v9858 = vpop.f32.mrf.mxu0
        %9859 = vmatprep.mubr.bf16.mxu0 %v9328
        %9860 = vmatmul.mubr.bf16.gmra.mxu0 %v9268
        %v9861 = vpop.f32.mrf.mxu0
        %v9862 = vadd.f32 %v9553, %v9861
        %v9863 = vpop.f32.mrf.mxu0
        %v9864 = vpop.f32.mrf.mxu0
        %v9865 = vadd.f32 %v9553, %v9864
        %v9866 = vpop.f32.mrf.mxu0
        %9867 = vmatprep.mubr.bf16.mxu0 %v9329
        %9868 = vmatmul.mubr.bf16.gmra.mxu0 %v9269
        %v9869 = vpop.f32.mrf.mxu0
        %v9870 = vadd.f32 %v9553, %v9869
        %v9871 = vpop.f32.mrf.mxu0
        %v9872 = vpop.f32.mrf.mxu0
        %v9873 = vadd.f32 %v9553, %v9872
        %v9874 = vpop.f32.mrf.mxu0
        %9875 = vmatprep.mubr.bf16.mxu0 %v9330
        %9876 = vmatmul.mubr.bf16.gmra.mxu0 %v9270
        %v9877 = vpop.f32.mrf.mxu0
        %v9878 = vadd.f32 %v9553, %v9877
        %v9879 = vpop.f32.mrf.mxu0
        %v9880 = vpop.f32.mrf.mxu0
        %v9881 = vadd.f32 %v9553, %v9880
        %v9882 = vpop.f32.mrf.mxu0
        %9883 = vmatprep.mubr.bf16.mxu0 %v9331
        %9884 = vmatmul.mubr.bf16.gmra.mxu0 %v9271
        %v9885 = vpop.f32.mrf.mxu0
        %v9886 = vadd.f32 %v9553, %v9885
        %v9887 = vpop.f32.mrf.mxu0
        %v9888 = vpop.f32.mrf.mxu0
        %v9889 = vadd.f32 %v9553, %v9888
        %v9890 = vpop.f32.mrf.mxu0
        %9891 = vmatprep.mubr.bf16.mxu0 %v9332
        %9892 = vmatmul.mubr.bf16.gmra.mxu0 %v9272
        %v9893 = vpop.f32.mrf.mxu0
        %v9894 = vadd.f32 %v9553, %v9893
        %v9895 = vpop.f32.mrf.mxu0
        %v9896 = vpop.f32.mrf.mxu0
        %v9897 = vadd.f32 %v9553, %v9896
        %v9898 = vpop.f32.mrf.mxu0
        %9899 = vmatprep.mubr.bf16.mxu0 %v9333
        %9900 = vmatmul.mubr.bf16.gmra.mxu0 %v9273
        %v9901 = vpop.f32.mrf.mxu0
        %v9902 = vadd.f32 %v9553, %v9901
        %v9903 = vpop.f32.mrf.mxu0
        %v9904 = vpop.f32.mrf.mxu0
        %v9905 = vadd.f32 %v9553, %v9904
        %v9906 = vpop.f32.mrf.mxu0
        %9907 = vmatprep.mubr.bf16.mxu0 %v9334
        %9908 = vmatmul.mubr.bf16.gmra.mxu0 %v9274
        %v9909 = vpop.f32.mrf.mxu0
        %v9910 = vadd.f32 %v9553, %v9909
        %v9911 = vpop.f32.mrf.mxu0
        %v9912 = vpop.f32.mrf.mxu0
        %v9913 = vadd.f32 %v9553, %v9912
        %v9914 = vpop.f32.mrf.mxu0
        %9915 = vmatprep.mubr.bf16.mxu0 %v9335
        %9916 = vmatmul.mubr.bf16.gmra.mxu0 %v9275
        %v9917 = vpop.f32.mrf.mxu0
        %v9918 = vadd.f32 %v9553, %v9917
        %v9919 = vpop.f32.mrf.mxu0
        %v9920 = vpop.f32.mrf.mxu0
        %v9921 = vadd.f32 %v9553, %v9920
        %v9922 = vpop.f32.mrf.mxu0
        %9923 = vdwg.mxu0
        %9924 = vmatprep.subr.bf16.mxu0 0
        %9925 = vmatpush1.bf16.msra.mxu0 %v9738
        %9926 = vmatprep.subr.bf16.mxu0 0
        %9927 = vmatpush1.bf16.msra.mxu0 %v9737
        %9928 = vmatprep.subr.bf16.mxu0 0
        %9929 = vmatpush1.bf16.msra.mxu0 %v9736
        %9930 = vmatprep.subr.bf16.mxu0 0
        %9931 = vmatpush1.bf16.msra.mxu0 %v9735
        %9932 = vmatprep.subr.bf16.mxu0 0
        %9933 = vmatpush1.bf16.msra.mxu0 %v9734
        %9934 = vmatprep.subr.bf16.mxu0 0
        %9935 = vmatpush1.bf16.msra.mxu0 %v9733
        %9936 = vmatprep.subr.bf16.mxu0 0
        %9937 = vmatpush1.bf16.msra.mxu0 %v9732
        %9938 = vmatprep.subr.bf16.mxu0 0
        %9939 = vmatpush1.bf16.msra.mxu0 %v9731
        %9940 = vmatprep.subr.bf16.mxu0 0
        %9941 = vmatpush2.bf16.msra.mxu0 %v9746
        %9942 = vmatprep.subr.bf16.mxu0 0
        %9943 = vmatpush2.bf16.msra.mxu0 %v9745
        %9944 = vmatprep.subr.bf16.mxu0 0
        %9945 = vmatpush2.bf16.msra.mxu0 %v9744
        %9946 = vmatprep.subr.bf16.mxu0 0
        %9947 = vmatpush2.bf16.msra.mxu0 %v9743
        %9948 = vmatprep.subr.bf16.mxu0 0
        %9949 = vmatpush2.bf16.msra.mxu0 %v9742
        %9950 = vmatprep.subr.bf16.mxu0 0
        %9951 = vmatpush2.bf16.msra.mxu0 %v9741
        %9952 = vmatprep.subr.bf16.mxu0 0
        %9953 = vmatpush2.bf16.msra.mxu0 %v9740
        %9954 = vmatprep.subr.bf16.mxu0 0
        %9955 = vmatpush2.bf16.msra.mxu0 %v9739
        %9956 = vmatprep.mubr.bf16.mxu0 %v9396
        %9957 = vmatmul.mubr.bf16.gmra.mxu0 %v9336
        %v9958 = vpop.f32.mrf.mxu0
        %v9959 = vadd.f32 %v9830, %v9958
        %v9960 = vpop.f32.mrf.mxu0
        %v9961 = vpop.f32.mrf.mxu0
        %v9962 = vadd.f32 %v9833, %v9961
        %v9963 = vpop.f32.mrf.mxu0
        %9964 = vmatprep.mubr.bf16.mxu0 %v9397
        %9965 = vmatmul.mubr.bf16.gmra.mxu0 %v9337
        %v9966 = vpop.f32.mrf.mxu0
        %v9967 = vadd.f32 %v9838, %v9966
        %v9968 = vpop.f32.mrf.mxu0
        %v9969 = vpop.f32.mrf.mxu0
        %v9970 = vadd.f32 %v9841, %v9969
        %v9971 = vpop.f32.mrf.mxu0
        %9972 = vmatprep.mubr.bf16.mxu0 %v9398
        %9973 = vmatmul.mubr.bf16.gmra.mxu0 %v9338
        %v9974 = vpop.f32.mrf.mxu0
        %v9975 = vadd.f32 %v9846, %v9974
        %v9976 = vpop.f32.mrf.mxu0
        %v9977 = vpop.f32.mrf.mxu0
        %v9978 = vadd.f32 %v9849, %v9977
        %v9979 = vpop.f32.mrf.mxu0
        %9980 = vmatprep.mubr.bf16.mxu0 %v9399
        %9981 = vmatmul.mubr.bf16.gmra.mxu0 %v9339
        %v9982 = vpop.f32.mrf.mxu0
        %v9983 = vadd.f32 %v9854, %v9982
        %v9984 = vpop.f32.mrf.mxu0
        %v9985 = vpop.f32.mrf.mxu0
        %v9986 = vadd.f32 %v9857, %v9985
        %v9987 = vpop.f32.mrf.mxu0
        %9988 = vmatprep.mubr.bf16.mxu0 %v9400
        %9989 = vmatmul.mubr.bf16.gmra.mxu0 %v9340
        %v9990 = vpop.f32.mrf.mxu0
        %v9991 = vadd.f32 %v9862, %v9990
        %v9992 = vpop.f32.mrf.mxu0
        %v9993 = vpop.f32.mrf.mxu0
        %v9994 = vadd.f32 %v9865, %v9993
        %v9995 = vpop.f32.mrf.mxu0
        %9996 = vmatprep.mubr.bf16.mxu0 %v9401
        %9997 = vmatmul.mubr.bf16.gmra.mxu0 %v9341
        %v9998 = vpop.f32.mrf.mxu0
        %v9999 = vadd.f32 %v9870, %v9998
        %v10000 = vpop.f32.mrf.mxu0
        %v10001 = vpop.f32.mrf.mxu0
        %v10002 = vadd.f32 %v9873, %v10001
        %v10003 = vpop.f32.mrf.mxu0
        %10004 = vmatprep.mubr.bf16.mxu0 %v9402
        %10005 = vmatmul.mubr.bf16.gmra.mxu0 %v9342
        %v10006 = vpop.f32.mrf.mxu0
        %v10007 = vadd.f32 %v9878, %v10006
        %v10008 = vpop.f32.mrf.mxu0
        %v10009 = vpop.f32.mrf.mxu0
        %v10010 = vadd.f32 %v9881, %v10009
        %v10011 = vpop.f32.mrf.mxu0
        %10012 = vmatprep.mubr.bf16.mxu0 %v9403
        %10013 = vmatmul.mubr.bf16.gmra.mxu0 %v9343
        %v10014 = vpop.f32.mrf.mxu0
        %v10015 = vadd.f32 %v9886, %v10014
        %v10016 = vpop.f32.mrf.mxu0
        %v10017 = vpop.f32.mrf.mxu0
        %v10018 = vadd.f32 %v9889, %v10017
        %v10019 = vpop.f32.mrf.mxu0
        %10020 = vmatprep.mubr.bf16.mxu0 %v9404
        %10021 = vmatmul.mubr.bf16.gmra.mxu0 %v9344
        %v10022 = vpop.f32.mrf.mxu0
        %v10023 = vadd.f32 %v9894, %v10022
        %v10024 = vpop.f32.mrf.mxu0
        %v10025 = vpop.f32.mrf.mxu0
        %v10026 = vadd.f32 %v9897, %v10025
        %v10027 = vpop.f32.mrf.mxu0
        %10028 = vmatprep.mubr.bf16.mxu0 %v9405
        %10029 = vmatmul.mubr.bf16.gmra.mxu0 %v9345
        %v10030 = vpop.f32.mrf.mxu0
        %v10031 = vadd.f32 %v9902, %v10030
        %v10032 = vpop.f32.mrf.mxu0
        %v10033 = vpop.f32.mrf.mxu0
        %v10034 = vadd.f32 %v9905, %v10033
        %v10035 = vpop.f32.mrf.mxu0
        %10036 = vmatprep.mubr.bf16.mxu0 %v9406
        %10037 = vmatmul.mubr.bf16.gmra.mxu0 %v9346
        %v10038 = vpop.f32.mrf.mxu0
        %v10039 = vadd.f32 %v9910, %v10038
        %v10040 = vpop.f32.mrf.mxu0
        %v10041 = vpop.f32.mrf.mxu0
        %v10042 = vadd.f32 %v9913, %v10041
        %v10043 = vpop.f32.mrf.mxu0
        %10044 = vmatprep.mubr.bf16.mxu0 %v9407
        %10045 = vmatmul.mubr.bf16.gmra.mxu0 %v9347
        %v10046 = vpop.f32.mrf.mxu0
        %v10047 = vadd.f32 %v9918, %v10046
        %v10048 = vpop.f32.mrf.mxu0
        %v10049 = vpop.f32.mrf.mxu0
        %v10050 = vadd.f32 %v9921, %v10049
        %v10051 = vpop.f32.mrf.mxu0
        %10052 = vdwg.mxu0
        %10053 = vmatprep.subr.bf16.mxu0 0
        %10054 = vmatpush1.bf16.msra.mxu0 %v9754
        %10055 = vmatprep.subr.bf16.mxu0 0
        %10056 = vmatpush1.bf16.msra.mxu0 %v9753
        %10057 = vmatprep.subr.bf16.mxu0 0
        %10058 = vmatpush1.bf16.msra.mxu0 %v9752
        %10059 = vmatprep.subr.bf16.mxu0 0
        %10060 = vmatpush1.bf16.msra.mxu0 %v9751
        %10061 = vmatprep.subr.bf16.mxu0 0
        %10062 = vmatpush1.bf16.msra.mxu0 %v9750
        %10063 = vmatprep.subr.bf16.mxu0 0
        %10064 = vmatpush1.bf16.msra.mxu0 %v9749
        %10065 = vmatprep.subr.bf16.mxu0 0
        %10066 = vmatpush1.bf16.msra.mxu0 %v9748
        %10067 = vmatprep.subr.bf16.mxu0 0
        %10068 = vmatpush1.bf16.msra.mxu0 %v9747
        %10069 = vmatprep.subr.bf16.mxu0 0
        %10070 = vmatpush2.bf16.msra.mxu0 0
        %10071 = vmatprep.subr.bf16.mxu0 0
        %10072 = vmatpush2.bf16.msra.mxu0 0
        %10073 = vmatprep.subr.bf16.mxu0 0
        %10074 = vmatpush2.bf16.msra.mxu0 0
        %10075 = vmatprep.subr.bf16.mxu0 0
        %10076 = vmatpush2.bf16.msra.mxu0 0
        %10077 = vmatprep.subr.bf16.mxu0 0
        %10078 = vmatpush2.bf16.msra.mxu0 0
        %10079 = vmatprep.subr.bf16.mxu0 0
        %10080 = vmatpush2.bf16.msra.mxu0 0
        %10081 = vmatprep.subr.bf16.mxu0 0
        %10082 = vmatpush2.bf16.msra.mxu0 0
        %10083 = vmatprep.subr.bf16.mxu0 0
        %10084 = vmatpush2.bf16.msra.mxu0 0
        %10085 = vmatprep.mubr.bf16.mxu0 0
        %10086 = vmatmul.mubr.bf16.gmra.mxu0 %v9456
        %v10087 = vpop.f32.mrf.mxu0
        %v10088 = vadd.f32 %v9959, %v10087
        %v10089 = vpop.f32.mrf.mxu0
        %v10090 = vpop.f32.mrf.mxu0
        %v10091 = vadd.f32 %v9962, %v10090
        %v10092 = vpop.f32.mrf.mxu0
        %10093 = vmatprep.mubr.bf16.mxu0 0
        %10094 = vmatmul.mubr.bf16.gmra.mxu0 %v9457
        %v10095 = vpop.f32.mrf.mxu0
        %v10096 = vadd.f32 %v9967, %v10095
        %v10097 = vpop.f32.mrf.mxu0
        %v10098 = vpop.f32.mrf.mxu0
        %v10099 = vadd.f32 %v9970, %v10098
        %v10100 = vpop.f32.mrf.mxu0
        %10101 = vmatprep.mubr.bf16.mxu0 0
        %10102 = vmatmul.mubr.bf16.gmra.mxu0 %v9458
        %v10103 = vpop.f32.mrf.mxu0
        %v10104 = vadd.f32 %v9975, %v10103
        %v10105 = vpop.f32.mrf.mxu0
        %v10106 = vpop.f32.mrf.mxu0
        %v10107 = vadd.f32 %v9978, %v10106
        %v10108 = vpop.f32.mrf.mxu0
        %10109 = vmatprep.mubr.bf16.mxu0 0
        %10110 = vmatmul.mubr.bf16.gmra.mxu0 %v9459
        %v10111 = vpop.f32.mrf.mxu0
        %v10112 = vadd.f32 %v9983, %v10111
        %v10113 = vpop.f32.mrf.mxu0
        %v10114 = vpop.f32.mrf.mxu0
        %v10115 = vadd.f32 %v9986, %v10114
        %v10116 = vpop.f32.mrf.mxu0
        %10117 = vmatprep.mubr.bf16.mxu0 0
        %10118 = vmatmul.mubr.bf16.gmra.mxu0 %v9460
        %v10119 = vpop.f32.mrf.mxu0
        %v10120 = vadd.f32 %v9991, %v10119
        %v10121 = vpop.f32.mrf.mxu0
        %v10122 = vpop.f32.mrf.mxu0
        %v10123 = vadd.f32 %v9994, %v10122
        %v10124 = vpop.f32.mrf.mxu0
        %10125 = vmatprep.mubr.bf16.mxu0 0
        %10126 = vmatmul.mubr.bf16.gmra.mxu0 %v9461
        %v10127 = vpop.f32.mrf.mxu0
        %v10128 = vadd.f32 %v9999, %v10127
        %v10129 = vpop.f32.mrf.mxu0
        %v10130 = vpop.f32.mrf.mxu0
        %v10131 = vadd.f32 %v10002, %v10130
        %v10132 = vpop.f32.mrf.mxu0
        %10133 = vmatprep.mubr.bf16.mxu0 0
        %10134 = vmatmul.mubr.bf16.gmra.mxu0 %v9462
        %v10135 = vpop.f32.mrf.mxu0
        %v10136 = vadd.f32 %v10007, %v10135
        %v10137 = vpop.f32.mrf.mxu0
        %v10138 = vpop.f32.mrf.mxu0
        %v10139 = vadd.f32 %v10010, %v10138
        %v10140 = vpop.f32.mrf.mxu0
        %10141 = vmatprep.mubr.bf16.mxu0 0
        %10142 = vmatmul.mubr.bf16.gmra.mxu0 %v9463
        %v10143 = vpop.f32.mrf.mxu0
        %v10144 = vadd.f32 %v10015, %v10143
        %v10145 = vpop.f32.mrf.mxu0
        %v10146 = vpop.f32.mrf.mxu0
        %v10147 = vadd.f32 %v10018, %v10146
        %v10148 = vpop.f32.mrf.mxu0
        %10149 = vmatprep.mubr.bf16.mxu0 0
        %10150 = vmatmul.mubr.bf16.gmra.mxu0 %v9464
        %v10151 = vpop.f32.mrf.mxu0
        %v10152 = vadd.f32 %v10023, %v10151
        %v10153 = vpop.f32.mrf.mxu0
        %v10154 = vpop.f32.mrf.mxu0
        %v10155 = vadd.f32 %v10026, %v10154
        %v10156 = vpop.f32.mrf.mxu0
        %10157 = vmatprep.mubr.bf16.mxu0 0
        %10158 = vmatmul.mubr.bf16.gmra.mxu0 %v9465
        %v10159 = vpop.f32.mrf.mxu0
        %v10160 = vadd.f32 %v10031, %v10159
        %v10161 = vpop.f32.mrf.mxu0
        %v10162 = vpop.f32.mrf.mxu0
        %v10163 = vadd.f32 %v10034, %v10162
        %v10164 = vpop.f32.mrf.mxu0
        %10165 = vmatprep.mubr.bf16.mxu0 0
        %10166 = vmatmul.mubr.bf16.gmra.mxu0 %v9466
        %v10167 = vpop.f32.mrf.mxu0
        %v10168 = vadd.f32 %v10039, %v10167
        %v10169 = vpop.f32.mrf.mxu0
        %v10170 = vpop.f32.mrf.mxu0
        %v10171 = vadd.f32 %v10042, %v10170
        %v10172 = vpop.f32.mrf.mxu0
        %10173 = vmatprep.mubr.bf16.mxu0 0
        %10174 = vmatmul.mubr.bf16.gmra.mxu0 %v9467
        %v10175 = vpop.f32.mrf.mxu0
        %v10176 = vadd.f32 %v10047, %v10175
        %v10177 = vpop.f32.mrf.mxu0
        %v10178 = vpop.f32.mrf.mxu0
        %v10179 = vadd.f32 %v10050, %v10178
        %v10180 = vpop.f32.mrf.mxu0
        %10181 = vdwg.mxu0
        %v10182 = vmax.f32 %v10088, 0.0
        %v10183 = vmax.f32 %v10091, 0.0
        %v10184 = vmax.f32 %v10096, 0.0
        %v10185 = vmax.f32 %v10099, 0.0
        %v10186 = vmax.f32 %v10104, 0.0
        %v10187 = vmax.f32 %v10107, 0.0
        %v10188 = vmax.f32 %v10112, 0.0
        %v10189 = vmax.f32 %v10115, 0.0
        %v10190 = vmax.f32 %v10120, 0.0
        %v10191 = vmax.f32 %v10123, 0.0
        %v10192 = vmax.f32 %v10128, 0.0
        %v10193 = vmax.f32 %v10131, 0.0
        %v10194 = vmax.f32 %v10136, 0.0
        %v10195 = vmax.f32 %v10139, 0.0
        %v10196 = vmax.f32 %v10144, 0.0
        %v10197 = vmax.f32 %v10147, 0.0
        %v10198 = vmax.f32 %v10152, 0.0
        %v10199 = vmax.f32 %v10155, 0.0
        %v10200 = vmax.f32 %v10160, 0.0
        %v10201 = vmax.f32 %v10163, 0.0
        %v10202 = vmax.f32 %v10168, 0.0
        %v10203 = vmax.f32 %v10171, 0.0
        %v10204 = vmax.f32 %v10176, 0.0
        %v10205 = vmax.f32 %v10179, 0.0
        %v10206 = vmul.f32 %v10182, %v1107
        %v10207 = vmul.f32 %v10183, %v1108
        %v10208 = vmul.f32 %v10184, %v1109
        %v10209 = vmul.f32 %v10185, %v1110
        %v10210 = vmul.f32 %v10186, %v1111
        %v10211 = vmul.f32 %v10187, %v1112
        %v10212 = vmul.f32 %v10188, %v1113
        %v10213 = vmul.f32 %v10189, %v1114
        %v10214 = vmul.f32 %v10190, %v1115
        %v10215 = vmul.f32 %v10191, %v1116
        %v10216 = vmul.f32 %v10192, %v1117
        %v10217 = vmul.f32 %v10193, %v1118
        %v10218 = vmul.f32 %v10194, %v1119
        %v10219 = vmul.f32 %v10195, %v1120
        %v10220 = vmul.f32 %v10196, %v1121
        %v10221 = vmul.f32 %v10197, %v1122
        %v10222 = vmul.f32 %v10198, %v1123
        %v10223 = vmul.f32 %v10199, %v1124
        %v10224 = vmul.f32 %v10200, %v1125
        %v10225 = vmul.f32 %v10201, %v1126
        %v10226 = vmul.f32 %v10202, %v1127
        %v10227 = vmul.f32 %v10203, %v1128
        %v10228 = vmul.f32 %v10204, %v1129
        %v10229 = vmul.f32 %v10205, %v1130
        %v10230 = vrot.slane %v10206, 7
        %v10231 = vrot.slane %v10207, 7
        %v10232 = vrot.slane %v10208, 7
        %v10233 = vrot.slane %v10209, 7
        %v10234 = vrot.slane %v10210, 7
        %v10235 = vrot.slane %v10211, 7
        %v10236 = vrot.slane %v10212, 7
        %v10237 = vrot.slane %v10213, 7
        %v10238 = vrot.slane %v10214, 7
        %v10239 = vrot.slane %v10215, 7
        %v10240 = vrot.slane %v10216, 7
        %v10241 = vrot.slane %v10217, 7
        %v10242 = vrot.slane %v10218, 7
        %v10243 = vrot.slane %v10219, 7
        %v10244 = vrot.slane %v10220, 7
        %v10245 = vrot.slane %v10221, 7
        %v10246 = vrot.slane %v10222, 7
        %v10247 = vrot.slane %v10223, 7
        %v10248 = vrot.slane %v10224, 7
        %v10249 = vrot.slane %v10225, 7
        %v10250 = vrot.slane %v10226, 7
        %v10251 = vrot.slane %v10227, 7
        %v10252 = vrot.slane %v10228, 7
        %v10253 = vrot.slane %v10229, 7
        %v10254 = vsel %vm1615, %v10252, %v10253
        %v10255 = vsel %vm1615, %v10251, %v10252
        %v10256 = vsel %vm1615, %v10250, %v10251
        %v10257 = vsel %vm1615, %v10249, %v10250
        %v10258 = vsel %vm1615, %v10248, %v10249
        %v10259 = vsel %vm1615, %v10247, %v10248
        %v10260 = vsel %vm1615, %v10246, %v10247
        %v10261 = vsel %vm1615, %v10245, %v10246
        %v10262 = vsel %vm1615, %v10244, %v10245
        %v10263 = vsel %vm1615, %v10243, %v10244
        %v10264 = vsel %vm1615, %v10242, %v10243
        %v10265 = vsel %vm1615, %v10241, %v10242
        %v10266 = vsel %vm1615, %v10240, %v10241
        %v10267 = vsel %vm1615, %v10239, %v10240
        %v10268 = vsel %vm1615, %v10238, %v10239
        %v10269 = vsel %vm1615, %v10237, %v10238
        %v10270 = vsel %vm1615, %v10236, %v10237
        %v10271 = vsel %vm1615, %v10235, %v10236
        %v10272 = vsel %vm1615, %v10234, %v10235
        %v10273 = vsel %vm1615, %v10233, %v10234
        %v10274 = vsel %vm1615, %v10232, %v10233
        %v10275 = vsel %vm1615, %v10231, %v10232
        %v10276 = vsel %vm1615, %v10230, %v10231
        %v10277 = vsel %vm1615, %v10253, %v10230
        %v10278 = vpack.c.bf16 %v10276, %v10277
        %v10279 = vpack.c.bf16 %v10274, %v10275
        %v10280 = vpack.c.bf16 %v10272, %v10273
        %v10281 = vpack.c.bf16 %v10270, %v10271
        %v10282 = vpack.c.bf16 %v10268, %v10269
        %v10283 = vpack.c.bf16 %v10266, %v10267
        %v10284 = vpack.c.bf16 %v10264, %v10265
        %v10285 = vpack.c.bf16 %v10262, %v10263
        %v10286 = vpack.c.bf16 %v10260, %v10261
        %v10287 = vpack.c.bf16 %v10258, %v10259
        %v10288 = vpack.c.bf16 %v10256, %v10257
        %v10289 = vpack.c.bf16 %v10254, %v10255
        %v10290 = vpack.c.bf16 %v10207, %v10206
        %v10291 = vpack.c.bf16 %v10209, %v10208
        %v10292 = vpack.c.bf16 %v10211, %v10210
        %v10293 = vpack.c.bf16 %v10213, %v10212
        %v10294 = vpack.c.bf16 %v10215, %v10214
        %v10295 = vpack.c.bf16 %v10217, %v10216
        %v10296 = vpack.c.bf16 %v10219, %v10218
        %v10297 = vpack.c.bf16 %v10221, %v10220
        %v10298 = vpack.c.bf16 %v10223, %v10222
        %v10299 = vpack.c.bf16 %v10225, %v10224
        %v10300 = vpack.c.bf16 %v10227, %v10226
        %v10301 = vpack.c.bf16 %v10229, %v10228
        %v10302 = vrot.slane %v10206, 1
        %v10303 = vrot.slane %v10207, 1
        %v10304 = vrot.slane %v10208, 1
        %v10305 = vrot.slane %v10209, 1
        %v10306 = vrot.slane %v10210, 1
        %v10307 = vrot.slane %v10211, 1
        %v10308 = vrot.slane %v10212, 1
        %v10309 = vrot.slane %v10213, 1
        %v10310 = vrot.slane %v10214, 1
        %v10311 = vrot.slane %v10215, 1
        %v10312 = vrot.slane %v10216, 1
        %v10313 = vrot.slane %v10217, 1
        %v10314 = vrot.slane %v10218, 1
        %v10315 = vrot.slane %v10219, 1
        %v10316 = vrot.slane %v10220, 1
        %v10317 = vrot.slane %v10221, 1
        %v10318 = vrot.slane %v10222, 1
        %v10319 = vrot.slane %v10223, 1
        %v10320 = vrot.slane %v10224, 1
        %v10321 = vrot.slane %v10225, 1
        %v10322 = vrot.slane %v10226, 1
        %v10323 = vrot.slane %v10227, 1
        %v10324 = vrot.slane %v10228, 1
        %v10325 = vrot.slane %v10229, 1
        %v10326 = vsel %vm2298, %v10324, %v10325
        %v10327 = vsel %vm2298, %v10323, %v10324
        %v10328 = vsel %vm2298, %v10322, %v10323
        %v10329 = vsel %vm2298, %v10321, %v10322
        %v10330 = vsel %vm2298, %v10320, %v10321
        %v10331 = vsel %vm2298, %v10319, %v10320
        %v10332 = vsel %vm2298, %v10318, %v10319
        %v10333 = vsel %vm2298, %v10317, %v10318
        %v10334 = vsel %vm2298, %v10316, %v10317
        %v10335 = vsel %vm2298, %v10315, %v10316
        %v10336 = vsel %vm2298, %v10314, %v10315
        %v10337 = vsel %vm2298, %v10313, %v10314
        %v10338 = vsel %vm2298, %v10312, %v10313
        %v10339 = vsel %vm2298, %v10311, %v10312
        %v10340 = vsel %vm2298, %v10310, %v10311
        %v10341 = vsel %vm2298, %v10309, %v10310
        %v10342 = vsel %vm2298, %v10308, %v10309
        %v10343 = vsel %vm2298, %v10307, %v10308
        %v10344 = vsel %vm2298, %v10306, %v10307
        %v10345 = vsel %vm2298, %v10305, %v10306
        %v10346 = vsel %vm2298, %v10304, %v10305
        %v10347 = vsel %vm2298, %v10303, %v10304
        %v10348 = vsel %vm2298, %v10302, %v10303
        %v10349 = vsel %vm2298, %v10325, %v10302
        %v10350 = vpack.c.bf16 %v10347, %v10348
        %v10351 = vpack.c.bf16 %v10345, %v10346
        %v10352 = vpack.c.bf16 %v10343, %v10344
        %v10353 = vpack.c.bf16 %v10341, %v10342
        %v10354 = vpack.c.bf16 %v10339, %v10340
        %v10355 = vpack.c.bf16 %v10337, %v10338
        %v10356 = vpack.c.bf16 %v10335, %v10336
        %v10357 = vpack.c.bf16 %v10333, %v10334
        %v10358 = vpack.c.bf16 %v10331, %v10332
        %v10359 = vpack.c.bf16 %v10329, %v10330
        %v10360 = vpack.c.bf16 %v10327, %v10328
        %v10361 = vpack.c.bf16 %v10349, %v10326
        %v10362 = vld [vmem:[#allocation28] sm:$0xf]
        %v10363 = vld [vmem:[#allocation28 + $0x4] sm:$0xf]
        %v10364 = vld [vmem:[#allocation28 + $0x8] sm:$0xf]
        %v10365 = vld [vmem:[#allocation28 + $0xc] sm:$0xf]
        %v10366 = vld [vmem:[#allocation28 + $0x10] sm:$0xf]
        %v10367 = vld [vmem:[#allocation28 + $0x14] sm:$0xf]
        %v10368 = vld [vmem:[#allocation28 + $0x18] sm:$0xf]
        %v10369 = vld [vmem:[#allocation28 + $0x1c] sm:$0xf]
        %v10370 = vld [vmem:[#allocation28 + $0x20] sm:$0xf]
        %v10371 = vld [vmem:[#allocation28 + $0x24] sm:$0xf]
        %v10372 = vld [vmem:[#allocation28 + $0x28] sm:$0xf]
        %v10373 = vld [vmem:[#allocation28 + $0x2c] sm:$0xf]
        %v10374 = vld [vmem:[#allocation28 + $0x30] sm:$0xf]
        %v10375 = vld [vmem:[#allocation28 + $0x34] sm:$0xf]
        %v10376 = vld [vmem:[#allocation28 + $0x38] sm:$0xf]
        %v10377 = vld [vmem:[#allocation28 + $0x3c] sm:$0xf]
        %v10378 = vld [vmem:[#allocation28 + $0x40] sm:$0xf]
        %v10379 = vld [vmem:[#allocation28 + $0x44] sm:$0xf]
        %v10380 = vld [vmem:[#allocation28 + $0x48] sm:$0xf]
        %v10381 = vld [vmem:[#allocation28 + $0x4c] sm:$0xf]
        %v10382 = vld [vmem:[#allocation28 + $0x50] sm:$0xf]
        %v10383 = vld [vmem:[#allocation28 + $0x54] sm:$0xf]
        %v10384 = vld [vmem:[#allocation28 + $0x58] sm:$0xf]
        %v10385 = vld [vmem:[#allocation28 + $0x5c] sm:$0xf]
        %v10386 = vld [vmem:[#allocation28 + $0x60] sm:$0xf]
        %v10387 = vld [vmem:[#allocation28 + $0x64] sm:$0xf]
        %v10388 = vld [vmem:[#allocation28 + $0x68] sm:$0xf]
        %v10389 = vld [vmem:[#allocation28 + $0x6c] sm:$0xf]
        %v10390 = vld [vmem:[#allocation28 + $0x70] sm:$0xf]
        %v10391 = vld [vmem:[#allocation28 + $0x74] sm:$0xf]
        %v10392 = vld [vmem:[#allocation28 + $0x78] sm:$0xf]
        %v10393 = vld [vmem:[#allocation28 + $0x7c] sm:$0xf]
        %v10394 = vld [vmem:[#allocation28 + $0x80] sm:$0xf]
        %v10395 = vld [vmem:[#allocation28 + $0x84] sm:$0xf]
        %v10396 = vld [vmem:[#allocation28 + $0x88] sm:$0xf]
        %v10397 = vld [vmem:[#allocation28 + $0x8c] sm:$0xf]
        %v10398 = vld [vmem:[#allocation28 + $0x90] sm:$0xf]
        %v10399 = vld [vmem:[#allocation28 + $0x94] sm:$0xf]
        %v10400 = vld [vmem:[#allocation28 + $0x98] sm:$0xf]
        %v10401 = vld [vmem:[#allocation28 + $0x9c] sm:$0xf]
        %v10402 = vld [vmem:[#allocation28 + $0xa0] sm:$0xf]
        %v10403 = vld [vmem:[#allocation28 + $0xa4] sm:$0xf]
        %v10404 = vld [vmem:[#allocation28 + $0xa8] sm:$0xf]
        %v10405 = vld [vmem:[#allocation28 + $0xac] sm:$0xf]
        %v10406 = vld [vmem:[#allocation28 + $0xb0] sm:$0xf]
        %v10407 = vld [vmem:[#allocation28 + $0xb4] sm:$0xf]
        %v10408 = vld [vmem:[#allocation28 + $0xb8] sm:$0xf]
        %v10409 = vld [vmem:[#allocation28 + $0xbc] sm:$0xf]
        %v10410 = vld [vmem:[%s23] sm:$0x1]
        %v10412 = vlaneseq
        %v10413 = vshrl.u32 %v10412, 7
        %v10414 = vsub.s32 0, %v10413
        %v10415 = vrot.slane %v10410, %v10414
        %v10465 = vunpack.c.l.b16 %v10362
        %v10466 = vunpack.c.l.b16 %v10363
        %v10467 = vunpack.c.l.b16 %v10364
        %v10468 = vunpack.c.l.b16 %v10365
        %v10469 = vunpack.c.l.b16 %v10366
        %v10470 = vunpack.c.l.b16 %v10367
        %v10471 = vunpack.c.l.b16 %v10368
        %v10472 = vunpack.c.l.b16 %v10369
        %v10473 = vunpack.c.l.b16 %v10370
        %v10474 = vunpack.c.l.b16 %v10371
        %v10475 = vunpack.c.l.b16 %v10372
        %v10476 = vunpack.c.l.b16 %v10373
        %v10477 = vunpack.c.l.b16 %v10374
        %v10478 = vunpack.c.l.b16 %v10375
        %v10479 = vunpack.c.l.b16 %v10376
        %v10480 = vunpack.c.l.b16 %v10377
        %v10481 = vunpack.c.l.b16 %v10378
        %v10482 = vunpack.c.l.b16 %v10379
        %v10483 = vunpack.c.l.b16 %v10380
        %v10484 = vunpack.c.l.b16 %v10381
        %v10485 = vunpack.c.l.b16 %v10382
        %v10486 = vunpack.c.l.b16 %v10383
        %v10487 = vunpack.c.l.b16 %v10384
        %v10488 = vunpack.c.l.b16 %v10385
        %v10489 = vunpack.c.l.b16 %v10386
        %v10490 = vunpack.c.l.b16 %v10387
        %v10491 = vunpack.c.l.b16 %v10388
        %v10492 = vunpack.c.l.b16 %v10389
        %v10493 = vunpack.c.l.b16 %v10390
        %v10494 = vunpack.c.l.b16 %v10391
        %v10495 = vunpack.c.l.b16 %v10392
        %v10496 = vunpack.c.l.b16 %v10393
        %v10497 = vunpack.c.l.b16 %v10394
        %v10498 = vunpack.c.l.b16 %v10395
        %v10499 = vunpack.c.l.b16 %v10396
        %v10500 = vunpack.c.l.b16 %v10397
        %v10501 = vunpack.c.l.b16 %v10398
        %v10502 = vunpack.c.l.b16 %v10399
        %v10503 = vunpack.c.l.b16 %v10400
        %v10504 = vunpack.c.l.b16 %v10401
        %v10505 = vunpack.c.l.b16 %v10402
        %v10506 = vunpack.c.l.b16 %v10403
        %v10507 = vunpack.c.l.b16 %v10404
        %v10508 = vunpack.c.l.b16 %v10405
        %v10509 = vunpack.c.l.b16 %v10406
        %v10510 = vunpack.c.l.b16 %v10407
        %v10511 = vunpack.c.l.b16 %v10408
        %v10512 = vunpack.c.l.b16 %v10409
        %v10513 = vpack.c.b16 %v10466, %v10465
        %v10514 = vpack.c.b16 %v10468, %v10467
        %v10515 = vpack.c.b16 %v10470, %v10469
        %v10516 = vpack.c.b16 %v10472, %v10471
        %v10517 = vpack.c.b16 %v10474, %v10473
        %v10518 = vpack.c.b16 %v10476, %v10475
        %v10519 = vpack.c.b16 %v10478, %v10477
        %v10520 = vpack.c.b16 %v10480, %v10479
        %v10521 = vpack.c.b16 %v10482, %v10481
        %v10522 = vpack.c.b16 %v10484, %v10483
        %v10523 = vpack.c.b16 %v10486, %v10485
        %v10524 = vpack.c.b16 %v10488, %v10487
        %v10525 = vpack.c.b16 %v10490, %v10489
        %v10526 = vpack.c.b16 %v10492, %v10491
        %v10527 = vpack.c.b16 %v10494, %v10493
        %v10528 = vpack.c.b16 %v10496, %v10495
        %v10529 = vpack.c.b16 %v10498, %v10497
        %v10530 = vpack.c.b16 %v10500, %v10499
        %v10531 = vpack.c.b16 %v10502, %v10501
        %v10532 = vpack.c.b16 %v10504, %v10503
        %v10533 = vpack.c.b16 %v10506, %v10505
        %v10534 = vpack.c.b16 %v10508, %v10507
        %v10535 = vpack.c.b16 %v10510, %v10509
        %v10536 = vpack.c.b16 %v10512, %v10511
        %10561 = vmatprep.subr.bf16.mxu0 0
        %10562 = vmatpush1.bf16.msra.mxu0 %v10520
        %10563 = vmatprep.subr.bf16.mxu0 0
        %10564 = vmatpush1.bf16.msra.mxu0 %v10519
        %10565 = vmatprep.subr.bf16.mxu0 0
        %10566 = vmatpush1.bf16.msra.mxu0 %v10518
        %10567 = vmatprep.subr.bf16.mxu0 0
        %10568 = vmatpush1.bf16.msra.mxu0 %v10517
        %10569 = vmatprep.subr.bf16.mxu0 0
        %10570 = vmatpush1.bf16.msra.mxu0 %v10516
        %10571 = vmatprep.subr.bf16.mxu0 0
        %10572 = vmatpush1.bf16.msra.mxu0 %v10515
        %10573 = vmatprep.subr.bf16.mxu0 0
        %10574 = vmatpush1.bf16.msra.mxu0 %v10514
        %10575 = vmatprep.subr.bf16.mxu0 0
        %10576 = vmatpush1.bf16.msra.mxu0 %v10513
        %10577 = vmatprep.subr.bf16.mxu0 0
        %10578 = vmatpush2.bf16.msra.mxu0 %v10528
        %10579 = vmatprep.subr.bf16.mxu0 0
        %10580 = vmatpush2.bf16.msra.mxu0 %v10527
        %10581 = vmatprep.subr.bf16.mxu0 0
        %10582 = vmatpush2.bf16.msra.mxu0 %v10526
        %10583 = vmatprep.subr.bf16.mxu0 0
        %10584 = vmatpush2.bf16.msra.mxu0 %v10525
        %10585 = vmatprep.subr.bf16.mxu0 0
        %10586 = vmatpush2.bf16.msra.mxu0 %v10524
        %10587 = vmatprep.subr.bf16.mxu0 0
        %10588 = vmatpush2.bf16.msra.mxu0 %v10523
        %10589 = vmatprep.subr.bf16.mxu0 0
        %10590 = vmatpush2.bf16.msra.mxu0 %v10522
        %10591 = vmatprep.subr.bf16.mxu0 0
        %10592 = vmatpush2.bf16.msra.mxu0 %v10521
        %10593 = vmatprep.mubr.bf16.mxu0 %v10290
        %10594 = vmatmul.mubr.bf16.gmra.mxu0 %v10278
        %v10595 = vpop.f32.mrf.mxu0
        %v10596 = vadd.f32 %v10415, %v10595
        %v10597 = vpop.f32.mrf.mxu0
        %v10598 = vpop.f32.mrf.mxu0
        %v10599 = vadd.f32 %v10415, %v10598
        %v10600 = vpop.f32.mrf.mxu0
        %10601 = vmatprep.mubr.bf16.mxu0 %v10291
        %10602 = vmatmul.mubr.bf16.gmra.mxu0 %v10279
        %v10603 = vpop.f32.mrf.mxu0
        %v10604 = vadd.f32 %v10415, %v10603
        %v10605 = vpop.f32.mrf.mxu0
        %v10606 = vpop.f32.mrf.mxu0
        %v10607 = vadd.f32 %v10415, %v10606
        %v10608 = vpop.f32.mrf.mxu0
        %10609 = vmatprep.mubr.bf16.mxu0 %v10292
        %10610 = vmatmul.mubr.bf16.gmra.mxu0 %v10280
        %v10611 = vpop.f32.mrf.mxu0
        %v10612 = vadd.f32 %v10415, %v10611
        %v10613 = vpop.f32.mrf.mxu0
        %v10614 = vpop.f32.mrf.mxu0
        %v10615 = vadd.f32 %v10415, %v10614
        %v10616 = vpop.f32.mrf.mxu0
        %10617 = vmatprep.mubr.bf16.mxu0 %v10293
        %10618 = vmatmul.mubr.bf16.gmra.mxu0 %v10281
        %v10619 = vpop.f32.mrf.mxu0
        %v10620 = vadd.f32 %v10415, %v10619
        %v10621 = vpop.f32.mrf.mxu0
        %v10622 = vpop.f32.mrf.mxu0
        %v10623 = vadd.f32 %v10415, %v10622
        %v10624 = vpop.f32.mrf.mxu0
        %10625 = vmatprep.mubr.bf16.mxu0 %v10294
        %10626 = vmatmul.mubr.bf16.gmra.mxu0 %v10282
        %v10627 = vpop.f32.mrf.mxu0
        %v10628 = vadd.f32 %v10415, %v10627
        %v10629 = vpop.f32.mrf.mxu0
        %v10630 = vpop.f32.mrf.mxu0
        %v10631 = vadd.f32 %v10415, %v10630
        %v10632 = vpop.f32.mrf.mxu0
        %10633 = vmatprep.mubr.bf16.mxu0 %v10295
        %10634 = vmatmul.mubr.bf16.gmra.mxu0 %v10283
        %v10635 = vpop.f32.mrf.mxu0
        %v10636 = vadd.f32 %v10415, %v10635
        %v10637 = vpop.f32.mrf.mxu0
        %v10638 = vpop.f32.mrf.mxu0
        %v10639 = vadd.f32 %v10415, %v10638
        %v10640 = vpop.f32.mrf.mxu0
        %10641 = vmatprep.mubr.bf16.mxu0 %v10296
        %10642 = vmatmul.mubr.bf16.gmra.mxu0 %v10284
        %v10643 = vpop.f32.mrf.mxu0
        %v10644 = vadd.f32 %v10415, %v10643
        %v10645 = vpop.f32.mrf.mxu0
        %v10646 = vpop.f32.mrf.mxu0
        %v10647 = vadd.f32 %v10415, %v10646
        %v10648 = vpop.f32.mrf.mxu0
        %10649 = vmatprep.mubr.bf16.mxu0 %v10297
        %10650 = vmatmul.mubr.bf16.gmra.mxu0 %v10285
        %v10651 = vpop.f32.mrf.mxu0
        %v10652 = vadd.f32 %v10415, %v10651
        %v10653 = vpop.f32.mrf.mxu0
        %v10654 = vpop.f32.mrf.mxu0
        %v10655 = vadd.f32 %v10415, %v10654
        %v10656 = vpop.f32.mrf.mxu0
        %10657 = vmatprep.mubr.bf16.mxu0 %v10298
        %10658 = vmatmul.mubr.bf16.gmra.mxu0 %v10286
        %v10659 = vpop.f32.mrf.mxu0
        %v10660 = vadd.f32 %v10415, %v10659
        %v10661 = vpop.f32.mrf.mxu0
        %v10662 = vpop.f32.mrf.mxu0
        %v10663 = vadd.f32 %v10415, %v10662
        %v10664 = vpop.f32.mrf.mxu0
        %10665 = vmatprep.mubr.bf16.mxu0 %v10299
        %10666 = vmatmul.mubr.bf16.gmra.mxu0 %v10287
        %v10667 = vpop.f32.mrf.mxu0
        %v10668 = vadd.f32 %v10415, %v10667
        %v10669 = vpop.f32.mrf.mxu0
        %v10670 = vpop.f32.mrf.mxu0
        %v10671 = vadd.f32 %v10415, %v10670
        %v10672 = vpop.f32.mrf.mxu0
        %10673 = vmatprep.mubr.bf16.mxu0 %v10300
        %10674 = vmatmul.mubr.bf16.gmra.mxu0 %v10288
        %v10675 = vpop.f32.mrf.mxu0
        %v10676 = vadd.f32 %v10415, %v10675
        %v10677 = vpop.f32.mrf.mxu0
        %v10678 = vpop.f32.mrf.mxu0
        %v10679 = vadd.f32 %v10415, %v10678
        %v10680 = vpop.f32.mrf.mxu0
        %10681 = vmatprep.mubr.bf16.mxu0 %v10301
        %10682 = vmatmul.mubr.bf16.gmra.mxu0 %v10289
        %v10683 = vpop.f32.mrf.mxu0
        %v10684 = vadd.f32 %v10415, %v10683
        %v10685 = vpop.f32.mrf.mxu0
        %v10686 = vpop.f32.mrf.mxu0
        %v10687 = vadd.f32 %v10415, %v10686
        %v10688 = vpop.f32.mrf.mxu0
        %10689 = vdwg.mxu0
        %10690 = vmatprep.subr.bf16.mxu0 0
        %10691 = vmatpush1.bf16.msra.mxu0 %v10536
        %10692 = vmatprep.subr.bf16.mxu0 0
        %10693 = vmatpush1.bf16.msra.mxu0 %v10535
        %10694 = vmatprep.subr.bf16.mxu0 0
        %10695 = vmatpush1.bf16.msra.mxu0 %v10534
        %10696 = vmatprep.subr.bf16.mxu0 0
        %10697 = vmatpush1.bf16.msra.mxu0 %v10533
        %10698 = vmatprep.subr.bf16.mxu0 0
        %10699 = vmatpush1.bf16.msra.mxu0 %v10532
        %10700 = vmatprep.subr.bf16.mxu0 0
        %10701 = vmatpush1.bf16.msra.mxu0 %v10531
        %10702 = vmatprep.subr.bf16.mxu0 0
        %10703 = vmatpush1.bf16.msra.mxu0 %v10530
        %10704 = vmatprep.subr.bf16.mxu0 0
        %10705 = vmatpush1.bf16.msra.mxu0 %v10529
        %10706 = vmatprep.subr.bf16.mxu0 0
        %10707 = vmatpush2.bf16.msra.mxu0 0
        %10708 = vmatprep.subr.bf16.mxu0 0
        %10709 = vmatpush2.bf16.msra.mxu0 0
        %10710 = vmatprep.subr.bf16.mxu0 0
        %10711 = vmatpush2.bf16.msra.mxu0 0
        %10712 = vmatprep.subr.bf16.mxu0 0
        %10713 = vmatpush2.bf16.msra.mxu0 0
        %10714 = vmatprep.subr.bf16.mxu0 0
        %10715 = vmatpush2.bf16.msra.mxu0 0
        %10716 = vmatprep.subr.bf16.mxu0 0
        %10717 = vmatpush2.bf16.msra.mxu0 0
        %10718 = vmatprep.subr.bf16.mxu0 0
        %10719 = vmatpush2.bf16.msra.mxu0 0
        %10720 = vmatprep.subr.bf16.mxu0 0
        %10721 = vmatpush2.bf16.msra.mxu0 0
        %10722 = vmatprep.mubr.bf16.mxu0 0
        %10723 = vmatmul.mubr.bf16.gmra.mxu0 %v10350
        %v10724 = vpop.f32.mrf.mxu0
        %v10725 = vadd.f32 %v10596, %v10724
        %v10726 = vpop.f32.mrf.mxu0
        %v10727 = vpop.f32.mrf.mxu0
        %v10728 = vadd.f32 %v10599, %v10727
        %v10729 = vpop.f32.mrf.mxu0
        %10730 = vmatprep.mubr.bf16.mxu0 0
        %10731 = vmatmul.mubr.bf16.gmra.mxu0 %v10351
        %v10732 = vpop.f32.mrf.mxu0
        %v10733 = vadd.f32 %v10604, %v10732
        %v10734 = vpop.f32.mrf.mxu0
        %v10735 = vpop.f32.mrf.mxu0
        %v10736 = vadd.f32 %v10607, %v10735
        %v10737 = vpop.f32.mrf.mxu0
        %10738 = vmatprep.mubr.bf16.mxu0 0
        %10739 = vmatmul.mubr.bf16.gmra.mxu0 %v10352
        %v10740 = vpop.f32.mrf.mxu0
        %v10741 = vadd.f32 %v10612, %v10740
        %v10742 = vpop.f32.mrf.mxu0
        %v10743 = vpop.f32.mrf.mxu0
        %v10744 = vadd.f32 %v10615, %v10743
        %v10745 = vpop.f32.mrf.mxu0
        %10746 = vmatprep.mubr.bf16.mxu0 0
        %10747 = vmatmul.mubr.bf16.gmra.mxu0 %v10353
        %v10748 = vpop.f32.mrf.mxu0
        %v10749 = vadd.f32 %v10620, %v10748
        %v10750 = vpop.f32.mrf.mxu0
        %v10751 = vpop.f32.mrf.mxu0
        %v10752 = vadd.f32 %v10623, %v10751
        %v10753 = vpop.f32.mrf.mxu0
        %10754 = vmatprep.mubr.bf16.mxu0 0
        %10755 = vmatmul.mubr.bf16.gmra.mxu0 %v10354
        %v10756 = vpop.f32.mrf.mxu0
        %v10757 = vadd.f32 %v10628, %v10756
        %v10758 = vpop.f32.mrf.mxu0
        %v10759 = vpop.f32.mrf.mxu0
        %v10760 = vadd.f32 %v10631, %v10759
        %v10761 = vpop.f32.mrf.mxu0
        %10762 = vmatprep.mubr.bf16.mxu0 0
        %10763 = vmatmul.mubr.bf16.gmra.mxu0 %v10355
        %v10764 = vpop.f32.mrf.mxu0
        %v10765 = vadd.f32 %v10636, %v10764
        %v10766 = vpop.f32.mrf.mxu0
        %v10767 = vpop.f32.mrf.mxu0
        %v10768 = vadd.f32 %v10639, %v10767
        %v10769 = vpop.f32.mrf.mxu0
        %10770 = vmatprep.mubr.bf16.mxu0 0
        %10771 = vmatmul.mubr.bf16.gmra.mxu0 %v10356
        %v10772 = vpop.f32.mrf.mxu0
        %v10773 = vadd.f32 %v10644, %v10772
        %v10774 = vpop.f32.mrf.mxu0
        %v10775 = vpop.f32.mrf.mxu0
        %v10776 = vadd.f32 %v10647, %v10775
        %v10777 = vpop.f32.mrf.mxu0
        %10778 = vmatprep.mubr.bf16.mxu0 0
        %10779 = vmatmul.mubr.bf16.gmra.mxu0 %v10357
        %v10780 = vpop.f32.mrf.mxu0
        %v10781 = vadd.f32 %v10652, %v10780
        %v10782 = vpop.f32.mrf.mxu0
        %v10783 = vpop.f32.mrf.mxu0
        %v10784 = vadd.f32 %v10655, %v10783
        %v10785 = vpop.f32.mrf.mxu0
        %10786 = vmatprep.mubr.bf16.mxu0 0
        %10787 = vmatmul.mubr.bf16.gmra.mxu0 %v10358
        %v10788 = vpop.f32.mrf.mxu0
        %v10789 = vadd.f32 %v10660, %v10788
        %v10790 = vpop.f32.mrf.mxu0
        %v10791 = vpop.f32.mrf.mxu0
        %v10792 = vadd.f32 %v10663, %v10791
        %v10793 = vpop.f32.mrf.mxu0
        %10794 = vmatprep.mubr.bf16.mxu0 0
        %10795 = vmatmul.mubr.bf16.gmra.mxu0 %v10359
        %v10796 = vpop.f32.mrf.mxu0
        %v10797 = vadd.f32 %v10668, %v10796
        %v10798 = vpop.f32.mrf.mxu0
        %v10799 = vpop.f32.mrf.mxu0
        %v10800 = vadd.f32 %v10671, %v10799
        %v10801 = vpop.f32.mrf.mxu0
        %10802 = vmatprep.mubr.bf16.mxu0 0
        %10803 = vmatmul.mubr.bf16.gmra.mxu0 %v10360
        %v10804 = vpop.f32.mrf.mxu0
        %v10805 = vadd.f32 %v10676, %v10804
        %v10806 = vpop.f32.mrf.mxu0
        %v10807 = vpop.f32.mrf.mxu0
        %v10808 = vadd.f32 %v10679, %v10807
        %v10809 = vpop.f32.mrf.mxu0
        %10810 = vmatprep.mubr.bf16.mxu0 0
        %10811 = vmatmul.mubr.bf16.gmra.mxu0 %v10361
        %v10812 = vpop.f32.mrf.mxu0
        %v10813 = vadd.f32 %v10684, %v10812
        %v10814 = vpop.f32.mrf.mxu0
        %v10815 = vpop.f32.mrf.mxu0
        %v10816 = vadd.f32 %v10687, %v10815
        %v10817 = vpop.f32.mrf.mxu0
        %10818 = vdwg.mxu0
        %v10819 = vmax.f32 %v10725, 0.0
        %v10820 = vmax.f32 %v10728, 0.0
        %v10821 = vmax.f32 %v10733, 0.0
        %v10822 = vmax.f32 %v10736, 0.0
        %v10823 = vmax.f32 %v10741, 0.0
        %v10824 = vmax.f32 %v10744, 0.0
        %v10825 = vmax.f32 %v10749, 0.0
        %v10826 = vmax.f32 %v10752, 0.0
        %v10827 = vmax.f32 %v10757, 0.0
        %v10828 = vmax.f32 %v10760, 0.0
        %v10829 = vmax.f32 %v10765, 0.0
        %v10830 = vmax.f32 %v10768, 0.0
        %v10831 = vmax.f32 %v10773, 0.0
        %v10832 = vmax.f32 %v10776, 0.0
        %v10833 = vmax.f32 %v10781, 0.0
        %v10834 = vmax.f32 %v10784, 0.0
        %v10835 = vmax.f32 %v10789, 0.0
        %v10836 = vmax.f32 %v10792, 0.0
        %v10837 = vmax.f32 %v10797, 0.0
        %v10838 = vmax.f32 %v10800, 0.0
        %v10839 = vmax.f32 %v10805, 0.0
        %v10840 = vmax.f32 %v10808, 0.0
        %v10841 = vmax.f32 %v10813, 0.0
        %v10842 = vmax.f32 %v10816, 0.0
        %v10843 = vmul.f32 %v10819, %v1107
        %v10844 = vmul.f32 %v10820, %v1108
        %v10845 = vmul.f32 %v10821, %v1109
        %v10846 = vmul.f32 %v10822, %v1110
        %v10847 = vmul.f32 %v10823, %v1111
        %v10848 = vmul.f32 %v10824, %v1112
        %v10849 = vmul.f32 %v10825, %v1113
        %v10850 = vmul.f32 %v10826, %v1114
        %v10851 = vmul.f32 %v10827, %v1115
        %v10852 = vmul.f32 %v10828, %v1116
        %v10853 = vmul.f32 %v10829, %v1117
        %v10854 = vmul.f32 %v10830, %v1118
        %v10855 = vmul.f32 %v10831, %v1119
        %v10856 = vmul.f32 %v10832, %v1120
        %v10857 = vmul.f32 %v10833, %v1121
        %v10858 = vmul.f32 %v10834, %v1122
        %v10859 = vmul.f32 %v10835, %v1123
        %v10860 = vmul.f32 %v10836, %v1124
        %v10861 = vmul.f32 %v10837, %v1125
        %v10862 = vmul.f32 %v10838, %v1126
        %v10863 = vmul.f32 %v10839, %v1127
        %v10864 = vmul.f32 %v10840, %v1128
        %v10865 = vmul.f32 %v10841, %v1129
        %v10866 = vmul.f32 %v10842, %v1130
        %v10867 = vadd.f32 %v10843, %v9192
        %v10868 = vadd.f32 %v10844, %v9193
        %v10869 = vadd.f32 %v10845, %v9194
        %v10870 = vadd.f32 %v10846, %v9195
        %v10871 = vadd.f32 %v10847, %v9196
        %v10872 = vadd.f32 %v10848, %v9197
        %v10873 = vadd.f32 %v10849, %v9198
        %v10874 = vadd.f32 %v10850, %v9199
        %v10875 = vadd.f32 %v10851, %v9200
        %v10876 = vadd.f32 %v10852, %v9201
        %v10877 = vadd.f32 %v10853, %v9202
        %v10878 = vadd.f32 %v10854, %v9203
        %v10879 = vadd.f32 %v10855, %v9204
        %v10880 = vadd.f32 %v10856, %v9205
        %v10881 = vadd.f32 %v10857, %v9206
        %v10882 = vadd.f32 %v10858, %v9207
        %v10883 = vadd.f32 %v10859, %v9208
        %v10884 = vadd.f32 %v10860, %v9209
        %v10885 = vadd.f32 %v10861, %v9210
        %v10886 = vadd.f32 %v10862, %v9211
        %v10887 = vadd.f32 %v10863, %v9212
        %v10888 = vadd.f32 %v10864, %v9213
        %v10889 = vadd.f32 %v10865, %v9214
        %v10890 = vadd.f32 %v10866, %v9215
        %v10891 = vmax.f32 %v10867, 0.0
        %v10892 = vmax.f32 %v10868, 0.0
        %v10893 = vmax.f32 %v10869, 0.0
        %v10894 = vmax.f32 %v10870, 0.0
        %v10895 = vmax.f32 %v10871, 0.0
        %v10896 = vmax.f32 %v10872, 0.0
        %v10897 = vmax.f32 %v10873, 0.0
        %v10898 = vmax.f32 %v10874, 0.0
        %v10899 = vmax.f32 %v10875, 0.0
        %v10900 = vmax.f32 %v10876, 0.0
        %v10901 = vmax.f32 %v10877, 0.0
        %v10902 = vmax.f32 %v10878, 0.0
        %v10903 = vmax.f32 %v10879, 0.0
        %v10904 = vmax.f32 %v10880, 0.0
        %v10905 = vmax.f32 %v10881, 0.0
        %v10906 = vmax.f32 %v10882, 0.0
        %v10907 = vmax.f32 %v10883, 0.0
        %v10908 = vmax.f32 %v10884, 0.0
        %v10909 = vmax.f32 %v10885, 0.0
        %v10910 = vmax.f32 %v10886, 0.0
        %v10911 = vmax.f32 %v10887, 0.0
        %v10912 = vmax.f32 %v10888, 0.0
        %v10913 = vmax.f32 %v10889, 0.0
        %v10914 = vmax.f32 %v10890, 0.0
        %v10915 = vadd.f32 %v10891, %v10892
        %v10916 = vadd.f32 %v10915, %v10893
        %v10917 = vadd.f32 %v10916, %v10894
        %v10918 = vadd.f32 %v10917, %v10895
        %v10919 = vadd.f32 %v10918, %v10896
        %v10920 = vadd.f32 %v10919, %v10897
        %v10921 = vadd.f32 %v10920, %v10898
        %v10922 = vadd.f32 %v10921, %v10899
        %v10923 = vadd.f32 %v10922, %v10900
        %v10924 = vadd.f32 %v10923, %v10901
        %v10925 = vadd.f32 %v10924, %v10902
        %v10926 = vadd.f32 %v10925, %v10903
        %v10927 = vadd.f32 %v10926, %v10904
        %v10928 = vadd.f32 %v10927, %v10905
        %v10929 = vadd.f32 %v10928, %v10906
        %v10930 = vadd.f32 %v10929, %v10907
        %v10931 = vadd.f32 %v10930, %v10908
        %v10932 = vadd.f32 %v10931, %v10909
        %v10933 = vadd.f32 %v10932, %v10910
        %v10934 = vadd.f32 %v10933, %v10911
        %v10935 = vadd.f32 %v10934, %v10912
        %v10936 = vadd.f32 %v10935, %v10913
        %v10937 = vadd.f32 %v10936, %v10914
        %v10938 = vrot.slane %v10937, 4
        %v10939 = vadd.f32 %v10937, %v10938
        %v10940 = vrot.slane %v10939, 2
        %v10941 = vadd.f32 %v10939, %v10940
        %v10942 = vrot.slane %v10941, 1
        %v10943 = vadd.f32 %v10941, %v10942
        %v10944 = vmul.f32 %v10943, 0.0056179776
        %v10945 = vld [vmem:[#allocation29] sm:$0xff]
        %v10946 = vld [vmem:[#allocation29 + $0x8] sm:$0xff]
        %v10947 = vld [vmem:[#allocation29 + $0x10] sm:$0xff]
        %v10948 = vld [vmem:[#allocation29 + $0x18] sm:$0xff]
        %v10949 = vld [vmem:[#allocation29 + $0x20] sm:$0xff]
        %v10950 = vld [vmem:[#allocation29 + $0x28] sm:$0xff]
        %v10951 = vld [vmem:[#allocation29 + $0x30] sm:$0xff]
        %v10952 = vld [vmem:[#allocation29 + $0x38] sm:$0xff]
        %v10953 = vld [vmem:[#allocation29 + $0x40] sm:$0xff]
        %v10954 = vld [vmem:[#allocation29 + $0x48] sm:$0xff]
        %v10955 = vld [vmem:[#allocation29 + $0x50] sm:$0xff]
        %v10956 = vld [vmem:[#allocation29 + $0x58] sm:$0xff]
        %v10957 = vld [vmem:[#allocation29 + $0x60] sm:$0xff]
        %v10958 = vld [vmem:[#allocation29 + $0x68] sm:$0xff]
        %v10959 = vld [vmem:[#allocation29 + $0x70] sm:$0xff]
        %v10960 = vld [vmem:[#allocation29 + $0x78] sm:$0xff]
        %v10961 = vld [vmem:[%s25] sm:$0x1]
        %10962 = vmatprep.subr.mxu0 0.0
        %10963 = vmatpush1.msra.mxu0 %v10960
        %10964 = vmatprep.subr.mxu0 0.0
        %10965 = vmatpush1.msra.mxu0 %v10959
        %10966 = vmatprep.subr.mxu0 0.0
        %10967 = vmatpush1.msra.mxu0 %v10958
        %10968 = vmatprep.subr.mxu0 0.0
        %10969 = vmatpush1.msra.mxu0 %v10957
        %10970 = vmatprep.subr.mxu0 0.0
        %10971 = vmatpush1.msra.mxu0 %v10956
        %10972 = vmatprep.subr.mxu0 0.0
        %10973 = vmatpush1.msra.mxu0 %v10955
        %10974 = vmatprep.subr.mxu0 0.0
        %10975 = vmatpush1.msra.mxu0 %v10954
        %10976 = vmatprep.subr.mxu0 0.0
        %10977 = vmatpush1.msra.mxu0 %v10953
        %10978 = vmatprep.subr.mxu0 0.0
        %10979 = vmatpush1.msra.mxu0 %v10952
        %10980 = vmatprep.subr.mxu0 0.0
        %10981 = vmatpush1.msra.mxu0 %v10951
        %10982 = vmatprep.subr.mxu0 0.0
        %10983 = vmatpush1.msra.mxu0 %v10950
        %10984 = vmatprep.subr.mxu0 0.0
        %10985 = vmatpush1.msra.mxu0 %v10949
        %10986 = vmatprep.subr.mxu0 0.0
        %10987 = vmatpush1.msra.mxu0 %v10948
        %10988 = vmatprep.subr.mxu0 0.0
        %10989 = vmatpush1.msra.mxu0 %v10947
        %10990 = vmatprep.subr.mxu0 0.0
        %10991 = vmatpush1.msra.mxu0 %v10946
        %10992 = vmatprep.subr.mxu0 0.0
        %10993 = vmatpush1.msra.mxu0 %v10945
        %10994 = vmatprep.subr.mxu0 0.0
        %10995 = vmatpush2.msra.mxu0 0.0
        %10996 = vmatprep.subr.mxu0 0.0
        %10997 = vmatpush2.msra.mxu0 0.0
        %10998 = vmatprep.subr.mxu0 0.0
        %10999 = vmatpush2.msra.mxu0 0.0
        %11000 = vmatprep.subr.mxu0 0.0
        %11001 = vmatpush2.msra.mxu0 0.0
        %11002 = vmatprep.subr.mxu0 0.0
        %11003 = vmatpush2.msra.mxu0 0.0
        %11004 = vmatprep.subr.mxu0 0.0
        %11005 = vmatpush2.msra.mxu0 0.0
        %11006 = vmatprep.subr.mxu0 0.0
        %11007 = vmatpush2.msra.mxu0 0.0
        %11008 = vmatprep.subr.mxu0 0.0
        %11009 = vmatpush2.msra.mxu0 0.0
        %11010 = vmatprep.subr.mxu0 0.0
        %11011 = vmatpush2.msra.mxu0 0.0
        %11012 = vmatprep.subr.mxu0 0.0
        %11013 = vmatpush2.msra.mxu0 0.0
        %11014 = vmatprep.subr.mxu0 0.0
        %11015 = vmatpush2.msra.mxu0 0.0
        %11016 = vmatprep.subr.mxu0 0.0
        %11017 = vmatpush2.msra.mxu0 0.0
        %11018 = vmatprep.subr.mxu0 0.0
        %11019 = vmatpush2.msra.mxu0 0.0
        %11020 = vmatprep.subr.mxu0 0.0
        %11021 = vmatpush2.msra.mxu0 0.0
        %11022 = vmatprep.subr.mxu0 0.0
        %11023 = vmatpush2.msra.mxu0 0.0
        %11024 = vmatprep.subr.mxu0 0.0
        %11025 = vmatpush2.msra.mxu0 0.0
        %11026 = vmatprep.mubr.f32.mxu0 0.0
        %11027 = vmatmul.mubr.f32.gmra.mxu0 %v10944
        %v11028 = vpop.f32.mrf.mxu0
        %v11029 = vadd.f32 %v10961, %v11028
        %v11030 = vpop.f32.mrf.mxu0
        %11031 = vdwg.mxu0
        %vm11032 = vcmask 1040384
        %v11033 = vsel %vm11032, %v11029, -inf
        %11034 = vmax.xlane.f32.xlu0 %v11033
        %v11035 = vpop.xlane.xlu0 %11034
        %v11036 = vsub.f32 %v11029, %v11035
        %v11037 = vmul.f32 %v11036, 1.442695
        %v11038 = vpow.pop %v11037
        %v11039 = vsel %vm11032, %v11038, 0.0
        %11040 = vadd.xlane.f32.xlu0 %v11039
        %v11041 = vpop.xlane.xlu0 %11040
        %v11042 = vrcp.pop %v11041
        %v11043 = vmul.f32 %v11038, %v11042
        %11044 = vst [vmem:[%s1026] sm:$0x1] %v11043
        %s11045 = sand.u32 %s609, 1
        %s11046 = scalar_lea.sflag [#allocation4], %s11045
        %s11047 = sand.u32 %s609, 1
        %s11048 = scalar_lea.vmem [#allocation31], %s11047
        // Predicated region
        $region197: #{resnet_forward.1} parent=123 // pred_check
          %p11049 = pneg %p619
        $region198: #{resnet_forward.1} parent=123 // pred_check_branch
          %11051 = sbr.rel (%p11049) target = $region200
        $region199: #{resnet_forward.1} parent=123 // pred_region
          %s11053 = ssub.s32 16, 16
          %11054 = vsyncadd %s11046, %s11053
          %s11055 = smul.addr %s50, 16
          %s11056 = scalar_lea.hbm %s26, %s11055
          %s11058 = sshll.u32 %s11048, 4
          %s11059 = int_to_ptr.vmem [resolvable:$true] %s11058
          %11061 = dma.vmem_to_hbm [thread:$0]  %s11059, 16, %s11056, %s11046
        $region200: #{resnet_forward.1} parent=123 // pred_fallthru
          _
      $region124: #{resnet_forward.1} parent=5 // pred_fallthru
        _
      %p11062 = scmp.le.s32.totalorder 2, %s45
      // Predicated region
      $region201: #{resnet_forward.1} parent=5 // pred_check
        %p11063 = pneg %p11062
      $region202: #{resnet_forward.1} parent=5 // pred_check_branch
        %11065 = sbr.rel (%p11063) target = $region204
      $region203: #{resnet_forward.1} parent=5 // pred_region
        %s11066 = ssub.s32 %s45, 2
        // Predicated region
        $region205: #{resnet_forward.1} parent=203 // pred_check
          %p11067 = pneg %p625
        $region206: #{resnet_forward.1} parent=203 // pred_check_branch
          %11069 = sbr.rel (%p11067) target = $region208
        $region207: #{resnet_forward.1} parent=203 // pred_region
          %s11070 = sand.u32 %s610, 1
          %s11071 = scalar_lea.sflag [#allocation4], %s11070
          %s11072 = sand.u32 %s610, 1
          %s11073 = scalar_lea.vmem [#allocation31], %s11072
          %11074 = dma.done %s11071, 16
        $region208: #{resnet_forward.1} parent=203 // pred_fallthru
          _
      $region204: #{resnet_forward.1} parent=5 // pred_fallthru
        _
    $region6: #{resnet_forward.1} parent=1 // loop_footer
      %s49 = sadd.s32 1, %s45
    $region7: #{resnet_forward.1} parent=1 // loop_footer_branch
      %44 = sbr.rel target = $region3
    $region8: #{resnet_forward.1} parent=1 // loop_exit
      _
    %11075 = vsyncpa [#allocation3], 1
    %s11076 = scalar_lea.sflag [#allocation3], 1
    %11077 = vsyncpa %s11076, 1
    %11078 = vsyncpa [#allocation6], 1
    %11079 = vsyncpa [#allocation9], 1
    %11080 = vsyncpa [#allocation12], 1
    %11081 = vsyncpa [#allocation15], 1
    %11082 = vsyncpa [#allocation18], 1
    %11083 = vsyncpa [#allocation21], 1
    %11084 = vsyncpa [#allocation24], 1
    %11085 = vsyncpa [#allocation27], 1
    %11086 = vsyncpa [#allocation30], 1
    %11087 = vsyncpa [#allocation4], 1
    %s11088 = scalar_lea.sflag [#allocation4], 1
    %11089 = vsyncpa %s11088, 1

</llo_original>
